<compile_context>
chip_gen: v7x
topology: tpu7x:2x2x1
jax: 0.10.0
libtpu: 0.0.40
codegen_flags: <defaults>
</compile_context>

<pallas_src>
import numpy as np
import jax
import jax.numpy as jnp
from jax import lax
from jax.experimental import pallas as pl
from jax.experimental.pallas import tpu as pltpu


# ------------------------------ helpers ------------------------------

def _pick_tm(M, cap):
    if M <= cap:
        return M
    for t in range(cap, 7, -8):
        if M % t == 0:
            return t
    return M


# ------------------------------ Pallas kernels ------------------------------

def _gemm_bias_kernel(x_ref, w_ref, b_ref, o_ref):
    y = jnp.dot(x_ref[...], w_ref[...], preferred_element_type=jnp.float32)
    o_ref[...] = (y + b_ref[...]).astype(o_ref.dtype)


def gemm_bias(x, w, b_row, *, out_dtype=jnp.bfloat16, tm_cap=512):
    """y[M, N] = x[M, K] @ w[K, N] + b_row[1, N]  (bf16 operands, f32 accum)."""
    x = x.astype(jnp.bfloat16)
    w = w.astype(jnp.bfloat16)
    M, K = x.shape
    Kw, Nc = w.shape
    assert K == Kw
    tm = _pick_tm(M, tm_cap)
    return pl.pallas_call(
        _gemm_bias_kernel,
        out_shape=jax.ShapeDtypeStruct((M, Nc), out_dtype),
        grid_spec=pltpu.PrefetchScalarGridSpec(
            num_scalar_prefetch=0, grid=(M // tm,),
            in_specs=[pl.BlockSpec((tm, K), lambda i: (i, 0)),
                      pl.BlockSpec((K, Nc), lambda i: (0, 0)),
                      pl.BlockSpec((1, Nc), lambda i: (0, 0))],
            out_specs=pl.BlockSpec((tm, Nc), lambda i: (i, 0))),
        compiler_params=pltpu.CompilerParams(
            dimension_semantics=("parallel",)),
    )(x, w, b_row.astype(jnp.float32))


def _gemm_stats_kernel(x_ref, w_ref, o_ref, sum_ref, sq_ref):
    # GEMM with fused per-channel sum / sum-of-squares epilogue (BN stats).
    y = jnp.dot(x_ref[...], w_ref[...], preferred_element_type=jnp.float32)
    o_ref[...] = y

    @pl.when(pl.program_id(0) == 0)
    def _():
        sum_ref[...] = jnp.zeros_like(sum_ref)
        sq_ref[...] = jnp.zeros_like(sq_ref)

    sum_ref[...] += jnp.sum(y, axis=0, keepdims=True)
    sq_ref[...] += jnp.sum(y * y, axis=0, keepdims=True)


def gemm_with_channel_stats(x, w, *, tm_cap=512):
    """Returns (y[M, N] f32, col_sum[1, N], col_sumsq[1, N])."""
    x = x.astype(jnp.bfloat16)
    w = w.astype(jnp.bfloat16)
    M, K = x.shape
    Kw, Nc = w.shape
    assert K == Kw
    tm = _pick_tm(M, tm_cap)
    return pl.pallas_call(
        _gemm_stats_kernel,
        out_shape=(jax.ShapeDtypeStruct((M, Nc), jnp.float32),
                   jax.ShapeDtypeStruct((1, Nc), jnp.float32),
                   jax.ShapeDtypeStruct((1, Nc), jnp.float32)),
        grid_spec=pltpu.PrefetchScalarGridSpec(
            num_scalar_prefetch=0, grid=(M // tm,),
            in_specs=[pl.BlockSpec((tm, K), lambda i: (i, 0)),
                      pl.BlockSpec((K, Nc), lambda i: (0, 0))],
            out_specs=(pl.BlockSpec((tm, Nc), lambda i: (i, 0)),
                       pl.BlockSpec((1, Nc), lambda i: (0, 0)),
                       pl.BlockSpec((1, Nc), lambda i: (0, 0)))),
        compiler_params=pltpu.CompilerParams(
            dimension_semantics=("arbitrary",)),   # stats accumulate across grid
    )(x, w)


def _make_bn_kernel(eps, clip6):
    def kernel(x_ref, m_ref, v_ref, o_ref):
        scale = lax.rsqrt(v_ref[...] + eps)            # EUP rsqrt, gamma=1
        y = (x_ref[...].astype(jnp.float32) - m_ref[...]) * scale
        if clip6:
            y = jnp.clip(y, 0.0, 6.0)
        o_ref[...] = y.astype(o_ref.dtype)
    return kernel


def bn_act_apply(x, mean_row, var_row, *, clip6, out_dtype, eps=1e-5, tm_cap=1024):
    """BatchNorm(+optional ReLU6) on x[M, C] with per-channel mean/var rows.

    Folds rows so the kernel works on a [M/fold, fold*C] view with a 128-wide
    lane dimension (unmasked full-vreg loads/stores)."""
    M, C = x.shape
    fold = 1
    if C < 128 and 128 % C == 0 and M % (128 // C) == 0:
        fold = 128 // C
    xw = x.reshape(M // fold, fold * C)                 # free row-major reshape
    mw = jnp.tile(mean_row, (1, fold))
    vw = jnp.tile(var_row, (1, fold))
    Mr, Cw = xw.shape
    tm = _pick_tm(Mr, tm_cap)
    out = pl.pallas_call(
        _make_bn_kernel(float(eps), bool(clip6)),
        out_shape=jax.ShapeDtypeStruct((Mr, Cw), out_dtype),
        grid_spec=pltpu.PrefetchScalarGridSpec(
            num_scalar_prefetch=0, grid=(Mr // tm,),
            in_specs=[pl.BlockSpec((tm, Cw), lambda i: (i, 0)),
                      pl.BlockSpec((1, Cw), lambda i: (0, 0)),
                      pl.BlockSpec((1, Cw), lambda i: (0, 0))],
            out_specs=pl.BlockSpec((tm, Cw), lambda i: (i, 0))),
        compiler_params=pltpu.CompilerParams(
            dimension_semantics=("parallel",)),
    )(xw, mw, vw)
    return out.reshape(M, C)


# ----------------------- XLA glue: im2col / phase packing -----------------------

def _im2col_3x3x3(x):  # x: [N, D, H, W, C] -> [N*D*H*W, 27*C]
    N, D, H, W, C = x.shape
    xp = jnp.pad(x, ((0, 0), (1, 1), (1, 1), (1, 1), (0, 0)))
    cols = []
    for dd in range(3):
        for dh in range(3):
            for dw in range(3):
                cols.append(xp[:, dd:dd + D, dh:dh + H, dw:dw + W, :])
    col = jnp.stack(cols, axis=4)                 # [N, D, H, W, 27, C]
    return col.reshape(N * D * H * W, 27 * C)


def _phases_to_spatial(Y, N, D, H, W, C):
    # Y: [N*D*H*W, 8*C], column = ((rd*2+rh)*2+rw)*C + c  ->  [N, 2D, 2H, 2W, C]
    Y = Y.reshape(N, D, H, W, 2, 2, 2, C)
    Y = Y.transpose(0, 1, 4, 2, 5, 3, 6, 7)
    return Y.reshape(N, 2 * D, 2 * H, 2 * W, C)


# ConvTranspose3d(k=4, s=2, p=1): output od = 2*q + r gets contributions from
# input positions q + delta with kernel tap k = r - 2*delta + 1 when 0<=k<=3:
#   r=0: (delta=-1, k=3), (delta=0, k=1);   r=1: (delta=0, k=2), (delta=+1, k=0)
def _build_up_weight_matrix(Wup):  # torch ConvTranspose3d layout [Cin, Cout, 4,4,4]
    Wnp = np.asarray(Wup, np.float32)
    Cin, Cout = Wnp.shape[0], Wnp.shape[1]

    def tap(r, d):
        k = r - 2 * d + 1
        return k if 0 <= k <= 3 else None

    Wbig = np.zeros((27 * Cin, 8 * Cout), np.float32)
    for rd in range(2):
        for rh in range(2):
            for rw in range(2):
                phase = (rd * 2 + rh) * 2 + rw
                for dd in range(3):
                    kd = tap(rd, dd - 1)
                    if kd is None:
                        continue
                    for dh in range(3):
                        kh = tap(rh, dh - 1)
                        if kh is None:
                            continue
                        for dw in range(3):
                            kw = tap(rw, dw - 1)
                            if kw is None:
                                continue
                            off = (dd * 3 + dh) * 3 + dw
                            Wbig[off * Cin:(off + 1) * Cin,
                                 phase * Cout:(phase + 1) * Cout] = Wnp[:, :, kd, kh, kw]
    return Wbig


def _build_conv3_weight_matrix(W):  # torch Conv3d layout [Cout, Cin, 3,3,3]
    Wnp = np.asarray(W, np.float32)
    Cout, Cin = Wnp.shape[0], Wnp.shape[1]
    return np.transpose(Wnp, (2, 3, 4, 1, 0)).reshape(27 * Cin, Cout)


# ------------------------------ forward pass ------------------------------

def unet_block_forward(x_ncdhw, params, eps=1e-5):
    # NCDHW in/out; NDHWC (channels-last) internally.
    x = jnp.transpose(x_ncdhw, (0, 2, 3, 4, 1)).astype(jnp.float32)
    N, D, H, W, Cin = x.shape
    Cout = params['W2mat'].shape[1]

    # 1) ConvTranspose3d(cin->cin, k=4, s=2, p=1, bias) as a phase-layout GEMM.
    xcol = _im2col_3x3x3(x)
    brow = jnp.tile(params['bup'], 8)[None, :]
    Y = gemm_bias(xcol, params['WupMat'], brow, out_dtype=jnp.bfloat16)
    u = _phases_to_spatial(Y, N, D, H, W, Cin)         # [N, 2D, 2H, 2W, Cin] bf16

    Mb = N * 8 * D * H * W

    # 2) Conv3d(cin->cin, 3x3x3, no bias) + BN + ReLU6 (stats fused in GEMM).
    ucol = _im2col_3x3x3(u)
    Z1, s1, q1 = gemm_with_channel_stats(ucol, params['W1mat'])
    mean1 = s1 / Mb
    var1 = jnp.maximum(q1 / Mb - mean1 * mean1, 0.0)   # training-mode (biased) var
    A1 = bn_act_apply(Z1, mean1, var1, clip6=True, out_dtype=jnp.bfloat16, eps=eps)
    A1 = A1.reshape(N, 2 * D, 2 * H, 2 * W, Cin)

    # 3) Conv3d(cin->cout, 3x3x3, no bias) + BN.
    acol = _im2col_3x3x3(A1)
    Z2, s2, q2 = gemm_with_channel_stats(acol, params['W2mat'])
    mean2 = s2 / Mb
    var2 = jnp.maximum(q2 / Mb - mean2 * mean2, 0.0)
    out = bn_act_apply(Z2, mean2, var2, clip6=False, out_dtype=jnp.float32, eps=eps)
    out = out.reshape(N, 2 * D, 2 * H, 2 * W, Cout)
    return jnp.transpose(out, (0, 4, 1, 2, 3))         # back to NCDHW


# ------------------------------ pure-JAX reference ------------------------------

def reference_forward(x_ncdhw, params, eps=1e-5):
    def bn(y):
        mean = jnp.mean(y, axis=(0, 2, 3, 4), keepdims=True)
        var = jnp.mean((y - mean) ** 2, axis=(0, 2, 3, 4), keepdims=True)
        return (y - mean) / jnp.sqrt(var + eps)

    # ConvTranspose3d(cin, cin, 4, stride=2, padding=1, bias=True)
    w_conv = jnp.flip(params['Wup'], axis=(2, 3, 4)).transpose(1, 0, 2, 3, 4)
    y = lax.conv_general_dilated(
        x_ncdhw, w_conv, window_strides=(1, 1, 1), padding=[(2, 2)] * 3,
        lhs_dilation=(2, 2, 2),
        dimension_numbers=('NCDHW', 'OIDHW', 'NCDHW'),
        precision=lax.Precision.HIGHEST)
    y = y + params['bup'][None, :, None, None, None]

    # Conv3d(cin, cin, 3, padding=1, bias=False) + BN + ReLU6
    z = lax.conv_general_dilated(
        y, params['W1'], window_strides=(1, 1, 1), padding=[(1, 1)] * 3,
        dimension_numbers=('NCDHW', 'OIDHW', 'NCDHW'),
        precision=lax.Precision.HIGHEST)
    z = jnp.clip(bn(z), 0.0, 6.0)

    # Conv3d(cin, cout, 3, padding=1, bias=False) + BN
    o = lax.conv_general_dilated(
        z, params['W2'], window_strides=(1, 1, 1), padding=[(1, 1)] * 3,
        dimension_numbers=('NCDHW', 'OIDHW', 'NCDHW'),
        precision=lax.Precision.HIGHEST)
    return bn(o)


# ------------------------------------ main ------------------------------------

if __name__ == "__main__":
    cin, cout = 32, 16
    N, D, H, W = 2, 4, 4, 4

    key = jax.random.PRNGKey(0)
    k1, k2, k3, k4, kx = jax.random.split(key, 5)
    Wup = 0.05 * jax.random.normal(k1, (cin, cin, 4, 4, 4), jnp.float32)   # ConvT3d weight
    bup = 0.10 * jax.random.normal(k2, (cin,), jnp.float32)                # ConvT3d bias
    W1 = 0.05 * jax.random.normal(k3, (cin, cin, 3, 3, 3), jnp.float32)    # Conv3d weight
    W2 = 0.05 * jax.random.normal(k4, (cout, cin, 3, 3, 3), jnp.float32)   # Conv3d weight

    params = {
        # original (torch-layout, f32) weights for the reference
        'Wup': Wup, 'bup': bup, 'W1': W1, 'W2': W2,
        # packed bf16 GEMM weight matrices for the Pallas kernels
        'WupMat': jnp.asarray(_build_up_weight_matrix(Wup), jnp.bfloat16),
        'W1mat': jnp.asarray(_build_conv3_weight_matrix(W1), jnp.bfloat16),
        'W2mat': jnp.asarray(_build_conv3_weight_matrix(W2), jnp.bfloat16),
    }

    x = jax.random.normal(kx, (N, cin, D, H, W), jnp.float32)

    fwd = jax.jit(unet_block_forward)
    out = jax.block_until_ready(fwd(x, params))
    assert out.shape == (N, cout, 2 * D, 2 * H, 2 * W) and out.dtype == jnp.float32

    ref = jax.block_until_ready(jax.jit(reference_forward)(x, params))
    # bf16 MXU operands with f32 accumulation vs an f32 HIGHEST-precision reference.
    np.testing.assert_allclose(np.asarray(out), np.asarray(ref), rtol=5e-2, atol=1e-1)
    print("KERNEL_OK")
</pallas_src>

<mosaic_0001>
module attributes {stable_mosaic.version = 11 : i64} {
  func.func @_gemm_bias_kernel(%arg0: i32, %arg1: memref<128x864xbf16, #tpu.memory_space<vmem>>, %arg2: memref<864x256xbf16, #tpu.memory_space<vmem>>, %arg3: memref<1x256xf32, #tpu.memory_space<vmem>>, %arg4: memref<128x256xbf16, #tpu.memory_space<vmem>>) attributes {dimension_semantics = [#tpu.dimension_semantics<parallel>], iteration_bounds = array<i64: 1>, scalar_prefetch = 0 : i64, scratch_operands = 0 : i64, tpu.core_type = #tpu.core_type<tc>, window_params = [{transform_indices = @transform_0, window_bounds = array<i64: 128, 864>}, {pipeline_mode = #tpu.pipeline_mode<synchronous>, transform_indices = @transform_1, window_bounds = array<i64: 864, 256>}, {pipeline_mode = #tpu.pipeline_mode<synchronous>, transform_indices = @transform_2, window_bounds = array<i64: 1, 256>}, {transform_indices = @transform_3, window_bounds = array<i64: 128, 256>}]} {
    %c0 = arith.constant 0 : index
    %c0_0 = arith.constant 0 : index
    %0 = vector.load %arg1[%c0, %c0_0] : memref<128x864xbf16, #tpu.memory_space<vmem>>, vector<128x864xbf16>
    %c0_1 = arith.constant 0 : index
    %c0_2 = arith.constant 0 : index
    %1 = vector.load %arg2[%c0_1, %c0_2] : memref<864x256xbf16, #tpu.memory_space<vmem>>, vector<864x256xbf16>
    %cst = arith.constant dense<0.000000e+00> : vector<128x256xf32>
    %2 = tpu.matmul %0, %1, %cst {dimension_numbers = #tpu.dot_dimension_numbers<[1], [0], [0], [1], [0, 0, 1, 1], [], []>} : vector<128x864xbf16>, vector<864x256xbf16>, vector<128x256xf32> -> vector<128x256xf32>
    %c0_3 = arith.constant 0 : index
    %c0_4 = arith.constant 0 : index
    %3 = vector.load %arg3[%c0_3, %c0_4] : memref<1x256xf32, #tpu.memory_space<vmem>>, vector<1x256xf32>
    %4 = vector.broadcast %3 : vector<1x256xf32> to vector<128x256xf32>
    %5 = arith.addf %2, %4 : vector<128x256xf32>
    %6 = arith.truncf %5 : vector<128x256xf32> to vector<128x256xbf16>
    %c0_5 = arith.constant 0 : index
    %c0_6 = arith.constant 0 : index
    %7 = vector.load %arg4[%c0_5, %c0_6] : memref<128x256xbf16, #tpu.memory_space<vmem>>, vector<128x256xbf16>
    tpu.vector_store %arg4[%c0_5, %c0_6], %6 {strides = array<i32>} : memref<128x256xbf16, #tpu.memory_space<vmem>>, vector<128x256xbf16>,
    return
  }
  func.func @transform_0(%arg0: i32) -> (i32, i32) {
    %c0_i32 = arith.constant 0 : i32
    %c0_i32_0 = arith.constant 0 : i32
    return %arg0, %c0_i32 : i32, i32
  }
  func.func @transform_1(%arg0: i32) -> (i32, i32) {
    %c0_i32 = arith.constant 0 : i32
    %c0_i32_0 = arith.constant 0 : i32
    %c0_i32_1 = arith.constant 0 : i32
    return %c0_i32, %c0_i32_0 : i32, i32
  }
  func.func @transform_2(%arg0: i32) -> (i32, i32) {
    %c0_i32 = arith.constant 0 : i32
    %c0_i32_0 = arith.constant 0 : i32
    %c0_i32_1 = arith.constant 0 : i32
    return %c0_i32, %c0_i32_0 : i32, i32
  }
  func.func @transform_3(%arg0: i32) -> (i32, i32) {
    %c0_i32 = arith.constant 0 : i32
    %c0_i32_0 = arith.constant 0 : i32
    return %arg0, %c0_i32 : i32, i32
  }
}

module attributes {stable_mosaic.version = 11 : i64} {
  func.func @_gemm_stats_kernel(%arg0: i32, %arg1: memref<512x864xbf16, #tpu.memory_space<vmem>>, %arg2: memref<864x32xbf16, #tpu.memory_space<vmem>>, %arg3: memref<512x32xf32, #tpu.memory_space<vmem>>, %arg4: memref<1x32xf32, #tpu.memory_space<vmem>>, %arg5: memref<1x32xf32, #tpu.memory_space<vmem>>) attributes {dimension_semantics = [#tpu.dimension_semantics<arbitrary>], iteration_bounds = array<i64: 2>, scalar_prefetch = 0 : i64, scratch_operands = 0 : i64, tpu.core_type = #tpu.core_type<tc>, window_params = [{transform_indices = @transform_0, window_bounds = array<i64: 512, 864>}, {pipeline_mode = #tpu.pipeline_mode<synchronous>, transform_indices = @transform_1, window_bounds = array<i64: 864, 32>}, {transform_indices = @transform_2, window_bounds = array<i64: 512, 32>}, {pipeline_mode = #tpu.pipeline_mode<synchronous>, transform_indices = @transform_3, window_bounds = array<i64: 1, 32>}, {pipeline_mode = #tpu.pipeline_mode<synchronous>, transform_indices = @transform_4, window_bounds = array<i64: 1, 32>}]} {
    %c0 = arith.constant 0 : index
    %c0_0 = arith.constant 0 : index
    %0 = vector.load %arg1[%c0, %c0_0] : memref<512x864xbf16, #tpu.memory_space<vmem>>, vector<512x864xbf16>
    %c0_1 = arith.constant 0 : index
    %c0_2 = arith.constant 0 : index
    %1 = vector.load %arg2[%c0_1, %c0_2] : memref<864x32xbf16, #tpu.memory_space<vmem>>, vector<864x32xbf16>
    %cst = arith.constant dense<0.000000e+00> : vector<512x32xf32>
    %2 = tpu.matmul %0, %1, %cst {dimension_numbers = #tpu.dot_dimension_numbers<[1], [0], [0], [1], [0, 0, 1, 1], [], []>} : vector<512x864xbf16>, vector<864x32xbf16>, vector<512x32xf32> -> vector<512x32xf32>
    %c0_3 = arith.constant 0 : index
    %c0_4 = arith.constant 0 : index
    %3 = vector.load %arg3[%c0_3, %c0_4] : memref<512x32xf32, #tpu.memory_space<vmem>>, vector<512x32xf32>
    tpu.vector_store %arg3[%c0_3, %c0_4], %2 {strides = array<i32>} : memref<512x32xf32, #tpu.memory_space<vmem>>, vector<512x32xf32>,
    %c0_i32 = arith.constant 0 : i32
    %4 = arith.cmpi eq, %arg0, %c0_i32 : i32
    %5 = arith.extui %4 : i1 to i32
    %c0_i32_5 = arith.constant 0 : i32
    %6 = arith.cmpi ne, %5, %c0_i32_5 : i32
    scf.if %6 {
      %cst_16 = arith.constant 0.000000e+00 : f32
      %18 = vector.broadcast %cst_16 : f32 to vector<1x32xf32>
      %c0_17 = arith.constant 0 : index
      %c0_18 = arith.constant 0 : index
      %19 = vector.load %arg4[%c0_17, %c0_18] : memref<1x32xf32, #tpu.memory_space<vmem>>, vector<1x32xf32>
      tpu.vector_store %arg4[%c0_17, %c0_18], %18 {strides = array<i32>} : memref<1x32xf32, #tpu.memory_space<vmem>>, vector<1x32xf32>,
      %cst_19 = arith.constant 0.000000e+00 : f32
      %20 = vector.broadcast %cst_19 : f32 to vector<1x32xf32>
      %c0_20 = arith.constant 0 : index
      %c0_21 = arith.constant 0 : index
      %21 = vector.load %arg5[%c0_20, %c0_21] : memref<1x32xf32, #tpu.memory_space<vmem>>, vector<1x32xf32>
      tpu.vector_store %arg5[%c0_20, %c0_21], %20 {strides = array<i32>} : memref<1x32xf32, #tpu.memory_space<vmem>>, vector<1x32xf32>,
    } else {
    }
    %c0_6 = arith.constant 0 : index
    %c0_7 = arith.constant 0 : index
    %7 = vector.load %arg4[%c0_6, %c0_7] : memref<1x32xf32, #tpu.memory_space<vmem>>, vector<1x32xf32>
    %cst_8 = arith.constant dense<0.000000e+00> : vector<32xf32>
    %8 = vector.multi_reduction <add>, %2, %cst_8 [0] : vector<512x32xf32> to vector<32xf32>
    %9 = vector.shape_cast %8 : vector<32xf32> to vector<1x32xf32>
    %10 = arith.addf %7, %9 : vector<1x32xf32>
    %c0_9 = arith.constant 0 : index
    %c0_10 = arith.constant 0 : index
    %11 = vector.load %arg4[%c0_9, %c0_10] : memref<1x32xf32, #tpu.memory_space<vmem>>, vector<1x32xf32>
    tpu.vector_store %arg4[%c0_9, %c0_10], %10 {strides = array<i32>} : memref<1x32xf32, #tpu.memory_space<vmem>>, vector<1x32xf32>,
    %c0_11 = arith.constant 0 : index
    %c0_12 = arith.constant 0 : index
    %12 = vector.load %arg5[%c0_11, %c0_12] : memref<1x32xf32, #tpu.memory_space<vmem>>, vector<1x32xf32>
    %13 = arith.mulf %2, %2 : vector<512x32xf32>
    %cst_13 = arith.constant dense<0.000000e+00> : vector<32xf32>
    %14 = vector.multi_reduction <add>, %13, %cst_13 [0] : vector<512x32xf32> to vector<32xf32>
    %15 = vector.shape_cast %14 : vector<32xf32> to vector<1x32xf32>
    %16 = arith.addf %12, %15 : vector<1x32xf32>
    %c0_14 = arith.constant 0 : index
    %c0_15 = arith.constant 0 : index
    %17 = vector.load %arg5[%c0_14, %c0_15] : memref<1x32xf32, #tpu.memory_space<vmem>>, vector<1x32xf32>
    tpu.vector_store %arg5[%c0_14, %c0_15], %16 {strides = array<i32>} : memref<1x32xf32, #tpu.memory_space<vmem>>, vector<1x32xf32>,
    return
  }
  func.func @transform_0(%arg0: i32) -> (i32, i32) {
    %c0_i32 = arith.constant 0 : i32
    %c0_i32_0 = arith.constant 0 : i32
    return %arg0, %c0_i32 : i32, i32
  }
  func.func @transform_1(%arg0: i32) -> (i32, i32) {
    %c0_i32 = arith.constant 0 : i32
    %c0_i32_0 = arith.constant 0 : i32
    %c0_i32_1 = arith.constant 0 : i32
    return %c0_i32, %c0_i32_0 : i32, i32
  }
  func.func @transform_2(%arg0: i32) -> (i32, i32) {
    %c0_i32 = arith.constant 0 : i32
    %c0_i32_0 = arith.constant 0 : i32
    return %arg0, %c0_i32 : i32, i32
  }
  func.func @transform_3(%arg0: i32) -> (i32, i32) {
    %c0_i32 = arith.constant 0 : i32
    %c0_i32_0 = arith.constant 0 : i32
    %c0_i32_1 = arith.constant 0 : i32
    return %c0_i32, %c0_i32_0 : i32, i32
  }
  func.func @transform_4(%arg0: i32) -> (i32, i32) {
    %c0_i32 = arith.constant 0 : i32
    %c0_i32_0 = arith.constant 0 : i32
    %c0_i32_1 = arith.constant 0 : i32
    return %c0_i32, %c0_i32_0 : i32, i32
  }
}

module attributes {stable_mosaic.version = 11 : i64} {
  func.func @kernel(%arg0: i32, %arg1: memref<256x128xf32, #tpu.memory_space<vmem>>, %arg2: memref<1x128xf32, #tpu.memory_space<vmem>>, %arg3: memref<1x128xf32, #tpu.memory_space<vmem>>, %arg4: memref<256x128xbf16, #tpu.memory_space<vmem>>) attributes {dimension_semantics = [#tpu.dimension_semantics<parallel>], iteration_bounds = array<i64: 1>, scalar_prefetch = 0 : i64, scratch_operands = 0 : i64, tpu.core_type = #tpu.core_type<tc>, window_params = [{transform_indices = @transform_0, window_bounds = array<i64: 256, 128>}, {pipeline_mode = #tpu.pipeline_mode<synchronous>, transform_indices = @transform_1, window_bounds = array<i64: 1, 128>}, {pipeline_mode = #tpu.pipeline_mode<synchronous>, transform_indices = @transform_2, window_bounds = array<i64: 1, 128>}, {transform_indices = @transform_3, window_bounds = array<i64: 256, 128>}]} {
    %c0 = arith.constant 0 : index
    %c0_0 = arith.constant 0 : index
    %0 = vector.load %arg3[%c0, %c0_0] : memref<1x128xf32, #tpu.memory_space<vmem>>, vector<1x128xf32>
    %cst = arith.constant 9.99999974E-6 : f32
    %1 = vector.broadcast %cst : f32 to vector<1x128xf32>
    %2 = arith.addf %0, %1 : vector<1x128xf32>
    %3 = math.rsqrt %2 : vector<1x128xf32>
    %c0_1 = arith.constant 0 : index
    %c0_2 = arith.constant 0 : index
    %4 = vector.load %arg1[%c0_1, %c0_2] : memref<256x128xf32, #tpu.memory_space<vmem>>, vector<256x128xf32>
    %c0_3 = arith.constant 0 : index
    %c0_4 = arith.constant 0 : index
    %5 = vector.load %arg2[%c0_3, %c0_4] : memref<1x128xf32, #tpu.memory_space<vmem>>, vector<1x128xf32>
    %6 = vector.broadcast %5 : vector<1x128xf32> to vector<256x128xf32>
    %7 = arith.subf %4, %6 : vector<256x128xf32>
    %8 = vector.broadcast %3 : vector<1x128xf32> to vector<256x128xf32>
    %9 = arith.mulf %7, %8 : vector<256x128xf32>
    %cst_5 = arith.constant 0.000000e+00 : f32
    %cst_6 = arith.constant 6.000000e+00 : f32
    %10 = vector.broadcast %cst_5 : f32 to vector<256x128xf32>
    %11 = arith.maximumf %10, %9 : vector<256x128xf32>
    %12 = vector.broadcast %cst_6 : f32 to vector<256x128xf32>
    %13 = arith.minimumf %12, %11 : vector<256x128xf32>
    %14 = arith.truncf %13 : vector<256x128xf32> to vector<256x128xbf16>
    %c0_7 = arith.constant 0 : index
    %c0_8 = arith.constant 0 : index
    %15 = vector.load %arg4[%c0_7, %c0_8] : memref<256x128xbf16, #tpu.memory_space<vmem>>, vector<256x128xbf16>
    tpu.vector_store %arg4[%c0_7, %c0_8], %14 {strides = array<i32>} : memref<256x128xbf16, #tpu.memory_space<vmem>>, vector<256x128xbf16>,
    return
  }
  func.func @transform_0(%arg0: i32) -> (i32, i32) {
    %c0_i32 = arith.constant 0 : i32
    %c0_i32_0 = arith.constant 0 : i32
    return %arg0, %c0_i32 : i32, i32
  }
  func.func @transform_1(%arg0: i32) -> (i32, i32) {
    %c0_i32 = arith.constant 0 : i32
    %c0_i32_0 = arith.constant 0 : i32
    %c0_i32_1 = arith.constant 0 : i32
    return %c0_i32, %c0_i32_0 : i32, i32
  }
  func.func @transform_2(%arg0: i32) -> (i32, i32) {
    %c0_i32 = arith.constant 0 : i32
    %c0_i32_0 = arith.constant 0 : i32
    %c0_i32_1 = arith.constant 0 : i32
    return %c0_i32, %c0_i32_0 : i32, i32
  }
  func.func @transform_3(%arg0: i32) -> (i32, i32) {
    %c0_i32 = arith.constant 0 : i32
    %c0_i32_0 = arith.constant 0 : i32
    return %arg0, %c0_i32 : i32, i32
  }
}

module attributes {stable_mosaic.version = 11 : i64} {
  func.func @_gemm_stats_kernel(%arg0: i32, %arg1: memref<512x864xbf16, #tpu.memory_space<vmem>>, %arg2: memref<864x16xbf16, #tpu.memory_space<vmem>>, %arg3: memref<512x16xf32, #tpu.memory_space<vmem>>, %arg4: memref<1x16xf32, #tpu.memory_space<vmem>>, %arg5: memref<1x16xf32, #tpu.memory_space<vmem>>) attributes {dimension_semantics = [#tpu.dimension_semantics<arbitrary>], iteration_bounds = array<i64: 2>, scalar_prefetch = 0 : i64, scratch_operands = 0 : i64, tpu.core_type = #tpu.core_type<tc>, window_params = [{transform_indices = @transform_0, window_bounds = array<i64: 512, 864>}, {pipeline_mode = #tpu.pipeline_mode<synchronous>, transform_indices = @transform_1, window_bounds = array<i64: 864, 16>}, {transform_indices = @transform_2, window_bounds = array<i64: 512, 16>}, {pipeline_mode = #tpu.pipeline_mode<synchronous>, transform_indices = @transform_3, window_bounds = array<i64: 1, 16>}, {pipeline_mode = #tpu.pipeline_mode<synchronous>, transform_indices = @transform_4, window_bounds = array<i64: 1, 16>}]} {
    %c0 = arith.constant 0 : index
    %c0_0 = arith.constant 0 : index
    %0 = vector.load %arg1[%c0, %c0_0] : memref<512x864xbf16, #tpu.memory_space<vmem>>, vector<512x864xbf16>
    %c0_1 = arith.constant 0 : index
    %c0_2 = arith.constant 0 : index
    %1 = vector.load %arg2[%c0_1, %c0_2] : memref<864x16xbf16, #tpu.memory_space<vmem>>, vector<864x16xbf16>
    %cst = arith.constant dense<0.000000e+00> : vector<512x16xf32>
    %2 = tpu.matmul %0, %1, %cst {dimension_numbers = #tpu.dot_dimension_numbers<[1], [0], [0], [1], [0, 0, 1, 1], [], []>} : vector<512x864xbf16>, vector<864x16xbf16>, vector<512x16xf32> -> vector<512x16xf32>
    %c0_3 = arith.constant 0 : index
    %c0_4 = arith.constant 0 : index
    %3 = vector.load %arg3[%c0_3, %c0_4] : memref<512x16xf32, #tpu.memory_space<vmem>>, vector<512x16xf32>
    tpu.vector_store %arg3[%c0_3, %c0_4], %2 {strides = array<i32>} : memref<512x16xf32, #tpu.memory_space<vmem>>, vector<512x16xf32>,
    %c0_i32 = arith.constant 0 : i32
    %4 = arith.cmpi eq, %arg0, %c0_i32 : i32
    %5 = arith.extui %4 : i1 to i32
    %c0_i32_5 = arith.constant 0 : i32
    %6 = arith.cmpi ne, %5, %c0_i32_5 : i32
    scf.if %6 {
      %cst_16 = arith.constant 0.000000e+00 : f32
      %18 = vector.broadcast %cst_16 : f32 to vector<1x16xf32>
      %c0_17 = arith.constant 0 : index
      %c0_18 = arith.constant 0 : index
      %19 = vector.load %arg4[%c0_17, %c0_18] : memref<1x16xf32, #tpu.memory_space<vmem>>, vector<1x16xf32>
      tpu.vector_store %arg4[%c0_17, %c0_18], %18 {strides = array<i32>} : memref<1x16xf32, #tpu.memory_space<vmem>>, vector<1x16xf32>,
      %cst_19 = arith.constant 0.000000e+00 : f32
      %20 = vector.broadcast %cst_19 : f32 to vector<1x16xf32>
      %c0_20 = arith.constant 0 : index
      %c0_21 = arith.constant 0 : index
      %21 = vector.load %arg5[%c0_20, %c0_21] : memref<1x16xf32, #tpu.memory_space<vmem>>, vector<1x16xf32>
      tpu.vector_store %arg5[%c0_20, %c0_21], %20 {strides = array<i32>} : memref<1x16xf32, #tpu.memory_space<vmem>>, vector<1x16xf32>,
    } else {
    }
    %c0_6 = arith.constant 0 : index
    %c0_7 = arith.constant 0 : index
    %7 = vector.load %arg4[%c0_6, %c0_7] : memref<1x16xf32, #tpu.memory_space<vmem>>, vector<1x16xf32>
    %cst_8 = arith.constant dense<0.000000e+00> : vector<16xf32>
    %8 = vector.multi_reduction <add>, %2, %cst_8 [0] : vector<512x16xf32> to vector<16xf32>
    %9 = vector.shape_cast %8 : vector<16xf32> to vector<1x16xf32>
    %10 = arith.addf %7, %9 : vector<1x16xf32>
    %c0_9 = arith.constant 0 : index
    %c0_10 = arith.constant 0 : index
    %11 = vector.load %arg4[%c0_9, %c0_10] : memref<1x16xf32, #tpu.memory_space<vmem>>, vector<1x16xf32>
    tpu.vector_store %arg4[%c0_9, %c0_10], %10 {strides = array<i32>} : memref<1x16xf32, #tpu.memory_space<vmem>>, vector<1x16xf32>,
    %c0_11 = arith.constant 0 : index
    %c0_12 = arith.constant 0 : index
    %12 = vector.load %arg5[%c0_11, %c0_12] : memref<1x16xf32, #tpu.memory_space<vmem>>, vector<1x16xf32>
    %13 = arith.mulf %2, %2 : vector<512x16xf32>
    %cst_13 = arith.constant dense<0.000000e+00> : vector<16xf32>
    %14 = vector.multi_reduction <add>, %13, %cst_13 [0] : vector<512x16xf32> to vector<16xf32>
    %15 = vector.shape_cast %14 : vector<16xf32> to vector<1x16xf32>
    %16 = arith.addf %12, %15 : vector<1x16xf32>
    %c0_14 = arith.constant 0 : index
    %c0_15 = arith.constant 0 : index
    %17 = vector.load %arg5[%c0_14, %c0_15] : memref<1x16xf32, #tpu.memory_space<vmem>>, vector<1x16xf32>
    tpu.vector_store %arg5[%c0_14, %c0_15], %16 {strides = array<i32>} : memref<1x16xf32, #tpu.memory_space<vmem>>, vector<1x16xf32>,
    return
  }
  func.func @transform_0(%arg0: i32) -> (i32, i32) {
    %c0_i32 = arith.constant 0 : i32
    %c0_i32_0 = arith.constant 0 : i32
    return %arg0, %c0_i32 : i32, i32
  }
  func.func @transform_1(%arg0: i32) -> (i32, i32) {
    %c0_i32 = arith.constant 0 : i32
    %c0_i32_0 = arith.constant 0 : i32
    %c0_i32_1 = arith.constant 0 : i32
    return %c0_i32, %c0_i32_0 : i32, i32
  }
  func.func @transform_2(%arg0: i32) -> (i32, i32) {
    %c0_i32 = arith.constant 0 : i32
    %c0_i32_0 = arith.constant 0 : i32
    return %arg0, %c0_i32 : i32, i32
  }
  func.func @transform_3(%arg0: i32) -> (i32, i32) {
    %c0_i32 = arith.constant 0 : i32
    %c0_i32_0 = arith.constant 0 : i32
    %c0_i32_1 = arith.constant 0 : i32
    return %c0_i32, %c0_i32_0 : i32, i32
  }
  func.func @transform_4(%arg0: i32) -> (i32, i32) {
    %c0_i32 = arith.constant 0 : i32
    %c0_i32_0 = arith.constant 0 : i32
    %c0_i32_1 = arith.constant 0 : i32
    return %c0_i32, %c0_i32_0 : i32, i32
  }
}

module attributes {stable_mosaic.version = 11 : i64} {
  func.func @kernel(%arg0: i32, %arg1: memref<128x128xf32, #tpu.memory_space<vmem>>, %arg2: memref<1x128xf32, #tpu.memory_space<vmem>>, %arg3: memref<1x128xf32, #tpu.memory_space<vmem>>, %arg4: memref<128x128xf32, #tpu.memory_space<vmem>>) attributes {dimension_semantics = [#tpu.dimension_semantics<parallel>], iteration_bounds = array<i64: 1>, scalar_prefetch = 0 : i64, scratch_operands = 0 : i64, tpu.core_type = #tpu.core_type<tc>, window_params = [{transform_indices = @transform_0, window_bounds = array<i64: 128, 128>}, {pipeline_mode = #tpu.pipeline_mode<synchronous>, transform_indices = @transform_1, window_bounds = array<i64: 1, 128>}, {pipeline_mode = #tpu.pipeline_mode<synchronous>, transform_indices = @transform_2, window_bounds = array<i64: 1, 128>}, {transform_indices = @transform_3, window_bounds = array<i64: 128, 128>}]} {
    %c0 = arith.constant 0 : index
    %c0_0 = arith.constant 0 : index
    %0 = vector.load %arg3[%c0, %c0_0] : memref<1x128xf32, #tpu.memory_space<vmem>>, vector<1x128xf32>
    %cst = arith.constant 9.99999974E-6 : f32
    %1 = vector.broadcast %cst : f32 to vector<1x128xf32>
    %2 = arith.addf %0, %1 : vector<1x128xf32>
    %3 = math.rsqrt %2 : vector<1x128xf32>
    %c0_1 = arith.constant 0 : index
    %c0_2 = arith.constant 0 : index
    %4 = vector.load %arg1[%c0_1, %c0_2] : memref<128x128xf32, #tpu.memory_space<vmem>>, vector<128x128xf32>
    %c0_3 = arith.constant 0 : index
    %c0_4 = arith.constant 0 : index
    %5 = vector.load %arg2[%c0_3, %c0_4] : memref<1x128xf32, #tpu.memory_space<vmem>>, vector<1x128xf32>
    %6 = vector.broadcast %5 : vector<1x128xf32> to vector<128x128xf32>
    %7 = arith.subf %4, %6 : vector<128x128xf32>
    %8 = vector.broadcast %3 : vector<1x128xf32> to vector<128x128xf32>
    %9 = arith.mulf %7, %8 : vector<128x128xf32>
    %c0_5 = arith.constant 0 : index
    %c0_6 = arith.constant 0 : index
    %10 = vector.load %arg4[%c0_5, %c0_6] : memref<128x128xf32, #tpu.memory_space<vmem>>, vector<128x128xf32>
    tpu.vector_store %arg4[%c0_5, %c0_6], %9 {strides = array<i32>} : memref<128x128xf32, #tpu.memory_space<vmem>>, vector<128x128xf32>,
    return
  }
  func.func @transform_0(%arg0: i32) -> (i32, i32) {
    %c0_i32 = arith.constant 0 : i32
    %c0_i32_0 = arith.constant 0 : i32
    return %arg0, %c0_i32 : i32, i32
  }
  func.func @transform_1(%arg0: i32) -> (i32, i32) {
    %c0_i32 = arith.constant 0 : i32
    %c0_i32_0 = arith.constant 0 : i32
    %c0_i32_1 = arith.constant 0 : i32
    return %c0_i32, %c0_i32_0 : i32, i32
  }
  func.func @transform_2(%arg0: i32) -> (i32, i32) {
    %c0_i32 = arith.constant 0 : i32
    %c0_i32_0 = arith.constant 0 : i32
    %c0_i32_1 = arith.constant 0 : i32
    return %c0_i32, %c0_i32_0 : i32, i32
  }
  func.func @transform_3(%arg0: i32) -> (i32, i32) {
    %c0_i32 = arith.constant 0 : i32
    %c0_i32_0 = arith.constant 0 : i32
    return %arg0, %c0_i32 : i32, i32
  }
}

</mosaic_0001>

<llo_original>
// kernel: tile.28
$region0: #{tile.28}
  #allocation2 [shape = 's32[1]{0}', space=sflag, size = 0x4, scoped, tag = 'scoped memory for tile.28']
  %s0 = inlined_call_operand.hbm [shape: f32[32], index: 0, kind: input, shape index: {}]
  %s1 = inlined_call_operand.vmem [shape: f32[8,32], index: 1, kind: output, shape index: {}]
  $region1: #{tile.28} parent=0
    #allocation0 [shape = 'u8[512]{0}', space=vmem, size = 0x400, scoped, tag = 'operand span for operand 0']
    #allocation1 [shape = 's32[1]{0}', space=sflag, size = 0x4, scoped, tag = 'scoped memory for tile.28']
    %2 = vsyncpa [#allocation1], 0
    // Predicated region
    $region2: #{tile.28} parent=1 // pred_check
      _
    $region3: #{tile.28} parent=1 // pred_check_branch
      %4 = sbr.rel (0) target = $region5
    $region4: #{tile.28} parent=1 // pred_region
      %s6 = ssub.s32 16, 16
      %7 = vsyncadd [#allocation1], %s6
      %s9 = sshll.u32 [#allocation0], 4
      %s10 = int_to_ptr.vmem [resolvable:$true] %s9
      %12 = dma.hbm_to_vmem [thread:$0]  %s0, 16, %s10, [#allocation1]
    $region5: #{tile.28} parent=1 // pred_fallthru
      _
    // Predicated region
    $region6: #{tile.28} parent=1 // pred_check
      _
    $region7: #{tile.28} parent=1 // pred_check_branch
      %14 = sbr.rel (0) target = $region9
    $region8: #{tile.28} parent=1 // pred_region
      %15 = dma.done [#allocation1], 16
    $region9: #{tile.28} parent=1 // pred_fallthru
      _
    %v16 = vld [vmem:[#allocation0] ss:$0 sm:$0xff]
    %17 = vst [vmem:[%s1] sm:$0xff] %v16
    %18 = vsyncpa [#allocation1], 1

// kernel: tile.29
$region0: #{tile.29}
  %s0 = inlined_call_operand.vmem [shape: f32[8,32], index: 0, kind: input, shape index: {}]
  %s1 = inlined_call_operand.vmem [shape: f32[1,256], index: 1, kind: output, shape index: {}]
  $region1: #{tile.29} parent=0
    #allocation0 [shape = 'u8[8192]{0}', space=vmem, size = 0x2000, scoped, tag = 'scoped mem for output reshape']
    %s2 = smov 3
    %v3 = vld [vmem:[%s0] ss:$4 sm:%s2]
    %vm4 = vcmask 261120
    %5 = vst.msk [vmem:[#allocation0] ss:$8 sm:$0x3] %vm4, %v3
    %s6 = scalar_lea.vmem %s0, 3
    %s7 = smov 3
    %v8 = vld [vmem:[%s6] ss:$4 sm:%s7]
    %9 = vrot.lane.b32.xlu0 %v8, 96
    %v10 = vpop.permute.xlu0 %9
    %vm11 = vcmask 1048320
    %12 = vst.msk [vmem:[#allocation0] ss:$8 sm:$0x3] %vm11, %v10
    %s13 = scalar_lea.vmem %s0, 2
    %s14 = smov 3
    %v15 = vld [vmem:[%s13] ss:$4 sm:%s14]
    %16 = vrot.lane.b32.xlu0 %v15, 64
    %v17 = vpop.permute.xlu0 %16
    %vm18 = vcmask 785920
    %19 = vst.msk [vmem:[#allocation0] ss:$8 sm:$0x3] %vm18, %v17
    %s20 = scalar_lea.vmem %s0, 1
    %s21 = smov 3
    %v22 = vld [vmem:[%s20] ss:$4 sm:%s21]
    %23 = vrot.lane.b32.xlu0 %v22, 32
    %v24 = vpop.permute.xlu0 %23
    %vm25 = vcmask 523520
    %26 = vst.msk [vmem:[#allocation0] ss:$8 sm:$0x3] %vm25, %v24
    %s28 = sshllo.u32 0, 1
    %v30 = vld [vmem:[#allocation0] sm:%s28]
    %s31 = sshllo.u32 0, 1
    %32 = vst [vmem:[%s1] sm:%s31] %v30
    %s33 = scalar_lea.vmem [#allocation0], 8
    %v34 = vld [vmem:[%s33] sm:%s28]
    %s35 = sshllo.u32 0, 1
    %s36 = scalar_lea.vmem %s1, 1
    %37 = vst [vmem:[%s36] sm:%s35] %v34

// kernel: unet_block_forward.5
$region0: #{unet_block_forward.5}
  #allocation0 [shape = 'u32[]', space=smem, size = 0x4, offset = 0x4, fixed_abs, tag = 'smem constant byte address 0x4 - core index']
  #allocation1 [shape = 'u32[144,128]{1,0:T(1,128)}', space=vmem, size = 0x12000, scoped, tag = 'internal scratch']
  %s0 = inlined_call_operand.vmem [shape: bf16[128,864], index: 0, kind: input, shape index: {}]
  %s1 = inlined_call_operand.hbm [shape: bf16[864,256], index: 1, kind: input, shape index: {}]
  %s2 = inlined_call_operand.vmem [shape: f32[1,256], index: 2, kind: input, shape index: {}]
  %s3 = inlined_call_operand.vmem [shape: bf16[128,256], index: 3, kind: output, shape index: {}]
  %s4 = sld [smem:[#allocation0]]
  $region26: #{unet_block_forward.5} parent=0
    _
  %s6 = ssub.s32 1, %s4
  %s7 = scalar_select 0, %s6, %s4
  $region1: #{unet_block_forward.5} parent=0
    #allocation2 [shape = 'u8[442368]{0}', space=vmem, size = 0x6c000, scoped, tag = 'input window, operand 1, single buffered']
    #allocation3 [shape = 's32[1]{0}', space=sflag, size = 0x4, scoped, tag = 'scoped memory for unet_block_forward.5']
    %8 = vsyncpa [#allocation3], 0
    // Predicated region
    $region2: #{unet_block_forward.5} parent=1 // pred_check
      _
    $region3: #{unet_block_forward.5} parent=1 // pred_check_branch
      %10 = sbr.rel (0) target = $region5
    $region4: #{unet_block_forward.5} parent=1 // pred_region
      _
    $region5: #{unet_block_forward.5} parent=1 // pred_fallthru
      _
    // Predicated region
    $region6: #{unet_block_forward.5} parent=1 // pred_check
      _
    $region7: #{unet_block_forward.5} parent=1 // pred_check_branch
      %12 = sbr.rel (0) target = $region9
    $region8: #{unet_block_forward.5} parent=1 // pred_region
      %s14 = ssub.s32 13824, 13824
      %15 = vsyncadd [#allocation3], %s14
      %s16 = sshll.u32 [#allocation2], 4
      %s17 = int_to_ptr.vmem [resolvable:$true] %s16
      %22 = dma.hbm_to_vmem [thread:$0]  %s1, 13824, %s17, [#allocation3], 128, 128, 8
    $region9: #{unet_block_forward.5} parent=1 // pred_fallthru
      _
    // Predicated region
    $region10: #{unet_block_forward.5} parent=1 // pred_check
      _
    $region11: #{unet_block_forward.5} parent=1 // pred_check_branch
      %24 = sbr.rel (0) target = $region13
    $region12: #{unet_block_forward.5} parent=1 // pred_region
      _
    $region13: #{unet_block_forward.5} parent=1 // pred_fallthru
      _
    // Predicated region
    $region14: #{unet_block_forward.5} parent=1 // pred_check
      _
    $region15: #{unet_block_forward.5} parent=1 // pred_check_branch
      %26 = sbr.rel (0) target = $region17
    $region16: #{unet_block_forward.5} parent=1 // pred_region
      %27 = dma.done [#allocation3], 13824
    $region17: #{unet_block_forward.5} parent=1 // pred_fallthru
      _
    %v29 = vld [vmem:[%s0] sm:$0xff]
    %v30 = vld [vmem:[%s0 + $0x8] sm:$0xff]
    %v31 = vld [vmem:[%s0 + $0x10] sm:$0xff]
    %v32 = vld [vmem:[%s0 + $0x18] sm:$0xf]
    %v33 = vld [vmem:[%s0 + $0x1c] sm:$0xff]
    %v34 = vld [vmem:[%s0 + $0x24] sm:$0xff]
    %v35 = vld [vmem:[%s0 + $0x2c] sm:$0xff]
    %v36 = vld [vmem:[%s0 + $0x34] sm:$0xf]
    %v37 = vld [vmem:[%s0 + $0x38] sm:$0xff]
    %v38 = vld [vmem:[%s0 + $0x40] sm:$0xff]
    %v39 = vld [vmem:[%s0 + $0x48] sm:$0xff]
    %v40 = vld [vmem:[%s0 + $0x50] sm:$0xf]
    %v41 = vld [vmem:[%s0 + $0x54] sm:$0xff]
    %v42 = vld [vmem:[%s0 + $0x5c] sm:$0xff]
    %v43 = vld [vmem:[%s0 + $0x64] sm:$0xff]
    %v44 = vld [vmem:[%s0 + $0x6c] sm:$0xf]
    %v45 = vld [vmem:[%s0 + $0x70] sm:$0xff]
    %v46 = vld [vmem:[%s0 + $0x78] sm:$0xff]
    %v47 = vld [vmem:[%s0 + $0x80] sm:$0xff]
    %v48 = vld [vmem:[%s0 + $0x88] sm:$0xf]
    %v49 = vld [vmem:[%s0 + $0x8c] sm:$0xff]
    %v50 = vld [vmem:[%s0 + $0x94] sm:$0xff]
    %v51 = vld [vmem:[%s0 + $0x9c] sm:$0xff]
    %v52 = vld [vmem:[%s0 + $0xa4] sm:$0xf]
    %v53 = vld [vmem:[%s0 + $0xa8] sm:$0xff]
    %v54 = vld [vmem:[%s0 + $0xb0] sm:$0xff]
    %v55 = vld [vmem:[%s0 + $0xb8] sm:$0xff]
    %v56 = vld [vmem:[%s0 + $0xc0] sm:$0xf]
    %v57 = vld [vmem:[%s0 + $0xc4] sm:$0xff]
    %v58 = vld [vmem:[%s0 + $0xcc] sm:$0xff]
    %v59 = vld [vmem:[%s0 + $0xd4] sm:$0xff]
    %v60 = vld [vmem:[%s0 + $0xdc] sm:$0xf]
    %v61 = vld [vmem:[%s0 + $0xe0] sm:$0xff]
    %v62 = vld [vmem:[%s0 + $0xe8] sm:$0xff]
    %v63 = vld [vmem:[%s0 + $0xf0] sm:$0xff]
    %v64 = vld [vmem:[%s0 + $0xf8] sm:$0xf]
    %v65 = vld [vmem:[%s0 + $0xfc] sm:$0xff]
    %v66 = vld [vmem:[%s0 + $0x104] sm:$0xff]
    %v67 = vld [vmem:[%s0 + $0x10c] sm:$0xff]
    %v68 = vld [vmem:[%s0 + $0x114] sm:$0xf]
    %v69 = vld [vmem:[%s0 + $0x118] sm:$0xff]
    %v70 = vld [vmem:[%s0 + $0x120] sm:$0xff]
    %v71 = vld [vmem:[%s0 + $0x128] sm:$0xff]
    %v72 = vld [vmem:[%s0 + $0x130] sm:$0xf]
    %v73 = vld [vmem:[%s0 + $0x134] sm:$0xff]
    %v74 = vld [vmem:[%s0 + $0x13c] sm:$0xff]
    %v75 = vld [vmem:[%s0 + $0x144] sm:$0xff]
    %v76 = vld [vmem:[%s0 + $0x14c] sm:$0xf]
    %v77 = vld [vmem:[%s0 + $0x150] sm:$0xff]
    %v78 = vld [vmem:[%s0 + $0x158] sm:$0xff]
    %v79 = vld [vmem:[%s0 + $0x160] sm:$0xff]
    %v80 = vld [vmem:[%s0 + $0x168] sm:$0xf]
    %v81 = vld [vmem:[%s0 + $0x16c] sm:$0xff]
    %v82 = vld [vmem:[%s0 + $0x174] sm:$0xff]
    %v83 = vld [vmem:[%s0 + $0x17c] sm:$0xff]
    %v84 = vld [vmem:[%s0 + $0x184] sm:$0xf]
    %v85 = vld [vmem:[%s0 + $0x188] sm:$0xff]
    %v86 = vld [vmem:[%s0 + $0x190] sm:$0xff]
    %v87 = vld [vmem:[%s0 + $0x198] sm:$0xff]
    %v88 = vld [vmem:[%s0 + $0x1a0] sm:$0xf]
    %v89 = vld [vmem:[%s0 + $0x1a4] sm:$0xff]
    %v90 = vld [vmem:[%s0 + $0x1ac] sm:$0xff]
    %v91 = vld [vmem:[%s0 + $0x1b4] sm:$0xff]
    %v92 = vld [vmem:[%s0 + $0x1bc] sm:$0xf]
    %v93 = vld [vmem:[#allocation2] sm:$0xff]
    %v94 = vld [vmem:[#allocation2 + $0x8] sm:$0xff]
    %v95 = vld [vmem:[#allocation2 + $0x10] sm:$0xff]
    %v96 = vld [vmem:[#allocation2 + $0x18] sm:$0xff]
    %v97 = vld [vmem:[#allocation2 + $0x20] sm:$0xff]
    %v98 = vld [vmem:[#allocation2 + $0x28] sm:$0xff]
    %v99 = vld [vmem:[#allocation2 + $0x30] sm:$0xff]
    %v100 = vld [vmem:[#allocation2 + $0x38] sm:$0xff]
    %v101 = vld [vmem:[#allocation2 + $0x40] sm:$0xff]
    %v102 = vld [vmem:[#allocation2 + $0x48] sm:$0xff]
    %v103 = vld [vmem:[#allocation2 + $0x50] sm:$0xff]
    %v104 = vld [vmem:[#allocation2 + $0x58] sm:$0xff]
    %v105 = vld [vmem:[#allocation2 + $0x60] sm:$0xff]
    %v106 = vld [vmem:[#allocation2 + $0x68] sm:$0xff]
    %v107 = vld [vmem:[#allocation2 + $0x70] sm:$0xff]
    %v108 = vld [vmem:[#allocation2 + $0x78] sm:$0xff]
    %v109 = vld [vmem:[#allocation2 + $0x80] sm:$0xff]
    %v110 = vld [vmem:[#allocation2 + $0x88] sm:$0xff]
    %v111 = vld [vmem:[#allocation2 + $0x90] sm:$0xff]
    %v112 = vld [vmem:[#allocation2 + $0x98] sm:$0xff]
    %v113 = vld [vmem:[#allocation2 + $0xa0] sm:$0xff]
    %v114 = vld [vmem:[#allocation2 + $0xa8] sm:$0xff]
    %v115 = vld [vmem:[#allocation2 + $0xb0] sm:$0xff]
    %v116 = vld [vmem:[#allocation2 + $0xb8] sm:$0xff]
    %v117 = vld [vmem:[#allocation2 + $0xc0] sm:$0xff]
    %v118 = vld [vmem:[#allocation2 + $0xc8] sm:$0xff]
    %v119 = vld [vmem:[#allocation2 + $0xd0] sm:$0xff]
    %v120 = vld [vmem:[#allocation2 + $0xd8] sm:$0xff]
    %v121 = vld [vmem:[#allocation2 + $0xe0] sm:$0xff]
    %v122 = vld [vmem:[#allocation2 + $0xe8] sm:$0xff]
    %v123 = vld [vmem:[#allocation2 + $0xf0] sm:$0xff]
    %v124 = vld [vmem:[#allocation2 + $0xf8] sm:$0xff]
    %v125 = vld [vmem:[#allocation2 + $0x100] sm:$0xff]
    %v126 = vld [vmem:[#allocation2 + $0x108] sm:$0xff]
    %v127 = vld [vmem:[#allocation2 + $0x110] sm:$0xff]
    %v128 = vld [vmem:[#allocation2 + $0x118] sm:$0xff]
    %v129 = vld [vmem:[#allocation2 + $0x120] sm:$0xff]
    %v130 = vld [vmem:[#allocation2 + $0x128] sm:$0xff]
    %v131 = vld [vmem:[#allocation2 + $0x130] sm:$0xff]
    %v132 = vld [vmem:[#allocation2 + $0x138] sm:$0xff]
    %v133 = vld [vmem:[#allocation2 + $0x140] sm:$0xff]
    %v134 = vld [vmem:[#allocation2 + $0x148] sm:$0xff]
    %v135 = vld [vmem:[#allocation2 + $0x150] sm:$0xff]
    %v136 = vld [vmem:[#allocation2 + $0x158] sm:$0xff]
    %v137 = vld [vmem:[#allocation2 + $0x160] sm:$0xff]
    %v138 = vld [vmem:[#allocation2 + $0x168] sm:$0xff]
    %v139 = vld [vmem:[#allocation2 + $0x170] sm:$0xff]
    %v140 = vld [vmem:[#allocation2 + $0x178] sm:$0xff]
    %v141 = vld [vmem:[#allocation2 + $0x180] sm:$0xff]
    %v142 = vld [vmem:[#allocation2 + $0x188] sm:$0xff]
    %v143 = vld [vmem:[#allocation2 + $0x190] sm:$0xff]
    %v144 = vld [vmem:[#allocation2 + $0x198] sm:$0xff]
    %v145 = vld [vmem:[#allocation2 + $0x1a0] sm:$0xff]
    %v146 = vld [vmem:[#allocation2 + $0x1a8] sm:$0xff]
    %v147 = vld [vmem:[#allocation2 + $0x1b0] sm:$0xff]
    %v148 = vld [vmem:[#allocation2 + $0x1b8] sm:$0xff]
    %v149 = vld [vmem:[#allocation2 + $0x1c0] sm:$0xff]
    %v150 = vld [vmem:[#allocation2 + $0x1c8] sm:$0xff]
    %v151 = vld [vmem:[#allocation2 + $0x1d0] sm:$0xff]
    %v152 = vld [vmem:[#allocation2 + $0x1d8] sm:$0xff]
    %v153 = vld [vmem:[#allocation2 + $0x1e0] sm:$0xff]
    %v154 = vld [vmem:[#allocation2 + $0x1e8] sm:$0xff]
    %v155 = vld [vmem:[#allocation2 + $0x1f0] sm:$0xff]
    %v156 = vld [vmem:[#allocation2 + $0x1f8] sm:$0xff]
    %v157 = vld [vmem:[#allocation2 + $0x200] sm:$0xff]
    %v158 = vld [vmem:[#allocation2 + $0x208] sm:$0xff]
    %v159 = vld [vmem:[#allocation2 + $0x210] sm:$0xff]
    %v160 = vld [vmem:[#allocation2 + $0x218] sm:$0xff]
    %v161 = vld [vmem:[#allocation2 + $0x220] sm:$0xff]
    %v162 = vld [vmem:[#allocation2 + $0x228] sm:$0xff]
    %v163 = vld [vmem:[#allocation2 + $0x230] sm:$0xff]
    %v164 = vld [vmem:[#allocation2 + $0x238] sm:$0xff]
    %v165 = vld [vmem:[#allocation2 + $0x240] sm:$0xff]
    %v166 = vld [vmem:[#allocation2 + $0x248] sm:$0xff]
    %v167 = vld [vmem:[#allocation2 + $0x250] sm:$0xff]
    %v168 = vld [vmem:[#allocation2 + $0x258] sm:$0xff]
    %v169 = vld [vmem:[#allocation2 + $0x260] sm:$0xff]
    %v170 = vld [vmem:[#allocation2 + $0x268] sm:$0xff]
    %v171 = vld [vmem:[#allocation2 + $0x270] sm:$0xff]
    %v172 = vld [vmem:[#allocation2 + $0x278] sm:$0xff]
    %v173 = vld [vmem:[#allocation2 + $0x280] sm:$0xff]
    %v174 = vld [vmem:[#allocation2 + $0x288] sm:$0xff]
    %v175 = vld [vmem:[#allocation2 + $0x290] sm:$0xff]
    %v176 = vld [vmem:[#allocation2 + $0x298] sm:$0xff]
    %v177 = vld [vmem:[#allocation2 + $0x2a0] sm:$0xff]
    %v178 = vld [vmem:[#allocation2 + $0x2a8] sm:$0xff]
    %v179 = vld [vmem:[#allocation2 + $0x2b0] sm:$0xff]
    %v180 = vld [vmem:[#allocation2 + $0x2b8] sm:$0xff]
    %v181 = vld [vmem:[#allocation2 + $0x2c0] sm:$0xff]
    %v182 = vld [vmem:[#allocation2 + $0x2c8] sm:$0xff]
    %v183 = vld [vmem:[#allocation2 + $0x2d0] sm:$0xff]
    %v184 = vld [vmem:[#allocation2 + $0x2d8] sm:$0xff]
    %v185 = vld [vmem:[#allocation2 + $0x2e0] sm:$0xff]
    %v186 = vld [vmem:[#allocation2 + $0x2e8] sm:$0xff]
    %v187 = vld [vmem:[#allocation2 + $0x2f0] sm:$0xff]
    %v188 = vld [vmem:[#allocation2 + $0x2f8] sm:$0xff]
    %v189 = vld [vmem:[#allocation2 + $0x300] sm:$0xff]
    %v190 = vld [vmem:[#allocation2 + $0x308] sm:$0xff]
    %v191 = vld [vmem:[#allocation2 + $0x310] sm:$0xff]
    %v192 = vld [vmem:[#allocation2 + $0x318] sm:$0xff]
    %v193 = vld [vmem:[#allocation2 + $0x320] sm:$0xff]
    %v194 = vld [vmem:[#allocation2 + $0x328] sm:$0xff]
    %v195 = vld [vmem:[#allocation2 + $0x330] sm:$0xff]
    %v196 = vld [vmem:[#allocation2 + $0x338] sm:$0xff]
    %v197 = vld [vmem:[#allocation2 + $0x340] sm:$0xff]
    %v198 = vld [vmem:[#allocation2 + $0x348] sm:$0xff]
    %v199 = vld [vmem:[#allocation2 + $0x350] sm:$0xff]
    %v200 = vld [vmem:[#allocation2 + $0x358] sm:$0xff]
    %v201 = vld [vmem:[%s2] sm:$0x3]
    %v203 = vlaneseq
    %v204 = vshrl.u32 %v203, 7
    %v205 = vsub.s32 0, %v204
    %v206 = vrot.slane %v201, %v205
    %v207 = vlaneseq
    %v208 = vshrl.u32 %v207, 7
    %v209 = vsub.s32 1, %v208
    %v210 = vrot.slane %v201, %v209
    %v277 = vunpack.c.l.b16 %v29
    %v278 = vunpack.c.h.b16 %v29
    %v279 = vunpack.c.l.b16 %v30
    %v280 = vunpack.c.h.b16 %v30
    %v281 = vunpack.c.l.b16 %v31
    %v282 = vunpack.c.h.b16 %v31
    %v283 = vunpack.c.l.b16 %v32
    %v284 = vunpack.c.l.b16 %v33
    %v285 = vunpack.c.h.b16 %v33
    %v286 = vunpack.c.l.b16 %v34
    %v287 = vunpack.c.h.b16 %v34
    %v288 = vunpack.c.l.b16 %v35
    %v289 = vunpack.c.h.b16 %v35
    %v290 = vunpack.c.l.b16 %v36
    %v291 = vunpack.c.l.b16 %v37
    %v292 = vunpack.c.h.b16 %v37
    %v293 = vunpack.c.l.b16 %v38
    %v294 = vunpack.c.h.b16 %v38
    %v295 = vunpack.c.l.b16 %v39
    %v296 = vunpack.c.h.b16 %v39
    %v297 = vunpack.c.l.b16 %v40
    %v298 = vunpack.c.l.b16 %v41
    %v299 = vunpack.c.h.b16 %v41
    %v300 = vunpack.c.l.b16 %v42
    %v301 = vunpack.c.h.b16 %v42
    %v302 = vunpack.c.l.b16 %v43
    %v303 = vunpack.c.h.b16 %v43
    %v304 = vunpack.c.l.b16 %v44
    %v305 = vunpack.c.l.b16 %v45
    %v306 = vunpack.c.h.b16 %v45
    %v307 = vunpack.c.l.b16 %v46
    %v308 = vunpack.c.h.b16 %v46
    %v309 = vunpack.c.l.b16 %v47
    %v310 = vunpack.c.h.b16 %v47
    %v311 = vunpack.c.l.b16 %v48
    %v312 = vunpack.c.l.b16 %v49
    %v313 = vunpack.c.h.b16 %v49
    %v314 = vunpack.c.l.b16 %v50
    %v315 = vunpack.c.h.b16 %v50
    %v316 = vunpack.c.l.b16 %v51
    %v317 = vunpack.c.h.b16 %v51
    %v318 = vunpack.c.l.b16 %v52
    %v319 = vunpack.c.l.b16 %v53
    %v320 = vunpack.c.h.b16 %v53
    %v321 = vunpack.c.l.b16 %v54
    %v322 = vunpack.c.h.b16 %v54
    %v323 = vunpack.c.l.b16 %v55
    %v324 = vunpack.c.h.b16 %v55
    %v325 = vunpack.c.l.b16 %v56
    %v326 = vunpack.c.l.b16 %v57
    %v327 = vunpack.c.h.b16 %v57
    %v328 = vunpack.c.l.b16 %v58
    %v329 = vunpack.c.h.b16 %v58
    %v330 = vunpack.c.l.b16 %v59
    %v331 = vunpack.c.h.b16 %v59
    %v332 = vunpack.c.l.b16 %v60
    %v333 = vunpack.c.l.b16 %v61
    %v334 = vunpack.c.h.b16 %v61
    %v335 = vunpack.c.l.b16 %v62
    %v336 = vunpack.c.h.b16 %v62
    %v337 = vunpack.c.l.b16 %v63
    %v338 = vunpack.c.h.b16 %v63
    %v339 = vunpack.c.l.b16 %v64
    %v340 = vunpack.c.l.b16 %v65
    %v341 = vunpack.c.h.b16 %v65
    %v342 = vunpack.c.l.b16 %v66
    %v343 = vunpack.c.h.b16 %v66
    %v344 = vunpack.c.l.b16 %v67
    %v345 = vunpack.c.h.b16 %v67
    %v346 = vunpack.c.l.b16 %v68
    %v347 = vunpack.c.l.b16 %v69
    %v348 = vunpack.c.h.b16 %v69
    %v349 = vunpack.c.l.b16 %v70
    %v350 = vunpack.c.h.b16 %v70
    %v351 = vunpack.c.l.b16 %v71
    %v352 = vunpack.c.h.b16 %v71
    %v353 = vunpack.c.l.b16 %v72
    %v354 = vunpack.c.l.b16 %v73
    %v355 = vunpack.c.h.b16 %v73
    %v356 = vunpack.c.l.b16 %v74
    %v357 = vunpack.c.h.b16 %v74
    %v358 = vunpack.c.l.b16 %v75
    %v359 = vunpack.c.h.b16 %v75
    %v360 = vunpack.c.l.b16 %v76
    %v361 = vunpack.c.l.b16 %v77
    %v362 = vunpack.c.h.b16 %v77
    %v363 = vunpack.c.l.b16 %v78
    %v364 = vunpack.c.h.b16 %v78
    %v365 = vunpack.c.l.b16 %v79
    %v366 = vunpack.c.h.b16 %v79
    %v367 = vunpack.c.l.b16 %v80
    %v368 = vunpack.c.l.b16 %v81
    %v369 = vunpack.c.h.b16 %v81
    %v370 = vunpack.c.l.b16 %v82
    %v371 = vunpack.c.h.b16 %v82
    %v372 = vunpack.c.l.b16 %v83
    %v373 = vunpack.c.h.b16 %v83
    %v374 = vunpack.c.l.b16 %v84
    %v375 = vunpack.c.l.b16 %v85
    %v376 = vunpack.c.h.b16 %v85
    %v377 = vunpack.c.l.b16 %v86
    %v378 = vunpack.c.h.b16 %v86
    %v379 = vunpack.c.l.b16 %v87
    %v380 = vunpack.c.h.b16 %v87
    %v381 = vunpack.c.l.b16 %v88
    %v382 = vunpack.c.l.b16 %v89
    %v383 = vunpack.c.h.b16 %v89
    %v384 = vunpack.c.l.b16 %v90
    %v385 = vunpack.c.h.b16 %v90
    %v386 = vunpack.c.l.b16 %v91
    %v387 = vunpack.c.h.b16 %v91
    %v388 = vunpack.c.l.b16 %v92
    %v389 = vpack.c.b16 %v284, %v277
    %v390 = vpack.c.b16 %v285, %v278
    %v391 = vpack.c.b16 %v286, %v279
    %v392 = vpack.c.b16 %v287, %v280
    %v393 = vpack.c.b16 %v288, %v281
    %v394 = vpack.c.b16 %v289, %v282
    %v395 = vpack.c.b16 %v290, %v283
    %v396 = vpack.c.b16 %v298, %v291
    %v397 = vpack.c.b16 %v299, %v292
    %v398 = vpack.c.b16 %v300, %v293
    %v399 = vpack.c.b16 %v301, %v294
    %v400 = vpack.c.b16 %v302, %v295
    %v401 = vpack.c.b16 %v303, %v296
    %v402 = vpack.c.b16 %v304, %v297
    %v403 = vpack.c.b16 %v312, %v305
    %v404 = vpack.c.b16 %v313, %v306
    %v405 = vpack.c.b16 %v314, %v307
    %v406 = vpack.c.b16 %v315, %v308
    %v407 = vpack.c.b16 %v316, %v309
    %v408 = vpack.c.b16 %v317, %v310
    %v409 = vpack.c.b16 %v318, %v311
    %v410 = vpack.c.b16 %v326, %v319
    %v411 = vpack.c.b16 %v327, %v320
    %v412 = vpack.c.b16 %v328, %v321
    %v413 = vpack.c.b16 %v329, %v322
    %v414 = vpack.c.b16 %v330, %v323
    %v415 = vpack.c.b16 %v331, %v324
    %v416 = vpack.c.b16 %v332, %v325
    %v417 = vpack.c.b16 %v340, %v333
    %v418 = vpack.c.b16 %v341, %v334
    %v419 = vpack.c.b16 %v342, %v335
    %v420 = vpack.c.b16 %v343, %v336
    %v421 = vpack.c.b16 %v344, %v337
    %v422 = vpack.c.b16 %v345, %v338
    %v423 = vpack.c.b16 %v346, %v339
    %v424 = vpack.c.b16 %v354, %v347
    %v425 = vpack.c.b16 %v355, %v348
    %v426 = vpack.c.b16 %v356, %v349
    %v427 = vpack.c.b16 %v357, %v350
    %v428 = vpack.c.b16 %v358, %v351
    %v429 = vpack.c.b16 %v359, %v352
    %v430 = vpack.c.b16 %v360, %v353
    %v431 = vpack.c.b16 %v368, %v361
    %v432 = vpack.c.b16 %v369, %v362
    %v433 = vpack.c.b16 %v370, %v363
    %v434 = vpack.c.b16 %v371, %v364
    %v435 = vpack.c.b16 %v372, %v365
    %v436 = vpack.c.b16 %v373, %v366
    %v437 = vpack.c.b16 %v374, %v367
    %v438 = vpack.c.b16 %v382, %v375
    %v439 = vpack.c.b16 %v383, %v376
    %v440 = vpack.c.b16 %v384, %v377
    %v441 = vpack.c.b16 %v385, %v378
    %v442 = vpack.c.b16 %v386, %v379
    %v443 = vpack.c.b16 %v387, %v380
    %v444 = vpack.c.b16 %v388, %v381
    %v601 = vunpack.c.l.b16 %v93
    %v602 = vunpack.c.h.b16 %v93
    %v603 = vunpack.c.l.b16 %v94
    %v604 = vunpack.c.h.b16 %v94
    %v605 = vunpack.c.l.b16 %v95
    %v606 = vunpack.c.h.b16 %v95
    %v607 = vunpack.c.l.b16 %v96
    %v608 = vunpack.c.h.b16 %v96
    %v609 = vunpack.c.l.b16 %v97
    %v610 = vunpack.c.h.b16 %v97
    %v611 = vunpack.c.l.b16 %v98
    %v612 = vunpack.c.h.b16 %v98
    %v613 = vunpack.c.l.b16 %v99
    %v614 = vunpack.c.h.b16 %v99
    %v615 = vunpack.c.l.b16 %v100
    %v616 = vunpack.c.h.b16 %v100
    %v617 = vunpack.c.l.b16 %v101
    %v618 = vunpack.c.h.b16 %v101
    %v619 = vunpack.c.l.b16 %v102
    %v620 = vunpack.c.h.b16 %v102
    %v621 = vunpack.c.l.b16 %v103
    %v622 = vunpack.c.h.b16 %v103
    %v623 = vunpack.c.l.b16 %v104
    %v624 = vunpack.c.h.b16 %v104
    %v625 = vunpack.c.l.b16 %v105
    %v626 = vunpack.c.h.b16 %v105
    %v627 = vunpack.c.l.b16 %v106
    %v628 = vunpack.c.h.b16 %v106
    %v629 = vunpack.c.l.b16 %v107
    %v630 = vunpack.c.h.b16 %v107
    %v631 = vunpack.c.l.b16 %v108
    %v632 = vunpack.c.h.b16 %v108
    %v633 = vunpack.c.l.b16 %v109
    %v634 = vunpack.c.h.b16 %v109
    %v635 = vunpack.c.l.b16 %v110
    %v636 = vunpack.c.h.b16 %v110
    %v637 = vunpack.c.l.b16 %v111
    %v638 = vunpack.c.h.b16 %v111
    %v639 = vunpack.c.l.b16 %v112
    %v640 = vunpack.c.h.b16 %v112
    %v641 = vunpack.c.l.b16 %v113
    %v642 = vunpack.c.h.b16 %v113
    %v643 = vunpack.c.l.b16 %v114
    %v644 = vunpack.c.h.b16 %v114
    %v645 = vunpack.c.l.b16 %v115
    %v646 = vunpack.c.h.b16 %v115
    %v647 = vunpack.c.l.b16 %v116
    %v648 = vunpack.c.h.b16 %v116
    %v649 = vunpack.c.l.b16 %v117
    %v650 = vunpack.c.h.b16 %v117
    %v651 = vunpack.c.l.b16 %v118
    %v652 = vunpack.c.h.b16 %v118
    %v653 = vunpack.c.l.b16 %v119
    %v654 = vunpack.c.h.b16 %v119
    %v655 = vunpack.c.l.b16 %v120
    %v656 = vunpack.c.h.b16 %v120
    %v657 = vunpack.c.l.b16 %v121
    %v658 = vunpack.c.h.b16 %v121
    %v659 = vunpack.c.l.b16 %v122
    %v660 = vunpack.c.h.b16 %v122
    %v661 = vunpack.c.l.b16 %v123
    %v662 = vunpack.c.h.b16 %v123
    %v663 = vunpack.c.l.b16 %v124
    %v664 = vunpack.c.h.b16 %v124
    %v665 = vunpack.c.l.b16 %v125
    %v666 = vunpack.c.h.b16 %v125
    %v667 = vunpack.c.l.b16 %v126
    %v668 = vunpack.c.h.b16 %v126
    %v669 = vunpack.c.l.b16 %v127
    %v670 = vunpack.c.h.b16 %v127
    %v671 = vunpack.c.l.b16 %v128
    %v672 = vunpack.c.h.b16 %v128
    %v673 = vunpack.c.l.b16 %v129
    %v674 = vunpack.c.h.b16 %v129
    %v675 = vunpack.c.l.b16 %v130
    %v676 = vunpack.c.h.b16 %v130
    %v677 = vunpack.c.l.b16 %v131
    %v678 = vunpack.c.h.b16 %v131
    %v679 = vunpack.c.l.b16 %v132
    %v680 = vunpack.c.h.b16 %v132
    %v681 = vunpack.c.l.b16 %v133
    %v682 = vunpack.c.h.b16 %v133
    %v683 = vunpack.c.l.b16 %v134
    %v684 = vunpack.c.h.b16 %v134
    %v685 = vunpack.c.l.b16 %v135
    %v686 = vunpack.c.h.b16 %v135
    %v687 = vunpack.c.l.b16 %v136
    %v688 = vunpack.c.h.b16 %v136
    %v689 = vunpack.c.l.b16 %v137
    %v690 = vunpack.c.h.b16 %v137
    %v691 = vunpack.c.l.b16 %v138
    %v692 = vunpack.c.h.b16 %v138
    %v693 = vunpack.c.l.b16 %v139
    %v694 = vunpack.c.h.b16 %v139
    %v695 = vunpack.c.l.b16 %v140
    %v696 = vunpack.c.h.b16 %v140
    %v697 = vunpack.c.l.b16 %v141
    %v698 = vunpack.c.h.b16 %v141
    %v699 = vunpack.c.l.b16 %v142
    %v700 = vunpack.c.h.b16 %v142
    %v701 = vunpack.c.l.b16 %v143
    %v702 = vunpack.c.h.b16 %v143
    %v703 = vunpack.c.l.b16 %v144
    %v704 = vunpack.c.h.b16 %v144
    %v705 = vunpack.c.l.b16 %v145
    %v706 = vunpack.c.h.b16 %v145
    %v707 = vunpack.c.l.b16 %v146
    %v708 = vunpack.c.h.b16 %v146
    %v709 = vunpack.c.l.b16 %v147
    %v710 = vunpack.c.h.b16 %v147
    %v711 = vunpack.c.l.b16 %v148
    %v712 = vunpack.c.h.b16 %v148
    %v713 = vunpack.c.l.b16 %v149
    %v714 = vunpack.c.h.b16 %v149
    %v715 = vunpack.c.l.b16 %v150
    %v716 = vunpack.c.h.b16 %v150
    %v717 = vunpack.c.l.b16 %v151
    %v718 = vunpack.c.h.b16 %v151
    %v719 = vunpack.c.l.b16 %v152
    %v720 = vunpack.c.h.b16 %v152
    %v721 = vunpack.c.l.b16 %v153
    %v722 = vunpack.c.h.b16 %v153
    %v723 = vunpack.c.l.b16 %v154
    %v724 = vunpack.c.h.b16 %v154
    %v725 = vunpack.c.l.b16 %v155
    %v726 = vunpack.c.h.b16 %v155
    %v727 = vunpack.c.l.b16 %v156
    %v728 = vunpack.c.h.b16 %v156
    %v729 = vunpack.c.l.b16 %v157
    %v730 = vunpack.c.h.b16 %v157
    %v731 = vunpack.c.l.b16 %v158
    %v732 = vunpack.c.h.b16 %v158
    %v733 = vunpack.c.l.b16 %v159
    %v734 = vunpack.c.h.b16 %v159
    %v735 = vunpack.c.l.b16 %v160
    %v736 = vunpack.c.h.b16 %v160
    %v737 = vunpack.c.l.b16 %v161
    %v738 = vunpack.c.h.b16 %v161
    %v739 = vunpack.c.l.b16 %v162
    %v740 = vunpack.c.h.b16 %v162
    %v741 = vunpack.c.l.b16 %v163
    %v742 = vunpack.c.h.b16 %v163
    %v743 = vunpack.c.l.b16 %v164
    %v744 = vunpack.c.h.b16 %v164
    %v745 = vunpack.c.l.b16 %v165
    %v746 = vunpack.c.h.b16 %v165
    %v747 = vunpack.c.l.b16 %v166
    %v748 = vunpack.c.h.b16 %v166
    %v749 = vunpack.c.l.b16 %v167
    %v750 = vunpack.c.h.b16 %v167
    %v751 = vunpack.c.l.b16 %v168
    %v752 = vunpack.c.h.b16 %v168
    %v753 = vunpack.c.l.b16 %v169
    %v754 = vunpack.c.h.b16 %v169
    %v755 = vunpack.c.l.b16 %v170
    %v756 = vunpack.c.h.b16 %v170
    %v757 = vunpack.c.l.b16 %v171
    %v758 = vunpack.c.h.b16 %v171
    %v759 = vunpack.c.l.b16 %v172
    %v760 = vunpack.c.h.b16 %v172
    %v761 = vunpack.c.l.b16 %v173
    %v762 = vunpack.c.h.b16 %v173
    %v763 = vunpack.c.l.b16 %v174
    %v764 = vunpack.c.h.b16 %v174
    %v765 = vunpack.c.l.b16 %v175
    %v766 = vunpack.c.h.b16 %v175
    %v767 = vunpack.c.l.b16 %v176
    %v768 = vunpack.c.h.b16 %v176
    %v769 = vunpack.c.l.b16 %v177
    %v770 = vunpack.c.h.b16 %v177
    %v771 = vunpack.c.l.b16 %v178
    %v772 = vunpack.c.h.b16 %v178
    %v773 = vunpack.c.l.b16 %v179
    %v774 = vunpack.c.h.b16 %v179
    %v775 = vunpack.c.l.b16 %v180
    %v776 = vunpack.c.h.b16 %v180
    %v777 = vunpack.c.l.b16 %v181
    %v778 = vunpack.c.h.b16 %v181
    %v779 = vunpack.c.l.b16 %v182
    %v780 = vunpack.c.h.b16 %v182
    %v781 = vunpack.c.l.b16 %v183
    %v782 = vunpack.c.h.b16 %v183
    %v783 = vunpack.c.l.b16 %v184
    %v784 = vunpack.c.h.b16 %v184
    %v785 = vunpack.c.l.b16 %v185
    %v786 = vunpack.c.h.b16 %v185
    %v787 = vunpack.c.l.b16 %v186
    %v788 = vunpack.c.h.b16 %v186
    %v789 = vunpack.c.l.b16 %v187
    %v790 = vunpack.c.h.b16 %v187
    %v791 = vunpack.c.l.b16 %v188
    %v792 = vunpack.c.h.b16 %v188
    %v793 = vunpack.c.l.b16 %v189
    %v794 = vunpack.c.h.b16 %v189
    %v795 = vunpack.c.l.b16 %v190
    %v796 = vunpack.c.h.b16 %v190
    %v797 = vunpack.c.l.b16 %v191
    %v798 = vunpack.c.h.b16 %v191
    %v799 = vunpack.c.l.b16 %v192
    %v800 = vunpack.c.h.b16 %v192
    %v801 = vunpack.c.l.b16 %v193
    %v802 = vunpack.c.h.b16 %v193
    %v803 = vunpack.c.l.b16 %v194
    %v804 = vunpack.c.h.b16 %v194
    %v805 = vunpack.c.l.b16 %v195
    %v806 = vunpack.c.h.b16 %v195
    %v807 = vunpack.c.l.b16 %v196
    %v808 = vunpack.c.h.b16 %v196
    %v809 = vunpack.c.l.b16 %v197
    %v810 = vunpack.c.h.b16 %v197
    %v811 = vunpack.c.l.b16 %v198
    %v812 = vunpack.c.h.b16 %v198
    %v813 = vunpack.c.l.b16 %v199
    %v814 = vunpack.c.h.b16 %v199
    %v815 = vunpack.c.l.b16 %v200
    %v816 = vunpack.c.h.b16 %v200
    %v817 = vpack.c.b16 %v603, %v601
    %v818 = vpack.c.b16 %v604, %v602
    %v819 = vpack.c.b16 %v607, %v605
    %v820 = vpack.c.b16 %v608, %v606
    %v821 = vpack.c.b16 %v611, %v609
    %v822 = vpack.c.b16 %v612, %v610
    %v823 = vpack.c.b16 %v615, %v613
    %v824 = vpack.c.b16 %v616, %v614
    %v825 = vpack.c.b16 %v619, %v617
    %v826 = vpack.c.b16 %v620, %v618
    %v827 = vpack.c.b16 %v623, %v621
    %v828 = vpack.c.b16 %v624, %v622
    %v829 = vpack.c.b16 %v627, %v625
    %v830 = vpack.c.b16 %v628, %v626
    %v831 = vpack.c.b16 %v631, %v629
    %v832 = vpack.c.b16 %v632, %v630
    %v833 = vpack.c.b16 %v635, %v633
    %v834 = vpack.c.b16 %v636, %v634
    %v835 = vpack.c.b16 %v639, %v637
    %v836 = vpack.c.b16 %v640, %v638
    %v837 = vpack.c.b16 %v643, %v641
    %v838 = vpack.c.b16 %v644, %v642
    %v839 = vpack.c.b16 %v647, %v645
    %v840 = vpack.c.b16 %v648, %v646
    %v841 = vpack.c.b16 %v651, %v649
    %v842 = vpack.c.b16 %v652, %v650
    %v843 = vpack.c.b16 %v655, %v653
    %v844 = vpack.c.b16 %v656, %v654
    %v845 = vpack.c.b16 %v659, %v657
    %v846 = vpack.c.b16 %v660, %v658
    %v847 = vpack.c.b16 %v663, %v661
    %v848 = vpack.c.b16 %v664, %v662
    %v849 = vpack.c.b16 %v667, %v665
    %v850 = vpack.c.b16 %v668, %v666
    %v851 = vpack.c.b16 %v671, %v669
    %v852 = vpack.c.b16 %v672, %v670
    %v853 = vpack.c.b16 %v675, %v673
    %v854 = vpack.c.b16 %v676, %v674
    %v855 = vpack.c.b16 %v679, %v677
    %v856 = vpack.c.b16 %v680, %v678
    %v857 = vpack.c.b16 %v683, %v681
    %v858 = vpack.c.b16 %v684, %v682
    %v859 = vpack.c.b16 %v687, %v685
    %v860 = vpack.c.b16 %v688, %v686
    %v861 = vpack.c.b16 %v691, %v689
    %v862 = vpack.c.b16 %v692, %v690
    %v863 = vpack.c.b16 %v695, %v693
    %v864 = vpack.c.b16 %v696, %v694
    %v865 = vpack.c.b16 %v699, %v697
    %v866 = vpack.c.b16 %v700, %v698
    %v867 = vpack.c.b16 %v703, %v701
    %v868 = vpack.c.b16 %v704, %v702
    %v869 = vpack.c.b16 %v707, %v705
    %v870 = vpack.c.b16 %v708, %v706
    %v871 = vpack.c.b16 %v711, %v709
    %v872 = vpack.c.b16 %v712, %v710
    %v873 = vpack.c.b16 %v715, %v713
    %v874 = vpack.c.b16 %v716, %v714
    %v875 = vpack.c.b16 %v719, %v717
    %v876 = vpack.c.b16 %v720, %v718
    %v877 = vpack.c.b16 %v723, %v721
    %v878 = vpack.c.b16 %v724, %v722
    %v879 = vpack.c.b16 %v727, %v725
    %v880 = vpack.c.b16 %v728, %v726
    %v881 = vpack.c.b16 %v731, %v729
    %v882 = vpack.c.b16 %v732, %v730
    %v883 = vpack.c.b16 %v735, %v733
    %v884 = vpack.c.b16 %v736, %v734
    %v885 = vpack.c.b16 %v739, %v737
    %v886 = vpack.c.b16 %v740, %v738
    %v887 = vpack.c.b16 %v743, %v741
    %v888 = vpack.c.b16 %v744, %v742
    %v889 = vpack.c.b16 %v747, %v745
    %v890 = vpack.c.b16 %v748, %v746
    %v891 = vpack.c.b16 %v751, %v749
    %v892 = vpack.c.b16 %v752, %v750
    %v893 = vpack.c.b16 %v755, %v753
    %v894 = vpack.c.b16 %v756, %v754
    %v895 = vpack.c.b16 %v759, %v757
    %v896 = vpack.c.b16 %v760, %v758
    %v897 = vpack.c.b16 %v763, %v761
    %v898 = vpack.c.b16 %v764, %v762
    %v899 = vpack.c.b16 %v767, %v765
    %v900 = vpack.c.b16 %v768, %v766
    %v901 = vpack.c.b16 %v771, %v769
    %v902 = vpack.c.b16 %v772, %v770
    %v903 = vpack.c.b16 %v775, %v773
    %v904 = vpack.c.b16 %v776, %v774
    %v905 = vpack.c.b16 %v779, %v777
    %v906 = vpack.c.b16 %v780, %v778
    %v907 = vpack.c.b16 %v783, %v781
    %v908 = vpack.c.b16 %v784, %v782
    %v909 = vpack.c.b16 %v787, %v785
    %v910 = vpack.c.b16 %v788, %v786
    %v911 = vpack.c.b16 %v791, %v789
    %v912 = vpack.c.b16 %v792, %v790
    %v913 = vpack.c.b16 %v795, %v793
    %v914 = vpack.c.b16 %v796, %v794
    %v915 = vpack.c.b16 %v799, %v797
    %v916 = vpack.c.b16 %v800, %v798
    %v917 = vpack.c.b16 %v803, %v801
    %v918 = vpack.c.b16 %v804, %v802
    %v919 = vpack.c.b16 %v807, %v805
    %v920 = vpack.c.b16 %v808, %v806
    %v921 = vpack.c.b16 %v811, %v809
    %v922 = vpack.c.b16 %v812, %v810
    %v923 = vpack.c.b16 %v815, %v813
    %v924 = vpack.c.b16 %v816, %v814
    %vm1033 = vcmask 785408
    %v1035 = vsel %vm1033, %v395, 0
    %v1038 = vsel %vm1033, %v402, 0
    %v1041 = vsel %vm1033, %v409, 0
    %v1044 = vsel %vm1033, %v416, 0
    %v1047 = vsel %vm1033, %v423, 0
    %v1050 = vsel %vm1033, %v430, 0
    %v1053 = vsel %vm1033, %v437, 0
    %v1056 = vsel %vm1033, %v444, 0
    %1058 = vmatprep.subr.bf16.mxu0 %v818
    %1059 = vmatpush1.bf16.msra.mxu0 %v817
    %1060 = vmatprep.subr.bf16.mxu0 %v820
    %1061 = vmatpush1.bf16.msra.mxu0 %v819
    %1062 = vmatprep.subr.bf16.mxu0 %v822
    %1063 = vmatpush1.bf16.msra.mxu0 %v821
    %1064 = vmatprep.subr.bf16.mxu0 %v824
    %1065 = vmatpush1.bf16.msra.mxu0 %v823
    %1066 = vmatprep.subr.bf16.mxu0 %v826
    %1067 = vmatpush1.bf16.msra.mxu0 %v825
    %1068 = vmatprep.subr.bf16.mxu0 %v828
    %1069 = vmatpush1.bf16.msra.mxu0 %v827
    %1070 = vmatprep.subr.bf16.mxu0 %v830
    %1071 = vmatpush1.bf16.msra.mxu0 %v829
    %1072 = vmatprep.subr.bf16.mxu0 %v832
    %1073 = vmatpush1.bf16.msra.mxu0 %v831
    %1074 = vmatprep.subr.bf16.mxu0 %v834
    %1075 = vmatpush1.bf16.msra.mxu0 %v833
    %1076 = vmatprep.subr.bf16.mxu0 %v836
    %1077 = vmatpush1.bf16.msra.mxu0 %v835
    %1078 = vmatprep.subr.bf16.mxu0 %v838
    %1079 = vmatpush1.bf16.msra.mxu0 %v837
    %1080 = vmatprep.subr.bf16.mxu0 %v840
    %1081 = vmatpush1.bf16.msra.mxu0 %v839
    %1082 = vmatprep.subr.bf16.mxu0 %v842
    %1083 = vmatpush1.bf16.msra.mxu0 %v841
    %1084 = vmatprep.subr.bf16.mxu0 %v844
    %1085 = vmatpush1.bf16.msra.mxu0 %v843
    %1086 = vmatprep.subr.bf16.mxu0 %v846
    %1087 = vmatpush1.bf16.msra.mxu0 %v845
    %1088 = vmatprep.subr.bf16.mxu0 %v848
    %1089 = vmatpush1.bf16.msra.mxu0 %v847
    %1090 = vmatprep.mubr.bf16.mxu0 %v390
    %1091 = vmatmul.mubr.bf16.gmra.mrb[0].mxu0 %v389
    %v1092 = vpop.f32.mrb[0].mxu0
    %v1093 = vadd.f32 %v206, %v1092
    %v1094 = vpop.f32.mrb[0].mxu0
    %v1095 = vadd.f32 %v210, %v1094
    %v1096 = vpop.f32.mrb[0].mxu0
    %v1097 = vadd.f32 %v206, %v1096
    %v1098 = vpop.f32.mrb[0].mxu0
    %v1099 = vadd.f32 %v210, %v1098
    %1100 = vmatprep.mubr.bf16.mxu0 %v397
    %1101 = vmatmul.mubr.bf16.gmra.mrb[0].mxu0 %v396
    %v1102 = vpop.f32.mrb[0].mxu0
    %v1103 = vadd.f32 %v206, %v1102
    %v1104 = vpop.f32.mrb[0].mxu0
    %v1105 = vadd.f32 %v210, %v1104
    %v1106 = vpop.f32.mrb[0].mxu0
    %v1107 = vadd.f32 %v206, %v1106
    %v1108 = vpop.f32.mrb[0].mxu0
    %v1109 = vadd.f32 %v210, %v1108
    %1110 = vmatprep.mubr.bf16.mxu0 %v404
    %1111 = vmatmul.mubr.bf16.gmra.mrb[0].mxu0 %v403
    %v1112 = vpop.f32.mrb[0].mxu0
    %v1113 = vadd.f32 %v206, %v1112
    %v1114 = vpop.f32.mrb[0].mxu0
    %v1115 = vadd.f32 %v210, %v1114
    %v1116 = vpop.f32.mrb[0].mxu0
    %v1117 = vadd.f32 %v206, %v1116
    %v1118 = vpop.f32.mrb[0].mxu0
    %v1119 = vadd.f32 %v210, %v1118
    %1120 = vmatprep.mubr.bf16.mxu0 %v411
    %1121 = vmatmul.mubr.bf16.gmra.mrb[0].mxu0 %v410
    %v1122 = vpop.f32.mrb[0].mxu0
    %v1123 = vadd.f32 %v206, %v1122
    %v1124 = vpop.f32.mrb[0].mxu0
    %v1125 = vadd.f32 %v210, %v1124
    %v1126 = vpop.f32.mrb[0].mxu0
    %v1127 = vadd.f32 %v206, %v1126
    %v1128 = vpop.f32.mrb[0].mxu0
    %v1129 = vadd.f32 %v210, %v1128
    %1130 = vmatprep.mubr.bf16.mxu0 %v418
    %1131 = vmatmul.mubr.bf16.gmra.mrb[0].mxu0 %v417
    %v1132 = vpop.f32.mrb[0].mxu0
    %v1133 = vadd.f32 %v206, %v1132
    %v1134 = vpop.f32.mrb[0].mxu0
    %v1135 = vadd.f32 %v210, %v1134
    %v1136 = vpop.f32.mrb[0].mxu0
    %v1137 = vadd.f32 %v206, %v1136
    %v1138 = vpop.f32.mrb[0].mxu0
    %v1139 = vadd.f32 %v210, %v1138
    %1140 = vmatprep.mubr.bf16.mxu0 %v425
    %1141 = vmatmul.mubr.bf16.gmra.mrb[0].mxu0 %v424
    %v1142 = vpop.f32.mrb[0].mxu0
    %v1143 = vadd.f32 %v206, %v1142
    %v1144 = vpop.f32.mrb[0].mxu0
    %v1145 = vadd.f32 %v210, %v1144
    %v1146 = vpop.f32.mrb[0].mxu0
    %v1147 = vadd.f32 %v206, %v1146
    %v1148 = vpop.f32.mrb[0].mxu0
    %v1149 = vadd.f32 %v210, %v1148
    %1150 = vmatprep.mubr.bf16.mxu0 %v432
    %1151 = vmatmul.mubr.bf16.gmra.mrb[0].mxu0 %v431
    %v1152 = vpop.f32.mrb[0].mxu0
    %v1153 = vadd.f32 %v206, %v1152
    %v1154 = vpop.f32.mrb[0].mxu0
    %v1155 = vadd.f32 %v210, %v1154
    %v1156 = vpop.f32.mrb[0].mxu0
    %v1157 = vadd.f32 %v206, %v1156
    %v1158 = vpop.f32.mrb[0].mxu0
    %v1159 = vadd.f32 %v210, %v1158
    %1160 = vmatprep.mubr.bf16.mxu0 %v439
    %1161 = vmatmul.mubr.bf16.gmra.mrb[0].mxu0 %v438
    %v1162 = vpop.f32.mrb[0].mxu0
    %v1163 = vadd.f32 %v206, %v1162
    %v1164 = vpop.f32.mrb[0].mxu0
    %v1165 = vadd.f32 %v210, %v1164
    %v1166 = vpop.f32.mrb[0].mxu0
    %v1167 = vadd.f32 %v206, %v1166
    %v1168 = vpop.f32.mrb[0].mxu0
    %v1169 = vadd.f32 %v210, %v1168
    %1170 = vdwg.mxu0
    %1171 = vmatprep.subr.bf16.mxu0 %v850
    %1172 = vmatpush1.bf16.msra.mxu0 %v849
    %1173 = vmatprep.subr.bf16.mxu0 %v852
    %1174 = vmatpush1.bf16.msra.mxu0 %v851
    %1175 = vmatprep.subr.bf16.mxu0 %v854
    %1176 = vmatpush1.bf16.msra.mxu0 %v853
    %1177 = vmatprep.subr.bf16.mxu0 %v856
    %1178 = vmatpush1.bf16.msra.mxu0 %v855
    %1179 = vmatprep.subr.bf16.mxu0 %v858
    %1180 = vmatpush1.bf16.msra.mxu0 %v857
    %1181 = vmatprep.subr.bf16.mxu0 %v860
    %1182 = vmatpush1.bf16.msra.mxu0 %v859
    %1183 = vmatprep.subr.bf16.mxu0 %v862
    %1184 = vmatpush1.bf16.msra.mxu0 %v861
    %1185 = vmatprep.subr.bf16.mxu0 %v864
    %1186 = vmatpush1.bf16.msra.mxu0 %v863
    %1187 = vmatprep.subr.bf16.mxu0 %v866
    %1188 = vmatpush1.bf16.msra.mxu0 %v865
    %1189 = vmatprep.subr.bf16.mxu0 %v868
    %1190 = vmatpush1.bf16.msra.mxu0 %v867
    %1191 = vmatprep.subr.bf16.mxu0 %v870
    %1192 = vmatpush1.bf16.msra.mxu0 %v869
    %1193 = vmatprep.subr.bf16.mxu0 %v872
    %1194 = vmatpush1.bf16.msra.mxu0 %v871
    %1195 = vmatprep.subr.bf16.mxu0 %v874
    %1196 = vmatpush1.bf16.msra.mxu0 %v873
    %1197 = vmatprep.subr.bf16.mxu0 %v876
    %1198 = vmatpush1.bf16.msra.mxu0 %v875
    %1199 = vmatprep.subr.bf16.mxu0 %v878
    %1200 = vmatpush1.bf16.msra.mxu0 %v877
    %1201 = vmatprep.subr.bf16.mxu0 %v880
    %1202 = vmatpush1.bf16.msra.mxu0 %v879
    %1203 = vmatprep.mubr.bf16.mxu0 %v392
    %1204 = vmatmul.mubr.bf16.gmra.mrb[0].mxu0 %v391
    %v1205 = vpop.f32.mrb[0].mxu0
    %v1206 = vadd.f32 %v1093, %v1205
    %v1207 = vpop.f32.mrb[0].mxu0
    %v1208 = vadd.f32 %v1095, %v1207
    %v1209 = vpop.f32.mrb[0].mxu0
    %v1210 = vadd.f32 %v1097, %v1209
    %v1211 = vpop.f32.mrb[0].mxu0
    %v1212 = vadd.f32 %v1099, %v1211
    %1213 = vmatprep.mubr.bf16.mxu0 %v399
    %1214 = vmatmul.mubr.bf16.gmra.mrb[0].mxu0 %v398
    %v1215 = vpop.f32.mrb[0].mxu0
    %v1216 = vadd.f32 %v1103, %v1215
    %v1217 = vpop.f32.mrb[0].mxu0
    %v1218 = vadd.f32 %v1105, %v1217
    %v1219 = vpop.f32.mrb[0].mxu0
    %v1220 = vadd.f32 %v1107, %v1219
    %v1221 = vpop.f32.mrb[0].mxu0
    %v1222 = vadd.f32 %v1109, %v1221
    %1223 = vmatprep.mubr.bf16.mxu0 %v406
    %1224 = vmatmul.mubr.bf16.gmra.mrb[0].mxu0 %v405
    %v1225 = vpop.f32.mrb[0].mxu0
    %v1226 = vadd.f32 %v1113, %v1225
    %v1227 = vpop.f32.mrb[0].mxu0
    %v1228 = vadd.f32 %v1115, %v1227
    %v1229 = vpop.f32.mrb[0].mxu0
    %v1230 = vadd.f32 %v1117, %v1229
    %v1231 = vpop.f32.mrb[0].mxu0
    %v1232 = vadd.f32 %v1119, %v1231
    %1233 = vmatprep.mubr.bf16.mxu0 %v413
    %1234 = vmatmul.mubr.bf16.gmra.mrb[0].mxu0 %v412
    %v1235 = vpop.f32.mrb[0].mxu0
    %v1236 = vadd.f32 %v1123, %v1235
    %v1237 = vpop.f32.mrb[0].mxu0
    %v1238 = vadd.f32 %v1125, %v1237
    %v1239 = vpop.f32.mrb[0].mxu0
    %v1240 = vadd.f32 %v1127, %v1239
    %v1241 = vpop.f32.mrb[0].mxu0
    %v1242 = vadd.f32 %v1129, %v1241
    %1243 = vmatprep.mubr.bf16.mxu0 %v420
    %1244 = vmatmul.mubr.bf16.gmra.mrb[0].mxu0 %v419
    %v1245 = vpop.f32.mrb[0].mxu0
    %v1246 = vadd.f32 %v1133, %v1245
    %v1247 = vpop.f32.mrb[0].mxu0
    %v1248 = vadd.f32 %v1135, %v1247
    %v1249 = vpop.f32.mrb[0].mxu0
    %v1250 = vadd.f32 %v1137, %v1249
    %v1251 = vpop.f32.mrb[0].mxu0
    %v1252 = vadd.f32 %v1139, %v1251
    %1253 = vmatprep.mubr.bf16.mxu0 %v427
    %1254 = vmatmul.mubr.bf16.gmra.mrb[0].mxu0 %v426
    %v1255 = vpop.f32.mrb[0].mxu0
    %v1256 = vadd.f32 %v1143, %v1255
    %v1257 = vpop.f32.mrb[0].mxu0
    %v1258 = vadd.f32 %v1145, %v1257
    %v1259 = vpop.f32.mrb[0].mxu0
    %v1260 = vadd.f32 %v1147, %v1259
    %v1261 = vpop.f32.mrb[0].mxu0
    %v1262 = vadd.f32 %v1149, %v1261
    %1263 = vmatprep.mubr.bf16.mxu0 %v434
    %1264 = vmatmul.mubr.bf16.gmra.mrb[0].mxu0 %v433
    %v1265 = vpop.f32.mrb[0].mxu0
    %v1266 = vadd.f32 %v1153, %v1265
    %v1267 = vpop.f32.mrb[0].mxu0
    %v1268 = vadd.f32 %v1155, %v1267
    %v1269 = vpop.f32.mrb[0].mxu0
    %v1270 = vadd.f32 %v1157, %v1269
    %v1271 = vpop.f32.mrb[0].mxu0
    %v1272 = vadd.f32 %v1159, %v1271
    %1273 = vmatprep.mubr.bf16.mxu0 %v441
    %1274 = vmatmul.mubr.bf16.gmra.mrb[0].mxu0 %v440
    %v1275 = vpop.f32.mrb[0].mxu0
    %v1276 = vadd.f32 %v1163, %v1275
    %v1277 = vpop.f32.mrb[0].mxu0
    %v1278 = vadd.f32 %v1165, %v1277
    %v1279 = vpop.f32.mrb[0].mxu0
    %v1280 = vadd.f32 %v1167, %v1279
    %v1281 = vpop.f32.mrb[0].mxu0
    %v1282 = vadd.f32 %v1169, %v1281
    %1283 = vdwg.mxu0
    %1284 = vmatprep.subr.bf16.mxu0 %v882
    %1285 = vmatpush1.bf16.msra.mxu0 %v881
    %1286 = vmatprep.subr.bf16.mxu0 %v884
    %1287 = vmatpush1.bf16.msra.mxu0 %v883
    %1288 = vmatprep.subr.bf16.mxu0 %v886
    %1289 = vmatpush1.bf16.msra.mxu0 %v885
    %1290 = vmatprep.subr.bf16.mxu0 %v888
    %1291 = vmatpush1.bf16.msra.mxu0 %v887
    %1292 = vmatprep.subr.bf16.mxu0 %v890
    %1293 = vmatpush1.bf16.msra.mxu0 %v889
    %1294 = vmatprep.subr.bf16.mxu0 %v892
    %1295 = vmatpush1.bf16.msra.mxu0 %v891
    %1296 = vmatprep.subr.bf16.mxu0 %v894
    %1297 = vmatpush1.bf16.msra.mxu0 %v893
    %1298 = vmatprep.subr.bf16.mxu0 %v896
    %1299 = vmatpush1.bf16.msra.mxu0 %v895
    %1300 = vmatprep.subr.bf16.mxu0 %v898
    %1301 = vmatpush1.bf16.msra.mxu0 %v897
    %1302 = vmatprep.subr.bf16.mxu0 %v900
    %1303 = vmatpush1.bf16.msra.mxu0 %v899
    %1304 = vmatprep.subr.bf16.mxu0 %v902
    %1305 = vmatpush1.bf16.msra.mxu0 %v901
    %1306 = vmatprep.subr.bf16.mxu0 %v904
    %1307 = vmatpush1.bf16.msra.mxu0 %v903
    %1308 = vmatprep.subr.bf16.mxu0 %v906
    %1309 = vmatpush1.bf16.msra.mxu0 %v905
    %1310 = vmatprep.subr.bf16.mxu0 %v908
    %1311 = vmatpush1.bf16.msra.mxu0 %v907
    %1312 = vmatprep.subr.bf16.mxu0 %v910
    %1313 = vmatpush1.bf16.msra.mxu0 %v909
    %1314 = vmatprep.subr.bf16.mxu0 %v912
    %1315 = vmatpush1.bf16.msra.mxu0 %v911
    %1316 = vmatprep.mubr.bf16.mxu0 %v394
    %1317 = vmatmul.mubr.bf16.gmra.mrb[0].mxu0 %v393
    %v1318 = vpop.f32.mrb[0].mxu0
    %v1319 = vadd.f32 %v1206, %v1318
    %v1320 = vpop.f32.mrb[0].mxu0
    %v1321 = vadd.f32 %v1208, %v1320
    %v1322 = vpop.f32.mrb[0].mxu0
    %v1323 = vadd.f32 %v1210, %v1322
    %v1324 = vpop.f32.mrb[0].mxu0
    %v1325 = vadd.f32 %v1212, %v1324
    %1326 = vmatprep.mubr.bf16.mxu0 %v401
    %1327 = vmatmul.mubr.bf16.gmra.mrb[0].mxu0 %v400
    %v1328 = vpop.f32.mrb[0].mxu0
    %v1329 = vadd.f32 %v1216, %v1328
    %v1330 = vpop.f32.mrb[0].mxu0
    %v1331 = vadd.f32 %v1218, %v1330
    %v1332 = vpop.f32.mrb[0].mxu0
    %v1333 = vadd.f32 %v1220, %v1332
    %v1334 = vpop.f32.mrb[0].mxu0
    %v1335 = vadd.f32 %v1222, %v1334
    %1336 = vmatprep.mubr.bf16.mxu0 %v408
    %1337 = vmatmul.mubr.bf16.gmra.mrb[0].mxu0 %v407
    %v1338 = vpop.f32.mrb[0].mxu0
    %v1339 = vadd.f32 %v1226, %v1338
    %v1340 = vpop.f32.mrb[0].mxu0
    %v1341 = vadd.f32 %v1228, %v1340
    %v1342 = vpop.f32.mrb[0].mxu0
    %v1343 = vadd.f32 %v1230, %v1342
    %v1344 = vpop.f32.mrb[0].mxu0
    %v1345 = vadd.f32 %v1232, %v1344
    %1346 = vmatprep.mubr.bf16.mxu0 %v415
    %1347 = vmatmul.mubr.bf16.gmra.mrb[0].mxu0 %v414
    %v1348 = vpop.f32.mrb[0].mxu0
    %v1349 = vadd.f32 %v1236, %v1348
    %v1350 = vpop.f32.mrb[0].mxu0
    %v1351 = vadd.f32 %v1238, %v1350
    %v1352 = vpop.f32.mrb[0].mxu0
    %v1353 = vadd.f32 %v1240, %v1352
    %v1354 = vpop.f32.mrb[0].mxu0
    %v1355 = vadd.f32 %v1242, %v1354
    %1356 = vmatprep.mubr.bf16.mxu0 %v422
    %1357 = vmatmul.mubr.bf16.gmra.mrb[0].mxu0 %v421
    %v1358 = vpop.f32.mrb[0].mxu0
    %v1359 = vadd.f32 %v1246, %v1358
    %v1360 = vpop.f32.mrb[0].mxu0
    %v1361 = vadd.f32 %v1248, %v1360
    %v1362 = vpop.f32.mrb[0].mxu0
    %v1363 = vadd.f32 %v1250, %v1362
    %v1364 = vpop.f32.mrb[0].mxu0
    %v1365 = vadd.f32 %v1252, %v1364
    %1366 = vmatprep.mubr.bf16.mxu0 %v429
    %1367 = vmatmul.mubr.bf16.gmra.mrb[0].mxu0 %v428
    %v1368 = vpop.f32.mrb[0].mxu0
    %v1369 = vadd.f32 %v1256, %v1368
    %v1370 = vpop.f32.mrb[0].mxu0
    %v1371 = vadd.f32 %v1258, %v1370
    %v1372 = vpop.f32.mrb[0].mxu0
    %v1373 = vadd.f32 %v1260, %v1372
    %v1374 = vpop.f32.mrb[0].mxu0
    %v1375 = vadd.f32 %v1262, %v1374
    %1376 = vmatprep.mubr.bf16.mxu0 %v436
    %1377 = vmatmul.mubr.bf16.gmra.mrb[0].mxu0 %v435
    %v1378 = vpop.f32.mrb[0].mxu0
    %v1379 = vadd.f32 %v1266, %v1378
    %v1380 = vpop.f32.mrb[0].mxu0
    %v1381 = vadd.f32 %v1268, %v1380
    %v1382 = vpop.f32.mrb[0].mxu0
    %v1383 = vadd.f32 %v1270, %v1382
    %v1384 = vpop.f32.mrb[0].mxu0
    %v1385 = vadd.f32 %v1272, %v1384
    %1386 = vmatprep.mubr.bf16.mxu0 %v443
    %1387 = vmatmul.mubr.bf16.gmra.mrb[0].mxu0 %v442
    %v1388 = vpop.f32.mrb[0].mxu0
    %v1389 = vadd.f32 %v1276, %v1388
    %v1390 = vpop.f32.mrb[0].mxu0
    %v1391 = vadd.f32 %v1278, %v1390
    %v1392 = vpop.f32.mrb[0].mxu0
    %v1393 = vadd.f32 %v1280, %v1392
    %v1394 = vpop.f32.mrb[0].mxu0
    %v1395 = vadd.f32 %v1282, %v1394
    %1396 = vdwg.mxu0
    %1397 = vmatprep.subr.bf16.mxu0 %v914
    %1398 = vmatpush1.bf16.msra.mxu0 %v913
    %1399 = vmatprep.subr.bf16.mxu0 %v916
    %1400 = vmatpush1.bf16.msra.mxu0 %v915
    %1401 = vmatprep.subr.bf16.mxu0 %v918
    %1402 = vmatpush1.bf16.msra.mxu0 %v917
    %1403 = vmatprep.subr.bf16.mxu0 %v920
    %1404 = vmatpush1.bf16.msra.mxu0 %v919
    %1405 = vmatprep.subr.bf16.mxu0 %v922
    %1406 = vmatpush1.bf16.msra.mxu0 %v921
    %1407 = vmatprep.subr.bf16.mxu0 %v924
    %1408 = vmatpush1.bf16.msra.mxu0 %v923
    %1409 = vmatprep.subr.bf16.mxu0 0
    %1410 = vmatpush1.bf16.msra.mxu0 0
    %1411 = vmatprep.subr.bf16.mxu0 0
    %1412 = vmatpush1.bf16.msra.mxu0 0
    %1413 = vmatprep.subr.bf16.mxu0 0
    %1414 = vmatpush1.bf16.msra.mxu0 0
    %1415 = vmatprep.subr.bf16.mxu0 0
    %1416 = vmatpush1.bf16.msra.mxu0 0
    %1417 = vmatprep.subr.bf16.mxu0 0
    %1418 = vmatpush1.bf16.msra.mxu0 0
    %1419 = vmatprep.subr.bf16.mxu0 0
    %1420 = vmatpush1.bf16.msra.mxu0 0
    %1421 = vmatprep.subr.bf16.mxu0 0
    %1422 = vmatpush1.bf16.msra.mxu0 0
    %1423 = vmatprep.subr.bf16.mxu0 0
    %1424 = vmatpush1.bf16.msra.mxu0 0
    %1425 = vmatprep.subr.bf16.mxu0 0
    %1426 = vmatpush1.bf16.msra.mxu0 0
    %1427 = vmatprep.subr.bf16.mxu0 0
    %1428 = vmatpush1.bf16.msra.mxu0 0
    %1429 = vmatprep.mubr.bf16.mxu0 0
    %1430 = vmatmul.mubr.bf16.gmra.mrb[0].mxu0 %v1035
    %v1431 = vpop.f32.mrb[0].mxu0
    %v1432 = vadd.f32 %v1319, %v1431
    %v1433 = vpop.f32.mrb[0].mxu0
    %v1434 = vadd.f32 %v1321, %v1433
    %v1435 = vpop.f32.mrb[0].mxu0
    %v1436 = vadd.f32 %v1323, %v1435
    %v1437 = vpop.f32.mrb[0].mxu0
    %v1438 = vadd.f32 %v1325, %v1437
    %1439 = vmatprep.mubr.bf16.mxu0 0
    %1440 = vmatmul.mubr.bf16.gmra.mrb[0].mxu0 %v1038
    %v1441 = vpop.f32.mrb[0].mxu0
    %v1442 = vadd.f32 %v1329, %v1441
    %v1443 = vpop.f32.mrb[0].mxu0
    %v1444 = vadd.f32 %v1331, %v1443
    %v1445 = vpop.f32.mrb[0].mxu0
    %v1446 = vadd.f32 %v1333, %v1445
    %v1447 = vpop.f32.mrb[0].mxu0
    %v1448 = vadd.f32 %v1335, %v1447
    %1449 = vmatprep.mubr.bf16.mxu0 0
    %1450 = vmatmul.mubr.bf16.gmra.mrb[0].mxu0 %v1041
    %v1451 = vpop.f32.mrb[0].mxu0
    %v1452 = vadd.f32 %v1339, %v1451
    %v1453 = vpop.f32.mrb[0].mxu0
    %v1454 = vadd.f32 %v1341, %v1453
    %v1455 = vpop.f32.mrb[0].mxu0
    %v1456 = vadd.f32 %v1343, %v1455
    %v1457 = vpop.f32.mrb[0].mxu0
    %v1458 = vadd.f32 %v1345, %v1457
    %1459 = vmatprep.mubr.bf16.mxu0 0
    %1460 = vmatmul.mubr.bf16.gmra.mrb[0].mxu0 %v1044
    %v1461 = vpop.f32.mrb[0].mxu0
    %v1462 = vadd.f32 %v1349, %v1461
    %v1463 = vpop.f32.mrb[0].mxu0
    %v1464 = vadd.f32 %v1351, %v1463
    %v1465 = vpop.f32.mrb[0].mxu0
    %v1466 = vadd.f32 %v1353, %v1465
    %v1467 = vpop.f32.mrb[0].mxu0
    %v1468 = vadd.f32 %v1355, %v1467
    %1469 = vmatprep.mubr.bf16.mxu0 0
    %1470 = vmatmul.mubr.bf16.gmra.mrb[0].mxu0 %v1047
    %v1471 = vpop.f32.mrb[0].mxu0
    %v1472 = vadd.f32 %v1359, %v1471
    %v1473 = vpop.f32.mrb[0].mxu0
    %v1474 = vadd.f32 %v1361, %v1473
    %v1475 = vpop.f32.mrb[0].mxu0
    %v1476 = vadd.f32 %v1363, %v1475
    %v1477 = vpop.f32.mrb[0].mxu0
    %v1478 = vadd.f32 %v1365, %v1477
    %1479 = vmatprep.mubr.bf16.mxu0 0
    %1480 = vmatmul.mubr.bf16.gmra.mrb[0].mxu0 %v1050
    %v1481 = vpop.f32.mrb[0].mxu0
    %v1482 = vadd.f32 %v1369, %v1481
    %v1483 = vpop.f32.mrb[0].mxu0
    %v1484 = vadd.f32 %v1371, %v1483
    %v1485 = vpop.f32.mrb[0].mxu0
    %v1486 = vadd.f32 %v1373, %v1485
    %v1487 = vpop.f32.mrb[0].mxu0
    %v1488 = vadd.f32 %v1375, %v1487
    %1489 = vmatprep.mubr.bf16.mxu0 0
    %1490 = vmatmul.mubr.bf16.gmra.mrb[0].mxu0 %v1053
    %v1491 = vpop.f32.mrb[0].mxu0
    %v1492 = vadd.f32 %v1379, %v1491
    %v1493 = vpop.f32.mrb[0].mxu0
    %v1494 = vadd.f32 %v1381, %v1493
    %v1495 = vpop.f32.mrb[0].mxu0
    %v1496 = vadd.f32 %v1383, %v1495
    %v1497 = vpop.f32.mrb[0].mxu0
    %v1498 = vadd.f32 %v1385, %v1497
    %1499 = vmatprep.mubr.bf16.mxu0 0
    %1500 = vmatmul.mubr.bf16.gmra.mrb[0].mxu0 %v1056
    %v1501 = vpop.f32.mrb[0].mxu0
    %v1502 = vadd.f32 %v1389, %v1501
    %v1503 = vpop.f32.mrb[0].mxu0
    %v1504 = vadd.f32 %v1391, %v1503
    %v1505 = vpop.f32.mrb[0].mxu0
    %v1506 = vadd.f32 %v1393, %v1505
    %v1507 = vpop.f32.mrb[0].mxu0
    %v1508 = vadd.f32 %v1395, %v1507
    %1509 = vdwg.mxu0
    %v1510 = vpack.c.bf16 %v1436, %v1432
    %v1511 = vpack.c.bf16 %v1438, %v1434
    %v1512 = vpack.c.bf16 %v1446, %v1442
    %v1513 = vpack.c.bf16 %v1448, %v1444
    %v1514 = vpack.c.bf16 %v1456, %v1452
    %v1515 = vpack.c.bf16 %v1458, %v1454
    %v1516 = vpack.c.bf16 %v1466, %v1462
    %v1517 = vpack.c.bf16 %v1468, %v1464
    %v1518 = vpack.c.bf16 %v1476, %v1472
    %v1519 = vpack.c.bf16 %v1478, %v1474
    %v1520 = vpack.c.bf16 %v1486, %v1482
    %v1521 = vpack.c.bf16 %v1488, %v1484
    %v1522 = vpack.c.bf16 %v1496, %v1492
    %v1523 = vpack.c.bf16 %v1498, %v1494
    %v1524 = vpack.c.bf16 %v1506, %v1502
    %v1525 = vpack.c.bf16 %v1508, %v1504
    %v1542 = vunpack.c.l.b16 %v1510
    %v1543 = vunpack.c.l.b16 %v1511
    %v1544 = vunpack.c.h.b16 %v1510
    %v1545 = vunpack.c.h.b16 %v1511
    %v1546 = vunpack.c.l.b16 %v1512
    %v1547 = vunpack.c.l.b16 %v1513
    %v1548 = vunpack.c.h.b16 %v1512
    %v1549 = vunpack.c.h.b16 %v1513
    %v1550 = vunpack.c.l.b16 %v1514
    %v1551 = vunpack.c.l.b16 %v1515
    %v1552 = vunpack.c.h.b16 %v1514
    %v1553 = vunpack.c.h.b16 %v1515
    %v1554 = vunpack.c.l.b16 %v1516
    %v1555 = vunpack.c.l.b16 %v1517
    %v1556 = vunpack.c.h.b16 %v1516
    %v1557 = vunpack.c.h.b16 %v1517
    %v1558 = vunpack.c.l.b16 %v1518
    %v1559 = vunpack.c.l.b16 %v1519
    %v1560 = vunpack.c.h.b16 %v1518
    %v1561 = vunpack.c.h.b16 %v1519
    %v1562 = vunpack.c.l.b16 %v1520
    %v1563 = vunpack.c.l.b16 %v1521
    %v1564 = vunpack.c.h.b16 %v1520
    %v1565 = vunpack.c.h.b16 %v1521
    %v1566 = vunpack.c.l.b16 %v1522
    %v1567 = vunpack.c.l.b16 %v1523
    %v1568 = vunpack.c.h.b16 %v1522
    %v1569 = vunpack.c.h.b16 %v1523
    %v1570 = vunpack.c.l.b16 %v1524
    %v1571 = vunpack.c.l.b16 %v1525
    %v1572 = vunpack.c.h.b16 %v1524
    %v1573 = vunpack.c.h.b16 %v1525
    %v1574 = vpack.c.b16 %v1543, %v1542
    %v1575 = vpack.c.b16 %v1545, %v1544
    %v1576 = vpack.c.b16 %v1547, %v1546
    %v1577 = vpack.c.b16 %v1549, %v1548
    %v1578 = vpack.c.b16 %v1551, %v1550
    %v1579 = vpack.c.b16 %v1553, %v1552
    %v1580 = vpack.c.b16 %v1555, %v1554
    %v1581 = vpack.c.b16 %v1557, %v1556
    %v1582 = vpack.c.b16 %v1559, %v1558
    %v1583 = vpack.c.b16 %v1561, %v1560
    %v1584 = vpack.c.b16 %v1563, %v1562
    %v1585 = vpack.c.b16 %v1565, %v1564
    %v1586 = vpack.c.b16 %v1567, %v1566
    %v1587 = vpack.c.b16 %v1569, %v1568
    %v1588 = vpack.c.b16 %v1571, %v1570
    %v1589 = vpack.c.b16 %v1573, %v1572
    %1606 = vst [vmem:[%s3] sm:$0xff] %v1574
    %1607 = vst [vmem:[%s3 + $0x8] sm:$0xff] %v1575
    %1608 = vst [vmem:[%s3 + $0x10] sm:$0xff] %v1576
    %1609 = vst [vmem:[%s3 + $0x18] sm:$0xff] %v1577
    %1610 = vst [vmem:[%s3 + $0x20] sm:$0xff] %v1578
    %1611 = vst [vmem:[%s3 + $0x28] sm:$0xff] %v1579
    %1612 = vst [vmem:[%s3 + $0x30] sm:$0xff] %v1580
    %1613 = vst [vmem:[%s3 + $0x38] sm:$0xff] %v1581
    %1614 = vst [vmem:[%s3 + $0x40] sm:$0xff] %v1582
    %1615 = vst [vmem:[%s3 + $0x48] sm:$0xff] %v1583
    %1616 = vst [vmem:[%s3 + $0x50] sm:$0xff] %v1584
    %1617 = vst [vmem:[%s3 + $0x58] sm:$0xff] %v1585
    %1618 = vst [vmem:[%s3 + $0x60] sm:$0xff] %v1586
    %1619 = vst [vmem:[%s3 + $0x68] sm:$0xff] %v1587
    %1620 = vst [vmem:[%s3 + $0x70] sm:$0xff] %v1588
    %1621 = vst [vmem:[%s3 + $0x78] sm:$0xff] %v1589
    // Predicated region
    $region18: #{unet_block_forward.5} parent=1 // pred_check
      _
    $region19: #{unet_block_forward.5} parent=1 // pred_check_branch
      %1623 = sbr.rel (0) target = $region21
    $region20: #{unet_block_forward.5} parent=1 // pred_region
      _
    $region21: #{unet_block_forward.5} parent=1 // pred_fallthru
      _
    // Predicated region
    $region22: #{unet_block_forward.5} parent=1 // pred_check
      _
    $region23: #{unet_block_forward.5} parent=1 // pred_check_branch
      %1625 = sbr.rel (0) target = $region25
    $region24: #{unet_block_forward.5} parent=1 // pred_region
      _
    $region25: #{unet_block_forward.5} parent=1 // pred_fallthru
      _
    %1626 = vsyncpa [#allocation3], 1

// kernel: unet_block_forward.7
$region0: #{unet_block_forward.7}
  #allocation0 [shape = 'u32[]', space=smem, size = 0x4, offset = 0x4, fixed_abs, tag = 'smem constant byte address 0x4 - core index']
  #allocation1 [shape = 'u32[144,128]{1,0:T(1,128)}', space=vmem, size = 0x12000, scoped, tag = 'internal scratch']
  %s0 = inlined_call_operand.vmem [shape: f32[256,128], index: 0, kind: input, shape index: {}]
  %s1 = inlined_call_operand.vmem [shape: f32[1,128], index: 1, kind: input, shape index: {}]
  %s2 = inlined_call_operand.vmem [shape: f32[1,128], index: 2, kind: input, shape index: {}]
  %s3 = inlined_call_operand.vmem [shape: bf16[256,128], index: 3, kind: output, shape index: {}]
  %s4 = sld [smem:[#allocation0]]
  $region22: #{unet_block_forward.7} parent=0
    _
  %s6 = ssub.s32 1, %s4
  %s7 = scalar_select 0, %s6, %s4
  // Predicated region
  $region2: #{unet_block_forward.7} parent=0 // pred_check
    _
  $region3: #{unet_block_forward.7} parent=0 // pred_check_branch
    %9 = sbr.rel (0) target = $region5
  $region4: #{unet_block_forward.7} parent=0 // pred_region
    _
  $region5: #{unet_block_forward.7} parent=0 // pred_fallthru
    _
  // Predicated region
  $region6: #{unet_block_forward.7} parent=0 // pred_check
    _
  $region7: #{unet_block_forward.7} parent=0 // pred_check_branch
    %11 = sbr.rel (0) target = $region9
  $region8: #{unet_block_forward.7} parent=0 // pred_region
    _
  $region9: #{unet_block_forward.7} parent=0 // pred_fallthru
    _
  // Predicated region
  $region10: #{unet_block_forward.7} parent=0 // pred_check
    _
  $region11: #{unet_block_forward.7} parent=0 // pred_check_branch
    %13 = sbr.rel (0) target = $region13
  $region12: #{unet_block_forward.7} parent=0 // pred_region
    _
  $region13: #{unet_block_forward.7} parent=0 // pred_fallthru
    _
  %v14 = vld [vmem:[%s2] sm:$0x1]
  %v15 = vadd.f32 %v14, 1e-05
  %v16 = vrsqrt.pop %v15
  %v17 = vld [vmem:[%s0] sm:$0xff]
  %v18 = vld [vmem:[%s0 + $0x8] sm:$0xff]
  %v19 = vld [vmem:[%s0 + $0x10] sm:$0xff]
  %v20 = vld [vmem:[%s0 + $0x18] sm:$0xff]
  %v21 = vld [vmem:[%s0 + $0x20] sm:$0xff]
  %v22 = vld [vmem:[%s0 + $0x28] sm:$0xff]
  %v23 = vld [vmem:[%s0 + $0x30] sm:$0xff]
  %v24 = vld [vmem:[%s0 + $0x38] sm:$0xff]
  %v25 = vld [vmem:[%s0 + $0x40] sm:$0xff]
  %v26 = vld [vmem:[%s0 + $0x48] sm:$0xff]
  %v27 = vld [vmem:[%s0 + $0x50] sm:$0xff]
  %v28 = vld [vmem:[%s0 + $0x58] sm:$0xff]
  %v29 = vld [vmem:[%s0 + $0x60] sm:$0xff]
  %v30 = vld [vmem:[%s0 + $0x68] sm:$0xff]
  %v31 = vld [vmem:[%s0 + $0x70] sm:$0xff]
  %v32 = vld [vmem:[%s0 + $0x78] sm:$0xff]
  %v33 = vld [vmem:[%s0 + $0x80] sm:$0xff]
  %v34 = vld [vmem:[%s0 + $0x88] sm:$0xff]
  %v35 = vld [vmem:[%s0 + $0x90] sm:$0xff]
  %v36 = vld [vmem:[%s0 + $0x98] sm:$0xff]
  %v37 = vld [vmem:[%s0 + $0xa0] sm:$0xff]
  %v38 = vld [vmem:[%s0 + $0xa8] sm:$0xff]
  %v39 = vld [vmem:[%s0 + $0xb0] sm:$0xff]
  %v40 = vld [vmem:[%s0 + $0xb8] sm:$0xff]
  %v41 = vld [vmem:[%s0 + $0xc0] sm:$0xff]
  %v42 = vld [vmem:[%s0 + $0xc8] sm:$0xff]
  %v43 = vld [vmem:[%s0 + $0xd0] sm:$0xff]
  %v44 = vld [vmem:[%s0 + $0xd8] sm:$0xff]
  %v45 = vld [vmem:[%s0 + $0xe0] sm:$0xff]
  %v46 = vld [vmem:[%s0 + $0xe8] sm:$0xff]
  %v47 = vld [vmem:[%s0 + $0xf0] sm:$0xff]
  %v48 = vld [vmem:[%s0 + $0xf8] sm:$0xff]
  %v49 = vld [vmem:[%s1] sm:$0x1]
  %v51 = vlaneseq
  %v52 = vshrl.u32 %v51, 7
  %v53 = vsub.s32 0, %v52
  %v54 = vrot.slane %v49, %v53
  %v56 = vsub.f32 %v17, %v54
  %v57 = vsub.f32 %v18, %v54
  %v58 = vsub.f32 %v19, %v54
  %v59 = vsub.f32 %v20, %v54
  %v60 = vsub.f32 %v21, %v54
  %v61 = vsub.f32 %v22, %v54
  %v62 = vsub.f32 %v23, %v54
  %v63 = vsub.f32 %v24, %v54
  %v64 = vsub.f32 %v25, %v54
  %v65 = vsub.f32 %v26, %v54
  %v66 = vsub.f32 %v27, %v54
  %v67 = vsub.f32 %v28, %v54
  %v68 = vsub.f32 %v29, %v54
  %v69 = vsub.f32 %v30, %v54
  %v70 = vsub.f32 %v31, %v54
  %v71 = vsub.f32 %v32, %v54
  %v72 = vsub.f32 %v33, %v54
  %v73 = vsub.f32 %v34, %v54
  %v74 = vsub.f32 %v35, %v54
  %v75 = vsub.f32 %v36, %v54
  %v76 = vsub.f32 %v37, %v54
  %v77 = vsub.f32 %v38, %v54
  %v78 = vsub.f32 %v39, %v54
  %v79 = vsub.f32 %v40, %v54
  %v80 = vsub.f32 %v41, %v54
  %v81 = vsub.f32 %v42, %v54
  %v82 = vsub.f32 %v43, %v54
  %v83 = vsub.f32 %v44, %v54
  %v84 = vsub.f32 %v45, %v54
  %v85 = vsub.f32 %v46, %v54
  %v86 = vsub.f32 %v47, %v54
  %v87 = vsub.f32 %v48, %v54
  %v89 = vlaneseq
  %v90 = vshrl.u32 %v89, 7
  %v91 = vsub.s32 0, %v90
  %v92 = vrot.slane %v16, %v91
  %v94 = vmul.f32 %v56, %v92
  %v95 = vmul.f32 %v57, %v92
  %v96 = vmul.f32 %v58, %v92
  %v97 = vmul.f32 %v59, %v92
  %v98 = vmul.f32 %v60, %v92
  %v99 = vmul.f32 %v61, %v92
  %v100 = vmul.f32 %v62, %v92
  %v101 = vmul.f32 %v63, %v92
  %v102 = vmul.f32 %v64, %v92
  %v103 = vmul.f32 %v65, %v92
  %v104 = vmul.f32 %v66, %v92
  %v105 = vmul.f32 %v67, %v92
  %v106 = vmul.f32 %v68, %v92
  %v107 = vmul.f32 %v69, %v92
  %v108 = vmul.f32 %v70, %v92
  %v109 = vmul.f32 %v71, %v92
  %v110 = vmul.f32 %v72, %v92
  %v111 = vmul.f32 %v73, %v92
  %v112 = vmul.f32 %v74, %v92
  %v113 = vmul.f32 %v75, %v92
  %v114 = vmul.f32 %v76, %v92
  %v115 = vmul.f32 %v77, %v92
  %v116 = vmul.f32 %v78, %v92
  %v117 = vmul.f32 %v79, %v92
  %v118 = vmul.f32 %v80, %v92
  %v119 = vmul.f32 %v81, %v92
  %v120 = vmul.f32 %v82, %v92
  %v121 = vmul.f32 %v83, %v92
  %v122 = vmul.f32 %v84, %v92
  %v123 = vmul.f32 %v85, %v92
  %v124 = vmul.f32 %v86, %v92
  %v125 = vmul.f32 %v87, %v92
  %v126 = vmax.f32 %v94, 0.0
  %v127 = vmax.f32 %v95, 0.0
  %v128 = vmax.f32 %v96, 0.0
  %v129 = vmax.f32 %v97, 0.0
  %v130 = vmax.f32 %v98, 0.0
  %v131 = vmax.f32 %v99, 0.0
  %v132 = vmax.f32 %v100, 0.0
  %v133 = vmax.f32 %v101, 0.0
  %v134 = vmax.f32 %v102, 0.0
  %v135 = vmax.f32 %v103, 0.0
  %v136 = vmax.f32 %v104, 0.0
  %v137 = vmax.f32 %v105, 0.0
  %v138 = vmax.f32 %v106, 0.0
  %v139 = vmax.f32 %v107, 0.0
  %v140 = vmax.f32 %v108, 0.0
  %v141 = vmax.f32 %v109, 0.0
  %v142 = vmax.f32 %v110, 0.0
  %v143 = vmax.f32 %v111, 0.0
  %v144 = vmax.f32 %v112, 0.0
  %v145 = vmax.f32 %v113, 0.0
  %v146 = vmax.f32 %v114, 0.0
  %v147 = vmax.f32 %v115, 0.0
  %v148 = vmax.f32 %v116, 0.0
  %v149 = vmax.f32 %v117, 0.0
  %v150 = vmax.f32 %v118, 0.0
  %v151 = vmax.f32 %v119, 0.0
  %v152 = vmax.f32 %v120, 0.0
  %v153 = vmax.f32 %v121, 0.0
  %v154 = vmax.f32 %v122, 0.0
  %v155 = vmax.f32 %v123, 0.0
  %v156 = vmax.f32 %v124, 0.0
  %v157 = vmax.f32 %v125, 0.0
  %v158 = vmin.f32 %v126, 6.0
  %v159 = vmin.f32 %v127, 6.0
  %v160 = vmin.f32 %v128, 6.0
  %v161 = vmin.f32 %v129, 6.0
  %v162 = vmin.f32 %v130, 6.0
  %v163 = vmin.f32 %v131, 6.0
  %v164 = vmin.f32 %v132, 6.0
  %v165 = vmin.f32 %v133, 6.0
  %v166 = vmin.f32 %v134, 6.0
  %v167 = vmin.f32 %v135, 6.0
  %v168 = vmin.f32 %v136, 6.0
  %v169 = vmin.f32 %v137, 6.0
  %v170 = vmin.f32 %v138, 6.0
  %v171 = vmin.f32 %v139, 6.0
  %v172 = vmin.f32 %v140, 6.0
  %v173 = vmin.f32 %v141, 6.0
  %v174 = vmin.f32 %v142, 6.0
  %v175 = vmin.f32 %v143, 6.0
  %v176 = vmin.f32 %v144, 6.0
  %v177 = vmin.f32 %v145, 6.0
  %v178 = vmin.f32 %v146, 6.0
  %v179 = vmin.f32 %v147, 6.0
  %v180 = vmin.f32 %v148, 6.0
  %v181 = vmin.f32 %v149, 6.0
  %v182 = vmin.f32 %v150, 6.0
  %v183 = vmin.f32 %v151, 6.0
  %v184 = vmin.f32 %v152, 6.0
  %v185 = vmin.f32 %v153, 6.0
  %v186 = vmin.f32 %v154, 6.0
  %v187 = vmin.f32 %v155, 6.0
  %v188 = vmin.f32 %v156, 6.0
  %v189 = vmin.f32 %v157, 6.0
  %v190 = vpack.c.bf16 %v159, %v158
  %v191 = vpack.c.bf16 %v161, %v160
  %v192 = vpack.c.bf16 %v163, %v162
  %v193 = vpack.c.bf16 %v165, %v164
  %v194 = vpack.c.bf16 %v167, %v166
  %v195 = vpack.c.bf16 %v169, %v168
  %v196 = vpack.c.bf16 %v171, %v170
  %v197 = vpack.c.bf16 %v173, %v172
  %v198 = vpack.c.bf16 %v175, %v174
  %v199 = vpack.c.bf16 %v177, %v176
  %v200 = vpack.c.bf16 %v179, %v178
  %v201 = vpack.c.bf16 %v181, %v180
  %v202 = vpack.c.bf16 %v183, %v182
  %v203 = vpack.c.bf16 %v185, %v184
  %v204 = vpack.c.bf16 %v187, %v186
  %v205 = vpack.c.bf16 %v189, %v188
  %v222 = vunpack.c.l.b16 %v190
  %v223 = vunpack.c.h.b16 %v190
  %v224 = vunpack.c.l.b16 %v191
  %v225 = vunpack.c.h.b16 %v191
  %v226 = vunpack.c.l.b16 %v192
  %v227 = vunpack.c.h.b16 %v192
  %v228 = vunpack.c.l.b16 %v193
  %v229 = vunpack.c.h.b16 %v193
  %v230 = vunpack.c.l.b16 %v194
  %v231 = vunpack.c.h.b16 %v194
  %v232 = vunpack.c.l.b16 %v195
  %v233 = vunpack.c.h.b16 %v195
  %v234 = vunpack.c.l.b16 %v196
  %v235 = vunpack.c.h.b16 %v196
  %v236 = vunpack.c.l.b16 %v197
  %v237 = vunpack.c.h.b16 %v197
  %v238 = vunpack.c.l.b16 %v198
  %v239 = vunpack.c.h.b16 %v198
  %v240 = vunpack.c.l.b16 %v199
  %v241 = vunpack.c.h.b16 %v199
  %v242 = vunpack.c.l.b16 %v200
  %v243 = vunpack.c.h.b16 %v200
  %v244 = vunpack.c.l.b16 %v201
  %v245 = vunpack.c.h.b16 %v201
  %v246 = vunpack.c.l.b16 %v202
  %v247 = vunpack.c.h.b16 %v202
  %v248 = vunpack.c.l.b16 %v203
  %v249 = vunpack.c.h.b16 %v203
  %v250 = vunpack.c.l.b16 %v204
  %v251 = vunpack.c.h.b16 %v204
  %v252 = vunpack.c.l.b16 %v205
  %v253 = vunpack.c.h.b16 %v205
  %v254 = vpack.c.b16 %v222, %v222
  %v255 = vpack.c.b16 %v223, %v223
  %v256 = vpack.c.b16 %v224, %v224
  %v257 = vpack.c.b16 %v225, %v225
  %v258 = vpack.c.b16 %v226, %v226
  %v259 = vpack.c.b16 %v227, %v227
  %v260 = vpack.c.b16 %v228, %v228
  %v261 = vpack.c.b16 %v229, %v229
  %v262 = vpack.c.b16 %v230, %v230
  %v263 = vpack.c.b16 %v231, %v231
  %v264 = vpack.c.b16 %v232, %v232
  %v265 = vpack.c.b16 %v233, %v233
  %v266 = vpack.c.b16 %v234, %v234
  %v267 = vpack.c.b16 %v235, %v235
  %v268 = vpack.c.b16 %v236, %v236
  %v269 = vpack.c.b16 %v237, %v237
  %v270 = vpack.c.b16 %v238, %v238
  %v271 = vpack.c.b16 %v239, %v239
  %v272 = vpack.c.b16 %v240, %v240
  %v273 = vpack.c.b16 %v241, %v241
  %v274 = vpack.c.b16 %v242, %v242
  %v275 = vpack.c.b16 %v243, %v243
  %v276 = vpack.c.b16 %v244, %v244
  %v277 = vpack.c.b16 %v245, %v245
  %v278 = vpack.c.b16 %v246, %v246
  %v279 = vpack.c.b16 %v247, %v247
  %v280 = vpack.c.b16 %v248, %v248
  %v281 = vpack.c.b16 %v249, %v249
  %v282 = vpack.c.b16 %v250, %v250
  %v283 = vpack.c.b16 %v251, %v251
  %v284 = vpack.c.b16 %v252, %v252
  %v285 = vpack.c.b16 %v253, %v253
  %318 = vst [vmem:[%s3] sm:$0xf] %v254
  %319 = vst [vmem:[%s3 + $0x4] sm:$0xf] %v255
  %320 = vst [vmem:[%s3 + $0x8] sm:$0xf] %v256
  %321 = vst [vmem:[%s3 + $0xc] sm:$0xf] %v257
  %322 = vst [vmem:[%s3 + $0x10] sm:$0xf] %v258
  %323 = vst [vmem:[%s3 + $0x14] sm:$0xf] %v259
  %324 = vst [vmem:[%s3 + $0x18] sm:$0xf] %v260
  %325 = vst [vmem:[%s3 + $0x1c] sm:$0xf] %v261
  %326 = vst [vmem:[%s3 + $0x20] sm:$0xf] %v262
  %327 = vst [vmem:[%s3 + $0x24] sm:$0xf] %v263
  %328 = vst [vmem:[%s3 + $0x28] sm:$0xf] %v264
  %329 = vst [vmem:[%s3 + $0x2c] sm:$0xf] %v265
  %330 = vst [vmem:[%s3 + $0x30] sm:$0xf] %v266
  %331 = vst [vmem:[%s3 + $0x34] sm:$0xf] %v267
  %332 = vst [vmem:[%s3 + $0x38] sm:$0xf] %v268
  %333 = vst [vmem:[%s3 + $0x3c] sm:$0xf] %v269
  %334 = vst [vmem:[%s3 + $0x40] sm:$0xf] %v270
  %335 = vst [vmem:[%s3 + $0x44] sm:$0xf] %v271
  %336 = vst [vmem:[%s3 + $0x48] sm:$0xf] %v272
  %337 = vst [vmem:[%s3 + $0x4c] sm:$0xf] %v273
  %338 = vst [vmem:[%s3 + $0x50] sm:$0xf] %v274
  %339 = vst [vmem:[%s3 + $0x54] sm:$0xf] %v275
  %340 = vst [vmem:[%s3 + $0x58] sm:$0xf] %v276
  %341 = vst [vmem:[%s3 + $0x5c] sm:$0xf] %v277
  %342 = vst [vmem:[%s3 + $0x60] sm:$0xf] %v278
  %343 = vst [vmem:[%s3 + $0x64] sm:$0xf] %v279
  %344 = vst [vmem:[%s3 + $0x68] sm:$0xf] %v280
  %345 = vst [vmem:[%s3 + $0x6c] sm:$0xf] %v281
  %346 = vst [vmem:[%s3 + $0x70] sm:$0xf] %v282
  %347 = vst [vmem:[%s3 + $0x74] sm:$0xf] %v283
  %348 = vst [vmem:[%s3 + $0x78] sm:$0xf] %v284
  %349 = vst [vmem:[%s3 + $0x7c] sm:$0xf] %v285
  // Predicated region
  $region14: #{unet_block_forward.7} parent=0 // pred_check
    _
  $region15: #{unet_block_forward.7} parent=0 // pred_check_branch
    %351 = sbr.rel (0) target = $region17
  $region16: #{unet_block_forward.7} parent=0 // pred_region
    _
  $region17: #{unet_block_forward.7} parent=0 // pred_fallthru
    _
  // Predicated region
  $region18: #{unet_block_forward.7} parent=0 // pred_check
    _
  $region19: #{unet_block_forward.7} parent=0 // pred_check_branch
    %353 = sbr.rel (0) target = $region21
  $region20: #{unet_block_forward.7} parent=0 // pred_region
    _
  $region21: #{unet_block_forward.7} parent=0 // pred_fallthru
    _

// kernel: unet_block_forward.9
$region0: #{unet_block_forward.9}
  #allocation0 [shape = 'u32[]', space=smem, size = 0x4, offset = 0x4, fixed_abs, tag = 'smem constant byte address 0x4 - core index']
  #allocation1 [shape = 'u32[144,128]{1,0:T(1,128)}', space=vmem, size = 0x12000, scoped, tag = 'internal scratch']
  %s0 = inlined_call_operand.vmem [shape: f32[128,128], index: 0, kind: input, shape index: {}]
  %s1 = inlined_call_operand.vmem [shape: f32[1,128], index: 1, kind: input, shape index: {}]
  %s2 = inlined_call_operand.vmem [shape: f32[1,128], index: 2, kind: input, shape index: {}]
  %s3 = inlined_call_operand.vmem [shape: f32[128,128], index: 3, kind: output, shape index: {}]
  %s4 = sld [smem:[#allocation0]]
  $region22: #{unet_block_forward.9} parent=0
    _
  %s6 = ssub.s32 1, %s4
  %s7 = scalar_select 0, %s6, %s4
  // Predicated region
  $region2: #{unet_block_forward.9} parent=0 // pred_check
    _
  $region3: #{unet_block_forward.9} parent=0 // pred_check_branch
    %9 = sbr.rel (0) target = $region5
  $region4: #{unet_block_forward.9} parent=0 // pred_region
    _
  $region5: #{unet_block_forward.9} parent=0 // pred_fallthru
    _
  // Predicated region
  $region6: #{unet_block_forward.9} parent=0 // pred_check
    _
  $region7: #{unet_block_forward.9} parent=0 // pred_check_branch
    %11 = sbr.rel (0) target = $region9
  $region8: #{unet_block_forward.9} parent=0 // pred_region
    _
  $region9: #{unet_block_forward.9} parent=0 // pred_fallthru
    _
  // Predicated region
  $region10: #{unet_block_forward.9} parent=0 // pred_check
    _
  $region11: #{unet_block_forward.9} parent=0 // pred_check_branch
    %13 = sbr.rel (0) target = $region13
  $region12: #{unet_block_forward.9} parent=0 // pred_region
    _
  $region13: #{unet_block_forward.9} parent=0 // pred_fallthru
    _
  %v14 = vld [vmem:[%s2] sm:$0x1]
  %v15 = vadd.f32 %v14, 1e-05
  %v16 = vrsqrt.pop %v15
  %v17 = vld [vmem:[%s0] sm:$0xff]
  %v18 = vld [vmem:[%s0 + $0x8] sm:$0xff]
  %v19 = vld [vmem:[%s0 + $0x10] sm:$0xff]
  %v20 = vld [vmem:[%s0 + $0x18] sm:$0xff]
  %v21 = vld [vmem:[%s0 + $0x20] sm:$0xff]
  %v22 = vld [vmem:[%s0 + $0x28] sm:$0xff]
  %v23 = vld [vmem:[%s0 + $0x30] sm:$0xff]
  %v24 = vld [vmem:[%s0 + $0x38] sm:$0xff]
  %v25 = vld [vmem:[%s0 + $0x40] sm:$0xff]
  %v26 = vld [vmem:[%s0 + $0x48] sm:$0xff]
  %v27 = vld [vmem:[%s0 + $0x50] sm:$0xff]
  %v28 = vld [vmem:[%s0 + $0x58] sm:$0xff]
  %v29 = vld [vmem:[%s0 + $0x60] sm:$0xff]
  %v30 = vld [vmem:[%s0 + $0x68] sm:$0xff]
  %v31 = vld [vmem:[%s0 + $0x70] sm:$0xff]
  %v32 = vld [vmem:[%s0 + $0x78] sm:$0xff]
  %v33 = vld [vmem:[%s1] sm:$0x1]
  %v35 = vlaneseq
  %v36 = vshrl.u32 %v35, 7
  %v37 = vsub.s32 0, %v36
  %v38 = vrot.slane %v33, %v37
  %v40 = vsub.f32 %v17, %v38
  %v41 = vsub.f32 %v18, %v38
  %v42 = vsub.f32 %v19, %v38
  %v43 = vsub.f32 %v20, %v38
  %v44 = vsub.f32 %v21, %v38
  %v45 = vsub.f32 %v22, %v38
  %v46 = vsub.f32 %v23, %v38
  %v47 = vsub.f32 %v24, %v38
  %v48 = vsub.f32 %v25, %v38
  %v49 = vsub.f32 %v26, %v38
  %v50 = vsub.f32 %v27, %v38
  %v51 = vsub.f32 %v28, %v38
  %v52 = vsub.f32 %v29, %v38
  %v53 = vsub.f32 %v30, %v38
  %v54 = vsub.f32 %v31, %v38
  %v55 = vsub.f32 %v32, %v38
  %v57 = vlaneseq
  %v58 = vshrl.u32 %v57, 7
  %v59 = vsub.s32 0, %v58
  %v60 = vrot.slane %v16, %v59
  %v62 = vmul.f32 %v40, %v60
  %v63 = vmul.f32 %v41, %v60
  %v64 = vmul.f32 %v42, %v60
  %v65 = vmul.f32 %v43, %v60
  %v66 = vmul.f32 %v44, %v60
  %v67 = vmul.f32 %v45, %v60
  %v68 = vmul.f32 %v46, %v60
  %v69 = vmul.f32 %v47, %v60
  %v70 = vmul.f32 %v48, %v60
  %v71 = vmul.f32 %v49, %v60
  %v72 = vmul.f32 %v50, %v60
  %v73 = vmul.f32 %v51, %v60
  %v74 = vmul.f32 %v52, %v60
  %v75 = vmul.f32 %v53, %v60
  %v76 = vmul.f32 %v54, %v60
  %v77 = vmul.f32 %v55, %v60
  %78 = vst [vmem:[%s3] sm:$0xff] %v62
  %79 = vst [vmem:[%s3 + $0x8] sm:$0xff] %v63
  %80 = vst [vmem:[%s3 + $0x10] sm:$0xff] %v64
  %81 = vst [vmem:[%s3 + $0x18] sm:$0xff] %v65
  %82 = vst [vmem:[%s3 + $0x20] sm:$0xff] %v66
  %83 = vst [vmem:[%s3 + $0x28] sm:$0xff] %v67
  %84 = vst [vmem:[%s3 + $0x30] sm:$0xff] %v68
  %85 = vst [vmem:[%s3 + $0x38] sm:$0xff] %v69
  %86 = vst [vmem:[%s3 + $0x40] sm:$0xff] %v70
  %87 = vst [vmem:[%s3 + $0x48] sm:$0xff] %v71
  %88 = vst [vmem:[%s3 + $0x50] sm:$0xff] %v72
  %89 = vst [vmem:[%s3 + $0x58] sm:$0xff] %v73
  %90 = vst [vmem:[%s3 + $0x60] sm:$0xff] %v74
  %91 = vst [vmem:[%s3 + $0x68] sm:$0xff] %v75
  %92 = vst [vmem:[%s3 + $0x70] sm:$0xff] %v76
  %93 = vst [vmem:[%s3 + $0x78] sm:$0xff] %v77
  // Predicated region
  $region14: #{unet_block_forward.9} parent=0 // pred_check
    _
  $region15: #{unet_block_forward.9} parent=0 // pred_check_branch
    %95 = sbr.rel (0) target = $region17
  $region16: #{unet_block_forward.9} parent=0 // pred_region
    _
  $region17: #{unet_block_forward.9} parent=0 // pred_fallthru
    _
  // Predicated region
  $region18: #{unet_block_forward.9} parent=0 // pred_check
    _
  $region19: #{unet_block_forward.9} parent=0 // pred_check_branch
    %97 = sbr.rel (0) target = $region21
  $region20: #{unet_block_forward.9} parent=0 // pred_region
    _
  $region21: #{unet_block_forward.9} parent=0 // pred_fallthru
    _

// kernel: unet_block_forward.8
$region0: #{unet_block_forward.8}
  #allocation0 [shape = 'u32[]', space=smem, size = 0x4, offset = 0x4, fixed_abs, tag = 'smem constant byte address 0x4 - core index']
  #allocation1 [shape = 'u32[144,128]{1,0:T(1,128)}', space=vmem, size = 0x12000, scoped, tag = 'internal scratch']
  %s0 = inlined_call_operand.vmem [shape: bf16[1024,864], index: 0, kind: input, shape index: {}]
  %s1 = inlined_call_operand.vmem [shape: bf16[864,16], index: 1, kind: input, shape index: {}]
  %s2 = inlined_call_operand.vmem [shape: f32[1024,16], index: 2, kind: output, shape index: {0}]
  %s3 = inlined_call_operand.vmem [shape: f32[1,16], index: 3, kind: output, shape index: {1}]
  %s4 = inlined_call_operand.vmem [shape: f32[1,16], index: 4, kind: output, shape index: {2}]
  %5 = xla_tuple %s2, %s3, %s4
  %s6 = sld [smem:[#allocation0]]
  $region61: #{unet_block_forward.8} parent=0
    _
  %s8 = ssub.s32 1, %s6
  %s9 = scalar_select 0, %s8, %s6
  loop: start=0, step=1, limit=4
  $region2: #{unet_block_forward.8} parent=0 // loop_pre_header
    _
  $region3: #{unet_block_forward.8} parent=0 // loop_header
    %s11 = sphi 0, %s15
    %p12 = scmp.ge.s32.totalorder %s11, 4
    %s21 = sphi 0, %s23
    %s24 = sphi 0, %s21
    %s25 = sphi 0, %s24
    %s41 = sphi 0, %s25
    %s45 = sphi 0, %s45
    %s47 = sphi 0, %s45
    %s48 = sphi 0, %s47
    %s62 = sphi 0, %s48
    %s68 = sphi 0, %s70
    %s71 = sphi 0, %s68
    %s72 = sphi 0, %s71
    %s88 = sphi 0, %s72
    %s92 = sphi 0, %s92
    %s94 = sphi 0, %s92
    %s95 = sphi 0, %s94
    %s109 = sphi 0, %s95
    %s113 = sphi 0, %s113
    %s115 = sphi 0, %s113
    %s116 = sphi 0, %s115
    %s130 = sphi 0, %s116
  $region4: #{unet_block_forward.8} parent=0 // loop_header_branch
    %14 = sbr.rel (%p12) target = $region8
  $region5: #{unet_block_forward.8} parent=0 // loop_body
    %s16 = ssub.s32 %s11, 1
    %s17 = ssub.s32 %s11, 2
    %s18 = sadd.s32 %s11, 1
    %s19 = ssub.s32 %s11, %s18
    %p20 = scmp.eq.s32.totalorder %s19, 0
    %s22 = sadd.s32 %s21, 1
    %s23 = scalar_select %p20, %s21, %s22
    %p26 = pneg %p20
    %p27 = scmp.eq.s32.totalorder %s11, 1
    %p28 = por %p26, %p27
    %p29 = scmp.ne.s32.totalorder %s21, %s24
    %p30 = scmp.eq.s32.totalorder %s11, 0
    %p31 = por %p29, %p30
    %p32 = scmp.ne.s32.totalorder %s21, %s24
    %p33 = scmp.eq.s32.totalorder %s16, 1
    %p34 = por %p32, %p33
    %p35 = scmp.ne.s32.totalorder %s24, %s25
    %p36 = scmp.eq.s32.totalorder %s16, 0
    %p37 = por %p35, %p36
    %p38 = scmp.ne.s32.totalorder %s24, %s25
    %p39 = scmp.eq.s32.totalorder %s17, 1
    %p40 = por %p38, %p39
    %p42 = scmp.ne.s32.totalorder %s25, %s41
    %p43 = scmp.eq.s32.totalorder %s17, 0
    %p44 = por %p42, %p43
    %s46 = sadd.s32 %s45, 1
    %p49 = scmp.eq.s32.totalorder %s11, 1
    %p50 = scmp.ne.s32.totalorder %s45, %s47
    %p51 = scmp.eq.s32.totalorder %s11, 0
    %p52 = por %p50, %p51
    %p53 = scmp.ne.s32.totalorder %s45, %s47
    %p54 = scmp.eq.s32.totalorder %s16, 1
    %p55 = por %p53, %p54
    %p56 = scmp.ne.s32.totalorder %s47, %s48
    %p57 = scmp.eq.s32.totalorder %s16, 0
    %p58 = por %p56, %p57
    %p59 = scmp.ne.s32.totalorder %s47, %s48
    %p60 = scmp.eq.s32.totalorder %s17, 1
    %p61 = por %p59, %p60
    %p63 = scmp.ne.s32.totalorder %s48, %s62
    %p64 = scmp.eq.s32.totalorder %s17, 0
    %p65 = por %p63, %p64
    %s66 = ssub.s32 %s11, %s18
    %p67 = scmp.eq.s32.totalorder %s66, 0
    %s69 = sadd.s32 %s68, 1
    %s70 = scalar_select %p67, %s68, %s69
    %p73 = pneg %p67
    %p74 = scmp.eq.s32.totalorder %s11, 1
    %p75 = por %p73, %p74
    %p76 = scmp.ne.s32.totalorder %s68, %s71
    %p77 = scmp.eq.s32.totalorder %s11, 0
    %p78 = por %p76, %p77
    %p79 = scmp.ne.s32.totalorder %s68, %s71
    %p80 = scmp.eq.s32.totalorder %s16, 1
    %p81 = por %p79, %p80
    %p82 = scmp.ne.s32.totalorder %s71, %s72
    %p83 = scmp.eq.s32.totalorder %s16, 0
    %p84 = por %p82, %p83
    %p85 = scmp.ne.s32.totalorder %s71, %s72
    %p86 = scmp.eq.s32.totalorder %s17, 1
    %p87 = por %p85, %p86
    %p89 = scmp.ne.s32.totalorder %s72, %s88
    %p90 = scmp.eq.s32.totalorder %s17, 0
    %p91 = por %p89, %p90
    %s93 = sadd.s32 %s92, 1
    %p96 = scmp.eq.s32.totalorder %s11, 1
    %p97 = scmp.ne.s32.totalorder %s92, %s94
    %p98 = scmp.eq.s32.totalorder %s11, 0
    %p99 = por %p97, %p98
    %p100 = scmp.ne.s32.totalorder %s92, %s94
    %p101 = scmp.eq.s32.totalorder %s16, 1
    %p102 = por %p100, %p101
    %p103 = scmp.ne.s32.totalorder %s94, %s95
    %p104 = scmp.eq.s32.totalorder %s16, 0
    %p105 = por %p103, %p104
    %p106 = scmp.ne.s32.totalorder %s94, %s95
    %p107 = scmp.eq.s32.totalorder %s17, 1
    %p108 = por %p106, %p107
    %p110 = scmp.ne.s32.totalorder %s95, %s109
    %p111 = scmp.eq.s32.totalorder %s17, 0
    %p112 = por %p110, %p111
    %s114 = sadd.s32 %s113, 1
    %p117 = scmp.eq.s32.totalorder %s11, 1
    %p118 = scmp.ne.s32.totalorder %s113, %s115
    %p119 = scmp.eq.s32.totalorder %s11, 0
    %p120 = por %p118, %p119
    %p121 = scmp.ne.s32.totalorder %s113, %s115
    %p122 = scmp.eq.s32.totalorder %s16, 1
    %p123 = por %p121, %p122
    %p124 = scmp.ne.s32.totalorder %s115, %s116
    %p125 = scmp.eq.s32.totalorder %s16, 0
    %p126 = por %p124, %p125
    %p127 = scmp.ne.s32.totalorder %s115, %s116
    %p128 = scmp.eq.s32.totalorder %s17, 1
    %p129 = por %p127, %p128
    %p131 = scmp.ne.s32.totalorder %s116, %s130
    %p132 = scmp.eq.s32.totalorder %s17, 0
    %p133 = por %p131, %p132
    %p134 = scmp.le.s32.totalorder 1, %s11
    %p135 = scmp.lt.s32.totalorder %s11, 3
    %p136 = pnand %p134, %p135
    %p137 = pneg %p136
    // Predicated region
    $region9: #{unet_block_forward.8} parent=5 // pred_check
      _
    $region10: #{unet_block_forward.8} parent=5 // pred_check_branch
      %139 = sbr.rel (%p136) target = $region12
    $region11: #{unet_block_forward.8} parent=5 // pred_region
      %s140 = ssub.s32 %s11, 1
      // Predicated region
      $region13: #{unet_block_forward.8} parent=11 // pred_check
        %p141 = pneg %p58
      $region14: #{unet_block_forward.8} parent=11 // pred_check_branch
        %143 = sbr.rel (%p141) target = $region16
      $region15: #{unet_block_forward.8} parent=11 // pred_region
        _
      $region16: #{unet_block_forward.8} parent=11 // pred_fallthru
        _
    $region12: #{unet_block_forward.8} parent=5 // pred_fallthru
      _
    %p144 = scmp.lt.s32.totalorder %s11, 2
    // Predicated region
    $region17: #{unet_block_forward.8} parent=5 // pred_check
      %p145 = pneg %p144
    $region18: #{unet_block_forward.8} parent=5 // pred_check_branch
      %147 = sbr.rel (%p145) target = $region20
    $region19: #{unet_block_forward.8} parent=5 // pred_region
      // Predicated region
      $region21: #{unet_block_forward.8} parent=19 // pred_check
        %p148 = pneg %p31
      $region22: #{unet_block_forward.8} parent=19 // pred_check_branch
        %150 = sbr.rel (%p148) target = $region24
      $region23: #{unet_block_forward.8} parent=19 // pred_region
        %s151 = smul.u32 64, %s11
        %p152 = scmp.lt.s32.totalorder %s151, 127
        %s153 = scalar_select %p152, %s151, 127
        %s154 = smul.addr %s153, 7
        %s155 = smul.addr %s154, 4
        %s156 = scalar_lea.vmem %s0, %s155
        %s157 = smul.u32 64, %s11
      $region24: #{unet_block_forward.8} parent=19 // pred_fallthru
        _
    $region20: #{unet_block_forward.8} parent=5 // pred_fallthru
      _
    %p158 = scmp.le.s32.totalorder 1, %s11
    %p159 = scmp.lt.s32.totalorder %s11, 3
    %p160 = pnand %p158, %p159
    %p161 = pneg %p160
    // Predicated region
    $region25: #{unet_block_forward.8} parent=5 // pred_check
      _
    $region26: #{unet_block_forward.8} parent=5 // pred_check_branch
      %163 = sbr.rel (%p160) target = $region28
    $region27: #{unet_block_forward.8} parent=5 // pred_region
      %s164 = ssub.s32 %s11, 1
      %s165 = smul.u32 64, %s16
      %p166 = scmp.lt.s32.totalorder %s165, 127
      %s167 = scalar_select %p166, %s165, 127
      %s168 = smul.addr %s167, 7
      %s169 = smul.addr %s168, 4
      %s170 = scalar_lea.vmem %s0, %s169
      %p171 = pneg %p37
      %p172 = pneg %p34
      %p173 = pneg %p58
      %p174 = pneg %p55
      %p175 = pneg %p84
      %p176 = pneg %p81
      %s177 = smul.u32 64, %s16
      %p178 = scmp.lt.s32.totalorder %s177, 127
      %s179 = scalar_select %p178, %s177, 127
      %s180 = smul.addr %s179, 8
      %s181 = scalar_lea.vmem %s2, %s180
      %p182 = pneg %p105
      %p183 = pneg %p102
      %p184 = pneg %p126
      %p185 = pneg %p123
      %s186 = smul.u32 64, %s16
      %p187 = scmp.lt.s32.totalorder %s186, 127
      %s188 = scalar_select %p187, %s186, 127
      %s189 = smul.addr %s188, 7
      %s190 = smul.addr %s189, 4
      %s191 = scalar_lea.vmem %s0, %s190
      %s192 = smul.u32 64, %s16
      %s193 = smul.u32 64, %s16
      %p194 = scmp.lt.s32.totalorder %s193, 127
      %s195 = scalar_select %p194, %s193, 127
      %s196 = smul.addr %s195, 8
      %s197 = scalar_lea.vmem %s2, %s196
      %s198 = smul.u32 64, %s16
      %v200 = vld [vmem:[%s191] sm:$0xff]
      %v201 = vld [vmem:[%s191 + $0x8] sm:$0xff]
      %v202 = vld [vmem:[%s191 + $0x10] sm:$0xff]
      %v203 = vld [vmem:[%s191 + $0x18] sm:$0xf]
      %v204 = vld [vmem:[%s191 + $0x1c] sm:$0xff]
      %v205 = vld [vmem:[%s191 + $0x24] sm:$0xff]
      %v206 = vld [vmem:[%s191 + $0x2c] sm:$0xff]
      %v207 = vld [vmem:[%s191 + $0x34] sm:$0xf]
      %v208 = vld [vmem:[%s191 + $0x38] sm:$0xff]
      %v209 = vld [vmem:[%s191 + $0x40] sm:$0xff]
      %v210 = vld [vmem:[%s191 + $0x48] sm:$0xff]
      %v211 = vld [vmem:[%s191 + $0x50] sm:$0xf]
      %v212 = vld [vmem:[%s191 + $0x54] sm:$0xff]
      %v213 = vld [vmem:[%s191 + $0x5c] sm:$0xff]
      %v214 = vld [vmem:[%s191 + $0x64] sm:$0xff]
      %v215 = vld [vmem:[%s191 + $0x6c] sm:$0xf]
      %v216 = vld [vmem:[%s191 + $0x70] sm:$0xff]
      %v217 = vld [vmem:[%s191 + $0x78] sm:$0xff]
      %v218 = vld [vmem:[%s191 + $0x80] sm:$0xff]
      %v219 = vld [vmem:[%s191 + $0x88] sm:$0xf]
      %v220 = vld [vmem:[%s191 + $0x8c] sm:$0xff]
      %v221 = vld [vmem:[%s191 + $0x94] sm:$0xff]
      %v222 = vld [vmem:[%s191 + $0x9c] sm:$0xff]
      %v223 = vld [vmem:[%s191 + $0xa4] sm:$0xf]
      %v224 = vld [vmem:[%s191 + $0xa8] sm:$0xff]
      %v225 = vld [vmem:[%s191 + $0xb0] sm:$0xff]
      %v226 = vld [vmem:[%s191 + $0xb8] sm:$0xff]
      %v227 = vld [vmem:[%s191 + $0xc0] sm:$0xf]
      %v228 = vld [vmem:[%s191 + $0xc4] sm:$0xff]
      %v229 = vld [vmem:[%s191 + $0xcc] sm:$0xff]
      %v230 = vld [vmem:[%s191 + $0xd4] sm:$0xff]
      %v231 = vld [vmem:[%s191 + $0xdc] sm:$0xf]
      %v232 = vld [vmem:[%s191 + $0xe0] sm:$0xff]
      %v233 = vld [vmem:[%s191 + $0xe8] sm:$0xff]
      %v234 = vld [vmem:[%s191 + $0xf0] sm:$0xff]
      %v235 = vld [vmem:[%s191 + $0xf8] sm:$0xf]
      %v236 = vld [vmem:[%s191 + $0xfc] sm:$0xff]
      %v237 = vld [vmem:[%s191 + $0x104] sm:$0xff]
      %v238 = vld [vmem:[%s191 + $0x10c] sm:$0xff]
      %v239 = vld [vmem:[%s191 + $0x114] sm:$0xf]
      %v240 = vld [vmem:[%s191 + $0x118] sm:$0xff]
      %v241 = vld [vmem:[%s191 + $0x120] sm:$0xff]
      %v242 = vld [vmem:[%s191 + $0x128] sm:$0xff]
      %v243 = vld [vmem:[%s191 + $0x130] sm:$0xf]
      %v244 = vld [vmem:[%s191 + $0x134] sm:$0xff]
      %v245 = vld [vmem:[%s191 + $0x13c] sm:$0xff]
      %v246 = vld [vmem:[%s191 + $0x144] sm:$0xff]
      %v247 = vld [vmem:[%s191 + $0x14c] sm:$0xf]
      %v248 = vld [vmem:[%s191 + $0x150] sm:$0xff]
      %v249 = vld [vmem:[%s191 + $0x158] sm:$0xff]
      %v250 = vld [vmem:[%s191 + $0x160] sm:$0xff]
      %v251 = vld [vmem:[%s191 + $0x168] sm:$0xf]
      %v252 = vld [vmem:[%s191 + $0x16c] sm:$0xff]
      %v253 = vld [vmem:[%s191 + $0x174] sm:$0xff]
      %v254 = vld [vmem:[%s191 + $0x17c] sm:$0xff]
      %v255 = vld [vmem:[%s191 + $0x184] sm:$0xf]
      %v256 = vld [vmem:[%s191 + $0x188] sm:$0xff]
      %v257 = vld [vmem:[%s191 + $0x190] sm:$0xff]
      %v258 = vld [vmem:[%s191 + $0x198] sm:$0xff]
      %v259 = vld [vmem:[%s191 + $0x1a0] sm:$0xf]
      %v260 = vld [vmem:[%s191 + $0x1a4] sm:$0xff]
      %v261 = vld [vmem:[%s191 + $0x1ac] sm:$0xff]
      %v262 = vld [vmem:[%s191 + $0x1b4] sm:$0xff]
      %v263 = vld [vmem:[%s191 + $0x1bc] sm:$0xf]
      %v264 = vld [vmem:[%s191 + $0x1c0] sm:$0xff]
      %v265 = vld [vmem:[%s191 + $0x1c8] sm:$0xff]
      %v266 = vld [vmem:[%s191 + $0x1d0] sm:$0xff]
      %v267 = vld [vmem:[%s191 + $0x1d8] sm:$0xf]
      %v268 = vld [vmem:[%s191 + $0x1dc] sm:$0xff]
      %v269 = vld [vmem:[%s191 + $0x1e4] sm:$0xff]
      %v270 = vld [vmem:[%s191 + $0x1ec] sm:$0xff]
      %v271 = vld [vmem:[%s191 + $0x1f4] sm:$0xf]
      %v272 = vld [vmem:[%s191 + $0x1f8] sm:$0xff]
      %v273 = vld [vmem:[%s191 + $0x200] sm:$0xff]
      %v274 = vld [vmem:[%s191 + $0x208] sm:$0xff]
      %v275 = vld [vmem:[%s191 + $0x210] sm:$0xf]
      %v276 = vld [vmem:[%s191 + $0x214] sm:$0xff]
      %v277 = vld [vmem:[%s191 + $0x21c] sm:$0xff]
      %v278 = vld [vmem:[%s191 + $0x224] sm:$0xff]
      %v279 = vld [vmem:[%s191 + $0x22c] sm:$0xf]
      %v280 = vld [vmem:[%s191 + $0x230] sm:$0xff]
      %v281 = vld [vmem:[%s191 + $0x238] sm:$0xff]
      %v282 = vld [vmem:[%s191 + $0x240] sm:$0xff]
      %v283 = vld [vmem:[%s191 + $0x248] sm:$0xf]
      %v284 = vld [vmem:[%s191 + $0x24c] sm:$0xff]
      %v285 = vld [vmem:[%s191 + $0x254] sm:$0xff]
      %v286 = vld [vmem:[%s191 + $0x25c] sm:$0xff]
      %v287 = vld [vmem:[%s191 + $0x264] sm:$0xf]
      %v288 = vld [vmem:[%s191 + $0x268] sm:$0xff]
      %v289 = vld [vmem:[%s191 + $0x270] sm:$0xff]
      %v290 = vld [vmem:[%s191 + $0x278] sm:$0xff]
      %v291 = vld [vmem:[%s191 + $0x280] sm:$0xf]
      %v292 = vld [vmem:[%s191 + $0x284] sm:$0xff]
      %v293 = vld [vmem:[%s191 + $0x28c] sm:$0xff]
      %v294 = vld [vmem:[%s191 + $0x294] sm:$0xff]
      %v295 = vld [vmem:[%s191 + $0x29c] sm:$0xf]
      %v296 = vld [vmem:[%s191 + $0x2a0] sm:$0xff]
      %v297 = vld [vmem:[%s191 + $0x2a8] sm:$0xff]
      %v298 = vld [vmem:[%s191 + $0x2b0] sm:$0xff]
      %v299 = vld [vmem:[%s191 + $0x2b8] sm:$0xf]
      %v300 = vld [vmem:[%s191 + $0x2bc] sm:$0xff]
      %v301 = vld [vmem:[%s191 + $0x2c4] sm:$0xff]
      %v302 = vld [vmem:[%s191 + $0x2cc] sm:$0xff]
      %v303 = vld [vmem:[%s191 + $0x2d4] sm:$0xf]
      %v304 = vld [vmem:[%s191 + $0x2d8] sm:$0xff]
      %v305 = vld [vmem:[%s191 + $0x2e0] sm:$0xff]
      %v306 = vld [vmem:[%s191 + $0x2e8] sm:$0xff]
      %v307 = vld [vmem:[%s191 + $0x2f0] sm:$0xf]
      %v308 = vld [vmem:[%s191 + $0x2f4] sm:$0xff]
      %v309 = vld [vmem:[%s191 + $0x2fc] sm:$0xff]
      %v310 = vld [vmem:[%s191 + $0x304] sm:$0xff]
      %v311 = vld [vmem:[%s191 + $0x30c] sm:$0xf]
      %v312 = vld [vmem:[%s191 + $0x310] sm:$0xff]
      %v313 = vld [vmem:[%s191 + $0x318] sm:$0xff]
      %v314 = vld [vmem:[%s191 + $0x320] sm:$0xff]
      %v315 = vld [vmem:[%s191 + $0x328] sm:$0xf]
      %v316 = vld [vmem:[%s191 + $0x32c] sm:$0xff]
      %v317 = vld [vmem:[%s191 + $0x334] sm:$0xff]
      %v318 = vld [vmem:[%s191 + $0x33c] sm:$0xff]
      %v319 = vld [vmem:[%s191 + $0x344] sm:$0xf]
      %v320 = vld [vmem:[%s191 + $0x348] sm:$0xff]
      %v321 = vld [vmem:[%s191 + $0x350] sm:$0xff]
      %v322 = vld [vmem:[%s191 + $0x358] sm:$0xff]
      %v323 = vld [vmem:[%s191 + $0x360] sm:$0xf]
      %v324 = vld [vmem:[%s191 + $0x364] sm:$0xff]
      %v325 = vld [vmem:[%s191 + $0x36c] sm:$0xff]
      %v326 = vld [vmem:[%s191 + $0x374] sm:$0xff]
      %v327 = vld [vmem:[%s191 + $0x37c] sm:$0xf]
      %v328 = vld [vmem:[%s191 + $0x380] sm:$0xff]
      %v329 = vld [vmem:[%s191 + $0x388] sm:$0xff]
      %v330 = vld [vmem:[%s191 + $0x390] sm:$0xff]
      %v331 = vld [vmem:[%s191 + $0x398] sm:$0xf]
      %v332 = vld [vmem:[%s191 + $0x39c] sm:$0xff]
      %v333 = vld [vmem:[%s191 + $0x3a4] sm:$0xff]
      %v334 = vld [vmem:[%s191 + $0x3ac] sm:$0xff]
      %v335 = vld [vmem:[%s191 + $0x3b4] sm:$0xf]
      %v336 = vld [vmem:[%s191 + $0x3b8] sm:$0xff]
      %v337 = vld [vmem:[%s191 + $0x3c0] sm:$0xff]
      %v338 = vld [vmem:[%s191 + $0x3c8] sm:$0xff]
      %v339 = vld [vmem:[%s191 + $0x3d0] sm:$0xf]
      %v340 = vld [vmem:[%s191 + $0x3d4] sm:$0xff]
      %v341 = vld [vmem:[%s191 + $0x3dc] sm:$0xff]
      %v342 = vld [vmem:[%s191 + $0x3e4] sm:$0xff]
      %v343 = vld [vmem:[%s191 + $0x3ec] sm:$0xf]
      %v344 = vld [vmem:[%s191 + $0x3f0] sm:$0xff]
      %v345 = vld [vmem:[%s191 + $0x3f8] sm:$0xff]
      %v346 = vld [vmem:[%s191 + $0x400] sm:$0xff]
      %v347 = vld [vmem:[%s191 + $0x408] sm:$0xf]
      %v348 = vld [vmem:[%s191 + $0x40c] sm:$0xff]
      %v349 = vld [vmem:[%s191 + $0x414] sm:$0xff]
      %v350 = vld [vmem:[%s191 + $0x41c] sm:$0xff]
      %v351 = vld [vmem:[%s191 + $0x424] sm:$0xf]
      %v352 = vld [vmem:[%s191 + $0x428] sm:$0xff]
      %v353 = vld [vmem:[%s191 + $0x430] sm:$0xff]
      %v354 = vld [vmem:[%s191 + $0x438] sm:$0xff]
      %v355 = vld [vmem:[%s191 + $0x440] sm:$0xf]
      %v356 = vld [vmem:[%s191 + $0x444] sm:$0xff]
      %v357 = vld [vmem:[%s191 + $0x44c] sm:$0xff]
      %v358 = vld [vmem:[%s191 + $0x454] sm:$0xff]
      %v359 = vld [vmem:[%s191 + $0x45c] sm:$0xf]
      %v360 = vld [vmem:[%s191 + $0x460] sm:$0xff]
      %v361 = vld [vmem:[%s191 + $0x468] sm:$0xff]
      %v362 = vld [vmem:[%s191 + $0x470] sm:$0xff]
      %v363 = vld [vmem:[%s191 + $0x478] sm:$0xf]
      %v364 = vld [vmem:[%s191 + $0x47c] sm:$0xff]
      %v365 = vld [vmem:[%s191 + $0x484] sm:$0xff]
      %v366 = vld [vmem:[%s191 + $0x48c] sm:$0xff]
      %v367 = vld [vmem:[%s191 + $0x494] sm:$0xf]
      %v368 = vld [vmem:[%s191 + $0x498] sm:$0xff]
      %v369 = vld [vmem:[%s191 + $0x4a0] sm:$0xff]
      %v370 = vld [vmem:[%s191 + $0x4a8] sm:$0xff]
      %v371 = vld [vmem:[%s191 + $0x4b0] sm:$0xf]
      %v372 = vld [vmem:[%s191 + $0x4b4] sm:$0xff]
      %v373 = vld [vmem:[%s191 + $0x4bc] sm:$0xff]
      %v374 = vld [vmem:[%s191 + $0x4c4] sm:$0xff]
      %v375 = vld [vmem:[%s191 + $0x4cc] sm:$0xf]
      %v376 = vld [vmem:[%s191 + $0x4d0] sm:$0xff]
      %v377 = vld [vmem:[%s191 + $0x4d8] sm:$0xff]
      %v378 = vld [vmem:[%s191 + $0x4e0] sm:$0xff]
      %v379 = vld [vmem:[%s191 + $0x4e8] sm:$0xf]
      %v380 = vld [vmem:[%s191 + $0x4ec] sm:$0xff]
      %v381 = vld [vmem:[%s191 + $0x4f4] sm:$0xff]
      %v382 = vld [vmem:[%s191 + $0x4fc] sm:$0xff]
      %v383 = vld [vmem:[%s191 + $0x504] sm:$0xf]
      %v384 = vld [vmem:[%s191 + $0x508] sm:$0xff]
      %v385 = vld [vmem:[%s191 + $0x510] sm:$0xff]
      %v386 = vld [vmem:[%s191 + $0x518] sm:$0xff]
      %v387 = vld [vmem:[%s191 + $0x520] sm:$0xf]
      %v388 = vld [vmem:[%s191 + $0x524] sm:$0xff]
      %v389 = vld [vmem:[%s191 + $0x52c] sm:$0xff]
      %v390 = vld [vmem:[%s191 + $0x534] sm:$0xff]
      %v391 = vld [vmem:[%s191 + $0x53c] sm:$0xf]
      %v392 = vld [vmem:[%s191 + $0x540] sm:$0xff]
      %v393 = vld [vmem:[%s191 + $0x548] sm:$0xff]
      %v394 = vld [vmem:[%s191 + $0x550] sm:$0xff]
      %v395 = vld [vmem:[%s191 + $0x558] sm:$0xf]
      %v396 = vld [vmem:[%s191 + $0x55c] sm:$0xff]
      %v397 = vld [vmem:[%s191 + $0x564] sm:$0xff]
      %v398 = vld [vmem:[%s191 + $0x56c] sm:$0xff]
      %v399 = vld [vmem:[%s191 + $0x574] sm:$0xf]
      %v400 = vld [vmem:[%s191 + $0x578] sm:$0xff]
      %v401 = vld [vmem:[%s191 + $0x580] sm:$0xff]
      %v402 = vld [vmem:[%s191 + $0x588] sm:$0xff]
      %v403 = vld [vmem:[%s191 + $0x590] sm:$0xf]
      %v404 = vld [vmem:[%s191 + $0x594] sm:$0xff]
      %v405 = vld [vmem:[%s191 + $0x59c] sm:$0xff]
      %v406 = vld [vmem:[%s191 + $0x5a4] sm:$0xff]
      %v407 = vld [vmem:[%s191 + $0x5ac] sm:$0xf]
      %v408 = vld [vmem:[%s191 + $0x5b0] sm:$0xff]
      %v409 = vld [vmem:[%s191 + $0x5b8] sm:$0xff]
      %v410 = vld [vmem:[%s191 + $0x5c0] sm:$0xff]
      %v411 = vld [vmem:[%s191 + $0x5c8] sm:$0xf]
      %v412 = vld [vmem:[%s191 + $0x5cc] sm:$0xff]
      %v413 = vld [vmem:[%s191 + $0x5d4] sm:$0xff]
      %v414 = vld [vmem:[%s191 + $0x5dc] sm:$0xff]
      %v415 = vld [vmem:[%s191 + $0x5e4] sm:$0xf]
      %v416 = vld [vmem:[%s191 + $0x5e8] sm:$0xff]
      %v417 = vld [vmem:[%s191 + $0x5f0] sm:$0xff]
      %v418 = vld [vmem:[%s191 + $0x5f8] sm:$0xff]
      %v419 = vld [vmem:[%s191 + $0x600] sm:$0xf]
      %v420 = vld [vmem:[%s191 + $0x604] sm:$0xff]
      %v421 = vld [vmem:[%s191 + $0x60c] sm:$0xff]
      %v422 = vld [vmem:[%s191 + $0x614] sm:$0xff]
      %v423 = vld [vmem:[%s191 + $0x61c] sm:$0xf]
      %v424 = vld [vmem:[%s191 + $0x620] sm:$0xff]
      %v425 = vld [vmem:[%s191 + $0x628] sm:$0xff]
      %v426 = vld [vmem:[%s191 + $0x630] sm:$0xff]
      %v427 = vld [vmem:[%s191 + $0x638] sm:$0xf]
      %v428 = vld [vmem:[%s191 + $0x63c] sm:$0xff]
      %v429 = vld [vmem:[%s191 + $0x644] sm:$0xff]
      %v430 = vld [vmem:[%s191 + $0x64c] sm:$0xff]
      %v431 = vld [vmem:[%s191 + $0x654] sm:$0xf]
      %v432 = vld [vmem:[%s191 + $0x658] sm:$0xff]
      %v433 = vld [vmem:[%s191 + $0x660] sm:$0xff]
      %v434 = vld [vmem:[%s191 + $0x668] sm:$0xff]
      %v435 = vld [vmem:[%s191 + $0x670] sm:$0xf]
      %v436 = vld [vmem:[%s191 + $0x674] sm:$0xff]
      %v437 = vld [vmem:[%s191 + $0x67c] sm:$0xff]
      %v438 = vld [vmem:[%s191 + $0x684] sm:$0xff]
      %v439 = vld [vmem:[%s191 + $0x68c] sm:$0xf]
      %v440 = vld [vmem:[%s191 + $0x690] sm:$0xff]
      %v441 = vld [vmem:[%s191 + $0x698] sm:$0xff]
      %v442 = vld [vmem:[%s191 + $0x6a0] sm:$0xff]
      %v443 = vld [vmem:[%s191 + $0x6a8] sm:$0xf]
      %v444 = vld [vmem:[%s191 + $0x6ac] sm:$0xff]
      %v445 = vld [vmem:[%s191 + $0x6b4] sm:$0xff]
      %v446 = vld [vmem:[%s191 + $0x6bc] sm:$0xff]
      %v447 = vld [vmem:[%s191 + $0x6c4] sm:$0xf]
      %v448 = vld [vmem:[%s191 + $0x6c8] sm:$0xff]
      %v449 = vld [vmem:[%s191 + $0x6d0] sm:$0xff]
      %v450 = vld [vmem:[%s191 + $0x6d8] sm:$0xff]
      %v451 = vld [vmem:[%s191 + $0x6e0] sm:$0xf]
      %v452 = vld [vmem:[%s191 + $0x6e4] sm:$0xff]
      %v453 = vld [vmem:[%s191 + $0x6ec] sm:$0xff]
      %v454 = vld [vmem:[%s191 + $0x6f4] sm:$0xff]
      %v455 = vld [vmem:[%s191 + $0x6fc] sm:$0xf]
      %v456 = vld [vmem:[%s1] sm:$0xf]
      %v457 = vld [vmem:[%s1 + $0x4] sm:$0xf]
      %v458 = vld [vmem:[%s1 + $0x8] sm:$0xf]
      %v459 = vld [vmem:[%s1 + $0xc] sm:$0xf]
      %v460 = vld [vmem:[%s1 + $0x10] sm:$0xf]
      %v461 = vld [vmem:[%s1 + $0x14] sm:$0xf]
      %v462 = vld [vmem:[%s1 + $0x18] sm:$0xf]
      %v463 = vld [vmem:[%s1 + $0x1c] sm:$0xf]
      %v464 = vld [vmem:[%s1 + $0x20] sm:$0xf]
      %v465 = vld [vmem:[%s1 + $0x24] sm:$0xf]
      %v466 = vld [vmem:[%s1 + $0x28] sm:$0xf]
      %v467 = vld [vmem:[%s1 + $0x2c] sm:$0xf]
      %v468 = vld [vmem:[%s1 + $0x30] sm:$0xf]
      %v469 = vld [vmem:[%s1 + $0x34] sm:$0xf]
      %v470 = vld [vmem:[%s1 + $0x38] sm:$0xf]
      %v471 = vld [vmem:[%s1 + $0x3c] sm:$0xf]
      %v472 = vld [vmem:[%s1 + $0x40] sm:$0xf]
      %v473 = vld [vmem:[%s1 + $0x44] sm:$0xf]
      %v474 = vld [vmem:[%s1 + $0x48] sm:$0xf]
      %v475 = vld [vmem:[%s1 + $0x4c] sm:$0xf]
      %v476 = vld [vmem:[%s1 + $0x50] sm:$0xf]
      %v477 = vld [vmem:[%s1 + $0x54] sm:$0xf]
      %v478 = vld [vmem:[%s1 + $0x58] sm:$0xf]
      %v479 = vld [vmem:[%s1 + $0x5c] sm:$0xf]
      %v480 = vld [vmem:[%s1 + $0x60] sm:$0xf]
      %v481 = vld [vmem:[%s1 + $0x64] sm:$0xf]
      %v482 = vld [vmem:[%s1 + $0x68] sm:$0xf]
      %v483 = vld [vmem:[%s1 + $0x6c] sm:$0xf]
      %v484 = vld [vmem:[%s1 + $0x70] sm:$0xf]
      %v485 = vld [vmem:[%s1 + $0x74] sm:$0xf]
      %v486 = vld [vmem:[%s1 + $0x78] sm:$0xf]
      %v487 = vld [vmem:[%s1 + $0x7c] sm:$0xf]
      %v488 = vld [vmem:[%s1 + $0x80] sm:$0xf]
      %v489 = vld [vmem:[%s1 + $0x84] sm:$0xf]
      %v490 = vld [vmem:[%s1 + $0x88] sm:$0xf]
      %v491 = vld [vmem:[%s1 + $0x8c] sm:$0xf]
      %v492 = vld [vmem:[%s1 + $0x90] sm:$0xf]
      %v493 = vld [vmem:[%s1 + $0x94] sm:$0xf]
      %v494 = vld [vmem:[%s1 + $0x98] sm:$0xf]
      %v495 = vld [vmem:[%s1 + $0x9c] sm:$0xf]
      %v496 = vld [vmem:[%s1 + $0xa0] sm:$0xf]
      %v497 = vld [vmem:[%s1 + $0xa4] sm:$0xf]
      %v498 = vld [vmem:[%s1 + $0xa8] sm:$0xf]
      %v499 = vld [vmem:[%s1 + $0xac] sm:$0xf]
      %v500 = vld [vmem:[%s1 + $0xb0] sm:$0xf]
      %v501 = vld [vmem:[%s1 + $0xb4] sm:$0xf]
      %v502 = vld [vmem:[%s1 + $0xb8] sm:$0xf]
      %v503 = vld [vmem:[%s1 + $0xbc] sm:$0xf]
      %v504 = vld [vmem:[%s1 + $0xc0] sm:$0xf]
      %v505 = vld [vmem:[%s1 + $0xc4] sm:$0xf]
      %v506 = vld [vmem:[%s1 + $0xc8] sm:$0xf]
      %v507 = vld [vmem:[%s1 + $0xcc] sm:$0xf]
      %v508 = vld [vmem:[%s1 + $0xd0] sm:$0xf]
      %v509 = vld [vmem:[%s1 + $0xd4] sm:$0xf]
      %v510 = vld [vmem:[%s1 + $0xd8] sm:$0xf]
      %v511 = vld [vmem:[%s1 + $0xdc] sm:$0xf]
      %v512 = vld [vmem:[%s1 + $0xe0] sm:$0xf]
      %v513 = vld [vmem:[%s1 + $0xe4] sm:$0xf]
      %v514 = vld [vmem:[%s1 + $0xe8] sm:$0xf]
      %v515 = vld [vmem:[%s1 + $0xec] sm:$0xf]
      %v516 = vld [vmem:[%s1 + $0xf0] sm:$0xf]
      %v517 = vld [vmem:[%s1 + $0xf4] sm:$0xf]
      %v518 = vld [vmem:[%s1 + $0xf8] sm:$0xf]
      %v519 = vld [vmem:[%s1 + $0xfc] sm:$0xf]
      %v520 = vld [vmem:[%s1 + $0x100] sm:$0xf]
      %v521 = vld [vmem:[%s1 + $0x104] sm:$0xf]
      %v522 = vld [vmem:[%s1 + $0x108] sm:$0xf]
      %v523 = vld [vmem:[%s1 + $0x10c] sm:$0xf]
      %v524 = vld [vmem:[%s1 + $0x110] sm:$0xf]
      %v525 = vld [vmem:[%s1 + $0x114] sm:$0xf]
      %v526 = vld [vmem:[%s1 + $0x118] sm:$0xf]
      %v527 = vld [vmem:[%s1 + $0x11c] sm:$0xf]
      %v528 = vld [vmem:[%s1 + $0x120] sm:$0xf]
      %v529 = vld [vmem:[%s1 + $0x124] sm:$0xf]
      %v530 = vld [vmem:[%s1 + $0x128] sm:$0xf]
      %v531 = vld [vmem:[%s1 + $0x12c] sm:$0xf]
      %v532 = vld [vmem:[%s1 + $0x130] sm:$0xf]
      %v533 = vld [vmem:[%s1 + $0x134] sm:$0xf]
      %v534 = vld [vmem:[%s1 + $0x138] sm:$0xf]
      %v535 = vld [vmem:[%s1 + $0x13c] sm:$0xf]
      %v536 = vld [vmem:[%s1 + $0x140] sm:$0xf]
      %v537 = vld [vmem:[%s1 + $0x144] sm:$0xf]
      %v538 = vld [vmem:[%s1 + $0x148] sm:$0xf]
      %v539 = vld [vmem:[%s1 + $0x14c] sm:$0xf]
      %v540 = vld [vmem:[%s1 + $0x150] sm:$0xf]
      %v541 = vld [vmem:[%s1 + $0x154] sm:$0xf]
      %v542 = vld [vmem:[%s1 + $0x158] sm:$0xf]
      %v543 = vld [vmem:[%s1 + $0x15c] sm:$0xf]
      %v544 = vld [vmem:[%s1 + $0x160] sm:$0xf]
      %v545 = vld [vmem:[%s1 + $0x164] sm:$0xf]
      %v546 = vld [vmem:[%s1 + $0x168] sm:$0xf]
      %v547 = vld [vmem:[%s1 + $0x16c] sm:$0xf]
      %v548 = vld [vmem:[%s1 + $0x170] sm:$0xf]
      %v549 = vld [vmem:[%s1 + $0x174] sm:$0xf]
      %v550 = vld [vmem:[%s1 + $0x178] sm:$0xf]
      %v551 = vld [vmem:[%s1 + $0x17c] sm:$0xf]
      %v552 = vld [vmem:[%s1 + $0x180] sm:$0xf]
      %v553 = vld [vmem:[%s1 + $0x184] sm:$0xf]
      %v554 = vld [vmem:[%s1 + $0x188] sm:$0xf]
      %v555 = vld [vmem:[%s1 + $0x18c] sm:$0xf]
      %v556 = vld [vmem:[%s1 + $0x190] sm:$0xf]
      %v557 = vld [vmem:[%s1 + $0x194] sm:$0xf]
      %v558 = vld [vmem:[%s1 + $0x198] sm:$0xf]
      %v559 = vld [vmem:[%s1 + $0x19c] sm:$0xf]
      %v560 = vld [vmem:[%s1 + $0x1a0] sm:$0xf]
      %v561 = vld [vmem:[%s1 + $0x1a4] sm:$0xf]
      %v562 = vld [vmem:[%s1 + $0x1a8] sm:$0xf]
      %v563 = vld [vmem:[%s1 + $0x1ac] sm:$0xf]
      %v820 = vunpack.c.l.b16 %v200
      %v821 = vunpack.c.h.b16 %v200
      %v822 = vunpack.c.l.b16 %v201
      %v823 = vunpack.c.h.b16 %v201
      %v824 = vunpack.c.l.b16 %v202
      %v825 = vunpack.c.h.b16 %v202
      %v826 = vunpack.c.l.b16 %v203
      %v827 = vunpack.c.l.b16 %v204
      %v828 = vunpack.c.h.b16 %v204
      %v829 = vunpack.c.l.b16 %v205
      %v830 = vunpack.c.h.b16 %v205
      %v831 = vunpack.c.l.b16 %v206
      %v832 = vunpack.c.h.b16 %v206
      %v833 = vunpack.c.l.b16 %v207
      %v834 = vunpack.c.l.b16 %v208
      %v835 = vunpack.c.h.b16 %v208
      %v836 = vunpack.c.l.b16 %v209
      %v837 = vunpack.c.h.b16 %v209
      %v838 = vunpack.c.l.b16 %v210
      %v839 = vunpack.c.h.b16 %v210
      %v840 = vunpack.c.l.b16 %v211
      %v841 = vunpack.c.l.b16 %v212
      %v842 = vunpack.c.h.b16 %v212
      %v843 = vunpack.c.l.b16 %v213
      %v844 = vunpack.c.h.b16 %v213
      %v845 = vunpack.c.l.b16 %v214
      %v846 = vunpack.c.h.b16 %v214
      %v847 = vunpack.c.l.b16 %v215
      %v848 = vunpack.c.l.b16 %v216
      %v849 = vunpack.c.h.b16 %v216
      %v850 = vunpack.c.l.b16 %v217
      %v851 = vunpack.c.h.b16 %v217
      %v852 = vunpack.c.l.b16 %v218
      %v853 = vunpack.c.h.b16 %v218
      %v854 = vunpack.c.l.b16 %v219
      %v855 = vunpack.c.l.b16 %v220
      %v856 = vunpack.c.h.b16 %v220
      %v857 = vunpack.c.l.b16 %v221
      %v858 = vunpack.c.h.b16 %v221
      %v859 = vunpack.c.l.b16 %v222
      %v860 = vunpack.c.h.b16 %v222
      %v861 = vunpack.c.l.b16 %v223
      %v862 = vunpack.c.l.b16 %v224
      %v863 = vunpack.c.h.b16 %v224
      %v864 = vunpack.c.l.b16 %v225
      %v865 = vunpack.c.h.b16 %v225
      %v866 = vunpack.c.l.b16 %v226
      %v867 = vunpack.c.h.b16 %v226
      %v868 = vunpack.c.l.b16 %v227
      %v869 = vunpack.c.l.b16 %v228
      %v870 = vunpack.c.h.b16 %v228
      %v871 = vunpack.c.l.b16 %v229
      %v872 = vunpack.c.h.b16 %v229
      %v873 = vunpack.c.l.b16 %v230
      %v874 = vunpack.c.h.b16 %v230
      %v875 = vunpack.c.l.b16 %v231
      %v876 = vunpack.c.l.b16 %v232
      %v877 = vunpack.c.h.b16 %v232
      %v878 = vunpack.c.l.b16 %v233
      %v879 = vunpack.c.h.b16 %v233
      %v880 = vunpack.c.l.b16 %v234
      %v881 = vunpack.c.h.b16 %v234
      %v882 = vunpack.c.l.b16 %v235
      %v883 = vunpack.c.l.b16 %v236
      %v884 = vunpack.c.h.b16 %v236
      %v885 = vunpack.c.l.b16 %v237
      %v886 = vunpack.c.h.b16 %v237
      %v887 = vunpack.c.l.b16 %v238
      %v888 = vunpack.c.h.b16 %v238
      %v889 = vunpack.c.l.b16 %v239
      %v890 = vunpack.c.l.b16 %v240
      %v891 = vunpack.c.h.b16 %v240
      %v892 = vunpack.c.l.b16 %v241
      %v893 = vunpack.c.h.b16 %v241
      %v894 = vunpack.c.l.b16 %v242
      %v895 = vunpack.c.h.b16 %v242
      %v896 = vunpack.c.l.b16 %v243
      %v897 = vunpack.c.l.b16 %v244
      %v898 = vunpack.c.h.b16 %v244
      %v899 = vunpack.c.l.b16 %v245
      %v900 = vunpack.c.h.b16 %v245
      %v901 = vunpack.c.l.b16 %v246
      %v902 = vunpack.c.h.b16 %v246
      %v903 = vunpack.c.l.b16 %v247
      %v904 = vunpack.c.l.b16 %v248
      %v905 = vunpack.c.h.b16 %v248
      %v906 = vunpack.c.l.b16 %v249
      %v907 = vunpack.c.h.b16 %v249
      %v908 = vunpack.c.l.b16 %v250
      %v909 = vunpack.c.h.b16 %v250
      %v910 = vunpack.c.l.b16 %v251
      %v911 = vunpack.c.l.b16 %v252
      %v912 = vunpack.c.h.b16 %v252
      %v913 = vunpack.c.l.b16 %v253
      %v914 = vunpack.c.h.b16 %v253
      %v915 = vunpack.c.l.b16 %v254
      %v916 = vunpack.c.h.b16 %v254
      %v917 = vunpack.c.l.b16 %v255
      %v918 = vunpack.c.l.b16 %v256
      %v919 = vunpack.c.h.b16 %v256
      %v920 = vunpack.c.l.b16 %v257
      %v921 = vunpack.c.h.b16 %v257
      %v922 = vunpack.c.l.b16 %v258
      %v923 = vunpack.c.h.b16 %v258
      %v924 = vunpack.c.l.b16 %v259
      %v925 = vunpack.c.l.b16 %v260
      %v926 = vunpack.c.h.b16 %v260
      %v927 = vunpack.c.l.b16 %v261
      %v928 = vunpack.c.h.b16 %v261
      %v929 = vunpack.c.l.b16 %v262
      %v930 = vunpack.c.h.b16 %v262
      %v931 = vunpack.c.l.b16 %v263
      %v932 = vunpack.c.l.b16 %v264
      %v933 = vunpack.c.h.b16 %v264
      %v934 = vunpack.c.l.b16 %v265
      %v935 = vunpack.c.h.b16 %v265
      %v936 = vunpack.c.l.b16 %v266
      %v937 = vunpack.c.h.b16 %v266
      %v938 = vunpack.c.l.b16 %v267
      %v939 = vunpack.c.l.b16 %v268
      %v940 = vunpack.c.h.b16 %v268
      %v941 = vunpack.c.l.b16 %v269
      %v942 = vunpack.c.h.b16 %v269
      %v943 = vunpack.c.l.b16 %v270
      %v944 = vunpack.c.h.b16 %v270
      %v945 = vunpack.c.l.b16 %v271
      %v946 = vunpack.c.l.b16 %v272
      %v947 = vunpack.c.h.b16 %v272
      %v948 = vunpack.c.l.b16 %v273
      %v949 = vunpack.c.h.b16 %v273
      %v950 = vunpack.c.l.b16 %v274
      %v951 = vunpack.c.h.b16 %v274
      %v952 = vunpack.c.l.b16 %v275
      %v953 = vunpack.c.l.b16 %v276
      %v954 = vunpack.c.h.b16 %v276
      %v955 = vunpack.c.l.b16 %v277
      %v956 = vunpack.c.h.b16 %v277
      %v957 = vunpack.c.l.b16 %v278
      %v958 = vunpack.c.h.b16 %v278
      %v959 = vunpack.c.l.b16 %v279
      %v960 = vunpack.c.l.b16 %v280
      %v961 = vunpack.c.h.b16 %v280
      %v962 = vunpack.c.l.b16 %v281
      %v963 = vunpack.c.h.b16 %v281
      %v964 = vunpack.c.l.b16 %v282
      %v965 = vunpack.c.h.b16 %v282
      %v966 = vunpack.c.l.b16 %v283
      %v967 = vunpack.c.l.b16 %v284
      %v968 = vunpack.c.h.b16 %v284
      %v969 = vunpack.c.l.b16 %v285
      %v970 = vunpack.c.h.b16 %v285
      %v971 = vunpack.c.l.b16 %v286
      %v972 = vunpack.c.h.b16 %v286
      %v973 = vunpack.c.l.b16 %v287
      %v974 = vunpack.c.l.b16 %v288
      %v975 = vunpack.c.h.b16 %v288
      %v976 = vunpack.c.l.b16 %v289
      %v977 = vunpack.c.h.b16 %v289
      %v978 = vunpack.c.l.b16 %v290
      %v979 = vunpack.c.h.b16 %v290
      %v980 = vunpack.c.l.b16 %v291
      %v981 = vunpack.c.l.b16 %v292
      %v982 = vunpack.c.h.b16 %v292
      %v983 = vunpack.c.l.b16 %v293
      %v984 = vunpack.c.h.b16 %v293
      %v985 = vunpack.c.l.b16 %v294
      %v986 = vunpack.c.h.b16 %v294
      %v987 = vunpack.c.l.b16 %v295
      %v988 = vunpack.c.l.b16 %v296
      %v989 = vunpack.c.h.b16 %v296
      %v990 = vunpack.c.l.b16 %v297
      %v991 = vunpack.c.h.b16 %v297
      %v992 = vunpack.c.l.b16 %v298
      %v993 = vunpack.c.h.b16 %v298
      %v994 = vunpack.c.l.b16 %v299
      %v995 = vunpack.c.l.b16 %v300
      %v996 = vunpack.c.h.b16 %v300
      %v997 = vunpack.c.l.b16 %v301
      %v998 = vunpack.c.h.b16 %v301
      %v999 = vunpack.c.l.b16 %v302
      %v1000 = vunpack.c.h.b16 %v302
      %v1001 = vunpack.c.l.b16 %v303
      %v1002 = vunpack.c.l.b16 %v304
      %v1003 = vunpack.c.h.b16 %v304
      %v1004 = vunpack.c.l.b16 %v305
      %v1005 = vunpack.c.h.b16 %v305
      %v1006 = vunpack.c.l.b16 %v306
      %v1007 = vunpack.c.h.b16 %v306
      %v1008 = vunpack.c.l.b16 %v307
      %v1009 = vunpack.c.l.b16 %v308
      %v1010 = vunpack.c.h.b16 %v308
      %v1011 = vunpack.c.l.b16 %v309
      %v1012 = vunpack.c.h.b16 %v309
      %v1013 = vunpack.c.l.b16 %v310
      %v1014 = vunpack.c.h.b16 %v310
      %v1015 = vunpack.c.l.b16 %v311
      %v1016 = vunpack.c.l.b16 %v312
      %v1017 = vunpack.c.h.b16 %v312
      %v1018 = vunpack.c.l.b16 %v313
      %v1019 = vunpack.c.h.b16 %v313
      %v1020 = vunpack.c.l.b16 %v314
      %v1021 = vunpack.c.h.b16 %v314
      %v1022 = vunpack.c.l.b16 %v315
      %v1023 = vunpack.c.l.b16 %v316
      %v1024 = vunpack.c.h.b16 %v316
      %v1025 = vunpack.c.l.b16 %v317
      %v1026 = vunpack.c.h.b16 %v317
      %v1027 = vunpack.c.l.b16 %v318
      %v1028 = vunpack.c.h.b16 %v318
      %v1029 = vunpack.c.l.b16 %v319
      %v1030 = vunpack.c.l.b16 %v320
      %v1031 = vunpack.c.h.b16 %v320
      %v1032 = vunpack.c.l.b16 %v321
      %v1033 = vunpack.c.h.b16 %v321
      %v1034 = vunpack.c.l.b16 %v322
      %v1035 = vunpack.c.h.b16 %v322
      %v1036 = vunpack.c.l.b16 %v323
      %v1037 = vunpack.c.l.b16 %v324
      %v1038 = vunpack.c.h.b16 %v324
      %v1039 = vunpack.c.l.b16 %v325
      %v1040 = vunpack.c.h.b16 %v325
      %v1041 = vunpack.c.l.b16 %v326
      %v1042 = vunpack.c.h.b16 %v326
      %v1043 = vunpack.c.l.b16 %v327
      %v1044 = vunpack.c.l.b16 %v328
      %v1045 = vunpack.c.h.b16 %v328
      %v1046 = vunpack.c.l.b16 %v329
      %v1047 = vunpack.c.h.b16 %v329
      %v1048 = vunpack.c.l.b16 %v330
      %v1049 = vunpack.c.h.b16 %v330
      %v1050 = vunpack.c.l.b16 %v331
      %v1051 = vunpack.c.l.b16 %v332
      %v1052 = vunpack.c.h.b16 %v332
      %v1053 = vunpack.c.l.b16 %v333
      %v1054 = vunpack.c.h.b16 %v333
      %v1055 = vunpack.c.l.b16 %v334
      %v1056 = vunpack.c.h.b16 %v334
      %v1057 = vunpack.c.l.b16 %v335
      %v1058 = vunpack.c.l.b16 %v336
      %v1059 = vunpack.c.h.b16 %v336
      %v1060 = vunpack.c.l.b16 %v337
      %v1061 = vunpack.c.h.b16 %v337
      %v1062 = vunpack.c.l.b16 %v338
      %v1063 = vunpack.c.h.b16 %v338
      %v1064 = vunpack.c.l.b16 %v339
      %v1065 = vunpack.c.l.b16 %v340
      %v1066 = vunpack.c.h.b16 %v340
      %v1067 = vunpack.c.l.b16 %v341
      %v1068 = vunpack.c.h.b16 %v341
      %v1069 = vunpack.c.l.b16 %v342
      %v1070 = vunpack.c.h.b16 %v342
      %v1071 = vunpack.c.l.b16 %v343
      %v1072 = vunpack.c.l.b16 %v344
      %v1073 = vunpack.c.h.b16 %v344
      %v1074 = vunpack.c.l.b16 %v345
      %v1075 = vunpack.c.h.b16 %v345
      %v1076 = vunpack.c.l.b16 %v346
      %v1077 = vunpack.c.h.b16 %v346
      %v1078 = vunpack.c.l.b16 %v347
      %v1079 = vunpack.c.l.b16 %v348
      %v1080 = vunpack.c.h.b16 %v348
      %v1081 = vunpack.c.l.b16 %v349
      %v1082 = vunpack.c.h.b16 %v349
      %v1083 = vunpack.c.l.b16 %v350
      %v1084 = vunpack.c.h.b16 %v350
      %v1085 = vunpack.c.l.b16 %v351
      %v1086 = vunpack.c.l.b16 %v352
      %v1087 = vunpack.c.h.b16 %v352
      %v1088 = vunpack.c.l.b16 %v353
      %v1089 = vunpack.c.h.b16 %v353
      %v1090 = vunpack.c.l.b16 %v354
      %v1091 = vunpack.c.h.b16 %v354
      %v1092 = vunpack.c.l.b16 %v355
      %v1093 = vunpack.c.l.b16 %v356
      %v1094 = vunpack.c.h.b16 %v356
      %v1095 = vunpack.c.l.b16 %v357
      %v1096 = vunpack.c.h.b16 %v357
      %v1097 = vunpack.c.l.b16 %v358
      %v1098 = vunpack.c.h.b16 %v358
      %v1099 = vunpack.c.l.b16 %v359
      %v1100 = vunpack.c.l.b16 %v360
      %v1101 = vunpack.c.h.b16 %v360
      %v1102 = vunpack.c.l.b16 %v361
      %v1103 = vunpack.c.h.b16 %v361
      %v1104 = vunpack.c.l.b16 %v362
      %v1105 = vunpack.c.h.b16 %v362
      %v1106 = vunpack.c.l.b16 %v363
      %v1107 = vunpack.c.l.b16 %v364
      %v1108 = vunpack.c.h.b16 %v364
      %v1109 = vunpack.c.l.b16 %v365
      %v1110 = vunpack.c.h.b16 %v365
      %v1111 = vunpack.c.l.b16 %v366
      %v1112 = vunpack.c.h.b16 %v366
      %v1113 = vunpack.c.l.b16 %v367
      %v1114 = vunpack.c.l.b16 %v368
      %v1115 = vunpack.c.h.b16 %v368
      %v1116 = vunpack.c.l.b16 %v369
      %v1117 = vunpack.c.h.b16 %v369
      %v1118 = vunpack.c.l.b16 %v370
      %v1119 = vunpack.c.h.b16 %v370
      %v1120 = vunpack.c.l.b16 %v371
      %v1121 = vunpack.c.l.b16 %v372
      %v1122 = vunpack.c.h.b16 %v372
      %v1123 = vunpack.c.l.b16 %v373
      %v1124 = vunpack.c.h.b16 %v373
      %v1125 = vunpack.c.l.b16 %v374
      %v1126 = vunpack.c.h.b16 %v374
      %v1127 = vunpack.c.l.b16 %v375
      %v1128 = vunpack.c.l.b16 %v376
      %v1129 = vunpack.c.h.b16 %v376
      %v1130 = vunpack.c.l.b16 %v377
      %v1131 = vunpack.c.h.b16 %v377
      %v1132 = vunpack.c.l.b16 %v378
      %v1133 = vunpack.c.h.b16 %v378
      %v1134 = vunpack.c.l.b16 %v379
      %v1135 = vunpack.c.l.b16 %v380
      %v1136 = vunpack.c.h.b16 %v380
      %v1137 = vunpack.c.l.b16 %v381
      %v1138 = vunpack.c.h.b16 %v381
      %v1139 = vunpack.c.l.b16 %v382
      %v1140 = vunpack.c.h.b16 %v382
      %v1141 = vunpack.c.l.b16 %v383
      %v1142 = vunpack.c.l.b16 %v384
      %v1143 = vunpack.c.h.b16 %v384
      %v1144 = vunpack.c.l.b16 %v385
      %v1145 = vunpack.c.h.b16 %v385
      %v1146 = vunpack.c.l.b16 %v386
      %v1147 = vunpack.c.h.b16 %v386
      %v1148 = vunpack.c.l.b16 %v387
      %v1149 = vunpack.c.l.b16 %v388
      %v1150 = vunpack.c.h.b16 %v388
      %v1151 = vunpack.c.l.b16 %v389
      %v1152 = vunpack.c.h.b16 %v389
      %v1153 = vunpack.c.l.b16 %v390
      %v1154 = vunpack.c.h.b16 %v390
      %v1155 = vunpack.c.l.b16 %v391
      %v1156 = vunpack.c.l.b16 %v392
      %v1157 = vunpack.c.h.b16 %v392
      %v1158 = vunpack.c.l.b16 %v393
      %v1159 = vunpack.c.h.b16 %v393
      %v1160 = vunpack.c.l.b16 %v394
      %v1161 = vunpack.c.h.b16 %v394
      %v1162 = vunpack.c.l.b16 %v395
      %v1163 = vunpack.c.l.b16 %v396
      %v1164 = vunpack.c.h.b16 %v396
      %v1165 = vunpack.c.l.b16 %v397
      %v1166 = vunpack.c.h.b16 %v397
      %v1167 = vunpack.c.l.b16 %v398
      %v1168 = vunpack.c.h.b16 %v398
      %v1169 = vunpack.c.l.b16 %v399
      %v1170 = vunpack.c.l.b16 %v400
      %v1171 = vunpack.c.h.b16 %v400
      %v1172 = vunpack.c.l.b16 %v401
      %v1173 = vunpack.c.h.b16 %v401
      %v1174 = vunpack.c.l.b16 %v402
      %v1175 = vunpack.c.h.b16 %v402
      %v1176 = vunpack.c.l.b16 %v403
      %v1177 = vunpack.c.l.b16 %v404
      %v1178 = vunpack.c.h.b16 %v404
      %v1179 = vunpack.c.l.b16 %v405
      %v1180 = vunpack.c.h.b16 %v405
      %v1181 = vunpack.c.l.b16 %v406
      %v1182 = vunpack.c.h.b16 %v406
      %v1183 = vunpack.c.l.b16 %v407
      %v1184 = vunpack.c.l.b16 %v408
      %v1185 = vunpack.c.h.b16 %v408
      %v1186 = vunpack.c.l.b16 %v409
      %v1187 = vunpack.c.h.b16 %v409
      %v1188 = vunpack.c.l.b16 %v410
      %v1189 = vunpack.c.h.b16 %v410
      %v1190 = vunpack.c.l.b16 %v411
      %v1191 = vunpack.c.l.b16 %v412
      %v1192 = vunpack.c.h.b16 %v412
      %v1193 = vunpack.c.l.b16 %v413
      %v1194 = vunpack.c.h.b16 %v413
      %v1195 = vunpack.c.l.b16 %v414
      %v1196 = vunpack.c.h.b16 %v414
      %v1197 = vunpack.c.l.b16 %v415
      %v1198 = vunpack.c.l.b16 %v416
      %v1199 = vunpack.c.h.b16 %v416
      %v1200 = vunpack.c.l.b16 %v417
      %v1201 = vunpack.c.h.b16 %v417
      %v1202 = vunpack.c.l.b16 %v418
      %v1203 = vunpack.c.h.b16 %v418
      %v1204 = vunpack.c.l.b16 %v419
      %v1205 = vunpack.c.l.b16 %v420
      %v1206 = vunpack.c.h.b16 %v420
      %v1207 = vunpack.c.l.b16 %v421
      %v1208 = vunpack.c.h.b16 %v421
      %v1209 = vunpack.c.l.b16 %v422
      %v1210 = vunpack.c.h.b16 %v422
      %v1211 = vunpack.c.l.b16 %v423
      %v1212 = vunpack.c.l.b16 %v424
      %v1213 = vunpack.c.h.b16 %v424
      %v1214 = vunpack.c.l.b16 %v425
      %v1215 = vunpack.c.h.b16 %v425
      %v1216 = vunpack.c.l.b16 %v426
      %v1217 = vunpack.c.h.b16 %v426
      %v1218 = vunpack.c.l.b16 %v427
      %v1219 = vunpack.c.l.b16 %v428
      %v1220 = vunpack.c.h.b16 %v428
      %v1221 = vunpack.c.l.b16 %v429
      %v1222 = vunpack.c.h.b16 %v429
      %v1223 = vunpack.c.l.b16 %v430
      %v1224 = vunpack.c.h.b16 %v430
      %v1225 = vunpack.c.l.b16 %v431
      %v1226 = vunpack.c.l.b16 %v432
      %v1227 = vunpack.c.h.b16 %v432
      %v1228 = vunpack.c.l.b16 %v433
      %v1229 = vunpack.c.h.b16 %v433
      %v1230 = vunpack.c.l.b16 %v434
      %v1231 = vunpack.c.h.b16 %v434
      %v1232 = vunpack.c.l.b16 %v435
      %v1233 = vunpack.c.l.b16 %v436
      %v1234 = vunpack.c.h.b16 %v436
      %v1235 = vunpack.c.l.b16 %v437
      %v1236 = vunpack.c.h.b16 %v437
      %v1237 = vunpack.c.l.b16 %v438
      %v1238 = vunpack.c.h.b16 %v438
      %v1239 = vunpack.c.l.b16 %v439
      %v1240 = vunpack.c.l.b16 %v440
      %v1241 = vunpack.c.h.b16 %v440
      %v1242 = vunpack.c.l.b16 %v441
      %v1243 = vunpack.c.h.b16 %v441
      %v1244 = vunpack.c.l.b16 %v442
      %v1245 = vunpack.c.h.b16 %v442
      %v1246 = vunpack.c.l.b16 %v443
      %v1247 = vunpack.c.l.b16 %v444
      %v1248 = vunpack.c.h.b16 %v444
      %v1249 = vunpack.c.l.b16 %v445
      %v1250 = vunpack.c.h.b16 %v445
      %v1251 = vunpack.c.l.b16 %v446
      %v1252 = vunpack.c.h.b16 %v446
      %v1253 = vunpack.c.l.b16 %v447
      %v1254 = vunpack.c.l.b16 %v448
      %v1255 = vunpack.c.h.b16 %v448
      %v1256 = vunpack.c.l.b16 %v449
      %v1257 = vunpack.c.h.b16 %v449
      %v1258 = vunpack.c.l.b16 %v450
      %v1259 = vunpack.c.h.b16 %v450
      %v1260 = vunpack.c.l.b16 %v451
      %v1261 = vunpack.c.l.b16 %v452
      %v1262 = vunpack.c.h.b16 %v452
      %v1263 = vunpack.c.l.b16 %v453
      %v1264 = vunpack.c.h.b16 %v453
      %v1265 = vunpack.c.l.b16 %v454
      %v1266 = vunpack.c.h.b16 %v454
      %v1267 = vunpack.c.l.b16 %v455
      %v1268 = vpack.c.b16 %v827, %v820
      %v1269 = vpack.c.b16 %v828, %v821
      %v1270 = vpack.c.b16 %v829, %v822
      %v1271 = vpack.c.b16 %v830, %v823
      %v1272 = vpack.c.b16 %v831, %v824
      %v1273 = vpack.c.b16 %v832, %v825
      %v1274 = vpack.c.b16 %v833, %v826
      %v1275 = vpack.c.b16 %v841, %v834
      %v1276 = vpack.c.b16 %v842, %v835
      %v1277 = vpack.c.b16 %v843, %v836
      %v1278 = vpack.c.b16 %v844, %v837
      %v1279 = vpack.c.b16 %v845, %v838
      %v1280 = vpack.c.b16 %v846, %v839
      %v1281 = vpack.c.b16 %v847, %v840
      %v1282 = vpack.c.b16 %v855, %v848
      %v1283 = vpack.c.b16 %v856, %v849
      %v1284 = vpack.c.b16 %v857, %v850
      %v1285 = vpack.c.b16 %v858, %v851
      %v1286 = vpack.c.b16 %v859, %v852
      %v1287 = vpack.c.b16 %v860, %v853
      %v1288 = vpack.c.b16 %v861, %v854
      %v1289 = vpack.c.b16 %v869, %v862
      %v1290 = vpack.c.b16 %v870, %v863
      %v1291 = vpack.c.b16 %v871, %v864
      %v1292 = vpack.c.b16 %v872, %v865
      %v1293 = vpack.c.b16 %v873, %v866
      %v1294 = vpack.c.b16 %v874, %v867
      %v1295 = vpack.c.b16 %v875, %v868
      %v1296 = vpack.c.b16 %v883, %v876
      %v1297 = vpack.c.b16 %v884, %v877
      %v1298 = vpack.c.b16 %v885, %v878
      %v1299 = vpack.c.b16 %v886, %v879
      %v1300 = vpack.c.b16 %v887, %v880
      %v1301 = vpack.c.b16 %v888, %v881
      %v1302 = vpack.c.b16 %v889, %v882
      %v1303 = vpack.c.b16 %v897, %v890
      %v1304 = vpack.c.b16 %v898, %v891
      %v1305 = vpack.c.b16 %v899, %v892
      %v1306 = vpack.c.b16 %v900, %v893
      %v1307 = vpack.c.b16 %v901, %v894
      %v1308 = vpack.c.b16 %v902, %v895
      %v1309 = vpack.c.b16 %v903, %v896
      %v1310 = vpack.c.b16 %v911, %v904
      %v1311 = vpack.c.b16 %v912, %v905
      %v1312 = vpack.c.b16 %v913, %v906
      %v1313 = vpack.c.b16 %v914, %v907
      %v1314 = vpack.c.b16 %v915, %v908
      %v1315 = vpack.c.b16 %v916, %v909
      %v1316 = vpack.c.b16 %v917, %v910
      %v1317 = vpack.c.b16 %v925, %v918
      %v1318 = vpack.c.b16 %v926, %v919
      %v1319 = vpack.c.b16 %v927, %v920
      %v1320 = vpack.c.b16 %v928, %v921
      %v1321 = vpack.c.b16 %v929, %v922
      %v1322 = vpack.c.b16 %v930, %v923
      %v1323 = vpack.c.b16 %v931, %v924
      %v1324 = vpack.c.b16 %v939, %v932
      %v1325 = vpack.c.b16 %v940, %v933
      %v1326 = vpack.c.b16 %v941, %v934
      %v1327 = vpack.c.b16 %v942, %v935
      %v1328 = vpack.c.b16 %v943, %v936
      %v1329 = vpack.c.b16 %v944, %v937
      %v1330 = vpack.c.b16 %v945, %v938
      %v1331 = vpack.c.b16 %v953, %v946
      %v1332 = vpack.c.b16 %v954, %v947
      %v1333 = vpack.c.b16 %v955, %v948
      %v1334 = vpack.c.b16 %v956, %v949
      %v1335 = vpack.c.b16 %v957, %v950
      %v1336 = vpack.c.b16 %v958, %v951
      %v1337 = vpack.c.b16 %v959, %v952
      %v1338 = vpack.c.b16 %v967, %v960
      %v1339 = vpack.c.b16 %v968, %v961
      %v1340 = vpack.c.b16 %v969, %v962
      %v1341 = vpack.c.b16 %v970, %v963
      %v1342 = vpack.c.b16 %v971, %v964
      %v1343 = vpack.c.b16 %v972, %v965
      %v1344 = vpack.c.b16 %v973, %v966
      %v1345 = vpack.c.b16 %v981, %v974
      %v1346 = vpack.c.b16 %v982, %v975
      %v1347 = vpack.c.b16 %v983, %v976
      %v1348 = vpack.c.b16 %v984, %v977
      %v1349 = vpack.c.b16 %v985, %v978
      %v1350 = vpack.c.b16 %v986, %v979
      %v1351 = vpack.c.b16 %v987, %v980
      %v1352 = vpack.c.b16 %v995, %v988
      %v1353 = vpack.c.b16 %v996, %v989
      %v1354 = vpack.c.b16 %v997, %v990
      %v1355 = vpack.c.b16 %v998, %v991
      %v1356 = vpack.c.b16 %v999, %v992
      %v1357 = vpack.c.b16 %v1000, %v993
      %v1358 = vpack.c.b16 %v1001, %v994
      %v1359 = vpack.c.b16 %v1009, %v1002
      %v1360 = vpack.c.b16 %v1010, %v1003
      %v1361 = vpack.c.b16 %v1011, %v1004
      %v1362 = vpack.c.b16 %v1012, %v1005
      %v1363 = vpack.c.b16 %v1013, %v1006
      %v1364 = vpack.c.b16 %v1014, %v1007
      %v1365 = vpack.c.b16 %v1015, %v1008
      %v1366 = vpack.c.b16 %v1023, %v1016
      %v1367 = vpack.c.b16 %v1024, %v1017
      %v1368 = vpack.c.b16 %v1025, %v1018
      %v1369 = vpack.c.b16 %v1026, %v1019
      %v1370 = vpack.c.b16 %v1027, %v1020
      %v1371 = vpack.c.b16 %v1028, %v1021
      %v1372 = vpack.c.b16 %v1029, %v1022
      %v1373 = vpack.c.b16 %v1037, %v1030
      %v1374 = vpack.c.b16 %v1038, %v1031
      %v1375 = vpack.c.b16 %v1039, %v1032
      %v1376 = vpack.c.b16 %v1040, %v1033
      %v1377 = vpack.c.b16 %v1041, %v1034
      %v1378 = vpack.c.b16 %v1042, %v1035
      %v1379 = vpack.c.b16 %v1043, %v1036
      %v1380 = vpack.c.b16 %v1051, %v1044
      %v1381 = vpack.c.b16 %v1052, %v1045
      %v1382 = vpack.c.b16 %v1053, %v1046
      %v1383 = vpack.c.b16 %v1054, %v1047
      %v1384 = vpack.c.b16 %v1055, %v1048
      %v1385 = vpack.c.b16 %v1056, %v1049
      %v1386 = vpack.c.b16 %v1057, %v1050
      %v1387 = vpack.c.b16 %v1065, %v1058
      %v1388 = vpack.c.b16 %v1066, %v1059
      %v1389 = vpack.c.b16 %v1067, %v1060
      %v1390 = vpack.c.b16 %v1068, %v1061
      %v1391 = vpack.c.b16 %v1069, %v1062
      %v1392 = vpack.c.b16 %v1070, %v1063
      %v1393 = vpack.c.b16 %v1071, %v1064
      %v1394 = vpack.c.b16 %v1079, %v1072
      %v1395 = vpack.c.b16 %v1080, %v1073
      %v1396 = vpack.c.b16 %v1081, %v1074
      %v1397 = vpack.c.b16 %v1082, %v1075
      %v1398 = vpack.c.b16 %v1083, %v1076
      %v1399 = vpack.c.b16 %v1084, %v1077
      %v1400 = vpack.c.b16 %v1085, %v1078
      %v1401 = vpack.c.b16 %v1093, %v1086
      %v1402 = vpack.c.b16 %v1094, %v1087
      %v1403 = vpack.c.b16 %v1095, %v1088
      %v1404 = vpack.c.b16 %v1096, %v1089
      %v1405 = vpack.c.b16 %v1097, %v1090
      %v1406 = vpack.c.b16 %v1098, %v1091
      %v1407 = vpack.c.b16 %v1099, %v1092
      %v1408 = vpack.c.b16 %v1107, %v1100
      %v1409 = vpack.c.b16 %v1108, %v1101
      %v1410 = vpack.c.b16 %v1109, %v1102
      %v1411 = vpack.c.b16 %v1110, %v1103
      %v1412 = vpack.c.b16 %v1111, %v1104
      %v1413 = vpack.c.b16 %v1112, %v1105
      %v1414 = vpack.c.b16 %v1113, %v1106
      %v1415 = vpack.c.b16 %v1121, %v1114
      %v1416 = vpack.c.b16 %v1122, %v1115
      %v1417 = vpack.c.b16 %v1123, %v1116
      %v1418 = vpack.c.b16 %v1124, %v1117
      %v1419 = vpack.c.b16 %v1125, %v1118
      %v1420 = vpack.c.b16 %v1126, %v1119
      %v1421 = vpack.c.b16 %v1127, %v1120
      %v1422 = vpack.c.b16 %v1135, %v1128
      %v1423 = vpack.c.b16 %v1136, %v1129
      %v1424 = vpack.c.b16 %v1137, %v1130
      %v1425 = vpack.c.b16 %v1138, %v1131
      %v1426 = vpack.c.b16 %v1139, %v1132
      %v1427 = vpack.c.b16 %v1140, %v1133
      %v1428 = vpack.c.b16 %v1141, %v1134
      %v1429 = vpack.c.b16 %v1149, %v1142
      %v1430 = vpack.c.b16 %v1150, %v1143
      %v1431 = vpack.c.b16 %v1151, %v1144
      %v1432 = vpack.c.b16 %v1152, %v1145
      %v1433 = vpack.c.b16 %v1153, %v1146
      %v1434 = vpack.c.b16 %v1154, %v1147
      %v1435 = vpack.c.b16 %v1155, %v1148
      %v1436 = vpack.c.b16 %v1163, %v1156
      %v1437 = vpack.c.b16 %v1164, %v1157
      %v1438 = vpack.c.b16 %v1165, %v1158
      %v1439 = vpack.c.b16 %v1166, %v1159
      %v1440 = vpack.c.b16 %v1167, %v1160
      %v1441 = vpack.c.b16 %v1168, %v1161
      %v1442 = vpack.c.b16 %v1169, %v1162
      %v1443 = vpack.c.b16 %v1177, %v1170
      %v1444 = vpack.c.b16 %v1178, %v1171
      %v1445 = vpack.c.b16 %v1179, %v1172
      %v1446 = vpack.c.b16 %v1180, %v1173
      %v1447 = vpack.c.b16 %v1181, %v1174
      %v1448 = vpack.c.b16 %v1182, %v1175
      %v1449 = vpack.c.b16 %v1183, %v1176
      %v1450 = vpack.c.b16 %v1191, %v1184
      %v1451 = vpack.c.b16 %v1192, %v1185
      %v1452 = vpack.c.b16 %v1193, %v1186
      %v1453 = vpack.c.b16 %v1194, %v1187
      %v1454 = vpack.c.b16 %v1195, %v1188
      %v1455 = vpack.c.b16 %v1196, %v1189
      %v1456 = vpack.c.b16 %v1197, %v1190
      %v1457 = vpack.c.b16 %v1205, %v1198
      %v1458 = vpack.c.b16 %v1206, %v1199
      %v1459 = vpack.c.b16 %v1207, %v1200
      %v1460 = vpack.c.b16 %v1208, %v1201
      %v1461 = vpack.c.b16 %v1209, %v1202
      %v1462 = vpack.c.b16 %v1210, %v1203
      %v1463 = vpack.c.b16 %v1211, %v1204
      %v1464 = vpack.c.b16 %v1219, %v1212
      %v1465 = vpack.c.b16 %v1220, %v1213
      %v1466 = vpack.c.b16 %v1221, %v1214
      %v1467 = vpack.c.b16 %v1222, %v1215
      %v1468 = vpack.c.b16 %v1223, %v1216
      %v1469 = vpack.c.b16 %v1224, %v1217
      %v1470 = vpack.c.b16 %v1225, %v1218
      %v1471 = vpack.c.b16 %v1233, %v1226
      %v1472 = vpack.c.b16 %v1234, %v1227
      %v1473 = vpack.c.b16 %v1235, %v1228
      %v1474 = vpack.c.b16 %v1236, %v1229
      %v1475 = vpack.c.b16 %v1237, %v1230
      %v1476 = vpack.c.b16 %v1238, %v1231
      %v1477 = vpack.c.b16 %v1239, %v1232
      %v1478 = vpack.c.b16 %v1247, %v1240
      %v1479 = vpack.c.b16 %v1248, %v1241
      %v1480 = vpack.c.b16 %v1249, %v1242
      %v1481 = vpack.c.b16 %v1250, %v1243
      %v1482 = vpack.c.b16 %v1251, %v1244
      %v1483 = vpack.c.b16 %v1252, %v1245
      %v1484 = vpack.c.b16 %v1253, %v1246
      %v1485 = vpack.c.b16 %v1261, %v1254
      %v1486 = vpack.c.b16 %v1262, %v1255
      %v1487 = vpack.c.b16 %v1263, %v1256
      %v1488 = vpack.c.b16 %v1264, %v1257
      %v1489 = vpack.c.b16 %v1265, %v1258
      %v1490 = vpack.c.b16 %v1266, %v1259
      %v1491 = vpack.c.b16 %v1267, %v1260
      %v1792 = vunpack.c.l.b16 %v456
      %v1793 = vunpack.c.l.b16 %v457
      %v1794 = vunpack.c.l.b16 %v458
      %v1795 = vunpack.c.l.b16 %v459
      %v1796 = vunpack.c.l.b16 %v460
      %v1797 = vunpack.c.l.b16 %v461
      %v1798 = vunpack.c.l.b16 %v462
      %v1799 = vunpack.c.l.b16 %v463
      %v1800 = vunpack.c.l.b16 %v464
      %v1801 = vunpack.c.l.b16 %v465
      %v1802 = vunpack.c.l.b16 %v466
      %v1803 = vunpack.c.l.b16 %v467
      %v1804 = vunpack.c.l.b16 %v468
      %v1805 = vunpack.c.l.b16 %v469
      %v1806 = vunpack.c.l.b16 %v470
      %v1807 = vunpack.c.l.b16 %v471
      %v1808 = vunpack.c.l.b16 %v472
      %v1809 = vunpack.c.l.b16 %v473
      %v1810 = vunpack.c.l.b16 %v474
      %v1811 = vunpack.c.l.b16 %v475
      %v1812 = vunpack.c.l.b16 %v476
      %v1813 = vunpack.c.l.b16 %v477
      %v1814 = vunpack.c.l.b16 %v478
      %v1815 = vunpack.c.l.b16 %v479
      %v1816 = vunpack.c.l.b16 %v480
      %v1817 = vunpack.c.l.b16 %v481
      %v1818 = vunpack.c.l.b16 %v482
      %v1819 = vunpack.c.l.b16 %v483
      %v1820 = vunpack.c.l.b16 %v484
      %v1821 = vunpack.c.l.b16 %v485
      %v1822 = vunpack.c.l.b16 %v486
      %v1823 = vunpack.c.l.b16 %v487
      %v1824 = vunpack.c.l.b16 %v488
      %v1825 = vunpack.c.l.b16 %v489
      %v1826 = vunpack.c.l.b16 %v490
      %v1827 = vunpack.c.l.b16 %v491
      %v1828 = vunpack.c.l.b16 %v492
      %v1829 = vunpack.c.l.b16 %v493
      %v1830 = vunpack.c.l.b16 %v494
      %v1831 = vunpack.c.l.b16 %v495
      %v1832 = vunpack.c.l.b16 %v496
      %v1833 = vunpack.c.l.b16 %v497
      %v1834 = vunpack.c.l.b16 %v498
      %v1835 = vunpack.c.l.b16 %v499
      %v1836 = vunpack.c.l.b16 %v500
      %v1837 = vunpack.c.l.b16 %v501
      %v1838 = vunpack.c.l.b16 %v502
      %v1839 = vunpack.c.l.b16 %v503
      %v1840 = vunpack.c.l.b16 %v504
      %v1841 = vunpack.c.l.b16 %v505
      %v1842 = vunpack.c.l.b16 %v506
      %v1843 = vunpack.c.l.b16 %v507
      %v1844 = vunpack.c.l.b16 %v508
      %v1845 = vunpack.c.l.b16 %v509
      %v1846 = vunpack.c.l.b16 %v510
      %v1847 = vunpack.c.l.b16 %v511
      %v1848 = vunpack.c.l.b16 %v512
      %v1849 = vunpack.c.l.b16 %v513
      %v1850 = vunpack.c.l.b16 %v514
      %v1851 = vunpack.c.l.b16 %v515
      %v1852 = vunpack.c.l.b16 %v516
      %v1853 = vunpack.c.l.b16 %v517
      %v1854 = vunpack.c.l.b16 %v518
      %v1855 = vunpack.c.l.b16 %v519
      %v1856 = vunpack.c.l.b16 %v520
      %v1857 = vunpack.c.l.b16 %v521
      %v1858 = vunpack.c.l.b16 %v522
      %v1859 = vunpack.c.l.b16 %v523
      %v1860 = vunpack.c.l.b16 %v524
      %v1861 = vunpack.c.l.b16 %v525
      %v1862 = vunpack.c.l.b16 %v526
      %v1863 = vunpack.c.l.b16 %v527
      %v1864 = vunpack.c.l.b16 %v528
      %v1865 = vunpack.c.l.b16 %v529
      %v1866 = vunpack.c.l.b16 %v530
      %v1867 = vunpack.c.l.b16 %v531
      %v1868 = vunpack.c.l.b16 %v532
      %v1869 = vunpack.c.l.b16 %v533
      %v1870 = vunpack.c.l.b16 %v534
      %v1871 = vunpack.c.l.b16 %v535
      %v1872 = vunpack.c.l.b16 %v536
      %v1873 = vunpack.c.l.b16 %v537
      %v1874 = vunpack.c.l.b16 %v538
      %v1875 = vunpack.c.l.b16 %v539
      %v1876 = vunpack.c.l.b16 %v540
      %v1877 = vunpack.c.l.b16 %v541
      %v1878 = vunpack.c.l.b16 %v542
      %v1879 = vunpack.c.l.b16 %v543
      %v1880 = vunpack.c.l.b16 %v544
      %v1881 = vunpack.c.l.b16 %v545
      %v1882 = vunpack.c.l.b16 %v546
      %v1883 = vunpack.c.l.b16 %v547
      %v1884 = vunpack.c.l.b16 %v548
      %v1885 = vunpack.c.l.b16 %v549
      %v1886 = vunpack.c.l.b16 %v550
      %v1887 = vunpack.c.l.b16 %v551
      %v1888 = vunpack.c.l.b16 %v552
      %v1889 = vunpack.c.l.b16 %v553
      %v1890 = vunpack.c.l.b16 %v554
      %v1891 = vunpack.c.l.b16 %v555
      %v1892 = vunpack.c.l.b16 %v556
      %v1893 = vunpack.c.l.b16 %v557
      %v1894 = vunpack.c.l.b16 %v558
      %v1895 = vunpack.c.l.b16 %v559
      %v1896 = vunpack.c.l.b16 %v560
      %v1897 = vunpack.c.l.b16 %v561
      %v1898 = vunpack.c.l.b16 %v562
      %v1899 = vunpack.c.l.b16 %v563
      %v1900 = vpack.c.b16 %v1793, %v1792
      %v1901 = vpack.c.b16 %v1795, %v1794
      %v1902 = vpack.c.b16 %v1797, %v1796
      %v1903 = vpack.c.b16 %v1799, %v1798
      %v1904 = vpack.c.b16 %v1801, %v1800
      %v1905 = vpack.c.b16 %v1803, %v1802
      %v1906 = vpack.c.b16 %v1805, %v1804
      %v1907 = vpack.c.b16 %v1807, %v1806
      %v1908 = vpack.c.b16 %v1809, %v1808
      %v1909 = vpack.c.b16 %v1811, %v1810
      %v1910 = vpack.c.b16 %v1813, %v1812
      %v1911 = vpack.c.b16 %v1815, %v1814
      %v1912 = vpack.c.b16 %v1817, %v1816
      %v1913 = vpack.c.b16 %v1819, %v1818
      %v1914 = vpack.c.b16 %v1821, %v1820
      %v1915 = vpack.c.b16 %v1823, %v1822
      %v1916 = vpack.c.b16 %v1825, %v1824
      %v1917 = vpack.c.b16 %v1827, %v1826
      %v1918 = vpack.c.b16 %v1829, %v1828
      %v1919 = vpack.c.b16 %v1831, %v1830
      %v1920 = vpack.c.b16 %v1833, %v1832
      %v1921 = vpack.c.b16 %v1835, %v1834
      %v1922 = vpack.c.b16 %v1837, %v1836
      %v1923 = vpack.c.b16 %v1839, %v1838
      %v1924 = vpack.c.b16 %v1841, %v1840
      %v1925 = vpack.c.b16 %v1843, %v1842
      %v1926 = vpack.c.b16 %v1845, %v1844
      %v1927 = vpack.c.b16 %v1847, %v1846
      %v1928 = vpack.c.b16 %v1849, %v1848
      %v1929 = vpack.c.b16 %v1851, %v1850
      %v1930 = vpack.c.b16 %v1853, %v1852
      %v1931 = vpack.c.b16 %v1855, %v1854
      %v1932 = vpack.c.b16 %v1857, %v1856
      %v1933 = vpack.c.b16 %v1859, %v1858
      %v1934 = vpack.c.b16 %v1861, %v1860
      %v1935 = vpack.c.b16 %v1863, %v1862
      %v1936 = vpack.c.b16 %v1865, %v1864
      %v1937 = vpack.c.b16 %v1867, %v1866
      %v1938 = vpack.c.b16 %v1869, %v1868
      %v1939 = vpack.c.b16 %v1871, %v1870
      %v1940 = vpack.c.b16 %v1873, %v1872
      %v1941 = vpack.c.b16 %v1875, %v1874
      %v1942 = vpack.c.b16 %v1877, %v1876
      %v1943 = vpack.c.b16 %v1879, %v1878
      %v1944 = vpack.c.b16 %v1881, %v1880
      %v1945 = vpack.c.b16 %v1883, %v1882
      %v1946 = vpack.c.b16 %v1885, %v1884
      %v1947 = vpack.c.b16 %v1887, %v1886
      %v1948 = vpack.c.b16 %v1889, %v1888
      %v1949 = vpack.c.b16 %v1891, %v1890
      %v1950 = vpack.c.b16 %v1893, %v1892
      %v1951 = vpack.c.b16 %v1895, %v1894
      %v1952 = vpack.c.b16 %v1897, %v1896
      %v1953 = vpack.c.b16 %v1899, %v1898
      %vm2008 = vcmask 785408
      %v2010 = vsel %vm2008, %v1274, 0
      %v2013 = vsel %vm2008, %v1281, 0
      %v2016 = vsel %vm2008, %v1288, 0
      %v2019 = vsel %vm2008, %v1295, 0
      %v2022 = vsel %vm2008, %v1302, 0
      %v2025 = vsel %vm2008, %v1309, 0
      %v2028 = vsel %vm2008, %v1316, 0
      %v2031 = vsel %vm2008, %v1323, 0
      %v2034 = vsel %vm2008, %v1330, 0
      %v2037 = vsel %vm2008, %v1337, 0
      %v2040 = vsel %vm2008, %v1344, 0
      %v2043 = vsel %vm2008, %v1351, 0
      %v2046 = vsel %vm2008, %v1358, 0
      %v2049 = vsel %vm2008, %v1365, 0
      %v2052 = vsel %vm2008, %v1372, 0
      %v2055 = vsel %vm2008, %v1379, 0
      %v2058 = vsel %vm2008, %v1386, 0
      %v2061 = vsel %vm2008, %v1393, 0
      %v2064 = vsel %vm2008, %v1400, 0
      %v2067 = vsel %vm2008, %v1407, 0
      %v2070 = vsel %vm2008, %v1414, 0
      %v2073 = vsel %vm2008, %v1421, 0
      %v2076 = vsel %vm2008, %v1428, 0
      %v2079 = vsel %vm2008, %v1435, 0
      %v2082 = vsel %vm2008, %v1442, 0
      %v2085 = vsel %vm2008, %v1449, 0
      %v2088 = vsel %vm2008, %v1456, 0
      %v2091 = vsel %vm2008, %v1463, 0
      %v2094 = vsel %vm2008, %v1470, 0
      %v2097 = vsel %vm2008, %v1477, 0
      %v2100 = vsel %vm2008, %v1484, 0
      %v2103 = vsel %vm2008, %v1491, 0
      %2105 = vmatprep.subr.bf16.mxu0 0
      %2106 = vmatpush1.bf16.msra.mxu0 %v1900
      %2107 = vmatprep.subr.bf16.mxu0 0
      %2108 = vmatpush1.bf16.msra.mxu0 %v1901
      %2109 = vmatprep.subr.bf16.mxu0 0
      %2110 = vmatpush1.bf16.msra.mxu0 %v1902
      %2111 = vmatprep.subr.bf16.mxu0 0
      %2112 = vmatpush1.bf16.msra.mxu0 %v1903
      %2113 = vmatprep.subr.bf16.mxu0 0
      %2114 = vmatpush1.bf16.msra.mxu0 %v1904
      %2115 = vmatprep.subr.bf16.mxu0 0
      %2116 = vmatpush1.bf16.msra.mxu0 %v1905
      %2117 = vmatprep.subr.bf16.mxu0 0
      %2118 = vmatpush1.bf16.msra.mxu0 %v1906
      %2119 = vmatprep.subr.bf16.mxu0 0
      %2120 = vmatpush1.bf16.msra.mxu0 %v1907
      %2121 = vmatprep.subr.bf16.mxu0 0
      %2122 = vmatpush1.bf16.msra.mxu0 %v1908
      %2123 = vmatprep.subr.bf16.mxu0 0
      %2124 = vmatpush1.bf16.msra.mxu0 %v1909
      %2125 = vmatprep.subr.bf16.mxu0 0
      %2126 = vmatpush1.bf16.msra.mxu0 %v1910
      %2127 = vmatprep.subr.bf16.mxu0 0
      %2128 = vmatpush1.bf16.msra.mxu0 %v1911
      %2129 = vmatprep.subr.bf16.mxu0 0
      %2130 = vmatpush1.bf16.msra.mxu0 %v1912
      %2131 = vmatprep.subr.bf16.mxu0 0
      %2132 = vmatpush1.bf16.msra.mxu0 %v1913
      %2133 = vmatprep.subr.bf16.mxu0 0
      %2134 = vmatpush1.bf16.msra.mxu0 %v1914
      %2135 = vmatprep.subr.bf16.mxu0 0
      %2136 = vmatpush1.bf16.msra.mxu0 %v1915
      %2137 = vmatprep.mubr.bf16.mxu0 %v1269
      %2138 = vmatmul.mubr.bf16.gmra.mrb[0].mxu0 %v1268
      %v2139 = vpop.f32.mrb[0].mxu0
      %v2140 = vadd.f32 0.0, %v2139
      %v2141 = vpop.f32.mrb[0].mxu0
      %v2142 = vpop.f32.mrb[0].mxu0
      %v2143 = vadd.f32 0.0, %v2142
      %v2144 = vpop.f32.mrb[0].mxu0
      %2145 = vmatprep.mubr.bf16.mxu0 %v1276
      %2146 = vmatmul.mubr.bf16.gmra.mrb[0].mxu0 %v1275
      %v2147 = vpop.f32.mrb[0].mxu0
      %v2148 = vadd.f32 0.0, %v2147
      %v2149 = vpop.f32.mrb[0].mxu0
      %v2150 = vpop.f32.mrb[0].mxu0
      %v2151 = vadd.f32 0.0, %v2150
      %v2152 = vpop.f32.mrb[0].mxu0
      %2153 = vmatprep.mubr.bf16.mxu0 %v1283
      %2154 = vmatmul.mubr.bf16.gmra.mrb[0].mxu0 %v1282
      %v2155 = vpop.f32.mrb[0].mxu0
      %v2156 = vadd.f32 0.0, %v2155
      %v2157 = vpop.f32.mrb[0].mxu0
      %v2158 = vpop.f32.mrb[0].mxu0
      %v2159 = vadd.f32 0.0, %v2158
      %v2160 = vpop.f32.mrb[0].mxu0
      %2161 = vmatprep.mubr.bf16.mxu0 %v1290
      %2162 = vmatmul.mubr.bf16.gmra.mrb[0].mxu0 %v1289
      %v2163 = vpop.f32.mrb[0].mxu0
      %v2164 = vadd.f32 0.0, %v2163
      %v2165 = vpop.f32.mrb[0].mxu0
      %v2166 = vpop.f32.mrb[0].mxu0
      %v2167 = vadd.f32 0.0, %v2166
      %v2168 = vpop.f32.mrb[0].mxu0
      %2169 = vmatprep.mubr.bf16.mxu0 %v1297
      %2170 = vmatmul.mubr.bf16.gmra.mrb[0].mxu0 %v1296
      %v2171 = vpop.f32.mrb[0].mxu0
      %v2172 = vadd.f32 0.0, %v2171
      %v2173 = vpop.f32.mrb[0].mxu0
      %v2174 = vpop.f32.mrb[0].mxu0
      %v2175 = vadd.f32 0.0, %v2174
      %v2176 = vpop.f32.mrb[0].mxu0
      %2177 = vmatprep.mubr.bf16.mxu0 %v1304
      %2178 = vmatmul.mubr.bf16.gmra.mrb[0].mxu0 %v1303
      %v2179 = vpop.f32.mrb[0].mxu0
      %v2180 = vadd.f32 0.0, %v2179
      %v2181 = vpop.f32.mrb[0].mxu0
      %v2182 = vpop.f32.mrb[0].mxu0
      %v2183 = vadd.f32 0.0, %v2182
      %v2184 = vpop.f32.mrb[0].mxu0
      %2185 = vmatprep.mubr.bf16.mxu0 %v1311
      %2186 = vmatmul.mubr.bf16.gmra.mrb[0].mxu0 %v1310
      %v2187 = vpop.f32.mrb[0].mxu0
      %v2188 = vadd.f32 0.0, %v2187
      %v2189 = vpop.f32.mrb[0].mxu0
      %v2190 = vpop.f32.mrb[0].mxu0
      %v2191 = vadd.f32 0.0, %v2190
      %v2192 = vpop.f32.mrb[0].mxu0
      %2193 = vmatprep.mubr.bf16.mxu0 %v1318
      %2194 = vmatmul.mubr.bf16.gmra.mrb[0].mxu0 %v1317
      %v2195 = vpop.f32.mrb[0].mxu0
      %v2196 = vadd.f32 0.0, %v2195
      %v2197 = vpop.f32.mrb[0].mxu0
      %v2198 = vpop.f32.mrb[0].mxu0
      %v2199 = vadd.f32 0.0, %v2198
      %v2200 = vpop.f32.mrb[0].mxu0
      %2201 = vmatprep.mubr.bf16.mxu0 %v1325
      %2202 = vmatmul.mubr.bf16.gmra.mrb[0].mxu0 %v1324
      %v2203 = vpop.f32.mrb[0].mxu0
      %v2204 = vadd.f32 0.0, %v2203
      %v2205 = vpop.f32.mrb[0].mxu0
      %v2206 = vpop.f32.mrb[0].mxu0
      %v2207 = vadd.f32 0.0, %v2206
      %v2208 = vpop.f32.mrb[0].mxu0
      %2209 = vmatprep.mubr.bf16.mxu0 %v1332
      %2210 = vmatmul.mubr.bf16.gmra.mrb[0].mxu0 %v1331
      %v2211 = vpop.f32.mrb[0].mxu0
      %v2212 = vadd.f32 0.0, %v2211
      %v2213 = vpop.f32.mrb[0].mxu0
      %v2214 = vpop.f32.mrb[0].mxu0
      %v2215 = vadd.f32 0.0, %v2214
      %v2216 = vpop.f32.mrb[0].mxu0
      %2217 = vmatprep.mubr.bf16.mxu0 %v1339
      %2218 = vmatmul.mubr.bf16.gmra.mrb[0].mxu0 %v1338
      %v2219 = vpop.f32.mrb[0].mxu0
      %v2220 = vadd.f32 0.0, %v2219
      %v2221 = vpop.f32.mrb[0].mxu0
      %v2222 = vpop.f32.mrb[0].mxu0
      %v2223 = vadd.f32 0.0, %v2222
      %v2224 = vpop.f32.mrb[0].mxu0
      %2225 = vmatprep.mubr.bf16.mxu0 %v1346
      %2226 = vmatmul.mubr.bf16.gmra.mrb[0].mxu0 %v1345
      %v2227 = vpop.f32.mrb[0].mxu0
      %v2228 = vadd.f32 0.0, %v2227
      %v2229 = vpop.f32.mrb[0].mxu0
      %v2230 = vpop.f32.mrb[0].mxu0
      %v2231 = vadd.f32 0.0, %v2230
      %v2232 = vpop.f32.mrb[0].mxu0
      %2233 = vmatprep.mubr.bf16.mxu0 %v1353
      %2234 = vmatmul.mubr.bf16.gmra.mrb[0].mxu0 %v1352
      %v2235 = vpop.f32.mrb[0].mxu0
      %v2236 = vadd.f32 0.0, %v2235
      %v2237 = vpop.f32.mrb[0].mxu0
      %v2238 = vpop.f32.mrb[0].mxu0
      %v2239 = vadd.f32 0.0, %v2238
      %v2240 = vpop.f32.mrb[0].mxu0
      %2241 = vmatprep.mubr.bf16.mxu0 %v1360
      %2242 = vmatmul.mubr.bf16.gmra.mrb[0].mxu0 %v1359
      %v2243 = vpop.f32.mrb[0].mxu0
      %v2244 = vadd.f32 0.0, %v2243
      %v2245 = vpop.f32.mrb[0].mxu0
      %v2246 = vpop.f32.mrb[0].mxu0
      %v2247 = vadd.f32 0.0, %v2246
      %v2248 = vpop.f32.mrb[0].mxu0
      %2249 = vmatprep.mubr.bf16.mxu0 %v1367
      %2250 = vmatmul.mubr.bf16.gmra.mrb[0].mxu0 %v1366
      %v2251 = vpop.f32.mrb[0].mxu0
      %v2252 = vadd.f32 0.0, %v2251
      %v2253 = vpop.f32.mrb[0].mxu0
      %v2254 = vpop.f32.mrb[0].mxu0
      %v2255 = vadd.f32 0.0, %v2254
      %v2256 = vpop.f32.mrb[0].mxu0
      %2257 = vmatprep.mubr.bf16.mxu0 %v1374
      %2258 = vmatmul.mubr.bf16.gmra.mrb[0].mxu0 %v1373
      %v2259 = vpop.f32.mrb[0].mxu0
      %v2260 = vadd.f32 0.0, %v2259
      %v2261 = vpop.f32.mrb[0].mxu0
      %v2262 = vpop.f32.mrb[0].mxu0
      %v2263 = vadd.f32 0.0, %v2262
      %v2264 = vpop.f32.mrb[0].mxu0
      %2265 = vmatprep.mubr.bf16.mxu0 %v1381
      %2266 = vmatmul.mubr.bf16.gmra.mrb[0].mxu0 %v1380
      %v2267 = vpop.f32.mrb[0].mxu0
      %v2268 = vadd.f32 0.0, %v2267
      %v2269 = vpop.f32.mrb[0].mxu0
      %v2270 = vpop.f32.mrb[0].mxu0
      %v2271 = vadd.f32 0.0, %v2270
      %v2272 = vpop.f32.mrb[0].mxu0
      %2273 = vmatprep.mubr.bf16.mxu0 %v1388
      %2274 = vmatmul.mubr.bf16.gmra.mrb[0].mxu0 %v1387
      %v2275 = vpop.f32.mrb[0].mxu0
      %v2276 = vadd.f32 0.0, %v2275
      %v2277 = vpop.f32.mrb[0].mxu0
      %v2278 = vpop.f32.mrb[0].mxu0
      %v2279 = vadd.f32 0.0, %v2278
      %v2280 = vpop.f32.mrb[0].mxu0
      %2281 = vmatprep.mubr.bf16.mxu0 %v1395
      %2282 = vmatmul.mubr.bf16.gmra.mrb[0].mxu0 %v1394
      %v2283 = vpop.f32.mrb[0].mxu0
      %v2284 = vadd.f32 0.0, %v2283
      %v2285 = vpop.f32.mrb[0].mxu0
      %v2286 = vpop.f32.mrb[0].mxu0
      %v2287 = vadd.f32 0.0, %v2286
      %v2288 = vpop.f32.mrb[0].mxu0
      %2289 = vmatprep.mubr.bf16.mxu0 %v1402
      %2290 = vmatmul.mubr.bf16.gmra.mrb[0].mxu0 %v1401
      %v2291 = vpop.f32.mrb[0].mxu0
      %v2292 = vadd.f32 0.0, %v2291
      %v2293 = vpop.f32.mrb[0].mxu0
      %v2294 = vpop.f32.mrb[0].mxu0
      %v2295 = vadd.f32 0.0, %v2294
      %v2296 = vpop.f32.mrb[0].mxu0
      %2297 = vmatprep.mubr.bf16.mxu0 %v1409
      %2298 = vmatmul.mubr.bf16.gmra.mrb[0].mxu0 %v1408
      %v2299 = vpop.f32.mrb[0].mxu0
      %v2300 = vadd.f32 0.0, %v2299
      %v2301 = vpop.f32.mrb[0].mxu0
      %v2302 = vpop.f32.mrb[0].mxu0
      %v2303 = vadd.f32 0.0, %v2302
      %v2304 = vpop.f32.mrb[0].mxu0
      %2305 = vmatprep.mubr.bf16.mxu0 %v1416
      %2306 = vmatmul.mubr.bf16.gmra.mrb[0].mxu0 %v1415
      %v2307 = vpop.f32.mrb[0].mxu0
      %v2308 = vadd.f32 0.0, %v2307
      %v2309 = vpop.f32.mrb[0].mxu0
      %v2310 = vpop.f32.mrb[0].mxu0
      %v2311 = vadd.f32 0.0, %v2310
      %v2312 = vpop.f32.mrb[0].mxu0
      %2313 = vmatprep.mubr.bf16.mxu0 %v1423
      %2314 = vmatmul.mubr.bf16.gmra.mrb[0].mxu0 %v1422
      %v2315 = vpop.f32.mrb[0].mxu0
      %v2316 = vadd.f32 0.0, %v2315
      %v2317 = vpop.f32.mrb[0].mxu0
      %v2318 = vpop.f32.mrb[0].mxu0
      %v2319 = vadd.f32 0.0, %v2318
      %v2320 = vpop.f32.mrb[0].mxu0
      %2321 = vmatprep.mubr.bf16.mxu0 %v1430
      %2322 = vmatmul.mubr.bf16.gmra.mrb[0].mxu0 %v1429
      %v2323 = vpop.f32.mrb[0].mxu0
      %v2324 = vadd.f32 0.0, %v2323
      %v2325 = vpop.f32.mrb[0].mxu0
      %v2326 = vpop.f32.mrb[0].mxu0
      %v2327 = vadd.f32 0.0, %v2326
      %v2328 = vpop.f32.mrb[0].mxu0
      %2329 = vmatprep.mubr.bf16.mxu0 %v1437
      %2330 = vmatmul.mubr.bf16.gmra.mrb[0].mxu0 %v1436
      %v2331 = vpop.f32.mrb[0].mxu0
      %v2332 = vadd.f32 0.0, %v2331
      %v2333 = vpop.f32.mrb[0].mxu0
      %v2334 = vpop.f32.mrb[0].mxu0
      %v2335 = vadd.f32 0.0, %v2334
      %v2336 = vpop.f32.mrb[0].mxu0
      %2337 = vmatprep.mubr.bf16.mxu0 %v1444
      %2338 = vmatmul.mubr.bf16.gmra.mrb[0].mxu0 %v1443
      %v2339 = vpop.f32.mrb[0].mxu0
      %v2340 = vadd.f32 0.0, %v2339
      %v2341 = vpop.f32.mrb[0].mxu0
      %v2342 = vpop.f32.mrb[0].mxu0
      %v2343 = vadd.f32 0.0, %v2342
      %v2344 = vpop.f32.mrb[0].mxu0
      %2345 = vmatprep.mubr.bf16.mxu0 %v1451
      %2346 = vmatmul.mubr.bf16.gmra.mrb[0].mxu0 %v1450
      %v2347 = vpop.f32.mrb[0].mxu0
      %v2348 = vadd.f32 0.0, %v2347
      %v2349 = vpop.f32.mrb[0].mxu0
      %v2350 = vpop.f32.mrb[0].mxu0
      %v2351 = vadd.f32 0.0, %v2350
      %v2352 = vpop.f32.mrb[0].mxu0
      %2353 = vmatprep.mubr.bf16.mxu0 %v1458
      %2354 = vmatmul.mubr.bf16.gmra.mrb[0].mxu0 %v1457
      %v2355 = vpop.f32.mrb[0].mxu0
      %v2356 = vadd.f32 0.0, %v2355
      %v2357 = vpop.f32.mrb[0].mxu0
      %v2358 = vpop.f32.mrb[0].mxu0
      %v2359 = vadd.f32 0.0, %v2358
      %v2360 = vpop.f32.mrb[0].mxu0
      %2361 = vmatprep.mubr.bf16.mxu0 %v1465
      %2362 = vmatmul.mubr.bf16.gmra.mrb[0].mxu0 %v1464
      %v2363 = vpop.f32.mrb[0].mxu0
      %v2364 = vadd.f32 0.0, %v2363
      %v2365 = vpop.f32.mrb[0].mxu0
      %v2366 = vpop.f32.mrb[0].mxu0
      %v2367 = vadd.f32 0.0, %v2366
      %v2368 = vpop.f32.mrb[0].mxu0
      %2369 = vmatprep.mubr.bf16.mxu0 %v1472
      %2370 = vmatmul.mubr.bf16.gmra.mrb[0].mxu0 %v1471
      %v2371 = vpop.f32.mrb[0].mxu0
      %v2372 = vadd.f32 0.0, %v2371
      %v2373 = vpop.f32.mrb[0].mxu0
      %v2374 = vpop.f32.mrb[0].mxu0
      %v2375 = vadd.f32 0.0, %v2374
      %v2376 = vpop.f32.mrb[0].mxu0
      %2377 = vmatprep.mubr.bf16.mxu0 %v1479
      %2378 = vmatmul.mubr.bf16.gmra.mrb[0].mxu0 %v1478
      %v2379 = vpop.f32.mrb[0].mxu0
      %v2380 = vadd.f32 0.0, %v2379
      %v2381 = vpop.f32.mrb[0].mxu0
      %v2382 = vpop.f32.mrb[0].mxu0
      %v2383 = vadd.f32 0.0, %v2382
      %v2384 = vpop.f32.mrb[0].mxu0
      %2385 = vmatprep.mubr.bf16.mxu0 %v1486
      %2386 = vmatmul.mubr.bf16.gmra.mrb[0].mxu0 %v1485
      %v2387 = vpop.f32.mrb[0].mxu0
      %v2388 = vadd.f32 0.0, %v2387
      %v2389 = vpop.f32.mrb[0].mxu0
      %v2390 = vpop.f32.mrb[0].mxu0
      %v2391 = vadd.f32 0.0, %v2390
      %v2392 = vpop.f32.mrb[0].mxu0
      %2393 = vdwg.mxu0
      %2394 = vmatprep.subr.bf16.mxu0 0
      %2395 = vmatpush1.bf16.msra.mxu0 %v1916
      %2396 = vmatprep.subr.bf16.mxu0 0
      %2397 = vmatpush1.bf16.msra.mxu0 %v1917
      %2398 = vmatprep.subr.bf16.mxu0 0
      %2399 = vmatpush1.bf16.msra.mxu0 %v1918
      %2400 = vmatprep.subr.bf16.mxu0 0
      %2401 = vmatpush1.bf16.msra.mxu0 %v1919
      %2402 = vmatprep.subr.bf16.mxu0 0
      %2403 = vmatpush1.bf16.msra.mxu0 %v1920
      %2404 = vmatprep.subr.bf16.mxu0 0
      %2405 = vmatpush1.bf16.msra.mxu0 %v1921
      %2406 = vmatprep.subr.bf16.mxu0 0
      %2407 = vmatpush1.bf16.msra.mxu0 %v1922
      %2408 = vmatprep.subr.bf16.mxu0 0
      %2409 = vmatpush1.bf16.msra.mxu0 %v1923
      %2410 = vmatprep.subr.bf16.mxu0 0
      %2411 = vmatpush1.bf16.msra.mxu0 %v1924
      %2412 = vmatprep.subr.bf16.mxu0 0
      %2413 = vmatpush1.bf16.msra.mxu0 %v1925
      %2414 = vmatprep.subr.bf16.mxu0 0
      %2415 = vmatpush1.bf16.msra.mxu0 %v1926
      %2416 = vmatprep.subr.bf16.mxu0 0
      %2417 = vmatpush1.bf16.msra.mxu0 %v1927
      %2418 = vmatprep.subr.bf16.mxu0 0
      %2419 = vmatpush1.bf16.msra.mxu0 %v1928
      %2420 = vmatprep.subr.bf16.mxu0 0
      %2421 = vmatpush1.bf16.msra.mxu0 %v1929
      %2422 = vmatprep.subr.bf16.mxu0 0
      %2423 = vmatpush1.bf16.msra.mxu0 %v1930
      %2424 = vmatprep.subr.bf16.mxu0 0
      %2425 = vmatpush1.bf16.msra.mxu0 %v1931
      %2426 = vmatprep.mubr.bf16.mxu0 %v1271
      %2427 = vmatmul.mubr.bf16.gmra.mrb[0].mxu0 %v1270
      %v2428 = vpop.f32.mrb[0].mxu0
      %v2429 = vadd.f32 %v2140, %v2428
      %v2430 = vpop.f32.mrb[0].mxu0
      %v2431 = vpop.f32.mrb[0].mxu0
      %v2432 = vadd.f32 %v2143, %v2431
      %v2433 = vpop.f32.mrb[0].mxu0
      %2434 = vmatprep.mubr.bf16.mxu0 %v1278
      %2435 = vmatmul.mubr.bf16.gmra.mrb[0].mxu0 %v1277
      %v2436 = vpop.f32.mrb[0].mxu0
      %v2437 = vadd.f32 %v2148, %v2436
      %v2438 = vpop.f32.mrb[0].mxu0
      %v2439 = vpop.f32.mrb[0].mxu0
      %v2440 = vadd.f32 %v2151, %v2439
      %v2441 = vpop.f32.mrb[0].mxu0
      %2442 = vmatprep.mubr.bf16.mxu0 %v1285
      %2443 = vmatmul.mubr.bf16.gmra.mrb[0].mxu0 %v1284
      %v2444 = vpop.f32.mrb[0].mxu0
      %v2445 = vadd.f32 %v2156, %v2444
      %v2446 = vpop.f32.mrb[0].mxu0
      %v2447 = vpop.f32.mrb[0].mxu0
      %v2448 = vadd.f32 %v2159, %v2447
      %v2449 = vpop.f32.mrb[0].mxu0
      %2450 = vmatprep.mubr.bf16.mxu0 %v1292
      %2451 = vmatmul.mubr.bf16.gmra.mrb[0].mxu0 %v1291
      %v2452 = vpop.f32.mrb[0].mxu0
      %v2453 = vadd.f32 %v2164, %v2452
      %v2454 = vpop.f32.mrb[0].mxu0
      %v2455 = vpop.f32.mrb[0].mxu0
      %v2456 = vadd.f32 %v2167, %v2455
      %v2457 = vpop.f32.mrb[0].mxu0
      %2458 = vmatprep.mubr.bf16.mxu0 %v1299
      %2459 = vmatmul.mubr.bf16.gmra.mrb[0].mxu0 %v1298
      %v2460 = vpop.f32.mrb[0].mxu0
      %v2461 = vadd.f32 %v2172, %v2460
      %v2462 = vpop.f32.mrb[0].mxu0
      %v2463 = vpop.f32.mrb[0].mxu0
      %v2464 = vadd.f32 %v2175, %v2463
      %v2465 = vpop.f32.mrb[0].mxu0
      %2466 = vmatprep.mubr.bf16.mxu0 %v1306
      %2467 = vmatmul.mubr.bf16.gmra.mrb[0].mxu0 %v1305
      %v2468 = vpop.f32.mrb[0].mxu0
      %v2469 = vadd.f32 %v2180, %v2468
      %v2470 = vpop.f32.mrb[0].mxu0
      %v2471 = vpop.f32.mrb[0].mxu0
      %v2472 = vadd.f32 %v2183, %v2471
      %v2473 = vpop.f32.mrb[0].mxu0
      %2474 = vmatprep.mubr.bf16.mxu0 %v1313
      %2475 = vmatmul.mubr.bf16.gmra.mrb[0].mxu0 %v1312
      %v2476 = vpop.f32.mrb[0].mxu0
      %v2477 = vadd.f32 %v2188, %v2476
      %v2478 = vpop.f32.mrb[0].mxu0
      %v2479 = vpop.f32.mrb[0].mxu0
      %v2480 = vadd.f32 %v2191, %v2479
      %v2481 = vpop.f32.mrb[0].mxu0
      %2482 = vmatprep.mubr.bf16.mxu0 %v1320
      %2483 = vmatmul.mubr.bf16.gmra.mrb[0].mxu0 %v1319
      %v2484 = vpop.f32.mrb[0].mxu0
      %v2485 = vadd.f32 %v2196, %v2484
      %v2486 = vpop.f32.mrb[0].mxu0
      %v2487 = vpop.f32.mrb[0].mxu0
      %v2488 = vadd.f32 %v2199, %v2487
      %v2489 = vpop.f32.mrb[0].mxu0
      %2490 = vmatprep.mubr.bf16.mxu0 %v1327
      %2491 = vmatmul.mubr.bf16.gmra.mrb[0].mxu0 %v1326
      %v2492 = vpop.f32.mrb[0].mxu0
      %v2493 = vadd.f32 %v2204, %v2492
      %v2494 = vpop.f32.mrb[0].mxu0
      %v2495 = vpop.f32.mrb[0].mxu0
      %v2496 = vadd.f32 %v2207, %v2495
      %v2497 = vpop.f32.mrb[0].mxu0
      %2498 = vmatprep.mubr.bf16.mxu0 %v1334
      %2499 = vmatmul.mubr.bf16.gmra.mrb[0].mxu0 %v1333
      %v2500 = vpop.f32.mrb[0].mxu0
      %v2501 = vadd.f32 %v2212, %v2500
      %v2502 = vpop.f32.mrb[0].mxu0
      %v2503 = vpop.f32.mrb[0].mxu0
      %v2504 = vadd.f32 %v2215, %v2503
      %v2505 = vpop.f32.mrb[0].mxu0
      %2506 = vmatprep.mubr.bf16.mxu0 %v1341
      %2507 = vmatmul.mubr.bf16.gmra.mrb[0].mxu0 %v1340
      %v2508 = vpop.f32.mrb[0].mxu0
      %v2509 = vadd.f32 %v2220, %v2508
      %v2510 = vpop.f32.mrb[0].mxu0
      %v2511 = vpop.f32.mrb[0].mxu0
      %v2512 = vadd.f32 %v2223, %v2511
      %v2513 = vpop.f32.mrb[0].mxu0
      %2514 = vmatprep.mubr.bf16.mxu0 %v1348
      %2515 = vmatmul.mubr.bf16.gmra.mrb[0].mxu0 %v1347
      %v2516 = vpop.f32.mrb[0].mxu0
      %v2517 = vadd.f32 %v2228, %v2516
      %v2518 = vpop.f32.mrb[0].mxu0
      %v2519 = vpop.f32.mrb[0].mxu0
      %v2520 = vadd.f32 %v2231, %v2519
      %v2521 = vpop.f32.mrb[0].mxu0
      %2522 = vmatprep.mubr.bf16.mxu0 %v1355
      %2523 = vmatmul.mubr.bf16.gmra.mrb[0].mxu0 %v1354
      %v2524 = vpop.f32.mrb[0].mxu0
      %v2525 = vadd.f32 %v2236, %v2524
      %v2526 = vpop.f32.mrb[0].mxu0
      %v2527 = vpop.f32.mrb[0].mxu0
      %v2528 = vadd.f32 %v2239, %v2527
      %v2529 = vpop.f32.mrb[0].mxu0
      %2530 = vmatprep.mubr.bf16.mxu0 %v1362
      %2531 = vmatmul.mubr.bf16.gmra.mrb[0].mxu0 %v1361
      %v2532 = vpop.f32.mrb[0].mxu0
      %v2533 = vadd.f32 %v2244, %v2532
      %v2534 = vpop.f32.mrb[0].mxu0
      %v2535 = vpop.f32.mrb[0].mxu0
      %v2536 = vadd.f32 %v2247, %v2535
      %v2537 = vpop.f32.mrb[0].mxu0
      %2538 = vmatprep.mubr.bf16.mxu0 %v1369
      %2539 = vmatmul.mubr.bf16.gmra.mrb[0].mxu0 %v1368
      %v2540 = vpop.f32.mrb[0].mxu0
      %v2541 = vadd.f32 %v2252, %v2540
      %v2542 = vpop.f32.mrb[0].mxu0
      %v2543 = vpop.f32.mrb[0].mxu0
      %v2544 = vadd.f32 %v2255, %v2543
      %v2545 = vpop.f32.mrb[0].mxu0
      %2546 = vmatprep.mubr.bf16.mxu0 %v1376
      %2547 = vmatmul.mubr.bf16.gmra.mrb[0].mxu0 %v1375
      %v2548 = vpop.f32.mrb[0].mxu0
      %v2549 = vadd.f32 %v2260, %v2548
      %v2550 = vpop.f32.mrb[0].mxu0
      %v2551 = vpop.f32.mrb[0].mxu0
      %v2552 = vadd.f32 %v2263, %v2551
      %v2553 = vpop.f32.mrb[0].mxu0
      %2554 = vmatprep.mubr.bf16.mxu0 %v1383
      %2555 = vmatmul.mubr.bf16.gmra.mrb[0].mxu0 %v1382
      %v2556 = vpop.f32.mrb[0].mxu0
      %v2557 = vadd.f32 %v2268, %v2556
      %v2558 = vpop.f32.mrb[0].mxu0
      %v2559 = vpop.f32.mrb[0].mxu0
      %v2560 = vadd.f32 %v2271, %v2559
      %v2561 = vpop.f32.mrb[0].mxu0
      %2562 = vmatprep.mubr.bf16.mxu0 %v1390
      %2563 = vmatmul.mubr.bf16.gmra.mrb[0].mxu0 %v1389
      %v2564 = vpop.f32.mrb[0].mxu0
      %v2565 = vadd.f32 %v2276, %v2564
      %v2566 = vpop.f32.mrb[0].mxu0
      %v2567 = vpop.f32.mrb[0].mxu0
      %v2568 = vadd.f32 %v2279, %v2567
      %v2569 = vpop.f32.mrb[0].mxu0
      %2570 = vmatprep.mubr.bf16.mxu0 %v1397
      %2571 = vmatmul.mubr.bf16.gmra.mrb[0].mxu0 %v1396
      %v2572 = vpop.f32.mrb[0].mxu0
      %v2573 = vadd.f32 %v2284, %v2572
      %v2574 = vpop.f32.mrb[0].mxu0
      %v2575 = vpop.f32.mrb[0].mxu0
      %v2576 = vadd.f32 %v2287, %v2575
      %v2577 = vpop.f32.mrb[0].mxu0
      %2578 = vmatprep.mubr.bf16.mxu0 %v1404
      %2579 = vmatmul.mubr.bf16.gmra.mrb[0].mxu0 %v1403
      %v2580 = vpop.f32.mrb[0].mxu0
      %v2581 = vadd.f32 %v2292, %v2580
      %v2582 = vpop.f32.mrb[0].mxu0
      %v2583 = vpop.f32.mrb[0].mxu0
      %v2584 = vadd.f32 %v2295, %v2583
      %v2585 = vpop.f32.mrb[0].mxu0
      %2586 = vmatprep.mubr.bf16.mxu0 %v1411
      %2587 = vmatmul.mubr.bf16.gmra.mrb[0].mxu0 %v1410
      %v2588 = vpop.f32.mrb[0].mxu0
      %v2589 = vadd.f32 %v2300, %v2588
      %v2590 = vpop.f32.mrb[0].mxu0
      %v2591 = vpop.f32.mrb[0].mxu0
      %v2592 = vadd.f32 %v2303, %v2591
      %v2593 = vpop.f32.mrb[0].mxu0
      %2594 = vmatprep.mubr.bf16.mxu0 %v1418
      %2595 = vmatmul.mubr.bf16.gmra.mrb[0].mxu0 %v1417
      %v2596 = vpop.f32.mrb[0].mxu0
      %v2597 = vadd.f32 %v2308, %v2596
      %v2598 = vpop.f32.mrb[0].mxu0
      %v2599 = vpop.f32.mrb[0].mxu0
      %v2600 = vadd.f32 %v2311, %v2599
      %v2601 = vpop.f32.mrb[0].mxu0
      %2602 = vmatprep.mubr.bf16.mxu0 %v1425
      %2603 = vmatmul.mubr.bf16.gmra.mrb[0].mxu0 %v1424
      %v2604 = vpop.f32.mrb[0].mxu0
      %v2605 = vadd.f32 %v2316, %v2604
      %v2606 = vpop.f32.mrb[0].mxu0
      %v2607 = vpop.f32.mrb[0].mxu0
      %v2608 = vadd.f32 %v2319, %v2607
      %v2609 = vpop.f32.mrb[0].mxu0
      %2610 = vmatprep.mubr.bf16.mxu0 %v1432
      %2611 = vmatmul.mubr.bf16.gmra.mrb[0].mxu0 %v1431
      %v2612 = vpop.f32.mrb[0].mxu0
      %v2613 = vadd.f32 %v2324, %v2612
      %v2614 = vpop.f32.mrb[0].mxu0
      %v2615 = vpop.f32.mrb[0].mxu0
      %v2616 = vadd.f32 %v2327, %v2615
      %v2617 = vpop.f32.mrb[0].mxu0
      %2618 = vmatprep.mubr.bf16.mxu0 %v1439
      %2619 = vmatmul.mubr.bf16.gmra.mrb[0].mxu0 %v1438
      %v2620 = vpop.f32.mrb[0].mxu0
      %v2621 = vadd.f32 %v2332, %v2620
      %v2622 = vpop.f32.mrb[0].mxu0
      %v2623 = vpop.f32.mrb[0].mxu0
      %v2624 = vadd.f32 %v2335, %v2623
      %v2625 = vpop.f32.mrb[0].mxu0
      %2626 = vmatprep.mubr.bf16.mxu0 %v1446
      %2627 = vmatmul.mubr.bf16.gmra.mrb[0].mxu0 %v1445
      %v2628 = vpop.f32.mrb[0].mxu0
      %v2629 = vadd.f32 %v2340, %v2628
      %v2630 = vpop.f32.mrb[0].mxu0
      %v2631 = vpop.f32.mrb[0].mxu0
      %v2632 = vadd.f32 %v2343, %v2631
      %v2633 = vpop.f32.mrb[0].mxu0
      %2634 = vmatprep.mubr.bf16.mxu0 %v1453
      %2635 = vmatmul.mubr.bf16.gmra.mrb[0].mxu0 %v1452
      %v2636 = vpop.f32.mrb[0].mxu0
      %v2637 = vadd.f32 %v2348, %v2636
      %v2638 = vpop.f32.mrb[0].mxu0
      %v2639 = vpop.f32.mrb[0].mxu0
      %v2640 = vadd.f32 %v2351, %v2639
      %v2641 = vpop.f32.mrb[0].mxu0
      %2642 = vmatprep.mubr.bf16.mxu0 %v1460
      %2643 = vmatmul.mubr.bf16.gmra.mrb[0].mxu0 %v1459
      %v2644 = vpop.f32.mrb[0].mxu0
      %v2645 = vadd.f32 %v2356, %v2644
      %v2646 = vpop.f32.mrb[0].mxu0
      %v2647 = vpop.f32.mrb[0].mxu0
      %v2648 = vadd.f32 %v2359, %v2647
      %v2649 = vpop.f32.mrb[0].mxu0
      %2650 = vmatprep.mubr.bf16.mxu0 %v1467
      %2651 = vmatmul.mubr.bf16.gmra.mrb[0].mxu0 %v1466
      %v2652 = vpop.f32.mrb[0].mxu0
      %v2653 = vadd.f32 %v2364, %v2652
      %v2654 = vpop.f32.mrb[0].mxu0
      %v2655 = vpop.f32.mrb[0].mxu0
      %v2656 = vadd.f32 %v2367, %v2655
      %v2657 = vpop.f32.mrb[0].mxu0
      %2658 = vmatprep.mubr.bf16.mxu0 %v1474
      %2659 = vmatmul.mubr.bf16.gmra.mrb[0].mxu0 %v1473
      %v2660 = vpop.f32.mrb[0].mxu0
      %v2661 = vadd.f32 %v2372, %v2660
      %v2662 = vpop.f32.mrb[0].mxu0
      %v2663 = vpop.f32.mrb[0].mxu0
      %v2664 = vadd.f32 %v2375, %v2663
      %v2665 = vpop.f32.mrb[0].mxu0
      %2666 = vmatprep.mubr.bf16.mxu0 %v1481
      %2667 = vmatmul.mubr.bf16.gmra.mrb[0].mxu0 %v1480
      %v2668 = vpop.f32.mrb[0].mxu0
      %v2669 = vadd.f32 %v2380, %v2668
      %v2670 = vpop.f32.mrb[0].mxu0
      %v2671 = vpop.f32.mrb[0].mxu0
      %v2672 = vadd.f32 %v2383, %v2671
      %v2673 = vpop.f32.mrb[0].mxu0
      %2674 = vmatprep.mubr.bf16.mxu0 %v1488
      %2675 = vmatmul.mubr.bf16.gmra.mrb[0].mxu0 %v1487
      %v2676 = vpop.f32.mrb[0].mxu0
      %v2677 = vadd.f32 %v2388, %v2676
      %v2678 = vpop.f32.mrb[0].mxu0
      %v2679 = vpop.f32.mrb[0].mxu0
      %v2680 = vadd.f32 %v2391, %v2679
      %v2681 = vpop.f32.mrb[0].mxu0
      %2682 = vdwg.mxu0
      %2683 = vmatprep.subr.bf16.mxu0 0
      %2684 = vmatpush1.bf16.msra.mxu0 %v1932
      %2685 = vmatprep.subr.bf16.mxu0 0
      %2686 = vmatpush1.bf16.msra.mxu0 %v1933
      %2687 = vmatprep.subr.bf16.mxu0 0
      %2688 = vmatpush1.bf16.msra.mxu0 %v1934
      %2689 = vmatprep.subr.bf16.mxu0 0
      %2690 = vmatpush1.bf16.msra.mxu0 %v1935
      %2691 = vmatprep.subr.bf16.mxu0 0
      %2692 = vmatpush1.bf16.msra.mxu0 %v1936
      %2693 = vmatprep.subr.bf16.mxu0 0
      %2694 = vmatpush1.bf16.msra.mxu0 %v1937
      %2695 = vmatprep.subr.bf16.mxu0 0
      %2696 = vmatpush1.bf16.msra.mxu0 %v1938
      %2697 = vmatprep.subr.bf16.mxu0 0
      %2698 = vmatpush1.bf16.msra.mxu0 %v1939
      %2699 = vmatprep.subr.bf16.mxu0 0
      %2700 = vmatpush1.bf16.msra.mxu0 %v1940
      %2701 = vmatprep.subr.bf16.mxu0 0
      %2702 = vmatpush1.bf16.msra.mxu0 %v1941
      %2703 = vmatprep.subr.bf16.mxu0 0
      %2704 = vmatpush1.bf16.msra.mxu0 %v1942
      %2705 = vmatprep.subr.bf16.mxu0 0
      %2706 = vmatpush1.bf16.msra.mxu0 %v1943
      %2707 = vmatprep.subr.bf16.mxu0 0
      %2708 = vmatpush1.bf16.msra.mxu0 %v1944
      %2709 = vmatprep.subr.bf16.mxu0 0
      %2710 = vmatpush1.bf16.msra.mxu0 %v1945
      %2711 = vmatprep.subr.bf16.mxu0 0
      %2712 = vmatpush1.bf16.msra.mxu0 %v1946
      %2713 = vmatprep.subr.bf16.mxu0 0
      %2714 = vmatpush1.bf16.msra.mxu0 %v1947
      %2715 = vmatprep.mubr.bf16.mxu0 %v1273
      %2716 = vmatmul.mubr.bf16.gmra.mrb[0].mxu0 %v1272
      %v2717 = vpop.f32.mrb[0].mxu0
      %v2718 = vadd.f32 %v2429, %v2717
      %v2719 = vpop.f32.mrb[0].mxu0
      %v2720 = vpop.f32.mrb[0].mxu0
      %v2721 = vadd.f32 %v2432, %v2720
      %v2722 = vpop.f32.mrb[0].mxu0
      %2723 = vmatprep.mubr.bf16.mxu0 %v1280
      %2724 = vmatmul.mubr.bf16.gmra.mrb[0].mxu0 %v1279
      %v2725 = vpop.f32.mrb[0].mxu0
      %v2726 = vadd.f32 %v2437, %v2725
      %v2727 = vpop.f32.mrb[0].mxu0
      %v2728 = vpop.f32.mrb[0].mxu0
      %v2729 = vadd.f32 %v2440, %v2728
      %v2730 = vpop.f32.mrb[0].mxu0
      %2731 = vmatprep.mubr.bf16.mxu0 %v1287
      %2732 = vmatmul.mubr.bf16.gmra.mrb[0].mxu0 %v1286
      %v2733 = vpop.f32.mrb[0].mxu0
      %v2734 = vadd.f32 %v2445, %v2733
      %v2735 = vpop.f32.mrb[0].mxu0
      %v2736 = vpop.f32.mrb[0].mxu0
      %v2737 = vadd.f32 %v2448, %v2736
      %v2738 = vpop.f32.mrb[0].mxu0
      %2739 = vmatprep.mubr.bf16.mxu0 %v1294
      %2740 = vmatmul.mubr.bf16.gmra.mrb[0].mxu0 %v1293
      %v2741 = vpop.f32.mrb[0].mxu0
      %v2742 = vadd.f32 %v2453, %v2741
      %v2743 = vpop.f32.mrb[0].mxu0
      %v2744 = vpop.f32.mrb[0].mxu0
      %v2745 = vadd.f32 %v2456, %v2744
      %v2746 = vpop.f32.mrb[0].mxu0
      %2747 = vmatprep.mubr.bf16.mxu0 %v1301
      %2748 = vmatmul.mubr.bf16.gmra.mrb[0].mxu0 %v1300
      %v2749 = vpop.f32.mrb[0].mxu0
      %v2750 = vadd.f32 %v2461, %v2749
      %v2751 = vpop.f32.mrb[0].mxu0
      %v2752 = vpop.f32.mrb[0].mxu0
      %v2753 = vadd.f32 %v2464, %v2752
      %v2754 = vpop.f32.mrb[0].mxu0
      %2755 = vmatprep.mubr.bf16.mxu0 %v1308
      %2756 = vmatmul.mubr.bf16.gmra.mrb[0].mxu0 %v1307
      %v2757 = vpop.f32.mrb[0].mxu0
      %v2758 = vadd.f32 %v2469, %v2757
      %v2759 = vpop.f32.mrb[0].mxu0
      %v2760 = vpop.f32.mrb[0].mxu0
      %v2761 = vadd.f32 %v2472, %v2760
      %v2762 = vpop.f32.mrb[0].mxu0
      %2763 = vmatprep.mubr.bf16.mxu0 %v1315
      %2764 = vmatmul.mubr.bf16.gmra.mrb[0].mxu0 %v1314
      %v2765 = vpop.f32.mrb[0].mxu0
      %v2766 = vadd.f32 %v2477, %v2765
      %v2767 = vpop.f32.mrb[0].mxu0
      %v2768 = vpop.f32.mrb[0].mxu0
      %v2769 = vadd.f32 %v2480, %v2768
      %v2770 = vpop.f32.mrb[0].mxu0
      %2771 = vmatprep.mubr.bf16.mxu0 %v1322
      %2772 = vmatmul.mubr.bf16.gmra.mrb[0].mxu0 %v1321
      %v2773 = vpop.f32.mrb[0].mxu0
      %v2774 = vadd.f32 %v2485, %v2773
      %v2775 = vpop.f32.mrb[0].mxu0
      %v2776 = vpop.f32.mrb[0].mxu0
      %v2777 = vadd.f32 %v2488, %v2776
      %v2778 = vpop.f32.mrb[0].mxu0
      %2779 = vmatprep.mubr.bf16.mxu0 %v1329
      %2780 = vmatmul.mubr.bf16.gmra.mrb[0].mxu0 %v1328
      %v2781 = vpop.f32.mrb[0].mxu0
      %v2782 = vadd.f32 %v2493, %v2781
      %v2783 = vpop.f32.mrb[0].mxu0
      %v2784 = vpop.f32.mrb[0].mxu0
      %v2785 = vadd.f32 %v2496, %v2784
      %v2786 = vpop.f32.mrb[0].mxu0
      %2787 = vmatprep.mubr.bf16.mxu0 %v1336
      %2788 = vmatmul.mubr.bf16.gmra.mrb[0].mxu0 %v1335
      %v2789 = vpop.f32.mrb[0].mxu0
      %v2790 = vadd.f32 %v2501, %v2789
      %v2791 = vpop.f32.mrb[0].mxu0
      %v2792 = vpop.f32.mrb[0].mxu0
      %v2793 = vadd.f32 %v2504, %v2792
      %v2794 = vpop.f32.mrb[0].mxu0
      %2795 = vmatprep.mubr.bf16.mxu0 %v1343
      %2796 = vmatmul.mubr.bf16.gmra.mrb[0].mxu0 %v1342
      %v2797 = vpop.f32.mrb[0].mxu0
      %v2798 = vadd.f32 %v2509, %v2797
      %v2799 = vpop.f32.mrb[0].mxu0
      %v2800 = vpop.f32.mrb[0].mxu0
      %v2801 = vadd.f32 %v2512, %v2800
      %v2802 = vpop.f32.mrb[0].mxu0
      %2803 = vmatprep.mubr.bf16.mxu0 %v1350
      %2804 = vmatmul.mubr.bf16.gmra.mrb[0].mxu0 %v1349
      %v2805 = vpop.f32.mrb[0].mxu0
      %v2806 = vadd.f32 %v2517, %v2805
      %v2807 = vpop.f32.mrb[0].mxu0
      %v2808 = vpop.f32.mrb[0].mxu0
      %v2809 = vadd.f32 %v2520, %v2808
      %v2810 = vpop.f32.mrb[0].mxu0
      %2811 = vmatprep.mubr.bf16.mxu0 %v1357
      %2812 = vmatmul.mubr.bf16.gmra.mrb[0].mxu0 %v1356
      %v2813 = vpop.f32.mrb[0].mxu0
      %v2814 = vadd.f32 %v2525, %v2813
      %v2815 = vpop.f32.mrb[0].mxu0
      %v2816 = vpop.f32.mrb[0].mxu0
      %v2817 = vadd.f32 %v2528, %v2816
      %v2818 = vpop.f32.mrb[0].mxu0
      %2819 = vmatprep.mubr.bf16.mxu0 %v1364
      %2820 = vmatmul.mubr.bf16.gmra.mrb[0].mxu0 %v1363
      %v2821 = vpop.f32.mrb[0].mxu0
      %v2822 = vadd.f32 %v2533, %v2821
      %v2823 = vpop.f32.mrb[0].mxu0
      %v2824 = vpop.f32.mrb[0].mxu0
      %v2825 = vadd.f32 %v2536, %v2824
      %v2826 = vpop.f32.mrb[0].mxu0
      %2827 = vmatprep.mubr.bf16.mxu0 %v1371
      %2828 = vmatmul.mubr.bf16.gmra.mrb[0].mxu0 %v1370
      %v2829 = vpop.f32.mrb[0].mxu0
      %v2830 = vadd.f32 %v2541, %v2829
      %v2831 = vpop.f32.mrb[0].mxu0
      %v2832 = vpop.f32.mrb[0].mxu0
      %v2833 = vadd.f32 %v2544, %v2832
      %v2834 = vpop.f32.mrb[0].mxu0
      %2835 = vmatprep.mubr.bf16.mxu0 %v1378
      %2836 = vmatmul.mubr.bf16.gmra.mrb[0].mxu0 %v1377
      %v2837 = vpop.f32.mrb[0].mxu0
      %v2838 = vadd.f32 %v2549, %v2837
      %v2839 = vpop.f32.mrb[0].mxu0
      %v2840 = vpop.f32.mrb[0].mxu0
      %v2841 = vadd.f32 %v2552, %v2840
      %v2842 = vpop.f32.mrb[0].mxu0
      %2843 = vmatprep.mubr.bf16.mxu0 %v1385
      %2844 = vmatmul.mubr.bf16.gmra.mrb[0].mxu0 %v1384
      %v2845 = vpop.f32.mrb[0].mxu0
      %v2846 = vadd.f32 %v2557, %v2845
      %v2847 = vpop.f32.mrb[0].mxu0
      %v2848 = vpop.f32.mrb[0].mxu0
      %v2849 = vadd.f32 %v2560, %v2848
      %v2850 = vpop.f32.mrb[0].mxu0
      %2851 = vmatprep.mubr.bf16.mxu0 %v1392
      %2852 = vmatmul.mubr.bf16.gmra.mrb[0].mxu0 %v1391
      %v2853 = vpop.f32.mrb[0].mxu0
      %v2854 = vadd.f32 %v2565, %v2853
      %v2855 = vpop.f32.mrb[0].mxu0
      %v2856 = vpop.f32.mrb[0].mxu0
      %v2857 = vadd.f32 %v2568, %v2856
      %v2858 = vpop.f32.mrb[0].mxu0
      %2859 = vmatprep.mubr.bf16.mxu0 %v1399
      %2860 = vmatmul.mubr.bf16.gmra.mrb[0].mxu0 %v1398
      %v2861 = vpop.f32.mrb[0].mxu0
      %v2862 = vadd.f32 %v2573, %v2861
      %v2863 = vpop.f32.mrb[0].mxu0
      %v2864 = vpop.f32.mrb[0].mxu0
      %v2865 = vadd.f32 %v2576, %v2864
      %v2866 = vpop.f32.mrb[0].mxu0
      %2867 = vmatprep.mubr.bf16.mxu0 %v1406
      %2868 = vmatmul.mubr.bf16.gmra.mrb[0].mxu0 %v1405
      %v2869 = vpop.f32.mrb[0].mxu0
      %v2870 = vadd.f32 %v2581, %v2869
      %v2871 = vpop.f32.mrb[0].mxu0
      %v2872 = vpop.f32.mrb[0].mxu0
      %v2873 = vadd.f32 %v2584, %v2872
      %v2874 = vpop.f32.mrb[0].mxu0
      %2875 = vmatprep.mubr.bf16.mxu0 %v1413
      %2876 = vmatmul.mubr.bf16.gmra.mrb[0].mxu0 %v1412
      %v2877 = vpop.f32.mrb[0].mxu0
      %v2878 = vadd.f32 %v2589, %v2877
      %v2879 = vpop.f32.mrb[0].mxu0
      %v2880 = vpop.f32.mrb[0].mxu0
      %v2881 = vadd.f32 %v2592, %v2880
      %v2882 = vpop.f32.mrb[0].mxu0
      %2883 = vmatprep.mubr.bf16.mxu0 %v1420
      %2884 = vmatmul.mubr.bf16.gmra.mrb[0].mxu0 %v1419
      %v2885 = vpop.f32.mrb[0].mxu0
      %v2886 = vadd.f32 %v2597, %v2885
      %v2887 = vpop.f32.mrb[0].mxu0
      %v2888 = vpop.f32.mrb[0].mxu0
      %v2889 = vadd.f32 %v2600, %v2888
      %v2890 = vpop.f32.mrb[0].mxu0
      %2891 = vmatprep.mubr.bf16.mxu0 %v1427
      %2892 = vmatmul.mubr.bf16.gmra.mrb[0].mxu0 %v1426
      %v2893 = vpop.f32.mrb[0].mxu0
      %v2894 = vadd.f32 %v2605, %v2893
      %v2895 = vpop.f32.mrb[0].mxu0
      %v2896 = vpop.f32.mrb[0].mxu0
      %v2897 = vadd.f32 %v2608, %v2896
      %v2898 = vpop.f32.mrb[0].mxu0
      %2899 = vmatprep.mubr.bf16.mxu0 %v1434
      %2900 = vmatmul.mubr.bf16.gmra.mrb[0].mxu0 %v1433
      %v2901 = vpop.f32.mrb[0].mxu0
      %v2902 = vadd.f32 %v2613, %v2901
      %v2903 = vpop.f32.mrb[0].mxu0
      %v2904 = vpop.f32.mrb[0].mxu0
      %v2905 = vadd.f32 %v2616, %v2904
      %v2906 = vpop.f32.mrb[0].mxu0
      %2907 = vmatprep.mubr.bf16.mxu0 %v1441
      %2908 = vmatmul.mubr.bf16.gmra.mrb[0].mxu0 %v1440
      %v2909 = vpop.f32.mrb[0].mxu0
      %v2910 = vadd.f32 %v2621, %v2909
      %v2911 = vpop.f32.mrb[0].mxu0
      %v2912 = vpop.f32.mrb[0].mxu0
      %v2913 = vadd.f32 %v2624, %v2912
      %v2914 = vpop.f32.mrb[0].mxu0
      %2915 = vmatprep.mubr.bf16.mxu0 %v1448
      %2916 = vmatmul.mubr.bf16.gmra.mrb[0].mxu0 %v1447
      %v2917 = vpop.f32.mrb[0].mxu0
      %v2918 = vadd.f32 %v2629, %v2917
      %v2919 = vpop.f32.mrb[0].mxu0
      %v2920 = vpop.f32.mrb[0].mxu0
      %v2921 = vadd.f32 %v2632, %v2920
      %v2922 = vpop.f32.mrb[0].mxu0
      %2923 = vmatprep.mubr.bf16.mxu0 %v1455
      %2924 = vmatmul.mubr.bf16.gmra.mrb[0].mxu0 %v1454
      %v2925 = vpop.f32.mrb[0].mxu0
      %v2926 = vadd.f32 %v2637, %v2925
      %v2927 = vpop.f32.mrb[0].mxu0
      %v2928 = vpop.f32.mrb[0].mxu0
      %v2929 = vadd.f32 %v2640, %v2928
      %v2930 = vpop.f32.mrb[0].mxu0
      %2931 = vmatprep.mubr.bf16.mxu0 %v1462
      %2932 = vmatmul.mubr.bf16.gmra.mrb[0].mxu0 %v1461
      %v2933 = vpop.f32.mrb[0].mxu0
      %v2934 = vadd.f32 %v2645, %v2933
      %v2935 = vpop.f32.mrb[0].mxu0
      %v2936 = vpop.f32.mrb[0].mxu0
      %v2937 = vadd.f32 %v2648, %v2936
      %v2938 = vpop.f32.mrb[0].mxu0
      %2939 = vmatprep.mubr.bf16.mxu0 %v1469
      %2940 = vmatmul.mubr.bf16.gmra.mrb[0].mxu0 %v1468
      %v2941 = vpop.f32.mrb[0].mxu0
      %v2942 = vadd.f32 %v2653, %v2941
      %v2943 = vpop.f32.mrb[0].mxu0
      %v2944 = vpop.f32.mrb[0].mxu0
      %v2945 = vadd.f32 %v2656, %v2944
      %v2946 = vpop.f32.mrb[0].mxu0
      %2947 = vmatprep.mubr.bf16.mxu0 %v1476
      %2948 = vmatmul.mubr.bf16.gmra.mrb[0].mxu0 %v1475
      %v2949 = vpop.f32.mrb[0].mxu0
      %v2950 = vadd.f32 %v2661, %v2949
      %v2951 = vpop.f32.mrb[0].mxu0
      %v2952 = vpop.f32.mrb[0].mxu0
      %v2953 = vadd.f32 %v2664, %v2952
      %v2954 = vpop.f32.mrb[0].mxu0
      %2955 = vmatprep.mubr.bf16.mxu0 %v1483
      %2956 = vmatmul.mubr.bf16.gmra.mrb[0].mxu0 %v1482
      %v2957 = vpop.f32.mrb[0].mxu0
      %v2958 = vadd.f32 %v2669, %v2957
      %v2959 = vpop.f32.mrb[0].mxu0
      %v2960 = vpop.f32.mrb[0].mxu0
      %v2961 = vadd.f32 %v2672, %v2960
      %v2962 = vpop.f32.mrb[0].mxu0
      %2963 = vmatprep.mubr.bf16.mxu0 %v1490
      %2964 = vmatmul.mubr.bf16.gmra.mrb[0].mxu0 %v1489
      %v2965 = vpop.f32.mrb[0].mxu0
      %v2966 = vadd.f32 %v2677, %v2965
      %v2967 = vpop.f32.mrb[0].mxu0
      %v2968 = vpop.f32.mrb[0].mxu0
      %v2969 = vadd.f32 %v2680, %v2968
      %v2970 = vpop.f32.mrb[0].mxu0
      %2971 = vdwg.mxu0
      %2972 = vmatprep.subr.bf16.mxu0 0
      %2973 = vmatpush1.bf16.msra.mxu0 %v1948
      %2974 = vmatprep.subr.bf16.mxu0 0
      %2975 = vmatpush1.bf16.msra.mxu0 %v1949
      %2976 = vmatprep.subr.bf16.mxu0 0
      %2977 = vmatpush1.bf16.msra.mxu0 %v1950
      %2978 = vmatprep.subr.bf16.mxu0 0
      %2979 = vmatpush1.bf16.msra.mxu0 %v1951
      %2980 = vmatprep.subr.bf16.mxu0 0
      %2981 = vmatpush1.bf16.msra.mxu0 %v1952
      %2982 = vmatprep.subr.bf16.mxu0 0
      %2983 = vmatpush1.bf16.msra.mxu0 %v1953
      %2984 = vmatprep.subr.bf16.mxu0 0
      %2985 = vmatpush1.bf16.msra.mxu0 0
      %2986 = vmatprep.subr.bf16.mxu0 0
      %2987 = vmatpush1.bf16.msra.mxu0 0
      %2988 = vmatprep.subr.bf16.mxu0 0
      %2989 = vmatpush1.bf16.msra.mxu0 0
      %2990 = vmatprep.subr.bf16.mxu0 0
      %2991 = vmatpush1.bf16.msra.mxu0 0
      %2992 = vmatprep.subr.bf16.mxu0 0
      %2993 = vmatpush1.bf16.msra.mxu0 0
      %2994 = vmatprep.subr.bf16.mxu0 0
      %2995 = vmatpush1.bf16.msra.mxu0 0
      %2996 = vmatprep.subr.bf16.mxu0 0
      %2997 = vmatpush1.bf16.msra.mxu0 0
      %2998 = vmatprep.subr.bf16.mxu0 0
      %2999 = vmatpush1.bf16.msra.mxu0 0
      %3000 = vmatprep.subr.bf16.mxu0 0
      %3001 = vmatpush1.bf16.msra.mxu0 0
      %3002 = vmatprep.subr.bf16.mxu0 0
      %3003 = vmatpush1.bf16.msra.mxu0 0
      %3004 = vmatprep.mubr.bf16.mxu0 0
      %3005 = vmatmul.mubr.bf16.gmra.mrb[0].mxu0 %v2010
      %v3006 = vpop.f32.mrb[0].mxu0
      %v3007 = vadd.f32 %v2718, %v3006
      %v3008 = vpop.f32.mrb[0].mxu0
      %v3009 = vpop.f32.mrb[0].mxu0
      %v3010 = vadd.f32 %v2721, %v3009
      %v3011 = vpop.f32.mrb[0].mxu0
      %3012 = vmatprep.mubr.bf16.mxu0 0
      %3013 = vmatmul.mubr.bf16.gmra.mrb[0].mxu0 %v2013
      %v3014 = vpop.f32.mrb[0].mxu0
      %v3015 = vadd.f32 %v2726, %v3014
      %v3016 = vpop.f32.mrb[0].mxu0
      %v3017 = vpop.f32.mrb[0].mxu0
      %v3018 = vadd.f32 %v2729, %v3017
      %v3019 = vpop.f32.mrb[0].mxu0
      %3020 = vmatprep.mubr.bf16.mxu0 0
      %3021 = vmatmul.mubr.bf16.gmra.mrb[0].mxu0 %v2016
      %v3022 = vpop.f32.mrb[0].mxu0
      %v3023 = vadd.f32 %v2734, %v3022
      %v3024 = vpop.f32.mrb[0].mxu0
      %v3025 = vpop.f32.mrb[0].mxu0
      %v3026 = vadd.f32 %v2737, %v3025
      %v3027 = vpop.f32.mrb[0].mxu0
      %3028 = vmatprep.mubr.bf16.mxu0 0
      %3029 = vmatmul.mubr.bf16.gmra.mrb[0].mxu0 %v2019
      %v3030 = vpop.f32.mrb[0].mxu0
      %v3031 = vadd.f32 %v2742, %v3030
      %v3032 = vpop.f32.mrb[0].mxu0
      %v3033 = vpop.f32.mrb[0].mxu0
      %v3034 = vadd.f32 %v2745, %v3033
      %v3035 = vpop.f32.mrb[0].mxu0
      %3036 = vmatprep.mubr.bf16.mxu0 0
      %3037 = vmatmul.mubr.bf16.gmra.mrb[0].mxu0 %v2022
      %v3038 = vpop.f32.mrb[0].mxu0
      %v3039 = vadd.f32 %v2750, %v3038
      %v3040 = vpop.f32.mrb[0].mxu0
      %v3041 = vpop.f32.mrb[0].mxu0
      %v3042 = vadd.f32 %v2753, %v3041
      %v3043 = vpop.f32.mrb[0].mxu0
      %3044 = vmatprep.mubr.bf16.mxu0 0
      %3045 = vmatmul.mubr.bf16.gmra.mrb[0].mxu0 %v2025
      %v3046 = vpop.f32.mrb[0].mxu0
      %v3047 = vadd.f32 %v2758, %v3046
      %v3048 = vpop.f32.mrb[0].mxu0
      %v3049 = vpop.f32.mrb[0].mxu0
      %v3050 = vadd.f32 %v2761, %v3049
      %v3051 = vpop.f32.mrb[0].mxu0
      %3052 = vmatprep.mubr.bf16.mxu0 0
      %3053 = vmatmul.mubr.bf16.gmra.mrb[0].mxu0 %v2028
      %v3054 = vpop.f32.mrb[0].mxu0
      %v3055 = vadd.f32 %v2766, %v3054
      %v3056 = vpop.f32.mrb[0].mxu0
      %v3057 = vpop.f32.mrb[0].mxu0
      %v3058 = vadd.f32 %v2769, %v3057
      %v3059 = vpop.f32.mrb[0].mxu0
      %3060 = vmatprep.mubr.bf16.mxu0 0
      %3061 = vmatmul.mubr.bf16.gmra.mrb[0].mxu0 %v2031
      %v3062 = vpop.f32.mrb[0].mxu0
      %v3063 = vadd.f32 %v2774, %v3062
      %v3064 = vpop.f32.mrb[0].mxu0
      %v3065 = vpop.f32.mrb[0].mxu0
      %v3066 = vadd.f32 %v2777, %v3065
      %v3067 = vpop.f32.mrb[0].mxu0
      %3068 = vmatprep.mubr.bf16.mxu0 0
      %3069 = vmatmul.mubr.bf16.gmra.mrb[0].mxu0 %v2034
      %v3070 = vpop.f32.mrb[0].mxu0
      %v3071 = vadd.f32 %v2782, %v3070
      %v3072 = vpop.f32.mrb[0].mxu0
      %v3073 = vpop.f32.mrb[0].mxu0
      %v3074 = vadd.f32 %v2785, %v3073
      %v3075 = vpop.f32.mrb[0].mxu0
      %3076 = vmatprep.mubr.bf16.mxu0 0
      %3077 = vmatmul.mubr.bf16.gmra.mrb[0].mxu0 %v2037
      %v3078 = vpop.f32.mrb[0].mxu0
      %v3079 = vadd.f32 %v2790, %v3078
      %v3080 = vpop.f32.mrb[0].mxu0
      %v3081 = vpop.f32.mrb[0].mxu0
      %v3082 = vadd.f32 %v2793, %v3081
      %v3083 = vpop.f32.mrb[0].mxu0
      %3084 = vmatprep.mubr.bf16.mxu0 0
      %3085 = vmatmul.mubr.bf16.gmra.mrb[0].mxu0 %v2040
      %v3086 = vpop.f32.mrb[0].mxu0
      %v3087 = vadd.f32 %v2798, %v3086
      %v3088 = vpop.f32.mrb[0].mxu0
      %v3089 = vpop.f32.mrb[0].mxu0
      %v3090 = vadd.f32 %v2801, %v3089
      %v3091 = vpop.f32.mrb[0].mxu0
      %3092 = vmatprep.mubr.bf16.mxu0 0
      %3093 = vmatmul.mubr.bf16.gmra.mrb[0].mxu0 %v2043
      %v3094 = vpop.f32.mrb[0].mxu0
      %v3095 = vadd.f32 %v2806, %v3094
      %v3096 = vpop.f32.mrb[0].mxu0
      %v3097 = vpop.f32.mrb[0].mxu0
      %v3098 = vadd.f32 %v2809, %v3097
      %v3099 = vpop.f32.mrb[0].mxu0
      %3100 = vmatprep.mubr.bf16.mxu0 0
      %3101 = vmatmul.mubr.bf16.gmra.mrb[0].mxu0 %v2046
      %v3102 = vpop.f32.mrb[0].mxu0
      %v3103 = vadd.f32 %v2814, %v3102
      %v3104 = vpop.f32.mrb[0].mxu0
      %v3105 = vpop.f32.mrb[0].mxu0
      %v3106 = vadd.f32 %v2817, %v3105
      %v3107 = vpop.f32.mrb[0].mxu0
      %3108 = vmatprep.mubr.bf16.mxu0 0
      %3109 = vmatmul.mubr.bf16.gmra.mrb[0].mxu0 %v2049
      %v3110 = vpop.f32.mrb[0].mxu0
      %v3111 = vadd.f32 %v2822, %v3110
      %v3112 = vpop.f32.mrb[0].mxu0
      %v3113 = vpop.f32.mrb[0].mxu0
      %v3114 = vadd.f32 %v2825, %v3113
      %v3115 = vpop.f32.mrb[0].mxu0
      %3116 = vmatprep.mubr.bf16.mxu0 0
      %3117 = vmatmul.mubr.bf16.gmra.mrb[0].mxu0 %v2052
      %v3118 = vpop.f32.mrb[0].mxu0
      %v3119 = vadd.f32 %v2830, %v3118
      %v3120 = vpop.f32.mrb[0].mxu0
      %v3121 = vpop.f32.mrb[0].mxu0
      %v3122 = vadd.f32 %v2833, %v3121
      %v3123 = vpop.f32.mrb[0].mxu0
      %3124 = vmatprep.mubr.bf16.mxu0 0
      %3125 = vmatmul.mubr.bf16.gmra.mrb[0].mxu0 %v2055
      %v3126 = vpop.f32.mrb[0].mxu0
      %v3127 = vadd.f32 %v2838, %v3126
      %v3128 = vpop.f32.mrb[0].mxu0
      %v3129 = vpop.f32.mrb[0].mxu0
      %v3130 = vadd.f32 %v2841, %v3129
      %v3131 = vpop.f32.mrb[0].mxu0
      %3132 = vmatprep.mubr.bf16.mxu0 0
      %3133 = vmatmul.mubr.bf16.gmra.mrb[0].mxu0 %v2058
      %v3134 = vpop.f32.mrb[0].mxu0
      %v3135 = vadd.f32 %v2846, %v3134
      %v3136 = vpop.f32.mrb[0].mxu0
      %v3137 = vpop.f32.mrb[0].mxu0
      %v3138 = vadd.f32 %v2849, %v3137
      %v3139 = vpop.f32.mrb[0].mxu0
      %3140 = vmatprep.mubr.bf16.mxu0 0
      %3141 = vmatmul.mubr.bf16.gmra.mrb[0].mxu0 %v2061
      %v3142 = vpop.f32.mrb[0].mxu0
      %v3143 = vadd.f32 %v2854, %v3142
      %v3144 = vpop.f32.mrb[0].mxu0
      %v3145 = vpop.f32.mrb[0].mxu0
      %v3146 = vadd.f32 %v2857, %v3145
      %v3147 = vpop.f32.mrb[0].mxu0
      %3148 = vmatprep.mubr.bf16.mxu0 0
      %3149 = vmatmul.mubr.bf16.gmra.mrb[0].mxu0 %v2064
      %v3150 = vpop.f32.mrb[0].mxu0
      %v3151 = vadd.f32 %v2862, %v3150
      %v3152 = vpop.f32.mrb[0].mxu0
      %v3153 = vpop.f32.mrb[0].mxu0
      %v3154 = vadd.f32 %v2865, %v3153
      %v3155 = vpop.f32.mrb[0].mxu0
      %3156 = vmatprep.mubr.bf16.mxu0 0
      %3157 = vmatmul.mubr.bf16.gmra.mrb[0].mxu0 %v2067
      %v3158 = vpop.f32.mrb[0].mxu0
      %v3159 = vadd.f32 %v2870, %v3158
      %v3160 = vpop.f32.mrb[0].mxu0
      %v3161 = vpop.f32.mrb[0].mxu0
      %v3162 = vadd.f32 %v2873, %v3161
      %v3163 = vpop.f32.mrb[0].mxu0
      %3164 = vmatprep.mubr.bf16.mxu0 0
      %3165 = vmatmul.mubr.bf16.gmra.mrb[0].mxu0 %v2070
      %v3166 = vpop.f32.mrb[0].mxu0
      %v3167 = vadd.f32 %v2878, %v3166
      %v3168 = vpop.f32.mrb[0].mxu0
      %v3169 = vpop.f32.mrb[0].mxu0
      %v3170 = vadd.f32 %v2881, %v3169
      %v3171 = vpop.f32.mrb[0].mxu0
      %3172 = vmatprep.mubr.bf16.mxu0 0
      %3173 = vmatmul.mubr.bf16.gmra.mrb[0].mxu0 %v2073
      %v3174 = vpop.f32.mrb[0].mxu0
      %v3175 = vadd.f32 %v2886, %v3174
      %v3176 = vpop.f32.mrb[0].mxu0
      %v3177 = vpop.f32.mrb[0].mxu0
      %v3178 = vadd.f32 %v2889, %v3177
      %v3179 = vpop.f32.mrb[0].mxu0
      %3180 = vmatprep.mubr.bf16.mxu0 0
      %3181 = vmatmul.mubr.bf16.gmra.mrb[0].mxu0 %v2076
      %v3182 = vpop.f32.mrb[0].mxu0
      %v3183 = vadd.f32 %v2894, %v3182
      %v3184 = vpop.f32.mrb[0].mxu0
      %v3185 = vpop.f32.mrb[0].mxu0
      %v3186 = vadd.f32 %v2897, %v3185
      %v3187 = vpop.f32.mrb[0].mxu0
      %3188 = vmatprep.mubr.bf16.mxu0 0
      %3189 = vmatmul.mubr.bf16.gmra.mrb[0].mxu0 %v2079
      %v3190 = vpop.f32.mrb[0].mxu0
      %v3191 = vadd.f32 %v2902, %v3190
      %v3192 = vpop.f32.mrb[0].mxu0
      %v3193 = vpop.f32.mrb[0].mxu0
      %v3194 = vadd.f32 %v2905, %v3193
      %v3195 = vpop.f32.mrb[0].mxu0
      %3196 = vmatprep.mubr.bf16.mxu0 0
      %3197 = vmatmul.mubr.bf16.gmra.mrb[0].mxu0 %v2082
      %v3198 = vpop.f32.mrb[0].mxu0
      %v3199 = vadd.f32 %v2910, %v3198
      %v3200 = vpop.f32.mrb[0].mxu0
      %v3201 = vpop.f32.mrb[0].mxu0
      %v3202 = vadd.f32 %v2913, %v3201
      %v3203 = vpop.f32.mrb[0].mxu0
      %3204 = vmatprep.mubr.bf16.mxu0 0
      %3205 = vmatmul.mubr.bf16.gmra.mrb[0].mxu0 %v2085
      %v3206 = vpop.f32.mrb[0].mxu0
      %v3207 = vadd.f32 %v2918, %v3206
      %v3208 = vpop.f32.mrb[0].mxu0
      %v3209 = vpop.f32.mrb[0].mxu0
      %v3210 = vadd.f32 %v2921, %v3209
      %v3211 = vpop.f32.mrb[0].mxu0
      %3212 = vmatprep.mubr.bf16.mxu0 0
      %3213 = vmatmul.mubr.bf16.gmra.mrb[0].mxu0 %v2088
      %v3214 = vpop.f32.mrb[0].mxu0
      %v3215 = vadd.f32 %v2926, %v3214
      %v3216 = vpop.f32.mrb[0].mxu0
      %v3217 = vpop.f32.mrb[0].mxu0
      %v3218 = vadd.f32 %v2929, %v3217
      %v3219 = vpop.f32.mrb[0].mxu0
      %3220 = vmatprep.mubr.bf16.mxu0 0
      %3221 = vmatmul.mubr.bf16.gmra.mrb[0].mxu0 %v2091
      %v3222 = vpop.f32.mrb[0].mxu0
      %v3223 = vadd.f32 %v2934, %v3222
      %v3224 = vpop.f32.mrb[0].mxu0
      %v3225 = vpop.f32.mrb[0].mxu0
      %v3226 = vadd.f32 %v2937, %v3225
      %v3227 = vpop.f32.mrb[0].mxu0
      %3228 = vmatprep.mubr.bf16.mxu0 0
      %3229 = vmatmul.mubr.bf16.gmra.mrb[0].mxu0 %v2094
      %v3230 = vpop.f32.mrb[0].mxu0
      %v3231 = vadd.f32 %v2942, %v3230
      %v3232 = vpop.f32.mrb[0].mxu0
      %v3233 = vpop.f32.mrb[0].mxu0
      %v3234 = vadd.f32 %v2945, %v3233
      %v3235 = vpop.f32.mrb[0].mxu0
      %3236 = vmatprep.mubr.bf16.mxu0 0
      %3237 = vmatmul.mubr.bf16.gmra.mrb[0].mxu0 %v2097
      %v3238 = vpop.f32.mrb[0].mxu0
      %v3239 = vadd.f32 %v2950, %v3238
      %v3240 = vpop.f32.mrb[0].mxu0
      %v3241 = vpop.f32.mrb[0].mxu0
      %v3242 = vadd.f32 %v2953, %v3241
      %v3243 = vpop.f32.mrb[0].mxu0
      %3244 = vmatprep.mubr.bf16.mxu0 0
      %3245 = vmatmul.mubr.bf16.gmra.mrb[0].mxu0 %v2100
      %v3246 = vpop.f32.mrb[0].mxu0
      %v3247 = vadd.f32 %v2958, %v3246
      %v3248 = vpop.f32.mrb[0].mxu0
      %v3249 = vpop.f32.mrb[0].mxu0
      %v3250 = vadd.f32 %v2961, %v3249
      %v3251 = vpop.f32.mrb[0].mxu0
      %3252 = vmatprep.mubr.bf16.mxu0 0
      %3253 = vmatmul.mubr.bf16.gmra.mrb[0].mxu0 %v2103
      %v3254 = vpop.f32.mrb[0].mxu0
      %v3255 = vadd.f32 %v2966, %v3254
      %v3256 = vpop.f32.mrb[0].mxu0
      %v3257 = vpop.f32.mrb[0].mxu0
      %v3258 = vadd.f32 %v2969, %v3257
      %v3259 = vpop.f32.mrb[0].mxu0
      %3260 = vdwg.mxu0
      %vm3261 = vcmask 130048
      %3262 = vst.msk [vmem:[%s197] sm:$0xff] %vm3261, %v3007
      %3263 = vst.msk [vmem:[%s197 + $0x8] sm:$0xff] %vm3261, %v3010
      %3264 = vst.msk [vmem:[%s197 + $0x10] sm:$0xff] %vm3261, %v3015
      %3265 = vst.msk [vmem:[%s197 + $0x18] sm:$0xff] %vm3261, %v3018
      %3266 = vst.msk [vmem:[%s197 + $0x20] sm:$0xff] %vm3261, %v3023
      %3267 = vst.msk [vmem:[%s197 + $0x28] sm:$0xff] %vm3261, %v3026
      %3268 = vst.msk [vmem:[%s197 + $0x30] sm:$0xff] %vm3261, %v3031
      %3269 = vst.msk [vmem:[%s197 + $0x38] sm:$0xff] %vm3261, %v3034
      %3270 = vst.msk [vmem:[%s197 + $0x40] sm:$0xff] %vm3261, %v3039
      %3271 = vst.msk [vmem:[%s197 + $0x48] sm:$0xff] %vm3261, %v3042
      %3272 = vst.msk [vmem:[%s197 + $0x50] sm:$0xff] %vm3261, %v3047
      %3273 = vst.msk [vmem:[%s197 + $0x58] sm:$0xff] %vm3261, %v3050
      %3274 = vst.msk [vmem:[%s197 + $0x60] sm:$0xff] %vm3261, %v3055
      %3275 = vst.msk [vmem:[%s197 + $0x68] sm:$0xff] %vm3261, %v3058
      %3276 = vst.msk [vmem:[%s197 + $0x70] sm:$0xff] %vm3261, %v3063
      %3277 = vst.msk [vmem:[%s197 + $0x78] sm:$0xff] %vm3261, %v3066
      %3278 = vst.msk [vmem:[%s197 + $0x80] sm:$0xff] %vm3261, %v3071
      %3279 = vst.msk [vmem:[%s197 + $0x88] sm:$0xff] %vm3261, %v3074
      %3280 = vst.msk [vmem:[%s197 + $0x90] sm:$0xff] %vm3261, %v3079
      %3281 = vst.msk [vmem:[%s197 + $0x98] sm:$0xff] %vm3261, %v3082
      %3282 = vst.msk [vmem:[%s197 + $0xa0] sm:$0xff] %vm3261, %v3087
      %3283 = vst.msk [vmem:[%s197 + $0xa8] sm:$0xff] %vm3261, %v3090
      %3284 = vst.msk [vmem:[%s197 + $0xb0] sm:$0xff] %vm3261, %v3095
      %3285 = vst.msk [vmem:[%s197 + $0xb8] sm:$0xff] %vm3261, %v3098
      %3286 = vst.msk [vmem:[%s197 + $0xc0] sm:$0xff] %vm3261, %v3103
      %3287 = vst.msk [vmem:[%s197 + $0xc8] sm:$0xff] %vm3261, %v3106
      %3288 = vst.msk [vmem:[%s197 + $0xd0] sm:$0xff] %vm3261, %v3111
      %3289 = vst.msk [vmem:[%s197 + $0xd8] sm:$0xff] %vm3261, %v3114
      %3290 = vst.msk [vmem:[%s197 + $0xe0] sm:$0xff] %vm3261, %v3119
      %3291 = vst.msk [vmem:[%s197 + $0xe8] sm:$0xff] %vm3261, %v3122
      %3292 = vst.msk [vmem:[%s197 + $0xf0] sm:$0xff] %vm3261, %v3127
      %3293 = vst.msk [vmem:[%s197 + $0xf8] sm:$0xff] %vm3261, %v3130
      %3294 = vst.msk [vmem:[%s197 + $0x100] sm:$0xff] %vm3261, %v3135
      %3295 = vst.msk [vmem:[%s197 + $0x108] sm:$0xff] %vm3261, %v3138
      %3296 = vst.msk [vmem:[%s197 + $0x110] sm:$0xff] %vm3261, %v3143
      %3297 = vst.msk [vmem:[%s197 + $0x118] sm:$0xff] %vm3261, %v3146
      %3298 = vst.msk [vmem:[%s197 + $0x120] sm:$0xff] %vm3261, %v3151
      %3299 = vst.msk [vmem:[%s197 + $0x128] sm:$0xff] %vm3261, %v3154
      %3300 = vst.msk [vmem:[%s197 + $0x130] sm:$0xff] %vm3261, %v3159
      %3301 = vst.msk [vmem:[%s197 + $0x138] sm:$0xff] %vm3261, %v3162
      %3302 = vst.msk [vmem:[%s197 + $0x140] sm:$0xff] %vm3261, %v3167
      %3303 = vst.msk [vmem:[%s197 + $0x148] sm:$0xff] %vm3261, %v3170
      %3304 = vst.msk [vmem:[%s197 + $0x150] sm:$0xff] %vm3261, %v3175
      %3305 = vst.msk [vmem:[%s197 + $0x158] sm:$0xff] %vm3261, %v3178
      %3306 = vst.msk [vmem:[%s197 + $0x160] sm:$0xff] %vm3261, %v3183
      %3307 = vst.msk [vmem:[%s197 + $0x168] sm:$0xff] %vm3261, %v3186
      %3308 = vst.msk [vmem:[%s197 + $0x170] sm:$0xff] %vm3261, %v3191
      %3309 = vst.msk [vmem:[%s197 + $0x178] sm:$0xff] %vm3261, %v3194
      %3310 = vst.msk [vmem:[%s197 + $0x180] sm:$0xff] %vm3261, %v3199
      %3311 = vst.msk [vmem:[%s197 + $0x188] sm:$0xff] %vm3261, %v3202
      %3312 = vst.msk [vmem:[%s197 + $0x190] sm:$0xff] %vm3261, %v3207
      %3313 = vst.msk [vmem:[%s197 + $0x198] sm:$0xff] %vm3261, %v3210
      %3314 = vst.msk [vmem:[%s197 + $0x1a0] sm:$0xff] %vm3261, %v3215
      %3315 = vst.msk [vmem:[%s197 + $0x1a8] sm:$0xff] %vm3261, %v3218
      %3316 = vst.msk [vmem:[%s197 + $0x1b0] sm:$0xff] %vm3261, %v3223
      %3317 = vst.msk [vmem:[%s197 + $0x1b8] sm:$0xff] %vm3261, %v3226
      %3318 = vst.msk [vmem:[%s197 + $0x1c0] sm:$0xff] %vm3261, %v3231
      %3319 = vst.msk [vmem:[%s197 + $0x1c8] sm:$0xff] %vm3261, %v3234
      %3320 = vst.msk [vmem:[%s197 + $0x1d0] sm:$0xff] %vm3261, %v3239
      %3321 = vst.msk [vmem:[%s197 + $0x1d8] sm:$0xff] %vm3261, %v3242
      %3322 = vst.msk [vmem:[%s197 + $0x1e0] sm:$0xff] %vm3261, %v3247
      %3323 = vst.msk [vmem:[%s197 + $0x1e8] sm:$0xff] %vm3261, %v3250
      %3324 = vst.msk [vmem:[%s197 + $0x1f0] sm:$0xff] %vm3261, %v3255
      %3325 = vst.msk [vmem:[%s197 + $0x1f8] sm:$0xff] %vm3261, %v3258
      %p3326 = scmp.eq.s32.totalorder %s16, 0
      // Predicated region
      $region29: #{unet_block_forward.8} parent=27 // pred_check
        %p3327 = pneg %p3326
      $region30: #{unet_block_forward.8} parent=27 // pred_check_branch
        %3329 = sbr.rel (%p3327) target = $region32
      $region31: #{unet_block_forward.8} parent=27 // pred_region
        %vm3330 = vcmask 122880
        %3331 = vst.msk [vmem:[%s3] sm:$0x1] %vm3330, 0.0
        %3332 = vst.msk [vmem:[%s4] sm:$0x1] %vm3330, 0.0
      $region32: #{unet_block_forward.8} parent=27 // pred_fallthru
        _
      %v3333 = vld [vmem:[%s3] sm:$0x1]
      %v3334 = vsel %vm3261, %v3007, 0.0
      %v3335 = vsel %vm3261, %v3010, 0.0
      %v3336 = vadd.f32 %v3334, %v3335
      %v3337 = vsel %vm3261, %v3015, 0.0
      %v3338 = vadd.f32 %v3336, %v3337
      %v3339 = vsel %vm3261, %v3018, 0.0
      %v3340 = vadd.f32 %v3338, %v3339
      %v3341 = vsel %vm3261, %v3023, 0.0
      %v3342 = vadd.f32 %v3340, %v3341
      %v3343 = vsel %vm3261, %v3026, 0.0
      %v3344 = vadd.f32 %v3342, %v3343
      %v3345 = vsel %vm3261, %v3031, 0.0
      %v3346 = vadd.f32 %v3344, %v3345
      %v3347 = vsel %vm3261, %v3034, 0.0
      %v3348 = vadd.f32 %v3346, %v3347
      %v3349 = vsel %vm3261, %v3039, 0.0
      %v3350 = vadd.f32 %v3348, %v3349
      %v3351 = vsel %vm3261, %v3042, 0.0
      %v3352 = vadd.f32 %v3350, %v3351
      %v3353 = vsel %vm3261, %v3047, 0.0
      %v3354 = vadd.f32 %v3352, %v3353
      %v3355 = vsel %vm3261, %v3050, 0.0
      %v3356 = vadd.f32 %v3354, %v3355
      %v3357 = vsel %vm3261, %v3055, 0.0
      %v3358 = vadd.f32 %v3356, %v3357
      %v3359 = vsel %vm3261, %v3058, 0.0
      %v3360 = vadd.f32 %v3358, %v3359
      %v3361 = vsel %vm3261, %v3063, 0.0
      %v3362 = vadd.f32 %v3360, %v3361
      %v3363 = vsel %vm3261, %v3066, 0.0
      %v3364 = vadd.f32 %v3362, %v3363
      %v3365 = vsel %vm3261, %v3071, 0.0
      %v3366 = vadd.f32 %v3364, %v3365
      %v3367 = vsel %vm3261, %v3074, 0.0
      %v3368 = vadd.f32 %v3366, %v3367
      %v3369 = vsel %vm3261, %v3079, 0.0
      %v3370 = vadd.f32 %v3368, %v3369
      %v3371 = vsel %vm3261, %v3082, 0.0
      %v3372 = vadd.f32 %v3370, %v3371
      %v3373 = vsel %vm3261, %v3087, 0.0
      %v3374 = vadd.f32 %v3372, %v3373
      %v3375 = vsel %vm3261, %v3090, 0.0
      %v3376 = vadd.f32 %v3374, %v3375
      %v3377 = vsel %vm3261, %v3095, 0.0
      %v3378 = vadd.f32 %v3376, %v3377
      %v3379 = vsel %vm3261, %v3098, 0.0
      %v3380 = vadd.f32 %v3378, %v3379
      %v3381 = vsel %vm3261, %v3103, 0.0
      %v3382 = vadd.f32 %v3380, %v3381
      %v3383 = vsel %vm3261, %v3106, 0.0
      %v3384 = vadd.f32 %v3382, %v3383
      %v3385 = vsel %vm3261, %v3111, 0.0
      %v3386 = vadd.f32 %v3384, %v3385
      %v3387 = vsel %vm3261, %v3114, 0.0
      %v3388 = vadd.f32 %v3386, %v3387
      %v3389 = vsel %vm3261, %v3119, 0.0
      %v3390 = vadd.f32 %v3388, %v3389
      %v3391 = vsel %vm3261, %v3122, 0.0
      %v3392 = vadd.f32 %v3390, %v3391
      %v3393 = vsel %vm3261, %v3127, 0.0
      %v3394 = vadd.f32 %v3392, %v3393
      %v3395 = vsel %vm3261, %v3130, 0.0
      %v3396 = vadd.f32 %v3394, %v3395
      %v3397 = vsel %vm3261, %v3135, 0.0
      %v3398 = vadd.f32 %v3396, %v3397
      %v3399 = vsel %vm3261, %v3138, 0.0
      %v3400 = vadd.f32 %v3398, %v3399
      %v3401 = vsel %vm3261, %v3143, 0.0
      %v3402 = vadd.f32 %v3400, %v3401
      %v3403 = vsel %vm3261, %v3146, 0.0
      %v3404 = vadd.f32 %v3402, %v3403
      %v3405 = vsel %vm3261, %v3151, 0.0
      %v3406 = vadd.f32 %v3404, %v3405
      %v3407 = vsel %vm3261, %v3154, 0.0
      %v3408 = vadd.f32 %v3406, %v3407
      %v3409 = vsel %vm3261, %v3159, 0.0
      %v3410 = vadd.f32 %v3408, %v3409
      %v3411 = vsel %vm3261, %v3162, 0.0
      %v3412 = vadd.f32 %v3410, %v3411
      %v3413 = vsel %vm3261, %v3167, 0.0
      %v3414 = vadd.f32 %v3412, %v3413
      %v3415 = vsel %vm3261, %v3170, 0.0
      %v3416 = vadd.f32 %v3414, %v3415
      %v3417 = vsel %vm3261, %v3175, 0.0
      %v3418 = vadd.f32 %v3416, %v3417
      %v3419 = vsel %vm3261, %v3178, 0.0
      %v3420 = vadd.f32 %v3418, %v3419
      %v3421 = vsel %vm3261, %v3183, 0.0
      %v3422 = vadd.f32 %v3420, %v3421
      %v3423 = vsel %vm3261, %v3186, 0.0
      %v3424 = vadd.f32 %v3422, %v3423
      %v3425 = vsel %vm3261, %v3191, 0.0
      %v3426 = vadd.f32 %v3424, %v3425
      %v3427 = vsel %vm3261, %v3194, 0.0
      %v3428 = vadd.f32 %v3426, %v3427
      %v3429 = vsel %vm3261, %v3199, 0.0
      %v3430 = vadd.f32 %v3428, %v3429
      %v3431 = vsel %vm3261, %v3202, 0.0
      %v3432 = vadd.f32 %v3430, %v3431
      %v3433 = vsel %vm3261, %v3207, 0.0
      %v3434 = vadd.f32 %v3432, %v3433
      %v3435 = vsel %vm3261, %v3210, 0.0
      %v3436 = vadd.f32 %v3434, %v3435
      %v3437 = vsel %vm3261, %v3215, 0.0
      %v3438 = vadd.f32 %v3436, %v3437
      %v3439 = vsel %vm3261, %v3218, 0.0
      %v3440 = vadd.f32 %v3438, %v3439
      %v3441 = vsel %vm3261, %v3223, 0.0
      %v3442 = vadd.f32 %v3440, %v3441
      %v3443 = vsel %vm3261, %v3226, 0.0
      %v3444 = vadd.f32 %v3442, %v3443
      %v3445 = vsel %vm3261, %v3231, 0.0
      %v3446 = vadd.f32 %v3444, %v3445
      %v3447 = vsel %vm3261, %v3234, 0.0
      %v3448 = vadd.f32 %v3446, %v3447
      %v3449 = vsel %vm3261, %v3239, 0.0
      %v3450 = vadd.f32 %v3448, %v3449
      %v3451 = vsel %vm3261, %v3242, 0.0
      %v3452 = vadd.f32 %v3450, %v3451
      %v3453 = vsel %vm3261, %v3247, 0.0
      %v3454 = vadd.f32 %v3452, %v3453
      %v3455 = vsel %vm3261, %v3250, 0.0
      %v3456 = vadd.f32 %v3454, %v3455
      %v3457 = vsel %vm3261, %v3255, 0.0
      %v3458 = vadd.f32 %v3456, %v3457
      %v3459 = vsel %vm3261, %v3258, 0.0
      %v3460 = vadd.f32 %v3458, %v3459
      %v3461 = vrot.slane %v3460, 4
      %v3462 = vadd.f32 %v3460, %v3461
      %v3463 = vrot.slane %v3462, 2
      %v3464 = vadd.f32 %v3462, %v3463
      %v3465 = vrot.slane %v3464, 1
      %v3466 = vadd.f32 %v3464, %v3465
      %v3467 = vadd.f32 %v3333, %v3466
      %vm3468 = vcmask 122880
      %3469 = vst.msk [vmem:[%s3] sm:$0x1] %vm3468, %v3467
      %v3470 = vld [vmem:[%s4] sm:$0x1]
      %v3471 = vmul.f32 %v3007, %v3007
      %v3472 = vmul.f32 %v3010, %v3010
      %v3473 = vmul.f32 %v3015, %v3015
      %v3474 = vmul.f32 %v3018, %v3018
      %v3475 = vmul.f32 %v3023, %v3023
      %v3476 = vmul.f32 %v3026, %v3026
      %v3477 = vmul.f32 %v3031, %v3031
      %v3478 = vmul.f32 %v3034, %v3034
      %v3479 = vmul.f32 %v3039, %v3039
      %v3480 = vmul.f32 %v3042, %v3042
      %v3481 = vmul.f32 %v3047, %v3047
      %v3482 = vmul.f32 %v3050, %v3050
      %v3483 = vmul.f32 %v3055, %v3055
      %v3484 = vmul.f32 %v3058, %v3058
      %v3485 = vmul.f32 %v3063, %v3063
      %v3486 = vmul.f32 %v3066, %v3066
      %v3487 = vmul.f32 %v3071, %v3071
      %v3488 = vmul.f32 %v3074, %v3074
      %v3489 = vmul.f32 %v3079, %v3079
      %v3490 = vmul.f32 %v3082, %v3082
      %v3491 = vmul.f32 %v3087, %v3087
      %v3492 = vmul.f32 %v3090, %v3090
      %v3493 = vmul.f32 %v3095, %v3095
      %v3494 = vmul.f32 %v3098, %v3098
      %v3495 = vmul.f32 %v3103, %v3103
      %v3496 = vmul.f32 %v3106, %v3106
      %v3497 = vmul.f32 %v3111, %v3111
      %v3498 = vmul.f32 %v3114, %v3114
      %v3499 = vmul.f32 %v3119, %v3119
      %v3500 = vmul.f32 %v3122, %v3122
      %v3501 = vmul.f32 %v3127, %v3127
      %v3502 = vmul.f32 %v3130, %v3130
      %v3503 = vmul.f32 %v3135, %v3135
      %v3504 = vmul.f32 %v3138, %v3138
      %v3505 = vmul.f32 %v3143, %v3143
      %v3506 = vmul.f32 %v3146, %v3146
      %v3507 = vmul.f32 %v3151, %v3151
      %v3508 = vmul.f32 %v3154, %v3154
      %v3509 = vmul.f32 %v3159, %v3159
      %v3510 = vmul.f32 %v3162, %v3162
      %v3511 = vmul.f32 %v3167, %v3167
      %v3512 = vmul.f32 %v3170, %v3170
      %v3513 = vmul.f32 %v3175, %v3175
      %v3514 = vmul.f32 %v3178, %v3178
      %v3515 = vmul.f32 %v3183, %v3183
      %v3516 = vmul.f32 %v3186, %v3186
      %v3517 = vmul.f32 %v3191, %v3191
      %v3518 = vmul.f32 %v3194, %v3194
      %v3519 = vmul.f32 %v3199, %v3199
      %v3520 = vmul.f32 %v3202, %v3202
      %v3521 = vmul.f32 %v3207, %v3207
      %v3522 = vmul.f32 %v3210, %v3210
      %v3523 = vmul.f32 %v3215, %v3215
      %v3524 = vmul.f32 %v3218, %v3218
      %v3525 = vmul.f32 %v3223, %v3223
      %v3526 = vmul.f32 %v3226, %v3226
      %v3527 = vmul.f32 %v3231, %v3231
      %v3528 = vmul.f32 %v3234, %v3234
      %v3529 = vmul.f32 %v3239, %v3239
      %v3530 = vmul.f32 %v3242, %v3242
      %v3531 = vmul.f32 %v3247, %v3247
      %v3532 = vmul.f32 %v3250, %v3250
      %v3533 = vmul.f32 %v3255, %v3255
      %v3534 = vmul.f32 %v3258, %v3258
      %v3535 = vsel %vm3261, %v3471, 0.0
      %v3536 = vsel %vm3261, %v3472, 0.0
      %v3537 = vadd.f32 %v3535, %v3536
      %v3538 = vsel %vm3261, %v3473, 0.0
      %v3539 = vadd.f32 %v3537, %v3538
      %v3540 = vsel %vm3261, %v3474, 0.0
      %v3541 = vadd.f32 %v3539, %v3540
      %v3542 = vsel %vm3261, %v3475, 0.0
      %v3543 = vadd.f32 %v3541, %v3542
      %v3544 = vsel %vm3261, %v3476, 0.0
      %v3545 = vadd.f32 %v3543, %v3544
      %v3546 = vsel %vm3261, %v3477, 0.0
      %v3547 = vadd.f32 %v3545, %v3546
      %v3548 = vsel %vm3261, %v3478, 0.0
      %v3549 = vadd.f32 %v3547, %v3548
      %v3550 = vsel %vm3261, %v3479, 0.0
      %v3551 = vadd.f32 %v3549, %v3550
      %v3552 = vsel %vm3261, %v3480, 0.0
      %v3553 = vadd.f32 %v3551, %v3552
      %v3554 = vsel %vm3261, %v3481, 0.0
      %v3555 = vadd.f32 %v3553, %v3554
      %v3556 = vsel %vm3261, %v3482, 0.0
      %v3557 = vadd.f32 %v3555, %v3556
      %v3558 = vsel %vm3261, %v3483, 0.0
      %v3559 = vadd.f32 %v3557, %v3558
      %v3560 = vsel %vm3261, %v3484, 0.0
      %v3561 = vadd.f32 %v3559, %v3560
      %v3562 = vsel %vm3261, %v3485, 0.0
      %v3563 = vadd.f32 %v3561, %v3562
      %v3564 = vsel %vm3261, %v3486, 0.0
      %v3565 = vadd.f32 %v3563, %v3564
      %v3566 = vsel %vm3261, %v3487, 0.0
      %v3567 = vadd.f32 %v3565, %v3566
      %v3568 = vsel %vm3261, %v3488, 0.0
      %v3569 = vadd.f32 %v3567, %v3568
      %v3570 = vsel %vm3261, %v3489, 0.0
      %v3571 = vadd.f32 %v3569, %v3570
      %v3572 = vsel %vm3261, %v3490, 0.0
      %v3573 = vadd.f32 %v3571, %v3572
      %v3574 = vsel %vm3261, %v3491, 0.0
      %v3575 = vadd.f32 %v3573, %v3574
      %v3576 = vsel %vm3261, %v3492, 0.0
      %v3577 = vadd.f32 %v3575, %v3576
      %v3578 = vsel %vm3261, %v3493, 0.0
      %v3579 = vadd.f32 %v3577, %v3578
      %v3580 = vsel %vm3261, %v3494, 0.0
      %v3581 = vadd.f32 %v3579, %v3580
      %v3582 = vsel %vm3261, %v3495, 0.0
      %v3583 = vadd.f32 %v3581, %v3582
      %v3584 = vsel %vm3261, %v3496, 0.0
      %v3585 = vadd.f32 %v3583, %v3584
      %v3586 = vsel %vm3261, %v3497, 0.0
      %v3587 = vadd.f32 %v3585, %v3586
      %v3588 = vsel %vm3261, %v3498, 0.0
      %v3589 = vadd.f32 %v3587, %v3588
      %v3590 = vsel %vm3261, %v3499, 0.0
      %v3591 = vadd.f32 %v3589, %v3590
      %v3592 = vsel %vm3261, %v3500, 0.0
      %v3593 = vadd.f32 %v3591, %v3592
      %v3594 = vsel %vm3261, %v3501, 0.0
      %v3595 = vadd.f32 %v3593, %v3594
      %v3596 = vsel %vm3261, %v3502, 0.0
      %v3597 = vadd.f32 %v3595, %v3596
      %v3598 = vsel %vm3261, %v3503, 0.0
      %v3599 = vadd.f32 %v3597, %v3598
      %v3600 = vsel %vm3261, %v3504, 0.0
      %v3601 = vadd.f32 %v3599, %v3600
      %v3602 = vsel %vm3261, %v3505, 0.0
      %v3603 = vadd.f32 %v3601, %v3602
      %v3604 = vsel %vm3261, %v3506, 0.0
      %v3605 = vadd.f32 %v3603, %v3604
      %v3606 = vsel %vm3261, %v3507, 0.0
      %v3607 = vadd.f32 %v3605, %v3606
      %v3608 = vsel %vm3261, %v3508, 0.0
      %v3609 = vadd.f32 %v3607, %v3608
      %v3610 = vsel %vm3261, %v3509, 0.0
      %v3611 = vadd.f32 %v3609, %v3610
      %v3612 = vsel %vm3261, %v3510, 0.0
      %v3613 = vadd.f32 %v3611, %v3612
      %v3614 = vsel %vm3261, %v3511, 0.0
      %v3615 = vadd.f32 %v3613, %v3614
      %v3616 = vsel %vm3261, %v3512, 0.0
      %v3617 = vadd.f32 %v3615, %v3616
      %v3618 = vsel %vm3261, %v3513, 0.0
      %v3619 = vadd.f32 %v3617, %v3618
      %v3620 = vsel %vm3261, %v3514, 0.0
      %v3621 = vadd.f32 %v3619, %v3620
      %v3622 = vsel %vm3261, %v3515, 0.0
      %v3623 = vadd.f32 %v3621, %v3622
      %v3624 = vsel %vm3261, %v3516, 0.0
      %v3625 = vadd.f32 %v3623, %v3624
      %v3626 = vsel %vm3261, %v3517, 0.0
      %v3627 = vadd.f32 %v3625, %v3626
      %v3628 = vsel %vm3261, %v3518, 0.0
      %v3629 = vadd.f32 %v3627, %v3628
      %v3630 = vsel %vm3261, %v3519, 0.0
      %v3631 = vadd.f32 %v3629, %v3630
      %v3632 = vsel %vm3261, %v3520, 0.0
      %v3633 = vadd.f32 %v3631, %v3632
      %v3634 = vsel %vm3261, %v3521, 0.0
      %v3635 = vadd.f32 %v3633, %v3634
      %v3636 = vsel %vm3261, %v3522, 0.0
      %v3637 = vadd.f32 %v3635, %v3636
      %v3638 = vsel %vm3261, %v3523, 0.0
      %v3639 = vadd.f32 %v3637, %v3638
      %v3640 = vsel %vm3261, %v3524, 0.0
      %v3641 = vadd.f32 %v3639, %v3640
      %v3642 = vsel %vm3261, %v3525, 0.0
      %v3643 = vadd.f32 %v3641, %v3642
      %v3644 = vsel %vm3261, %v3526, 0.0
      %v3645 = vadd.f32 %v3643, %v3644
      %v3646 = vsel %vm3261, %v3527, 0.0
      %v3647 = vadd.f32 %v3645, %v3646
      %v3648 = vsel %vm3261, %v3528, 0.0
      %v3649 = vadd.f32 %v3647, %v3648
      %v3650 = vsel %vm3261, %v3529, 0.0
      %v3651 = vadd.f32 %v3649, %v3650
      %v3652 = vsel %vm3261, %v3530, 0.0
      %v3653 = vadd.f32 %v3651, %v3652
      %v3654 = vsel %vm3261, %v3531, 0.0
      %v3655 = vadd.f32 %v3653, %v3654
      %v3656 = vsel %vm3261, %v3532, 0.0
      %v3657 = vadd.f32 %v3655, %v3656
      %v3658 = vsel %vm3261, %v3533, 0.0
      %v3659 = vadd.f32 %v3657, %v3658
      %v3660 = vsel %vm3261, %v3534, 0.0
      %v3661 = vadd.f32 %v3659, %v3660
      %v3662 = vrot.slane %v3661, 4
      %v3663 = vadd.f32 %v3661, %v3662
      %v3664 = vrot.slane %v3663, 2
      %v3665 = vadd.f32 %v3663, %v3664
      %v3666 = vrot.slane %v3665, 1
      %v3667 = vadd.f32 %v3665, %v3666
      %v3668 = vadd.f32 %v3470, %v3667
      %3669 = vst.msk [vmem:[%s4] sm:$0x1] %vm3468, %v3668
      %s3670 = smul.u32 64, %s16
      %p3671 = scmp.lt.s32.totalorder %s3670, 127
      %s3672 = scalar_select %p3671, %s3670, 127
      %s3673 = smul.addr %s3672, 8
      %s3674 = scalar_lea.vmem %s2, %s3673
      // Predicated region
      $region33: #{unet_block_forward.8} parent=27 // pred_check
        %p3675 = pneg %p81
      $region34: #{unet_block_forward.8} parent=27 // pred_check_branch
        %3677 = sbr.rel (%p3675) target = $region36
      $region35: #{unet_block_forward.8} parent=27 // pred_region
        %s3678 = smul.u32 64, %s16
      $region36: #{unet_block_forward.8} parent=27 // pred_fallthru
        _
      // Predicated region
      $region37: #{unet_block_forward.8} parent=27 // pred_check
        %p3679 = pneg %p102
      $region38: #{unet_block_forward.8} parent=27 // pred_check_branch
        %3681 = sbr.rel (%p3679) target = $region40
      $region39: #{unet_block_forward.8} parent=27 // pred_region
        _
      $region40: #{unet_block_forward.8} parent=27 // pred_fallthru
        _
      // Predicated region
      $region41: #{unet_block_forward.8} parent=27 // pred_check
        %p3682 = pneg %p123
      $region42: #{unet_block_forward.8} parent=27 // pred_check_branch
        %3684 = sbr.rel (%p3682) target = $region44
      $region43: #{unet_block_forward.8} parent=27 // pred_region
        _
      $region44: #{unet_block_forward.8} parent=27 // pred_fallthru
        _
      // Predicated region
      $region45: #{unet_block_forward.8} parent=27 // pred_check
        %p3685 = pneg %p102
      $region46: #{unet_block_forward.8} parent=27 // pred_check_branch
        %3687 = sbr.rel (%p3685) target = $region48
      $region47: #{unet_block_forward.8} parent=27 // pred_region
        _
      $region48: #{unet_block_forward.8} parent=27 // pred_fallthru
        _
      // Predicated region
      $region49: #{unet_block_forward.8} parent=27 // pred_check
        %p3688 = pneg %p123
      $region50: #{unet_block_forward.8} parent=27 // pred_check_branch
        %3690 = sbr.rel (%p3688) target = $region52
      $region51: #{unet_block_forward.8} parent=27 // pred_region
        _
      $region52: #{unet_block_forward.8} parent=27 // pred_fallthru
        _
    $region28: #{unet_block_forward.8} parent=5 // pred_fallthru
      _
    %p3691 = scmp.le.s32.totalorder 2, %s11
    // Predicated region
    $region53: #{unet_block_forward.8} parent=5 // pred_check
      %p3692 = pneg %p3691
    $region54: #{unet_block_forward.8} parent=5 // pred_check_branch
      %3694 = sbr.rel (%p3692) target = $region56
    $region55: #{unet_block_forward.8} parent=5 // pred_region
      %s3695 = ssub.s32 %s11, 2
      // Predicated region
      $region57: #{unet_block_forward.8} parent=55 // pred_check
        %p3696 = pneg %p87
      $region58: #{unet_block_forward.8} parent=55 // pred_check_branch
        %3698 = sbr.rel (%p3696) target = $region60
      $region59: #{unet_block_forward.8} parent=55 // pred_region
        %s3699 = smul.u32 64, %s17
        %p3700 = scmp.lt.s32.totalorder %s3699, 127
        %s3701 = scalar_select %p3700, %s3699, 127
        %s3702 = smul.addr %s3701, 8
        %s3703 = scalar_lea.vmem %s2, %s3702
      $region60: #{unet_block_forward.8} parent=55 // pred_fallthru
        _
    $region56: #{unet_block_forward.8} parent=5 // pred_fallthru
      _
  $region6: #{unet_block_forward.8} parent=0 // loop_footer
    %s15 = sadd.s32 1, %s11
  $region7: #{unet_block_forward.8} parent=0 // loop_footer_branch
    %10 = sbr.rel target = $region3
  $region8: #{unet_block_forward.8} parent=0 // loop_exit
    _

// kernel: unet_block_forward.6
$region0: #{unet_block_forward.6}
  #allocation0 [shape = 'u32[]', space=smem, size = 0x4, offset = 0x4, fixed_abs, tag = 'smem constant byte address 0x4 - core index']
  #allocation1 [shape = 'u32[144,128]{1,0:T(1,128)}', space=vmem, size = 0x12000, scoped, tag = 'internal scratch']
  %s0 = inlined_call_operand.vmem [shape: bf16[1024,864], index: 0, kind: input, shape index: {}]
  %s1 = inlined_call_operand.vmem [shape: bf16[864,32], index: 1, kind: input, shape index: {}]
  %s2 = inlined_call_operand.vmem [shape: f32[1024,32], index: 2, kind: output, shape index: {0}]
  %s3 = inlined_call_operand.vmem [shape: f32[1,32], index: 3, kind: output, shape index: {1}]
  %s4 = inlined_call_operand.vmem [shape: f32[1,32], index: 4, kind: output, shape index: {2}]
  %5 = xla_tuple %s2, %s3, %s4
  %s6 = sld [smem:[#allocation0]]
  $region61: #{unet_block_forward.6} parent=0
    _
  %s8 = ssub.s32 1, %s6
  %s9 = scalar_select 0, %s8, %s6
  loop: start=0, step=1, limit=4
  $region2: #{unet_block_forward.6} parent=0 // loop_pre_header
    _
  $region3: #{unet_block_forward.6} parent=0 // loop_header
    %s11 = sphi 0, %s15
    %p12 = scmp.ge.s32.totalorder %s11, 4
    %s21 = sphi 0, %s23
    %s24 = sphi 0, %s21
    %s25 = sphi 0, %s24
    %s41 = sphi 0, %s25
    %s45 = sphi 0, %s45
    %s47 = sphi 0, %s45
    %s48 = sphi 0, %s47
    %s62 = sphi 0, %s48
    %s68 = sphi 0, %s70
    %s71 = sphi 0, %s68
    %s72 = sphi 0, %s71
    %s88 = sphi 0, %s72
    %s92 = sphi 0, %s92
    %s94 = sphi 0, %s92
    %s95 = sphi 0, %s94
    %s109 = sphi 0, %s95
    %s113 = sphi 0, %s113
    %s115 = sphi 0, %s113
    %s116 = sphi 0, %s115
    %s130 = sphi 0, %s116
  $region4: #{unet_block_forward.6} parent=0 // loop_header_branch
    %14 = sbr.rel (%p12) target = $region8
  $region5: #{unet_block_forward.6} parent=0 // loop_body
    %s16 = ssub.s32 %s11, 1
    %s17 = ssub.s32 %s11, 2
    %s18 = sadd.s32 %s11, 1
    %s19 = ssub.s32 %s11, %s18
    %p20 = scmp.eq.s32.totalorder %s19, 0
    %s22 = sadd.s32 %s21, 1
    %s23 = scalar_select %p20, %s21, %s22
    %p26 = pneg %p20
    %p27 = scmp.eq.s32.totalorder %s11, 1
    %p28 = por %p26, %p27
    %p29 = scmp.ne.s32.totalorder %s21, %s24
    %p30 = scmp.eq.s32.totalorder %s11, 0
    %p31 = por %p29, %p30
    %p32 = scmp.ne.s32.totalorder %s21, %s24
    %p33 = scmp.eq.s32.totalorder %s16, 1
    %p34 = por %p32, %p33
    %p35 = scmp.ne.s32.totalorder %s24, %s25
    %p36 = scmp.eq.s32.totalorder %s16, 0
    %p37 = por %p35, %p36
    %p38 = scmp.ne.s32.totalorder %s24, %s25
    %p39 = scmp.eq.s32.totalorder %s17, 1
    %p40 = por %p38, %p39
    %p42 = scmp.ne.s32.totalorder %s25, %s41
    %p43 = scmp.eq.s32.totalorder %s17, 0
    %p44 = por %p42, %p43
    %s46 = sadd.s32 %s45, 1
    %p49 = scmp.eq.s32.totalorder %s11, 1
    %p50 = scmp.ne.s32.totalorder %s45, %s47
    %p51 = scmp.eq.s32.totalorder %s11, 0
    %p52 = por %p50, %p51
    %p53 = scmp.ne.s32.totalorder %s45, %s47
    %p54 = scmp.eq.s32.totalorder %s16, 1
    %p55 = por %p53, %p54
    %p56 = scmp.ne.s32.totalorder %s47, %s48
    %p57 = scmp.eq.s32.totalorder %s16, 0
    %p58 = por %p56, %p57
    %p59 = scmp.ne.s32.totalorder %s47, %s48
    %p60 = scmp.eq.s32.totalorder %s17, 1
    %p61 = por %p59, %p60
    %p63 = scmp.ne.s32.totalorder %s48, %s62
    %p64 = scmp.eq.s32.totalorder %s17, 0
    %p65 = por %p63, %p64
    %s66 = ssub.s32 %s11, %s18
    %p67 = scmp.eq.s32.totalorder %s66, 0
    %s69 = sadd.s32 %s68, 1
    %s70 = scalar_select %p67, %s68, %s69
    %p73 = pneg %p67
    %p74 = scmp.eq.s32.totalorder %s11, 1
    %p75 = por %p73, %p74
    %p76 = scmp.ne.s32.totalorder %s68, %s71
    %p77 = scmp.eq.s32.totalorder %s11, 0
    %p78 = por %p76, %p77
    %p79 = scmp.ne.s32.totalorder %s68, %s71
    %p80 = scmp.eq.s32.totalorder %s16, 1
    %p81 = por %p79, %p80
    %p82 = scmp.ne.s32.totalorder %s71, %s72
    %p83 = scmp.eq.s32.totalorder %s16, 0
    %p84 = por %p82, %p83
    %p85 = scmp.ne.s32.totalorder %s71, %s72
    %p86 = scmp.eq.s32.totalorder %s17, 1
    %p87 = por %p85, %p86
    %p89 = scmp.ne.s32.totalorder %s72, %s88
    %p90 = scmp.eq.s32.totalorder %s17, 0
    %p91 = por %p89, %p90
    %s93 = sadd.s32 %s92, 1
    %p96 = scmp.eq.s32.totalorder %s11, 1
    %p97 = scmp.ne.s32.totalorder %s92, %s94
    %p98 = scmp.eq.s32.totalorder %s11, 0
    %p99 = por %p97, %p98
    %p100 = scmp.ne.s32.totalorder %s92, %s94
    %p101 = scmp.eq.s32.totalorder %s16, 1
    %p102 = por %p100, %p101
    %p103 = scmp.ne.s32.totalorder %s94, %s95
    %p104 = scmp.eq.s32.totalorder %s16, 0
    %p105 = por %p103, %p104
    %p106 = scmp.ne.s32.totalorder %s94, %s95
    %p107 = scmp.eq.s32.totalorder %s17, 1
    %p108 = por %p106, %p107
    %p110 = scmp.ne.s32.totalorder %s95, %s109
    %p111 = scmp.eq.s32.totalorder %s17, 0
    %p112 = por %p110, %p111
    %s114 = sadd.s32 %s113, 1
    %p117 = scmp.eq.s32.totalorder %s11, 1
    %p118 = scmp.ne.s32.totalorder %s113, %s115
    %p119 = scmp.eq.s32.totalorder %s11, 0
    %p120 = por %p118, %p119
    %p121 = scmp.ne.s32.totalorder %s113, %s115
    %p122 = scmp.eq.s32.totalorder %s16, 1
    %p123 = por %p121, %p122
    %p124 = scmp.ne.s32.totalorder %s115, %s116
    %p125 = scmp.eq.s32.totalorder %s16, 0
    %p126 = por %p124, %p125
    %p127 = scmp.ne.s32.totalorder %s115, %s116
    %p128 = scmp.eq.s32.totalorder %s17, 1
    %p129 = por %p127, %p128
    %p131 = scmp.ne.s32.totalorder %s116, %s130
    %p132 = scmp.eq.s32.totalorder %s17, 0
    %p133 = por %p131, %p132
    %p134 = scmp.le.s32.totalorder 1, %s11
    %p135 = scmp.lt.s32.totalorder %s11, 3
    %p136 = pnand %p134, %p135
    %p137 = pneg %p136
    // Predicated region
    $region9: #{unet_block_forward.6} parent=5 // pred_check
      _
    $region10: #{unet_block_forward.6} parent=5 // pred_check_branch
      %139 = sbr.rel (%p136) target = $region12
    $region11: #{unet_block_forward.6} parent=5 // pred_region
      %s140 = ssub.s32 %s11, 1
      // Predicated region
      $region13: #{unet_block_forward.6} parent=11 // pred_check
        %p141 = pneg %p58
      $region14: #{unet_block_forward.6} parent=11 // pred_check_branch
        %143 = sbr.rel (%p141) target = $region16
      $region15: #{unet_block_forward.6} parent=11 // pred_region
        _
      $region16: #{unet_block_forward.6} parent=11 // pred_fallthru
        _
    $region12: #{unet_block_forward.6} parent=5 // pred_fallthru
      _
    %p144 = scmp.lt.s32.totalorder %s11, 2
    // Predicated region
    $region17: #{unet_block_forward.6} parent=5 // pred_check
      %p145 = pneg %p144
    $region18: #{unet_block_forward.6} parent=5 // pred_check_branch
      %147 = sbr.rel (%p145) target = $region20
    $region19: #{unet_block_forward.6} parent=5 // pred_region
      // Predicated region
      $region21: #{unet_block_forward.6} parent=19 // pred_check
        %p148 = pneg %p31
      $region22: #{unet_block_forward.6} parent=19 // pred_check_branch
        %150 = sbr.rel (%p148) target = $region24
      $region23: #{unet_block_forward.6} parent=19 // pred_region
        %s151 = smul.u32 64, %s11
        %p152 = scmp.lt.s32.totalorder %s151, 127
        %s153 = scalar_select %p152, %s151, 127
        %s154 = smul.addr %s153, 7
        %s155 = smul.addr %s154, 4
        %s156 = scalar_lea.vmem %s0, %s155
        %s157 = smul.u32 64, %s11
      $region24: #{unet_block_forward.6} parent=19 // pred_fallthru
        _
    $region20: #{unet_block_forward.6} parent=5 // pred_fallthru
      _
    %p158 = scmp.le.s32.totalorder 1, %s11
    %p159 = scmp.lt.s32.totalorder %s11, 3
    %p160 = pnand %p158, %p159
    %p161 = pneg %p160
    // Predicated region
    $region25: #{unet_block_forward.6} parent=5 // pred_check
      _
    $region26: #{unet_block_forward.6} parent=5 // pred_check_branch
      %163 = sbr.rel (%p160) target = $region28
    $region27: #{unet_block_forward.6} parent=5 // pred_region
      %s164 = ssub.s32 %s11, 1
      %s165 = smul.u32 64, %s16
      %p166 = scmp.lt.s32.totalorder %s165, 127
      %s167 = scalar_select %p166, %s165, 127
      %s168 = smul.addr %s167, 7
      %s169 = smul.addr %s168, 4
      %s170 = scalar_lea.vmem %s0, %s169
      %p171 = pneg %p37
      %p172 = pneg %p34
      %p173 = pneg %p58
      %p174 = pneg %p55
      %p175 = pneg %p84
      %p176 = pneg %p81
      %s177 = smul.u32 64, %s16
      %p178 = scmp.lt.s32.totalorder %s177, 127
      %s179 = scalar_select %p178, %s177, 127
      %s180 = smul.addr %s179, 8
      %s181 = scalar_lea.vmem %s2, %s180
      %p182 = pneg %p105
      %p183 = pneg %p102
      %p184 = pneg %p126
      %p185 = pneg %p123
      %s186 = smul.u32 64, %s16
      %p187 = scmp.lt.s32.totalorder %s186, 127
      %s188 = scalar_select %p187, %s186, 127
      %s189 = smul.addr %s188, 7
      %s190 = smul.addr %s189, 4
      %s191 = scalar_lea.vmem %s0, %s190
      %s192 = smul.u32 64, %s16
      %s193 = smul.u32 64, %s16
      %p194 = scmp.lt.s32.totalorder %s193, 127
      %s195 = scalar_select %p194, %s193, 127
      %s196 = smul.addr %s195, 8
      %s197 = scalar_lea.vmem %s2, %s196
      %s198 = smul.u32 64, %s16
      %v200 = vld [vmem:[%s191] sm:$0xff]
      %v201 = vld [vmem:[%s191 + $0x8] sm:$0xff]
      %v202 = vld [vmem:[%s191 + $0x10] sm:$0xff]
      %v203 = vld [vmem:[%s191 + $0x18] sm:$0xf]
      %v204 = vld [vmem:[%s191 + $0x1c] sm:$0xff]
      %v205 = vld [vmem:[%s191 + $0x24] sm:$0xff]
      %v206 = vld [vmem:[%s191 + $0x2c] sm:$0xff]
      %v207 = vld [vmem:[%s191 + $0x34] sm:$0xf]
      %v208 = vld [vmem:[%s191 + $0x38] sm:$0xff]
      %v209 = vld [vmem:[%s191 + $0x40] sm:$0xff]
      %v210 = vld [vmem:[%s191 + $0x48] sm:$0xff]
      %v211 = vld [vmem:[%s191 + $0x50] sm:$0xf]
      %v212 = vld [vmem:[%s191 + $0x54] sm:$0xff]
      %v213 = vld [vmem:[%s191 + $0x5c] sm:$0xff]
      %v214 = vld [vmem:[%s191 + $0x64] sm:$0xff]
      %v215 = vld [vmem:[%s191 + $0x6c] sm:$0xf]
      %v216 = vld [vmem:[%s191 + $0x70] sm:$0xff]
      %v217 = vld [vmem:[%s191 + $0x78] sm:$0xff]
      %v218 = vld [vmem:[%s191 + $0x80] sm:$0xff]
      %v219 = vld [vmem:[%s191 + $0x88] sm:$0xf]
      %v220 = vld [vmem:[%s191 + $0x8c] sm:$0xff]
      %v221 = vld [vmem:[%s191 + $0x94] sm:$0xff]
      %v222 = vld [vmem:[%s191 + $0x9c] sm:$0xff]
      %v223 = vld [vmem:[%s191 + $0xa4] sm:$0xf]
      %v224 = vld [vmem:[%s191 + $0xa8] sm:$0xff]
      %v225 = vld [vmem:[%s191 + $0xb0] sm:$0xff]
      %v226 = vld [vmem:[%s191 + $0xb8] sm:$0xff]
      %v227 = vld [vmem:[%s191 + $0xc0] sm:$0xf]
      %v228 = vld [vmem:[%s191 + $0xc4] sm:$0xff]
      %v229 = vld [vmem:[%s191 + $0xcc] sm:$0xff]
      %v230 = vld [vmem:[%s191 + $0xd4] sm:$0xff]
      %v231 = vld [vmem:[%s191 + $0xdc] sm:$0xf]
      %v232 = vld [vmem:[%s191 + $0xe0] sm:$0xff]
      %v233 = vld [vmem:[%s191 + $0xe8] sm:$0xff]
      %v234 = vld [vmem:[%s191 + $0xf0] sm:$0xff]
      %v235 = vld [vmem:[%s191 + $0xf8] sm:$0xf]
      %v236 = vld [vmem:[%s191 + $0xfc] sm:$0xff]
      %v237 = vld [vmem:[%s191 + $0x104] sm:$0xff]
      %v238 = vld [vmem:[%s191 + $0x10c] sm:$0xff]
      %v239 = vld [vmem:[%s191 + $0x114] sm:$0xf]
      %v240 = vld [vmem:[%s191 + $0x118] sm:$0xff]
      %v241 = vld [vmem:[%s191 + $0x120] sm:$0xff]
      %v242 = vld [vmem:[%s191 + $0x128] sm:$0xff]
      %v243 = vld [vmem:[%s191 + $0x130] sm:$0xf]
      %v244 = vld [vmem:[%s191 + $0x134] sm:$0xff]
      %v245 = vld [vmem:[%s191 + $0x13c] sm:$0xff]
      %v246 = vld [vmem:[%s191 + $0x144] sm:$0xff]
      %v247 = vld [vmem:[%s191 + $0x14c] sm:$0xf]
      %v248 = vld [vmem:[%s191 + $0x150] sm:$0xff]
      %v249 = vld [vmem:[%s191 + $0x158] sm:$0xff]
      %v250 = vld [vmem:[%s191 + $0x160] sm:$0xff]
      %v251 = vld [vmem:[%s191 + $0x168] sm:$0xf]
      %v252 = vld [vmem:[%s191 + $0x16c] sm:$0xff]
      %v253 = vld [vmem:[%s191 + $0x174] sm:$0xff]
      %v254 = vld [vmem:[%s191 + $0x17c] sm:$0xff]
      %v255 = vld [vmem:[%s191 + $0x184] sm:$0xf]
      %v256 = vld [vmem:[%s191 + $0x188] sm:$0xff]
      %v257 = vld [vmem:[%s191 + $0x190] sm:$0xff]
      %v258 = vld [vmem:[%s191 + $0x198] sm:$0xff]
      %v259 = vld [vmem:[%s191 + $0x1a0] sm:$0xf]
      %v260 = vld [vmem:[%s191 + $0x1a4] sm:$0xff]
      %v261 = vld [vmem:[%s191 + $0x1ac] sm:$0xff]
      %v262 = vld [vmem:[%s191 + $0x1b4] sm:$0xff]
      %v263 = vld [vmem:[%s191 + $0x1bc] sm:$0xf]
      %v264 = vld [vmem:[%s191 + $0x1c0] sm:$0xff]
      %v265 = vld [vmem:[%s191 + $0x1c8] sm:$0xff]
      %v266 = vld [vmem:[%s191 + $0x1d0] sm:$0xff]
      %v267 = vld [vmem:[%s191 + $0x1d8] sm:$0xf]
      %v268 = vld [vmem:[%s191 + $0x1dc] sm:$0xff]
      %v269 = vld [vmem:[%s191 + $0x1e4] sm:$0xff]
      %v270 = vld [vmem:[%s191 + $0x1ec] sm:$0xff]
      %v271 = vld [vmem:[%s191 + $0x1f4] sm:$0xf]
      %v272 = vld [vmem:[%s191 + $0x1f8] sm:$0xff]
      %v273 = vld [vmem:[%s191 + $0x200] sm:$0xff]
      %v274 = vld [vmem:[%s191 + $0x208] sm:$0xff]
      %v275 = vld [vmem:[%s191 + $0x210] sm:$0xf]
      %v276 = vld [vmem:[%s191 + $0x214] sm:$0xff]
      %v277 = vld [vmem:[%s191 + $0x21c] sm:$0xff]
      %v278 = vld [vmem:[%s191 + $0x224] sm:$0xff]
      %v279 = vld [vmem:[%s191 + $0x22c] sm:$0xf]
      %v280 = vld [vmem:[%s191 + $0x230] sm:$0xff]
      %v281 = vld [vmem:[%s191 + $0x238] sm:$0xff]
      %v282 = vld [vmem:[%s191 + $0x240] sm:$0xff]
      %v283 = vld [vmem:[%s191 + $0x248] sm:$0xf]
      %v284 = vld [vmem:[%s191 + $0x24c] sm:$0xff]
      %v285 = vld [vmem:[%s191 + $0x254] sm:$0xff]
      %v286 = vld [vmem:[%s191 + $0x25c] sm:$0xff]
      %v287 = vld [vmem:[%s191 + $0x264] sm:$0xf]
      %v288 = vld [vmem:[%s191 + $0x268] sm:$0xff]
      %v289 = vld [vmem:[%s191 + $0x270] sm:$0xff]
      %v290 = vld [vmem:[%s191 + $0x278] sm:$0xff]
      %v291 = vld [vmem:[%s191 + $0x280] sm:$0xf]
      %v292 = vld [vmem:[%s191 + $0x284] sm:$0xff]
      %v293 = vld [vmem:[%s191 + $0x28c] sm:$0xff]
      %v294 = vld [vmem:[%s191 + $0x294] sm:$0xff]
      %v295 = vld [vmem:[%s191 + $0x29c] sm:$0xf]
      %v296 = vld [vmem:[%s191 + $0x2a0] sm:$0xff]
      %v297 = vld [vmem:[%s191 + $0x2a8] sm:$0xff]
      %v298 = vld [vmem:[%s191 + $0x2b0] sm:$0xff]
      %v299 = vld [vmem:[%s191 + $0x2b8] sm:$0xf]
      %v300 = vld [vmem:[%s191 + $0x2bc] sm:$0xff]
      %v301 = vld [vmem:[%s191 + $0x2c4] sm:$0xff]
      %v302 = vld [vmem:[%s191 + $0x2cc] sm:$0xff]
      %v303 = vld [vmem:[%s191 + $0x2d4] sm:$0xf]
      %v304 = vld [vmem:[%s191 + $0x2d8] sm:$0xff]
      %v305 = vld [vmem:[%s191 + $0x2e0] sm:$0xff]
      %v306 = vld [vmem:[%s191 + $0x2e8] sm:$0xff]
      %v307 = vld [vmem:[%s191 + $0x2f0] sm:$0xf]
      %v308 = vld [vmem:[%s191 + $0x2f4] sm:$0xff]
      %v309 = vld [vmem:[%s191 + $0x2fc] sm:$0xff]
      %v310 = vld [vmem:[%s191 + $0x304] sm:$0xff]
      %v311 = vld [vmem:[%s191 + $0x30c] sm:$0xf]
      %v312 = vld [vmem:[%s191 + $0x310] sm:$0xff]
      %v313 = vld [vmem:[%s191 + $0x318] sm:$0xff]
      %v314 = vld [vmem:[%s191 + $0x320] sm:$0xff]
      %v315 = vld [vmem:[%s191 + $0x328] sm:$0xf]
      %v316 = vld [vmem:[%s191 + $0x32c] sm:$0xff]
      %v317 = vld [vmem:[%s191 + $0x334] sm:$0xff]
      %v318 = vld [vmem:[%s191 + $0x33c] sm:$0xff]
      %v319 = vld [vmem:[%s191 + $0x344] sm:$0xf]
      %v320 = vld [vmem:[%s191 + $0x348] sm:$0xff]
      %v321 = vld [vmem:[%s191 + $0x350] sm:$0xff]
      %v322 = vld [vmem:[%s191 + $0x358] sm:$0xff]
      %v323 = vld [vmem:[%s191 + $0x360] sm:$0xf]
      %v324 = vld [vmem:[%s191 + $0x364] sm:$0xff]
      %v325 = vld [vmem:[%s191 + $0x36c] sm:$0xff]
      %v326 = vld [vmem:[%s191 + $0x374] sm:$0xff]
      %v327 = vld [vmem:[%s191 + $0x37c] sm:$0xf]
      %v328 = vld [vmem:[%s191 + $0x380] sm:$0xff]
      %v329 = vld [vmem:[%s191 + $0x388] sm:$0xff]
      %v330 = vld [vmem:[%s191 + $0x390] sm:$0xff]
      %v331 = vld [vmem:[%s191 + $0x398] sm:$0xf]
      %v332 = vld [vmem:[%s191 + $0x39c] sm:$0xff]
      %v333 = vld [vmem:[%s191 + $0x3a4] sm:$0xff]
      %v334 = vld [vmem:[%s191 + $0x3ac] sm:$0xff]
      %v335 = vld [vmem:[%s191 + $0x3b4] sm:$0xf]
      %v336 = vld [vmem:[%s191 + $0x3b8] sm:$0xff]
      %v337 = vld [vmem:[%s191 + $0x3c0] sm:$0xff]
      %v338 = vld [vmem:[%s191 + $0x3c8] sm:$0xff]
      %v339 = vld [vmem:[%s191 + $0x3d0] sm:$0xf]
      %v340 = vld [vmem:[%s191 + $0x3d4] sm:$0xff]
      %v341 = vld [vmem:[%s191 + $0x3dc] sm:$0xff]
      %v342 = vld [vmem:[%s191 + $0x3e4] sm:$0xff]
      %v343 = vld [vmem:[%s191 + $0x3ec] sm:$0xf]
      %v344 = vld [vmem:[%s191 + $0x3f0] sm:$0xff]
      %v345 = vld [vmem:[%s191 + $0x3f8] sm:$0xff]
      %v346 = vld [vmem:[%s191 + $0x400] sm:$0xff]
      %v347 = vld [vmem:[%s191 + $0x408] sm:$0xf]
      %v348 = vld [vmem:[%s191 + $0x40c] sm:$0xff]
      %v349 = vld [vmem:[%s191 + $0x414] sm:$0xff]
      %v350 = vld [vmem:[%s191 + $0x41c] sm:$0xff]
      %v351 = vld [vmem:[%s191 + $0x424] sm:$0xf]
      %v352 = vld [vmem:[%s191 + $0x428] sm:$0xff]
      %v353 = vld [vmem:[%s191 + $0x430] sm:$0xff]
      %v354 = vld [vmem:[%s191 + $0x438] sm:$0xff]
      %v355 = vld [vmem:[%s191 + $0x440] sm:$0xf]
      %v356 = vld [vmem:[%s191 + $0x444] sm:$0xff]
      %v357 = vld [vmem:[%s191 + $0x44c] sm:$0xff]
      %v358 = vld [vmem:[%s191 + $0x454] sm:$0xff]
      %v359 = vld [vmem:[%s191 + $0x45c] sm:$0xf]
      %v360 = vld [vmem:[%s191 + $0x460] sm:$0xff]
      %v361 = vld [vmem:[%s191 + $0x468] sm:$0xff]
      %v362 = vld [vmem:[%s191 + $0x470] sm:$0xff]
      %v363 = vld [vmem:[%s191 + $0x478] sm:$0xf]
      %v364 = vld [vmem:[%s191 + $0x47c] sm:$0xff]
      %v365 = vld [vmem:[%s191 + $0x484] sm:$0xff]
      %v366 = vld [vmem:[%s191 + $0x48c] sm:$0xff]
      %v367 = vld [vmem:[%s191 + $0x494] sm:$0xf]
      %v368 = vld [vmem:[%s191 + $0x498] sm:$0xff]
      %v369 = vld [vmem:[%s191 + $0x4a0] sm:$0xff]
      %v370 = vld [vmem:[%s191 + $0x4a8] sm:$0xff]
      %v371 = vld [vmem:[%s191 + $0x4b0] sm:$0xf]
      %v372 = vld [vmem:[%s191 + $0x4b4] sm:$0xff]
      %v373 = vld [vmem:[%s191 + $0x4bc] sm:$0xff]
      %v374 = vld [vmem:[%s191 + $0x4c4] sm:$0xff]
      %v375 = vld [vmem:[%s191 + $0x4cc] sm:$0xf]
      %v376 = vld [vmem:[%s191 + $0x4d0] sm:$0xff]
      %v377 = vld [vmem:[%s191 + $0x4d8] sm:$0xff]
      %v378 = vld [vmem:[%s191 + $0x4e0] sm:$0xff]
      %v379 = vld [vmem:[%s191 + $0x4e8] sm:$0xf]
      %v380 = vld [vmem:[%s191 + $0x4ec] sm:$0xff]
      %v381 = vld [vmem:[%s191 + $0x4f4] sm:$0xff]
      %v382 = vld [vmem:[%s191 + $0x4fc] sm:$0xff]
      %v383 = vld [vmem:[%s191 + $0x504] sm:$0xf]
      %v384 = vld [vmem:[%s191 + $0x508] sm:$0xff]
      %v385 = vld [vmem:[%s191 + $0x510] sm:$0xff]
      %v386 = vld [vmem:[%s191 + $0x518] sm:$0xff]
      %v387 = vld [vmem:[%s191 + $0x520] sm:$0xf]
      %v388 = vld [vmem:[%s191 + $0x524] sm:$0xff]
      %v389 = vld [vmem:[%s191 + $0x52c] sm:$0xff]
      %v390 = vld [vmem:[%s191 + $0x534] sm:$0xff]
      %v391 = vld [vmem:[%s191 + $0x53c] sm:$0xf]
      %v392 = vld [vmem:[%s191 + $0x540] sm:$0xff]
      %v393 = vld [vmem:[%s191 + $0x548] sm:$0xff]
      %v394 = vld [vmem:[%s191 + $0x550] sm:$0xff]
      %v395 = vld [vmem:[%s191 + $0x558] sm:$0xf]
      %v396 = vld [vmem:[%s191 + $0x55c] sm:$0xff]
      %v397 = vld [vmem:[%s191 + $0x564] sm:$0xff]
      %v398 = vld [vmem:[%s191 + $0x56c] sm:$0xff]
      %v399 = vld [vmem:[%s191 + $0x574] sm:$0xf]
      %v400 = vld [vmem:[%s191 + $0x578] sm:$0xff]
      %v401 = vld [vmem:[%s191 + $0x580] sm:$0xff]
      %v402 = vld [vmem:[%s191 + $0x588] sm:$0xff]
      %v403 = vld [vmem:[%s191 + $0x590] sm:$0xf]
      %v404 = vld [vmem:[%s191 + $0x594] sm:$0xff]
      %v405 = vld [vmem:[%s191 + $0x59c] sm:$0xff]
      %v406 = vld [vmem:[%s191 + $0x5a4] sm:$0xff]
      %v407 = vld [vmem:[%s191 + $0x5ac] sm:$0xf]
      %v408 = vld [vmem:[%s191 + $0x5b0] sm:$0xff]
      %v409 = vld [vmem:[%s191 + $0x5b8] sm:$0xff]
      %v410 = vld [vmem:[%s191 + $0x5c0] sm:$0xff]
      %v411 = vld [vmem:[%s191 + $0x5c8] sm:$0xf]
      %v412 = vld [vmem:[%s191 + $0x5cc] sm:$0xff]
      %v413 = vld [vmem:[%s191 + $0x5d4] sm:$0xff]
      %v414 = vld [vmem:[%s191 + $0x5dc] sm:$0xff]
      %v415 = vld [vmem:[%s191 + $0x5e4] sm:$0xf]
      %v416 = vld [vmem:[%s191 + $0x5e8] sm:$0xff]
      %v417 = vld [vmem:[%s191 + $0x5f0] sm:$0xff]
      %v418 = vld [vmem:[%s191 + $0x5f8] sm:$0xff]
      %v419 = vld [vmem:[%s191 + $0x600] sm:$0xf]
      %v420 = vld [vmem:[%s191 + $0x604] sm:$0xff]
      %v421 = vld [vmem:[%s191 + $0x60c] sm:$0xff]
      %v422 = vld [vmem:[%s191 + $0x614] sm:$0xff]
      %v423 = vld [vmem:[%s191 + $0x61c] sm:$0xf]
      %v424 = vld [vmem:[%s191 + $0x620] sm:$0xff]
      %v425 = vld [vmem:[%s191 + $0x628] sm:$0xff]
      %v426 = vld [vmem:[%s191 + $0x630] sm:$0xff]
      %v427 = vld [vmem:[%s191 + $0x638] sm:$0xf]
      %v428 = vld [vmem:[%s191 + $0x63c] sm:$0xff]
      %v429 = vld [vmem:[%s191 + $0x644] sm:$0xff]
      %v430 = vld [vmem:[%s191 + $0x64c] sm:$0xff]
      %v431 = vld [vmem:[%s191 + $0x654] sm:$0xf]
      %v432 = vld [vmem:[%s191 + $0x658] sm:$0xff]
      %v433 = vld [vmem:[%s191 + $0x660] sm:$0xff]
      %v434 = vld [vmem:[%s191 + $0x668] sm:$0xff]
      %v435 = vld [vmem:[%s191 + $0x670] sm:$0xf]
      %v436 = vld [vmem:[%s191 + $0x674] sm:$0xff]
      %v437 = vld [vmem:[%s191 + $0x67c] sm:$0xff]
      %v438 = vld [vmem:[%s191 + $0x684] sm:$0xff]
      %v439 = vld [vmem:[%s191 + $0x68c] sm:$0xf]
      %v440 = vld [vmem:[%s191 + $0x690] sm:$0xff]
      %v441 = vld [vmem:[%s191 + $0x698] sm:$0xff]
      %v442 = vld [vmem:[%s191 + $0x6a0] sm:$0xff]
      %v443 = vld [vmem:[%s191 + $0x6a8] sm:$0xf]
      %v444 = vld [vmem:[%s191 + $0x6ac] sm:$0xff]
      %v445 = vld [vmem:[%s191 + $0x6b4] sm:$0xff]
      %v446 = vld [vmem:[%s191 + $0x6bc] sm:$0xff]
      %v447 = vld [vmem:[%s191 + $0x6c4] sm:$0xf]
      %v448 = vld [vmem:[%s191 + $0x6c8] sm:$0xff]
      %v449 = vld [vmem:[%s191 + $0x6d0] sm:$0xff]
      %v450 = vld [vmem:[%s191 + $0x6d8] sm:$0xff]
      %v451 = vld [vmem:[%s191 + $0x6e0] sm:$0xf]
      %v452 = vld [vmem:[%s191 + $0x6e4] sm:$0xff]
      %v453 = vld [vmem:[%s191 + $0x6ec] sm:$0xff]
      %v454 = vld [vmem:[%s191 + $0x6f4] sm:$0xff]
      %v455 = vld [vmem:[%s191 + $0x6fc] sm:$0xf]
      %v456 = vld [vmem:[%s1] sm:$0xf]
      %v457 = vld [vmem:[%s1 + $0x4] sm:$0xf]
      %v458 = vld [vmem:[%s1 + $0x8] sm:$0xf]
      %v459 = vld [vmem:[%s1 + $0xc] sm:$0xf]
      %v460 = vld [vmem:[%s1 + $0x10] sm:$0xf]
      %v461 = vld [vmem:[%s1 + $0x14] sm:$0xf]
      %v462 = vld [vmem:[%s1 + $0x18] sm:$0xf]
      %v463 = vld [vmem:[%s1 + $0x1c] sm:$0xf]
      %v464 = vld [vmem:[%s1 + $0x20] sm:$0xf]
      %v465 = vld [vmem:[%s1 + $0x24] sm:$0xf]
      %v466 = vld [vmem:[%s1 + $0x28] sm:$0xf]
      %v467 = vld [vmem:[%s1 + $0x2c] sm:$0xf]
      %v468 = vld [vmem:[%s1 + $0x30] sm:$0xf]
      %v469 = vld [vmem:[%s1 + $0x34] sm:$0xf]
      %v470 = vld [vmem:[%s1 + $0x38] sm:$0xf]
      %v471 = vld [vmem:[%s1 + $0x3c] sm:$0xf]
      %v472 = vld [vmem:[%s1 + $0x40] sm:$0xf]
      %v473 = vld [vmem:[%s1 + $0x44] sm:$0xf]
      %v474 = vld [vmem:[%s1 + $0x48] sm:$0xf]
      %v475 = vld [vmem:[%s1 + $0x4c] sm:$0xf]
      %v476 = vld [vmem:[%s1 + $0x50] sm:$0xf]
      %v477 = vld [vmem:[%s1 + $0x54] sm:$0xf]
      %v478 = vld [vmem:[%s1 + $0x58] sm:$0xf]
      %v479 = vld [vmem:[%s1 + $0x5c] sm:$0xf]
      %v480 = vld [vmem:[%s1 + $0x60] sm:$0xf]
      %v481 = vld [vmem:[%s1 + $0x64] sm:$0xf]
      %v482 = vld [vmem:[%s1 + $0x68] sm:$0xf]
      %v483 = vld [vmem:[%s1 + $0x6c] sm:$0xf]
      %v484 = vld [vmem:[%s1 + $0x70] sm:$0xf]
      %v485 = vld [vmem:[%s1 + $0x74] sm:$0xf]
      %v486 = vld [vmem:[%s1 + $0x78] sm:$0xf]
      %v487 = vld [vmem:[%s1 + $0x7c] sm:$0xf]
      %v488 = vld [vmem:[%s1 + $0x80] sm:$0xf]
      %v489 = vld [vmem:[%s1 + $0x84] sm:$0xf]
      %v490 = vld [vmem:[%s1 + $0x88] sm:$0xf]
      %v491 = vld [vmem:[%s1 + $0x8c] sm:$0xf]
      %v492 = vld [vmem:[%s1 + $0x90] sm:$0xf]
      %v493 = vld [vmem:[%s1 + $0x94] sm:$0xf]
      %v494 = vld [vmem:[%s1 + $0x98] sm:$0xf]
      %v495 = vld [vmem:[%s1 + $0x9c] sm:$0xf]
      %v496 = vld [vmem:[%s1 + $0xa0] sm:$0xf]
      %v497 = vld [vmem:[%s1 + $0xa4] sm:$0xf]
      %v498 = vld [vmem:[%s1 + $0xa8] sm:$0xf]
      %v499 = vld [vmem:[%s1 + $0xac] sm:$0xf]
      %v500 = vld [vmem:[%s1 + $0xb0] sm:$0xf]
      %v501 = vld [vmem:[%s1 + $0xb4] sm:$0xf]
      %v502 = vld [vmem:[%s1 + $0xb8] sm:$0xf]
      %v503 = vld [vmem:[%s1 + $0xbc] sm:$0xf]
      %v504 = vld [vmem:[%s1 + $0xc0] sm:$0xf]
      %v505 = vld [vmem:[%s1 + $0xc4] sm:$0xf]
      %v506 = vld [vmem:[%s1 + $0xc8] sm:$0xf]
      %v507 = vld [vmem:[%s1 + $0xcc] sm:$0xf]
      %v508 = vld [vmem:[%s1 + $0xd0] sm:$0xf]
      %v509 = vld [vmem:[%s1 + $0xd4] sm:$0xf]
      %v510 = vld [vmem:[%s1 + $0xd8] sm:$0xf]
      %v511 = vld [vmem:[%s1 + $0xdc] sm:$0xf]
      %v512 = vld [vmem:[%s1 + $0xe0] sm:$0xf]
      %v513 = vld [vmem:[%s1 + $0xe4] sm:$0xf]
      %v514 = vld [vmem:[%s1 + $0xe8] sm:$0xf]
      %v515 = vld [vmem:[%s1 + $0xec] sm:$0xf]
      %v516 = vld [vmem:[%s1 + $0xf0] sm:$0xf]
      %v517 = vld [vmem:[%s1 + $0xf4] sm:$0xf]
      %v518 = vld [vmem:[%s1 + $0xf8] sm:$0xf]
      %v519 = vld [vmem:[%s1 + $0xfc] sm:$0xf]
      %v520 = vld [vmem:[%s1 + $0x100] sm:$0xf]
      %v521 = vld [vmem:[%s1 + $0x104] sm:$0xf]
      %v522 = vld [vmem:[%s1 + $0x108] sm:$0xf]
      %v523 = vld [vmem:[%s1 + $0x10c] sm:$0xf]
      %v524 = vld [vmem:[%s1 + $0x110] sm:$0xf]
      %v525 = vld [vmem:[%s1 + $0x114] sm:$0xf]
      %v526 = vld [vmem:[%s1 + $0x118] sm:$0xf]
      %v527 = vld [vmem:[%s1 + $0x11c] sm:$0xf]
      %v528 = vld [vmem:[%s1 + $0x120] sm:$0xf]
      %v529 = vld [vmem:[%s1 + $0x124] sm:$0xf]
      %v530 = vld [vmem:[%s1 + $0x128] sm:$0xf]
      %v531 = vld [vmem:[%s1 + $0x12c] sm:$0xf]
      %v532 = vld [vmem:[%s1 + $0x130] sm:$0xf]
      %v533 = vld [vmem:[%s1 + $0x134] sm:$0xf]
      %v534 = vld [vmem:[%s1 + $0x138] sm:$0xf]
      %v535 = vld [vmem:[%s1 + $0x13c] sm:$0xf]
      %v536 = vld [vmem:[%s1 + $0x140] sm:$0xf]
      %v537 = vld [vmem:[%s1 + $0x144] sm:$0xf]
      %v538 = vld [vmem:[%s1 + $0x148] sm:$0xf]
      %v539 = vld [vmem:[%s1 + $0x14c] sm:$0xf]
      %v540 = vld [vmem:[%s1 + $0x150] sm:$0xf]
      %v541 = vld [vmem:[%s1 + $0x154] sm:$0xf]
      %v542 = vld [vmem:[%s1 + $0x158] sm:$0xf]
      %v543 = vld [vmem:[%s1 + $0x15c] sm:$0xf]
      %v544 = vld [vmem:[%s1 + $0x160] sm:$0xf]
      %v545 = vld [vmem:[%s1 + $0x164] sm:$0xf]
      %v546 = vld [vmem:[%s1 + $0x168] sm:$0xf]
      %v547 = vld [vmem:[%s1 + $0x16c] sm:$0xf]
      %v548 = vld [vmem:[%s1 + $0x170] sm:$0xf]
      %v549 = vld [vmem:[%s1 + $0x174] sm:$0xf]
      %v550 = vld [vmem:[%s1 + $0x178] sm:$0xf]
      %v551 = vld [vmem:[%s1 + $0x17c] sm:$0xf]
      %v552 = vld [vmem:[%s1 + $0x180] sm:$0xf]
      %v553 = vld [vmem:[%s1 + $0x184] sm:$0xf]
      %v554 = vld [vmem:[%s1 + $0x188] sm:$0xf]
      %v555 = vld [vmem:[%s1 + $0x18c] sm:$0xf]
      %v556 = vld [vmem:[%s1 + $0x190] sm:$0xf]
      %v557 = vld [vmem:[%s1 + $0x194] sm:$0xf]
      %v558 = vld [vmem:[%s1 + $0x198] sm:$0xf]
      %v559 = vld [vmem:[%s1 + $0x19c] sm:$0xf]
      %v560 = vld [vmem:[%s1 + $0x1a0] sm:$0xf]
      %v561 = vld [vmem:[%s1 + $0x1a4] sm:$0xf]
      %v562 = vld [vmem:[%s1 + $0x1a8] sm:$0xf]
      %v563 = vld [vmem:[%s1 + $0x1ac] sm:$0xf]
      %v820 = vunpack.c.l.b16 %v200
      %v821 = vunpack.c.h.b16 %v200
      %v822 = vunpack.c.l.b16 %v201
      %v823 = vunpack.c.h.b16 %v201
      %v824 = vunpack.c.l.b16 %v202
      %v825 = vunpack.c.h.b16 %v202
      %v826 = vunpack.c.l.b16 %v203
      %v827 = vunpack.c.l.b16 %v204
      %v828 = vunpack.c.h.b16 %v204
      %v829 = vunpack.c.l.b16 %v205
      %v830 = vunpack.c.h.b16 %v205
      %v831 = vunpack.c.l.b16 %v206
      %v832 = vunpack.c.h.b16 %v206
      %v833 = vunpack.c.l.b16 %v207
      %v834 = vunpack.c.l.b16 %v208
      %v835 = vunpack.c.h.b16 %v208
      %v836 = vunpack.c.l.b16 %v209
      %v837 = vunpack.c.h.b16 %v209
      %v838 = vunpack.c.l.b16 %v210
      %v839 = vunpack.c.h.b16 %v210
      %v840 = vunpack.c.l.b16 %v211
      %v841 = vunpack.c.l.b16 %v212
      %v842 = vunpack.c.h.b16 %v212
      %v843 = vunpack.c.l.b16 %v213
      %v844 = vunpack.c.h.b16 %v213
      %v845 = vunpack.c.l.b16 %v214
      %v846 = vunpack.c.h.b16 %v214
      %v847 = vunpack.c.l.b16 %v215
      %v848 = vunpack.c.l.b16 %v216
      %v849 = vunpack.c.h.b16 %v216
      %v850 = vunpack.c.l.b16 %v217
      %v851 = vunpack.c.h.b16 %v217
      %v852 = vunpack.c.l.b16 %v218
      %v853 = vunpack.c.h.b16 %v218
      %v854 = vunpack.c.l.b16 %v219
      %v855 = vunpack.c.l.b16 %v220
      %v856 = vunpack.c.h.b16 %v220
      %v857 = vunpack.c.l.b16 %v221
      %v858 = vunpack.c.h.b16 %v221
      %v859 = vunpack.c.l.b16 %v222
      %v860 = vunpack.c.h.b16 %v222
      %v861 = vunpack.c.l.b16 %v223
      %v862 = vunpack.c.l.b16 %v224
      %v863 = vunpack.c.h.b16 %v224
      %v864 = vunpack.c.l.b16 %v225
      %v865 = vunpack.c.h.b16 %v225
      %v866 = vunpack.c.l.b16 %v226
      %v867 = vunpack.c.h.b16 %v226
      %v868 = vunpack.c.l.b16 %v227
      %v869 = vunpack.c.l.b16 %v228
      %v870 = vunpack.c.h.b16 %v228
      %v871 = vunpack.c.l.b16 %v229
      %v872 = vunpack.c.h.b16 %v229
      %v873 = vunpack.c.l.b16 %v230
      %v874 = vunpack.c.h.b16 %v230
      %v875 = vunpack.c.l.b16 %v231
      %v876 = vunpack.c.l.b16 %v232
      %v877 = vunpack.c.h.b16 %v232
      %v878 = vunpack.c.l.b16 %v233
      %v879 = vunpack.c.h.b16 %v233
      %v880 = vunpack.c.l.b16 %v234
      %v881 = vunpack.c.h.b16 %v234
      %v882 = vunpack.c.l.b16 %v235
      %v883 = vunpack.c.l.b16 %v236
      %v884 = vunpack.c.h.b16 %v236
      %v885 = vunpack.c.l.b16 %v237
      %v886 = vunpack.c.h.b16 %v237
      %v887 = vunpack.c.l.b16 %v238
      %v888 = vunpack.c.h.b16 %v238
      %v889 = vunpack.c.l.b16 %v239
      %v890 = vunpack.c.l.b16 %v240
      %v891 = vunpack.c.h.b16 %v240
      %v892 = vunpack.c.l.b16 %v241
      %v893 = vunpack.c.h.b16 %v241
      %v894 = vunpack.c.l.b16 %v242
      %v895 = vunpack.c.h.b16 %v242
      %v896 = vunpack.c.l.b16 %v243
      %v897 = vunpack.c.l.b16 %v244
      %v898 = vunpack.c.h.b16 %v244
      %v899 = vunpack.c.l.b16 %v245
      %v900 = vunpack.c.h.b16 %v245
      %v901 = vunpack.c.l.b16 %v246
      %v902 = vunpack.c.h.b16 %v246
      %v903 = vunpack.c.l.b16 %v247
      %v904 = vunpack.c.l.b16 %v248
      %v905 = vunpack.c.h.b16 %v248
      %v906 = vunpack.c.l.b16 %v249
      %v907 = vunpack.c.h.b16 %v249
      %v908 = vunpack.c.l.b16 %v250
      %v909 = vunpack.c.h.b16 %v250
      %v910 = vunpack.c.l.b16 %v251
      %v911 = vunpack.c.l.b16 %v252
      %v912 = vunpack.c.h.b16 %v252
      %v913 = vunpack.c.l.b16 %v253
      %v914 = vunpack.c.h.b16 %v253
      %v915 = vunpack.c.l.b16 %v254
      %v916 = vunpack.c.h.b16 %v254
      %v917 = vunpack.c.l.b16 %v255
      %v918 = vunpack.c.l.b16 %v256
      %v919 = vunpack.c.h.b16 %v256
      %v920 = vunpack.c.l.b16 %v257
      %v921 = vunpack.c.h.b16 %v257
      %v922 = vunpack.c.l.b16 %v258
      %v923 = vunpack.c.h.b16 %v258
      %v924 = vunpack.c.l.b16 %v259
      %v925 = vunpack.c.l.b16 %v260
      %v926 = vunpack.c.h.b16 %v260
      %v927 = vunpack.c.l.b16 %v261
      %v928 = vunpack.c.h.b16 %v261
      %v929 = vunpack.c.l.b16 %v262
      %v930 = vunpack.c.h.b16 %v262
      %v931 = vunpack.c.l.b16 %v263
      %v932 = vunpack.c.l.b16 %v264
      %v933 = vunpack.c.h.b16 %v264
      %v934 = vunpack.c.l.b16 %v265
      %v935 = vunpack.c.h.b16 %v265
      %v936 = vunpack.c.l.b16 %v266
      %v937 = vunpack.c.h.b16 %v266
      %v938 = vunpack.c.l.b16 %v267
      %v939 = vunpack.c.l.b16 %v268
      %v940 = vunpack.c.h.b16 %v268
      %v941 = vunpack.c.l.b16 %v269
      %v942 = vunpack.c.h.b16 %v269
      %v943 = vunpack.c.l.b16 %v270
      %v944 = vunpack.c.h.b16 %v270
      %v945 = vunpack.c.l.b16 %v271
      %v946 = vunpack.c.l.b16 %v272
      %v947 = vunpack.c.h.b16 %v272
      %v948 = vunpack.c.l.b16 %v273
      %v949 = vunpack.c.h.b16 %v273
      %v950 = vunpack.c.l.b16 %v274
      %v951 = vunpack.c.h.b16 %v274
      %v952 = vunpack.c.l.b16 %v275
      %v953 = vunpack.c.l.b16 %v276
      %v954 = vunpack.c.h.b16 %v276
      %v955 = vunpack.c.l.b16 %v277
      %v956 = vunpack.c.h.b16 %v277
      %v957 = vunpack.c.l.b16 %v278
      %v958 = vunpack.c.h.b16 %v278
      %v959 = vunpack.c.l.b16 %v279
      %v960 = vunpack.c.l.b16 %v280
      %v961 = vunpack.c.h.b16 %v280
      %v962 = vunpack.c.l.b16 %v281
      %v963 = vunpack.c.h.b16 %v281
      %v964 = vunpack.c.l.b16 %v282
      %v965 = vunpack.c.h.b16 %v282
      %v966 = vunpack.c.l.b16 %v283
      %v967 = vunpack.c.l.b16 %v284
      %v968 = vunpack.c.h.b16 %v284
      %v969 = vunpack.c.l.b16 %v285
      %v970 = vunpack.c.h.b16 %v285
      %v971 = vunpack.c.l.b16 %v286
      %v972 = vunpack.c.h.b16 %v286
      %v973 = vunpack.c.l.b16 %v287
      %v974 = vunpack.c.l.b16 %v288
      %v975 = vunpack.c.h.b16 %v288
      %v976 = vunpack.c.l.b16 %v289
      %v977 = vunpack.c.h.b16 %v289
      %v978 = vunpack.c.l.b16 %v290
      %v979 = vunpack.c.h.b16 %v290
      %v980 = vunpack.c.l.b16 %v291
      %v981 = vunpack.c.l.b16 %v292
      %v982 = vunpack.c.h.b16 %v292
      %v983 = vunpack.c.l.b16 %v293
      %v984 = vunpack.c.h.b16 %v293
      %v985 = vunpack.c.l.b16 %v294
      %v986 = vunpack.c.h.b16 %v294
      %v987 = vunpack.c.l.b16 %v295
      %v988 = vunpack.c.l.b16 %v296
      %v989 = vunpack.c.h.b16 %v296
      %v990 = vunpack.c.l.b16 %v297
      %v991 = vunpack.c.h.b16 %v297
      %v992 = vunpack.c.l.b16 %v298
      %v993 = vunpack.c.h.b16 %v298
      %v994 = vunpack.c.l.b16 %v299
      %v995 = vunpack.c.l.b16 %v300
      %v996 = vunpack.c.h.b16 %v300
      %v997 = vunpack.c.l.b16 %v301
      %v998 = vunpack.c.h.b16 %v301
      %v999 = vunpack.c.l.b16 %v302
      %v1000 = vunpack.c.h.b16 %v302
      %v1001 = vunpack.c.l.b16 %v303
      %v1002 = vunpack.c.l.b16 %v304
      %v1003 = vunpack.c.h.b16 %v304
      %v1004 = vunpack.c.l.b16 %v305
      %v1005 = vunpack.c.h.b16 %v305
      %v1006 = vunpack.c.l.b16 %v306
      %v1007 = vunpack.c.h.b16 %v306
      %v1008 = vunpack.c.l.b16 %v307
      %v1009 = vunpack.c.l.b16 %v308
      %v1010 = vunpack.c.h.b16 %v308
      %v1011 = vunpack.c.l.b16 %v309
      %v1012 = vunpack.c.h.b16 %v309
      %v1013 = vunpack.c.l.b16 %v310
      %v1014 = vunpack.c.h.b16 %v310
      %v1015 = vunpack.c.l.b16 %v311
      %v1016 = vunpack.c.l.b16 %v312
      %v1017 = vunpack.c.h.b16 %v312
      %v1018 = vunpack.c.l.b16 %v313
      %v1019 = vunpack.c.h.b16 %v313
      %v1020 = vunpack.c.l.b16 %v314
      %v1021 = vunpack.c.h.b16 %v314
      %v1022 = vunpack.c.l.b16 %v315
      %v1023 = vunpack.c.l.b16 %v316
      %v1024 = vunpack.c.h.b16 %v316
      %v1025 = vunpack.c.l.b16 %v317
      %v1026 = vunpack.c.h.b16 %v317
      %v1027 = vunpack.c.l.b16 %v318
      %v1028 = vunpack.c.h.b16 %v318
      %v1029 = vunpack.c.l.b16 %v319
      %v1030 = vunpack.c.l.b16 %v320
      %v1031 = vunpack.c.h.b16 %v320
      %v1032 = vunpack.c.l.b16 %v321
      %v1033 = vunpack.c.h.b16 %v321
      %v1034 = vunpack.c.l.b16 %v322
      %v1035 = vunpack.c.h.b16 %v322
      %v1036 = vunpack.c.l.b16 %v323
      %v1037 = vunpack.c.l.b16 %v324
      %v1038 = vunpack.c.h.b16 %v324
      %v1039 = vunpack.c.l.b16 %v325
      %v1040 = vunpack.c.h.b16 %v325
      %v1041 = vunpack.c.l.b16 %v326
      %v1042 = vunpack.c.h.b16 %v326
      %v1043 = vunpack.c.l.b16 %v327
      %v1044 = vunpack.c.l.b16 %v328
      %v1045 = vunpack.c.h.b16 %v328
      %v1046 = vunpack.c.l.b16 %v329
      %v1047 = vunpack.c.h.b16 %v329
      %v1048 = vunpack.c.l.b16 %v330
      %v1049 = vunpack.c.h.b16 %v330
      %v1050 = vunpack.c.l.b16 %v331
      %v1051 = vunpack.c.l.b16 %v332
      %v1052 = vunpack.c.h.b16 %v332
      %v1053 = vunpack.c.l.b16 %v333
      %v1054 = vunpack.c.h.b16 %v333
      %v1055 = vunpack.c.l.b16 %v334
      %v1056 = vunpack.c.h.b16 %v334
      %v1057 = vunpack.c.l.b16 %v335
      %v1058 = vunpack.c.l.b16 %v336
      %v1059 = vunpack.c.h.b16 %v336
      %v1060 = vunpack.c.l.b16 %v337
      %v1061 = vunpack.c.h.b16 %v337
      %v1062 = vunpack.c.l.b16 %v338
      %v1063 = vunpack.c.h.b16 %v338
      %v1064 = vunpack.c.l.b16 %v339
      %v1065 = vunpack.c.l.b16 %v340
      %v1066 = vunpack.c.h.b16 %v340
      %v1067 = vunpack.c.l.b16 %v341
      %v1068 = vunpack.c.h.b16 %v341
      %v1069 = vunpack.c.l.b16 %v342
      %v1070 = vunpack.c.h.b16 %v342
      %v1071 = vunpack.c.l.b16 %v343
      %v1072 = vunpack.c.l.b16 %v344
      %v1073 = vunpack.c.h.b16 %v344
      %v1074 = vunpack.c.l.b16 %v345
      %v1075 = vunpack.c.h.b16 %v345
      %v1076 = vunpack.c.l.b16 %v346
      %v1077 = vunpack.c.h.b16 %v346
      %v1078 = vunpack.c.l.b16 %v347
      %v1079 = vunpack.c.l.b16 %v348
      %v1080 = vunpack.c.h.b16 %v348
      %v1081 = vunpack.c.l.b16 %v349
      %v1082 = vunpack.c.h.b16 %v349
      %v1083 = vunpack.c.l.b16 %v350
      %v1084 = vunpack.c.h.b16 %v350
      %v1085 = vunpack.c.l.b16 %v351
      %v1086 = vunpack.c.l.b16 %v352
      %v1087 = vunpack.c.h.b16 %v352
      %v1088 = vunpack.c.l.b16 %v353
      %v1089 = vunpack.c.h.b16 %v353
      %v1090 = vunpack.c.l.b16 %v354
      %v1091 = vunpack.c.h.b16 %v354
      %v1092 = vunpack.c.l.b16 %v355
      %v1093 = vunpack.c.l.b16 %v356
      %v1094 = vunpack.c.h.b16 %v356
      %v1095 = vunpack.c.l.b16 %v357
      %v1096 = vunpack.c.h.b16 %v357
      %v1097 = vunpack.c.l.b16 %v358
      %v1098 = vunpack.c.h.b16 %v358
      %v1099 = vunpack.c.l.b16 %v359
      %v1100 = vunpack.c.l.b16 %v360
      %v1101 = vunpack.c.h.b16 %v360
      %v1102 = vunpack.c.l.b16 %v361
      %v1103 = vunpack.c.h.b16 %v361
      %v1104 = vunpack.c.l.b16 %v362
      %v1105 = vunpack.c.h.b16 %v362
      %v1106 = vunpack.c.l.b16 %v363
      %v1107 = vunpack.c.l.b16 %v364
      %v1108 = vunpack.c.h.b16 %v364
      %v1109 = vunpack.c.l.b16 %v365
      %v1110 = vunpack.c.h.b16 %v365
      %v1111 = vunpack.c.l.b16 %v366
      %v1112 = vunpack.c.h.b16 %v366
      %v1113 = vunpack.c.l.b16 %v367
      %v1114 = vunpack.c.l.b16 %v368
      %v1115 = vunpack.c.h.b16 %v368
      %v1116 = vunpack.c.l.b16 %v369
      %v1117 = vunpack.c.h.b16 %v369
      %v1118 = vunpack.c.l.b16 %v370
      %v1119 = vunpack.c.h.b16 %v370
      %v1120 = vunpack.c.l.b16 %v371
      %v1121 = vunpack.c.l.b16 %v372
      %v1122 = vunpack.c.h.b16 %v372
      %v1123 = vunpack.c.l.b16 %v373
      %v1124 = vunpack.c.h.b16 %v373
      %v1125 = vunpack.c.l.b16 %v374
      %v1126 = vunpack.c.h.b16 %v374
      %v1127 = vunpack.c.l.b16 %v375
      %v1128 = vunpack.c.l.b16 %v376
      %v1129 = vunpack.c.h.b16 %v376
      %v1130 = vunpack.c.l.b16 %v377
      %v1131 = vunpack.c.h.b16 %v377
      %v1132 = vunpack.c.l.b16 %v378
      %v1133 = vunpack.c.h.b16 %v378
      %v1134 = vunpack.c.l.b16 %v379
      %v1135 = vunpack.c.l.b16 %v380
      %v1136 = vunpack.c.h.b16 %v380
      %v1137 = vunpack.c.l.b16 %v381
      %v1138 = vunpack.c.h.b16 %v381
      %v1139 = vunpack.c.l.b16 %v382
      %v1140 = vunpack.c.h.b16 %v382
      %v1141 = vunpack.c.l.b16 %v383
      %v1142 = vunpack.c.l.b16 %v384
      %v1143 = vunpack.c.h.b16 %v384
      %v1144 = vunpack.c.l.b16 %v385
      %v1145 = vunpack.c.h.b16 %v385
      %v1146 = vunpack.c.l.b16 %v386
      %v1147 = vunpack.c.h.b16 %v386
      %v1148 = vunpack.c.l.b16 %v387
      %v1149 = vunpack.c.l.b16 %v388
      %v1150 = vunpack.c.h.b16 %v388
      %v1151 = vunpack.c.l.b16 %v389
      %v1152 = vunpack.c.h.b16 %v389
      %v1153 = vunpack.c.l.b16 %v390
      %v1154 = vunpack.c.h.b16 %v390
      %v1155 = vunpack.c.l.b16 %v391
      %v1156 = vunpack.c.l.b16 %v392
      %v1157 = vunpack.c.h.b16 %v392
      %v1158 = vunpack.c.l.b16 %v393
      %v1159 = vunpack.c.h.b16 %v393
      %v1160 = vunpack.c.l.b16 %v394
      %v1161 = vunpack.c.h.b16 %v394
      %v1162 = vunpack.c.l.b16 %v395
      %v1163 = vunpack.c.l.b16 %v396
      %v1164 = vunpack.c.h.b16 %v396
      %v1165 = vunpack.c.l.b16 %v397
      %v1166 = vunpack.c.h.b16 %v397
      %v1167 = vunpack.c.l.b16 %v398
      %v1168 = vunpack.c.h.b16 %v398
      %v1169 = vunpack.c.l.b16 %v399
      %v1170 = vunpack.c.l.b16 %v400
      %v1171 = vunpack.c.h.b16 %v400
      %v1172 = vunpack.c.l.b16 %v401
      %v1173 = vunpack.c.h.b16 %v401
      %v1174 = vunpack.c.l.b16 %v402
      %v1175 = vunpack.c.h.b16 %v402
      %v1176 = vunpack.c.l.b16 %v403
      %v1177 = vunpack.c.l.b16 %v404
      %v1178 = vunpack.c.h.b16 %v404
      %v1179 = vunpack.c.l.b16 %v405
      %v1180 = vunpack.c.h.b16 %v405
      %v1181 = vunpack.c.l.b16 %v406
      %v1182 = vunpack.c.h.b16 %v406
      %v1183 = vunpack.c.l.b16 %v407
      %v1184 = vunpack.c.l.b16 %v408
      %v1185 = vunpack.c.h.b16 %v408
      %v1186 = vunpack.c.l.b16 %v409
      %v1187 = vunpack.c.h.b16 %v409
      %v1188 = vunpack.c.l.b16 %v410
      %v1189 = vunpack.c.h.b16 %v410
      %v1190 = vunpack.c.l.b16 %v411
      %v1191 = vunpack.c.l.b16 %v412
      %v1192 = vunpack.c.h.b16 %v412
      %v1193 = vunpack.c.l.b16 %v413
      %v1194 = vunpack.c.h.b16 %v413
      %v1195 = vunpack.c.l.b16 %v414
      %v1196 = vunpack.c.h.b16 %v414
      %v1197 = vunpack.c.l.b16 %v415
      %v1198 = vunpack.c.l.b16 %v416
      %v1199 = vunpack.c.h.b16 %v416
      %v1200 = vunpack.c.l.b16 %v417
      %v1201 = vunpack.c.h.b16 %v417
      %v1202 = vunpack.c.l.b16 %v418
      %v1203 = vunpack.c.h.b16 %v418
      %v1204 = vunpack.c.l.b16 %v419
      %v1205 = vunpack.c.l.b16 %v420
      %v1206 = vunpack.c.h.b16 %v420
      %v1207 = vunpack.c.l.b16 %v421
      %v1208 = vunpack.c.h.b16 %v421
      %v1209 = vunpack.c.l.b16 %v422
      %v1210 = vunpack.c.h.b16 %v422
      %v1211 = vunpack.c.l.b16 %v423
      %v1212 = vunpack.c.l.b16 %v424
      %v1213 = vunpack.c.h.b16 %v424
      %v1214 = vunpack.c.l.b16 %v425
      %v1215 = vunpack.c.h.b16 %v425
      %v1216 = vunpack.c.l.b16 %v426
      %v1217 = vunpack.c.h.b16 %v426
      %v1218 = vunpack.c.l.b16 %v427
      %v1219 = vunpack.c.l.b16 %v428
      %v1220 = vunpack.c.h.b16 %v428
      %v1221 = vunpack.c.l.b16 %v429
      %v1222 = vunpack.c.h.b16 %v429
      %v1223 = vunpack.c.l.b16 %v430
      %v1224 = vunpack.c.h.b16 %v430
      %v1225 = vunpack.c.l.b16 %v431
      %v1226 = vunpack.c.l.b16 %v432
      %v1227 = vunpack.c.h.b16 %v432
      %v1228 = vunpack.c.l.b16 %v433
      %v1229 = vunpack.c.h.b16 %v433
      %v1230 = vunpack.c.l.b16 %v434
      %v1231 = vunpack.c.h.b16 %v434
      %v1232 = vunpack.c.l.b16 %v435
      %v1233 = vunpack.c.l.b16 %v436
      %v1234 = vunpack.c.h.b16 %v436
      %v1235 = vunpack.c.l.b16 %v437
      %v1236 = vunpack.c.h.b16 %v437
      %v1237 = vunpack.c.l.b16 %v438
      %v1238 = vunpack.c.h.b16 %v438
      %v1239 = vunpack.c.l.b16 %v439
      %v1240 = vunpack.c.l.b16 %v440
      %v1241 = vunpack.c.h.b16 %v440
      %v1242 = vunpack.c.l.b16 %v441
      %v1243 = vunpack.c.h.b16 %v441
      %v1244 = vunpack.c.l.b16 %v442
      %v1245 = vunpack.c.h.b16 %v442
      %v1246 = vunpack.c.l.b16 %v443
      %v1247 = vunpack.c.l.b16 %v444
      %v1248 = vunpack.c.h.b16 %v444
      %v1249 = vunpack.c.l.b16 %v445
      %v1250 = vunpack.c.h.b16 %v445
      %v1251 = vunpack.c.l.b16 %v446
      %v1252 = vunpack.c.h.b16 %v446
      %v1253 = vunpack.c.l.b16 %v447
      %v1254 = vunpack.c.l.b16 %v448
      %v1255 = vunpack.c.h.b16 %v448
      %v1256 = vunpack.c.l.b16 %v449
      %v1257 = vunpack.c.h.b16 %v449
      %v1258 = vunpack.c.l.b16 %v450
      %v1259 = vunpack.c.h.b16 %v450
      %v1260 = vunpack.c.l.b16 %v451
      %v1261 = vunpack.c.l.b16 %v452
      %v1262 = vunpack.c.h.b16 %v452
      %v1263 = vunpack.c.l.b16 %v453
      %v1264 = vunpack.c.h.b16 %v453
      %v1265 = vunpack.c.l.b16 %v454
      %v1266 = vunpack.c.h.b16 %v454
      %v1267 = vunpack.c.l.b16 %v455
      %v1268 = vpack.c.b16 %v827, %v820
      %v1269 = vpack.c.b16 %v828, %v821
      %v1270 = vpack.c.b16 %v829, %v822
      %v1271 = vpack.c.b16 %v830, %v823
      %v1272 = vpack.c.b16 %v831, %v824
      %v1273 = vpack.c.b16 %v832, %v825
      %v1274 = vpack.c.b16 %v833, %v826
      %v1275 = vpack.c.b16 %v841, %v834
      %v1276 = vpack.c.b16 %v842, %v835
      %v1277 = vpack.c.b16 %v843, %v836
      %v1278 = vpack.c.b16 %v844, %v837
      %v1279 = vpack.c.b16 %v845, %v838
      %v1280 = vpack.c.b16 %v846, %v839
      %v1281 = vpack.c.b16 %v847, %v840
      %v1282 = vpack.c.b16 %v855, %v848
      %v1283 = vpack.c.b16 %v856, %v849
      %v1284 = vpack.c.b16 %v857, %v850
      %v1285 = vpack.c.b16 %v858, %v851
      %v1286 = vpack.c.b16 %v859, %v852
      %v1287 = vpack.c.b16 %v860, %v853
      %v1288 = vpack.c.b16 %v861, %v854
      %v1289 = vpack.c.b16 %v869, %v862
      %v1290 = vpack.c.b16 %v870, %v863
      %v1291 = vpack.c.b16 %v871, %v864
      %v1292 = vpack.c.b16 %v872, %v865
      %v1293 = vpack.c.b16 %v873, %v866
      %v1294 = vpack.c.b16 %v874, %v867
      %v1295 = vpack.c.b16 %v875, %v868
      %v1296 = vpack.c.b16 %v883, %v876
      %v1297 = vpack.c.b16 %v884, %v877
      %v1298 = vpack.c.b16 %v885, %v878
      %v1299 = vpack.c.b16 %v886, %v879
      %v1300 = vpack.c.b16 %v887, %v880
      %v1301 = vpack.c.b16 %v888, %v881
      %v1302 = vpack.c.b16 %v889, %v882
      %v1303 = vpack.c.b16 %v897, %v890
      %v1304 = vpack.c.b16 %v898, %v891
      %v1305 = vpack.c.b16 %v899, %v892
      %v1306 = vpack.c.b16 %v900, %v893
      %v1307 = vpack.c.b16 %v901, %v894
      %v1308 = vpack.c.b16 %v902, %v895
      %v1309 = vpack.c.b16 %v903, %v896
      %v1310 = vpack.c.b16 %v911, %v904
      %v1311 = vpack.c.b16 %v912, %v905
      %v1312 = vpack.c.b16 %v913, %v906
      %v1313 = vpack.c.b16 %v914, %v907
      %v1314 = vpack.c.b16 %v915, %v908
      %v1315 = vpack.c.b16 %v916, %v909
      %v1316 = vpack.c.b16 %v917, %v910
      %v1317 = vpack.c.b16 %v925, %v918
      %v1318 = vpack.c.b16 %v926, %v919
      %v1319 = vpack.c.b16 %v927, %v920
      %v1320 = vpack.c.b16 %v928, %v921
      %v1321 = vpack.c.b16 %v929, %v922
      %v1322 = vpack.c.b16 %v930, %v923
      %v1323 = vpack.c.b16 %v931, %v924
      %v1324 = vpack.c.b16 %v939, %v932
      %v1325 = vpack.c.b16 %v940, %v933
      %v1326 = vpack.c.b16 %v941, %v934
      %v1327 = vpack.c.b16 %v942, %v935
      %v1328 = vpack.c.b16 %v943, %v936
      %v1329 = vpack.c.b16 %v944, %v937
      %v1330 = vpack.c.b16 %v945, %v938
      %v1331 = vpack.c.b16 %v953, %v946
      %v1332 = vpack.c.b16 %v954, %v947
      %v1333 = vpack.c.b16 %v955, %v948
      %v1334 = vpack.c.b16 %v956, %v949
      %v1335 = vpack.c.b16 %v957, %v950
      %v1336 = vpack.c.b16 %v958, %v951
      %v1337 = vpack.c.b16 %v959, %v952
      %v1338 = vpack.c.b16 %v967, %v960
      %v1339 = vpack.c.b16 %v968, %v961
      %v1340 = vpack.c.b16 %v969, %v962
      %v1341 = vpack.c.b16 %v970, %v963
      %v1342 = vpack.c.b16 %v971, %v964
      %v1343 = vpack.c.b16 %v972, %v965
      %v1344 = vpack.c.b16 %v973, %v966
      %v1345 = vpack.c.b16 %v981, %v974
      %v1346 = vpack.c.b16 %v982, %v975
      %v1347 = vpack.c.b16 %v983, %v976
      %v1348 = vpack.c.b16 %v984, %v977
      %v1349 = vpack.c.b16 %v985, %v978
      %v1350 = vpack.c.b16 %v986, %v979
      %v1351 = vpack.c.b16 %v987, %v980
      %v1352 = vpack.c.b16 %v995, %v988
      %v1353 = vpack.c.b16 %v996, %v989
      %v1354 = vpack.c.b16 %v997, %v990
      %v1355 = vpack.c.b16 %v998, %v991
      %v1356 = vpack.c.b16 %v999, %v992
      %v1357 = vpack.c.b16 %v1000, %v993
      %v1358 = vpack.c.b16 %v1001, %v994
      %v1359 = vpack.c.b16 %v1009, %v1002
      %v1360 = vpack.c.b16 %v1010, %v1003
      %v1361 = vpack.c.b16 %v1011, %v1004
      %v1362 = vpack.c.b16 %v1012, %v1005
      %v1363 = vpack.c.b16 %v1013, %v1006
      %v1364 = vpack.c.b16 %v1014, %v1007
      %v1365 = vpack.c.b16 %v1015, %v1008
      %v1366 = vpack.c.b16 %v1023, %v1016
      %v1367 = vpack.c.b16 %v1024, %v1017
      %v1368 = vpack.c.b16 %v1025, %v1018
      %v1369 = vpack.c.b16 %v1026, %v1019
      %v1370 = vpack.c.b16 %v1027, %v1020
      %v1371 = vpack.c.b16 %v1028, %v1021
      %v1372 = vpack.c.b16 %v1029, %v1022
      %v1373 = vpack.c.b16 %v1037, %v1030
      %v1374 = vpack.c.b16 %v1038, %v1031
      %v1375 = vpack.c.b16 %v1039, %v1032
      %v1376 = vpack.c.b16 %v1040, %v1033
      %v1377 = vpack.c.b16 %v1041, %v1034
      %v1378 = vpack.c.b16 %v1042, %v1035
      %v1379 = vpack.c.b16 %v1043, %v1036
      %v1380 = vpack.c.b16 %v1051, %v1044
      %v1381 = vpack.c.b16 %v1052, %v1045
      %v1382 = vpack.c.b16 %v1053, %v1046
      %v1383 = vpack.c.b16 %v1054, %v1047
      %v1384 = vpack.c.b16 %v1055, %v1048
      %v1385 = vpack.c.b16 %v1056, %v1049
      %v1386 = vpack.c.b16 %v1057, %v1050
      %v1387 = vpack.c.b16 %v1065, %v1058
      %v1388 = vpack.c.b16 %v1066, %v1059
      %v1389 = vpack.c.b16 %v1067, %v1060
      %v1390 = vpack.c.b16 %v1068, %v1061
      %v1391 = vpack.c.b16 %v1069, %v1062
      %v1392 = vpack.c.b16 %v1070, %v1063
      %v1393 = vpack.c.b16 %v1071, %v1064
      %v1394 = vpack.c.b16 %v1079, %v1072
      %v1395 = vpack.c.b16 %v1080, %v1073
      %v1396 = vpack.c.b16 %v1081, %v1074
      %v1397 = vpack.c.b16 %v1082, %v1075
      %v1398 = vpack.c.b16 %v1083, %v1076
      %v1399 = vpack.c.b16 %v1084, %v1077
      %v1400 = vpack.c.b16 %v1085, %v1078
      %v1401 = vpack.c.b16 %v1093, %v1086
      %v1402 = vpack.c.b16 %v1094, %v1087
      %v1403 = vpack.c.b16 %v1095, %v1088
      %v1404 = vpack.c.b16 %v1096, %v1089
      %v1405 = vpack.c.b16 %v1097, %v1090
      %v1406 = vpack.c.b16 %v1098, %v1091
      %v1407 = vpack.c.b16 %v1099, %v1092
      %v1408 = vpack.c.b16 %v1107, %v1100
      %v1409 = vpack.c.b16 %v1108, %v1101
      %v1410 = vpack.c.b16 %v1109, %v1102
      %v1411 = vpack.c.b16 %v1110, %v1103
      %v1412 = vpack.c.b16 %v1111, %v1104
      %v1413 = vpack.c.b16 %v1112, %v1105
      %v1414 = vpack.c.b16 %v1113, %v1106
      %v1415 = vpack.c.b16 %v1121, %v1114
      %v1416 = vpack.c.b16 %v1122, %v1115
      %v1417 = vpack.c.b16 %v1123, %v1116
      %v1418 = vpack.c.b16 %v1124, %v1117
      %v1419 = vpack.c.b16 %v1125, %v1118
      %v1420 = vpack.c.b16 %v1126, %v1119
      %v1421 = vpack.c.b16 %v1127, %v1120
      %v1422 = vpack.c.b16 %v1135, %v1128
      %v1423 = vpack.c.b16 %v1136, %v1129
      %v1424 = vpack.c.b16 %v1137, %v1130
      %v1425 = vpack.c.b16 %v1138, %v1131
      %v1426 = vpack.c.b16 %v1139, %v1132
      %v1427 = vpack.c.b16 %v1140, %v1133
      %v1428 = vpack.c.b16 %v1141, %v1134
      %v1429 = vpack.c.b16 %v1149, %v1142
      %v1430 = vpack.c.b16 %v1150, %v1143
      %v1431 = vpack.c.b16 %v1151, %v1144
      %v1432 = vpack.c.b16 %v1152, %v1145
      %v1433 = vpack.c.b16 %v1153, %v1146
      %v1434 = vpack.c.b16 %v1154, %v1147
      %v1435 = vpack.c.b16 %v1155, %v1148
      %v1436 = vpack.c.b16 %v1163, %v1156
      %v1437 = vpack.c.b16 %v1164, %v1157
      %v1438 = vpack.c.b16 %v1165, %v1158
      %v1439 = vpack.c.b16 %v1166, %v1159
      %v1440 = vpack.c.b16 %v1167, %v1160
      %v1441 = vpack.c.b16 %v1168, %v1161
      %v1442 = vpack.c.b16 %v1169, %v1162
      %v1443 = vpack.c.b16 %v1177, %v1170
      %v1444 = vpack.c.b16 %v1178, %v1171
      %v1445 = vpack.c.b16 %v1179, %v1172
      %v1446 = vpack.c.b16 %v1180, %v1173
      %v1447 = vpack.c.b16 %v1181, %v1174
      %v1448 = vpack.c.b16 %v1182, %v1175
      %v1449 = vpack.c.b16 %v1183, %v1176
      %v1450 = vpack.c.b16 %v1191, %v1184
      %v1451 = vpack.c.b16 %v1192, %v1185
      %v1452 = vpack.c.b16 %v1193, %v1186
      %v1453 = vpack.c.b16 %v1194, %v1187
      %v1454 = vpack.c.b16 %v1195, %v1188
      %v1455 = vpack.c.b16 %v1196, %v1189
      %v1456 = vpack.c.b16 %v1197, %v1190
      %v1457 = vpack.c.b16 %v1205, %v1198
      %v1458 = vpack.c.b16 %v1206, %v1199
      %v1459 = vpack.c.b16 %v1207, %v1200
      %v1460 = vpack.c.b16 %v1208, %v1201
      %v1461 = vpack.c.b16 %v1209, %v1202
      %v1462 = vpack.c.b16 %v1210, %v1203
      %v1463 = vpack.c.b16 %v1211, %v1204
      %v1464 = vpack.c.b16 %v1219, %v1212
      %v1465 = vpack.c.b16 %v1220, %v1213
      %v1466 = vpack.c.b16 %v1221, %v1214
      %v1467 = vpack.c.b16 %v1222, %v1215
      %v1468 = vpack.c.b16 %v1223, %v1216
      %v1469 = vpack.c.b16 %v1224, %v1217
      %v1470 = vpack.c.b16 %v1225, %v1218
      %v1471 = vpack.c.b16 %v1233, %v1226
      %v1472 = vpack.c.b16 %v1234, %v1227
      %v1473 = vpack.c.b16 %v1235, %v1228
      %v1474 = vpack.c.b16 %v1236, %v1229
      %v1475 = vpack.c.b16 %v1237, %v1230
      %v1476 = vpack.c.b16 %v1238, %v1231
      %v1477 = vpack.c.b16 %v1239, %v1232
      %v1478 = vpack.c.b16 %v1247, %v1240
      %v1479 = vpack.c.b16 %v1248, %v1241
      %v1480 = vpack.c.b16 %v1249, %v1242
      %v1481 = vpack.c.b16 %v1250, %v1243
      %v1482 = vpack.c.b16 %v1251, %v1244
      %v1483 = vpack.c.b16 %v1252, %v1245
      %v1484 = vpack.c.b16 %v1253, %v1246
      %v1485 = vpack.c.b16 %v1261, %v1254
      %v1486 = vpack.c.b16 %v1262, %v1255
      %v1487 = vpack.c.b16 %v1263, %v1256
      %v1488 = vpack.c.b16 %v1264, %v1257
      %v1489 = vpack.c.b16 %v1265, %v1258
      %v1490 = vpack.c.b16 %v1266, %v1259
      %v1491 = vpack.c.b16 %v1267, %v1260
      %v1792 = vunpack.c.l.b16 %v456
      %v1793 = vunpack.c.l.b16 %v457
      %v1794 = vunpack.c.l.b16 %v458
      %v1795 = vunpack.c.l.b16 %v459
      %v1796 = vunpack.c.l.b16 %v460
      %v1797 = vunpack.c.l.b16 %v461
      %v1798 = vunpack.c.l.b16 %v462
      %v1799 = vunpack.c.l.b16 %v463
      %v1800 = vunpack.c.l.b16 %v464
      %v1801 = vunpack.c.l.b16 %v465
      %v1802 = vunpack.c.l.b16 %v466
      %v1803 = vunpack.c.l.b16 %v467
      %v1804 = vunpack.c.l.b16 %v468
      %v1805 = vunpack.c.l.b16 %v469
      %v1806 = vunpack.c.l.b16 %v470
      %v1807 = vunpack.c.l.b16 %v471
      %v1808 = vunpack.c.l.b16 %v472
      %v1809 = vunpack.c.l.b16 %v473
      %v1810 = vunpack.c.l.b16 %v474
      %v1811 = vunpack.c.l.b16 %v475
      %v1812 = vunpack.c.l.b16 %v476
      %v1813 = vunpack.c.l.b16 %v477
      %v1814 = vunpack.c.l.b16 %v478
      %v1815 = vunpack.c.l.b16 %v479
      %v1816 = vunpack.c.l.b16 %v480
      %v1817 = vunpack.c.l.b16 %v481
      %v1818 = vunpack.c.l.b16 %v482
      %v1819 = vunpack.c.l.b16 %v483
      %v1820 = vunpack.c.l.b16 %v484
      %v1821 = vunpack.c.l.b16 %v485
      %v1822 = vunpack.c.l.b16 %v486
      %v1823 = vunpack.c.l.b16 %v487
      %v1824 = vunpack.c.l.b16 %v488
      %v1825 = vunpack.c.l.b16 %v489
      %v1826 = vunpack.c.l.b16 %v490
      %v1827 = vunpack.c.l.b16 %v491
      %v1828 = vunpack.c.l.b16 %v492
      %v1829 = vunpack.c.l.b16 %v493
      %v1830 = vunpack.c.l.b16 %v494
      %v1831 = vunpack.c.l.b16 %v495
      %v1832 = vunpack.c.l.b16 %v496
      %v1833 = vunpack.c.l.b16 %v497
      %v1834 = vunpack.c.l.b16 %v498
      %v1835 = vunpack.c.l.b16 %v499
      %v1836 = vunpack.c.l.b16 %v500
      %v1837 = vunpack.c.l.b16 %v501
      %v1838 = vunpack.c.l.b16 %v502
      %v1839 = vunpack.c.l.b16 %v503
      %v1840 = vunpack.c.l.b16 %v504
      %v1841 = vunpack.c.l.b16 %v505
      %v1842 = vunpack.c.l.b16 %v506
      %v1843 = vunpack.c.l.b16 %v507
      %v1844 = vunpack.c.l.b16 %v508
      %v1845 = vunpack.c.l.b16 %v509
      %v1846 = vunpack.c.l.b16 %v510
      %v1847 = vunpack.c.l.b16 %v511
      %v1848 = vunpack.c.l.b16 %v512
      %v1849 = vunpack.c.l.b16 %v513
      %v1850 = vunpack.c.l.b16 %v514
      %v1851 = vunpack.c.l.b16 %v515
      %v1852 = vunpack.c.l.b16 %v516
      %v1853 = vunpack.c.l.b16 %v517
      %v1854 = vunpack.c.l.b16 %v518
      %v1855 = vunpack.c.l.b16 %v519
      %v1856 = vunpack.c.l.b16 %v520
      %v1857 = vunpack.c.l.b16 %v521
      %v1858 = vunpack.c.l.b16 %v522
      %v1859 = vunpack.c.l.b16 %v523
      %v1860 = vunpack.c.l.b16 %v524
      %v1861 = vunpack.c.l.b16 %v525
      %v1862 = vunpack.c.l.b16 %v526
      %v1863 = vunpack.c.l.b16 %v527
      %v1864 = vunpack.c.l.b16 %v528
      %v1865 = vunpack.c.l.b16 %v529
      %v1866 = vunpack.c.l.b16 %v530
      %v1867 = vunpack.c.l.b16 %v531
      %v1868 = vunpack.c.l.b16 %v532
      %v1869 = vunpack.c.l.b16 %v533
      %v1870 = vunpack.c.l.b16 %v534
      %v1871 = vunpack.c.l.b16 %v535
      %v1872 = vunpack.c.l.b16 %v536
      %v1873 = vunpack.c.l.b16 %v537
      %v1874 = vunpack.c.l.b16 %v538
      %v1875 = vunpack.c.l.b16 %v539
      %v1876 = vunpack.c.l.b16 %v540
      %v1877 = vunpack.c.l.b16 %v541
      %v1878 = vunpack.c.l.b16 %v542
      %v1879 = vunpack.c.l.b16 %v543
      %v1880 = vunpack.c.l.b16 %v544
      %v1881 = vunpack.c.l.b16 %v545
      %v1882 = vunpack.c.l.b16 %v546
      %v1883 = vunpack.c.l.b16 %v547
      %v1884 = vunpack.c.l.b16 %v548
      %v1885 = vunpack.c.l.b16 %v549
      %v1886 = vunpack.c.l.b16 %v550
      %v1887 = vunpack.c.l.b16 %v551
      %v1888 = vunpack.c.l.b16 %v552
      %v1889 = vunpack.c.l.b16 %v553
      %v1890 = vunpack.c.l.b16 %v554
      %v1891 = vunpack.c.l.b16 %v555
      %v1892 = vunpack.c.l.b16 %v556
      %v1893 = vunpack.c.l.b16 %v557
      %v1894 = vunpack.c.l.b16 %v558
      %v1895 = vunpack.c.l.b16 %v559
      %v1896 = vunpack.c.l.b16 %v560
      %v1897 = vunpack.c.l.b16 %v561
      %v1898 = vunpack.c.l.b16 %v562
      %v1899 = vunpack.c.l.b16 %v563
      %v1900 = vpack.c.b16 %v1793, %v1792
      %v1901 = vpack.c.b16 %v1795, %v1794
      %v1902 = vpack.c.b16 %v1797, %v1796
      %v1903 = vpack.c.b16 %v1799, %v1798
      %v1904 = vpack.c.b16 %v1801, %v1800
      %v1905 = vpack.c.b16 %v1803, %v1802
      %v1906 = vpack.c.b16 %v1805, %v1804
      %v1907 = vpack.c.b16 %v1807, %v1806
      %v1908 = vpack.c.b16 %v1809, %v1808
      %v1909 = vpack.c.b16 %v1811, %v1810
      %v1910 = vpack.c.b16 %v1813, %v1812
      %v1911 = vpack.c.b16 %v1815, %v1814
      %v1912 = vpack.c.b16 %v1817, %v1816
      %v1913 = vpack.c.b16 %v1819, %v1818
      %v1914 = vpack.c.b16 %v1821, %v1820
      %v1915 = vpack.c.b16 %v1823, %v1822
      %v1916 = vpack.c.b16 %v1825, %v1824
      %v1917 = vpack.c.b16 %v1827, %v1826
      %v1918 = vpack.c.b16 %v1829, %v1828
      %v1919 = vpack.c.b16 %v1831, %v1830
      %v1920 = vpack.c.b16 %v1833, %v1832
      %v1921 = vpack.c.b16 %v1835, %v1834
      %v1922 = vpack.c.b16 %v1837, %v1836
      %v1923 = vpack.c.b16 %v1839, %v1838
      %v1924 = vpack.c.b16 %v1841, %v1840
      %v1925 = vpack.c.b16 %v1843, %v1842
      %v1926 = vpack.c.b16 %v1845, %v1844
      %v1927 = vpack.c.b16 %v1847, %v1846
      %v1928 = vpack.c.b16 %v1849, %v1848
      %v1929 = vpack.c.b16 %v1851, %v1850
      %v1930 = vpack.c.b16 %v1853, %v1852
      %v1931 = vpack.c.b16 %v1855, %v1854
      %v1932 = vpack.c.b16 %v1857, %v1856
      %v1933 = vpack.c.b16 %v1859, %v1858
      %v1934 = vpack.c.b16 %v1861, %v1860
      %v1935 = vpack.c.b16 %v1863, %v1862
      %v1936 = vpack.c.b16 %v1865, %v1864
      %v1937 = vpack.c.b16 %v1867, %v1866
      %v1938 = vpack.c.b16 %v1869, %v1868
      %v1939 = vpack.c.b16 %v1871, %v1870
      %v1940 = vpack.c.b16 %v1873, %v1872
      %v1941 = vpack.c.b16 %v1875, %v1874
      %v1942 = vpack.c.b16 %v1877, %v1876
      %v1943 = vpack.c.b16 %v1879, %v1878
      %v1944 = vpack.c.b16 %v1881, %v1880
      %v1945 = vpack.c.b16 %v1883, %v1882
      %v1946 = vpack.c.b16 %v1885, %v1884
      %v1947 = vpack.c.b16 %v1887, %v1886
      %v1948 = vpack.c.b16 %v1889, %v1888
      %v1949 = vpack.c.b16 %v1891, %v1890
      %v1950 = vpack.c.b16 %v1893, %v1892
      %v1951 = vpack.c.b16 %v1895, %v1894
      %v1952 = vpack.c.b16 %v1897, %v1896
      %v1953 = vpack.c.b16 %v1899, %v1898
      %vm2008 = vcmask 785408
      %v2010 = vsel %vm2008, %v1274, 0
      %v2013 = vsel %vm2008, %v1281, 0
      %v2016 = vsel %vm2008, %v1288, 0
      %v2019 = vsel %vm2008, %v1295, 0
      %v2022 = vsel %vm2008, %v1302, 0
      %v2025 = vsel %vm2008, %v1309, 0
      %v2028 = vsel %vm2008, %v1316, 0
      %v2031 = vsel %vm2008, %v1323, 0
      %v2034 = vsel %vm2008, %v1330, 0
      %v2037 = vsel %vm2008, %v1337, 0
      %v2040 = vsel %vm2008, %v1344, 0
      %v2043 = vsel %vm2008, %v1351, 0
      %v2046 = vsel %vm2008, %v1358, 0
      %v2049 = vsel %vm2008, %v1365, 0
      %v2052 = vsel %vm2008, %v1372, 0
      %v2055 = vsel %vm2008, %v1379, 0
      %v2058 = vsel %vm2008, %v1386, 0
      %v2061 = vsel %vm2008, %v1393, 0
      %v2064 = vsel %vm2008, %v1400, 0
      %v2067 = vsel %vm2008, %v1407, 0
      %v2070 = vsel %vm2008, %v1414, 0
      %v2073 = vsel %vm2008, %v1421, 0
      %v2076 = vsel %vm2008, %v1428, 0
      %v2079 = vsel %vm2008, %v1435, 0
      %v2082 = vsel %vm2008, %v1442, 0
      %v2085 = vsel %vm2008, %v1449, 0
      %v2088 = vsel %vm2008, %v1456, 0
      %v2091 = vsel %vm2008, %v1463, 0
      %v2094 = vsel %vm2008, %v1470, 0
      %v2097 = vsel %vm2008, %v1477, 0
      %v2100 = vsel %vm2008, %v1484, 0
      %v2103 = vsel %vm2008, %v1491, 0
      %2105 = vmatprep.subr.bf16.mxu0 0
      %2106 = vmatpush1.bf16.msra.mxu0 %v1900
      %2107 = vmatprep.subr.bf16.mxu0 0
      %2108 = vmatpush1.bf16.msra.mxu0 %v1901
      %2109 = vmatprep.subr.bf16.mxu0 0
      %2110 = vmatpush1.bf16.msra.mxu0 %v1902
      %2111 = vmatprep.subr.bf16.mxu0 0
      %2112 = vmatpush1.bf16.msra.mxu0 %v1903
      %2113 = vmatprep.subr.bf16.mxu0 0
      %2114 = vmatpush1.bf16.msra.mxu0 %v1904
      %2115 = vmatprep.subr.bf16.mxu0 0
      %2116 = vmatpush1.bf16.msra.mxu0 %v1905
      %2117 = vmatprep.subr.bf16.mxu0 0
      %2118 = vmatpush1.bf16.msra.mxu0 %v1906
      %2119 = vmatprep.subr.bf16.mxu0 0
      %2120 = vmatpush1.bf16.msra.mxu0 %v1907
      %2121 = vmatprep.subr.bf16.mxu0 0
      %2122 = vmatpush1.bf16.msra.mxu0 %v1908
      %2123 = vmatprep.subr.bf16.mxu0 0
      %2124 = vmatpush1.bf16.msra.mxu0 %v1909
      %2125 = vmatprep.subr.bf16.mxu0 0
      %2126 = vmatpush1.bf16.msra.mxu0 %v1910
      %2127 = vmatprep.subr.bf16.mxu0 0
      %2128 = vmatpush1.bf16.msra.mxu0 %v1911
      %2129 = vmatprep.subr.bf16.mxu0 0
      %2130 = vmatpush1.bf16.msra.mxu0 %v1912
      %2131 = vmatprep.subr.bf16.mxu0 0
      %2132 = vmatpush1.bf16.msra.mxu0 %v1913
      %2133 = vmatprep.subr.bf16.mxu0 0
      %2134 = vmatpush1.bf16.msra.mxu0 %v1914
      %2135 = vmatprep.subr.bf16.mxu0 0
      %2136 = vmatpush1.bf16.msra.mxu0 %v1915
      %2137 = vmatprep.mubr.bf16.mxu0 %v1269
      %2138 = vmatmul.mubr.bf16.gmra.mrb[0].mxu0 %v1268
      %v2139 = vpop.f32.mrb[0].mxu0
      %v2140 = vadd.f32 0.0, %v2139
      %v2141 = vpop.f32.mrb[0].mxu0
      %v2142 = vpop.f32.mrb[0].mxu0
      %v2143 = vadd.f32 0.0, %v2142
      %v2144 = vpop.f32.mrb[0].mxu0
      %2145 = vmatprep.mubr.bf16.mxu0 %v1276
      %2146 = vmatmul.mubr.bf16.gmra.mrb[0].mxu0 %v1275
      %v2147 = vpop.f32.mrb[0].mxu0
      %v2148 = vadd.f32 0.0, %v2147
      %v2149 = vpop.f32.mrb[0].mxu0
      %v2150 = vpop.f32.mrb[0].mxu0
      %v2151 = vadd.f32 0.0, %v2150
      %v2152 = vpop.f32.mrb[0].mxu0
      %2153 = vmatprep.mubr.bf16.mxu0 %v1283
      %2154 = vmatmul.mubr.bf16.gmra.mrb[0].mxu0 %v1282
      %v2155 = vpop.f32.mrb[0].mxu0
      %v2156 = vadd.f32 0.0, %v2155
      %v2157 = vpop.f32.mrb[0].mxu0
      %v2158 = vpop.f32.mrb[0].mxu0
      %v2159 = vadd.f32 0.0, %v2158
      %v2160 = vpop.f32.mrb[0].mxu0
      %2161 = vmatprep.mubr.bf16.mxu0 %v1290
      %2162 = vmatmul.mubr.bf16.gmra.mrb[0].mxu0 %v1289
      %v2163 = vpop.f32.mrb[0].mxu0
      %v2164 = vadd.f32 0.0, %v2163
      %v2165 = vpop.f32.mrb[0].mxu0
      %v2166 = vpop.f32.mrb[0].mxu0
      %v2167 = vadd.f32 0.0, %v2166
      %v2168 = vpop.f32.mrb[0].mxu0
      %2169 = vmatprep.mubr.bf16.mxu0 %v1297
      %2170 = vmatmul.mubr.bf16.gmra.mrb[0].mxu0 %v1296
      %v2171 = vpop.f32.mrb[0].mxu0
      %v2172 = vadd.f32 0.0, %v2171
      %v2173 = vpop.f32.mrb[0].mxu0
      %v2174 = vpop.f32.mrb[0].mxu0
      %v2175 = vadd.f32 0.0, %v2174
      %v2176 = vpop.f32.mrb[0].mxu0
      %2177 = vmatprep.mubr.bf16.mxu0 %v1304
      %2178 = vmatmul.mubr.bf16.gmra.mrb[0].mxu0 %v1303
      %v2179 = vpop.f32.mrb[0].mxu0
      %v2180 = vadd.f32 0.0, %v2179
      %v2181 = vpop.f32.mrb[0].mxu0
      %v2182 = vpop.f32.mrb[0].mxu0
      %v2183 = vadd.f32 0.0, %v2182
      %v2184 = vpop.f32.mrb[0].mxu0
      %2185 = vmatprep.mubr.bf16.mxu0 %v1311
      %2186 = vmatmul.mubr.bf16.gmra.mrb[0].mxu0 %v1310
      %v2187 = vpop.f32.mrb[0].mxu0
      %v2188 = vadd.f32 0.0, %v2187
      %v2189 = vpop.f32.mrb[0].mxu0
      %v2190 = vpop.f32.mrb[0].mxu0
      %v2191 = vadd.f32 0.0, %v2190
      %v2192 = vpop.f32.mrb[0].mxu0
      %2193 = vmatprep.mubr.bf16.mxu0 %v1318
      %2194 = vmatmul.mubr.bf16.gmra.mrb[0].mxu0 %v1317
      %v2195 = vpop.f32.mrb[0].mxu0
      %v2196 = vadd.f32 0.0, %v2195
      %v2197 = vpop.f32.mrb[0].mxu0
      %v2198 = vpop.f32.mrb[0].mxu0
      %v2199 = vadd.f32 0.0, %v2198
      %v2200 = vpop.f32.mrb[0].mxu0
      %2201 = vmatprep.mubr.bf16.mxu0 %v1325
      %2202 = vmatmul.mubr.bf16.gmra.mrb[0].mxu0 %v1324
      %v2203 = vpop.f32.mrb[0].mxu0
      %v2204 = vadd.f32 0.0, %v2203
      %v2205 = vpop.f32.mrb[0].mxu0
      %v2206 = vpop.f32.mrb[0].mxu0
      %v2207 = vadd.f32 0.0, %v2206
      %v2208 = vpop.f32.mrb[0].mxu0
      %2209 = vmatprep.mubr.bf16.mxu0 %v1332
      %2210 = vmatmul.mubr.bf16.gmra.mrb[0].mxu0 %v1331
      %v2211 = vpop.f32.mrb[0].mxu0
      %v2212 = vadd.f32 0.0, %v2211
      %v2213 = vpop.f32.mrb[0].mxu0
      %v2214 = vpop.f32.mrb[0].mxu0
      %v2215 = vadd.f32 0.0, %v2214
      %v2216 = vpop.f32.mrb[0].mxu0
      %2217 = vmatprep.mubr.bf16.mxu0 %v1339
      %2218 = vmatmul.mubr.bf16.gmra.mrb[0].mxu0 %v1338
      %v2219 = vpop.f32.mrb[0].mxu0
      %v2220 = vadd.f32 0.0, %v2219
      %v2221 = vpop.f32.mrb[0].mxu0
      %v2222 = vpop.f32.mrb[0].mxu0
      %v2223 = vadd.f32 0.0, %v2222
      %v2224 = vpop.f32.mrb[0].mxu0
      %2225 = vmatprep.mubr.bf16.mxu0 %v1346
      %2226 = vmatmul.mubr.bf16.gmra.mrb[0].mxu0 %v1345
      %v2227 = vpop.f32.mrb[0].mxu0
      %v2228 = vadd.f32 0.0, %v2227
      %v2229 = vpop.f32.mrb[0].mxu0
      %v2230 = vpop.f32.mrb[0].mxu0
      %v2231 = vadd.f32 0.0, %v2230
      %v2232 = vpop.f32.mrb[0].mxu0
      %2233 = vmatprep.mubr.bf16.mxu0 %v1353
      %2234 = vmatmul.mubr.bf16.gmra.mrb[0].mxu0 %v1352
      %v2235 = vpop.f32.mrb[0].mxu0
      %v2236 = vadd.f32 0.0, %v2235
      %v2237 = vpop.f32.mrb[0].mxu0
      %v2238 = vpop.f32.mrb[0].mxu0
      %v2239 = vadd.f32 0.0, %v2238
      %v2240 = vpop.f32.mrb[0].mxu0
      %2241 = vmatprep.mubr.bf16.mxu0 %v1360
      %2242 = vmatmul.mubr.bf16.gmra.mrb[0].mxu0 %v1359
      %v2243 = vpop.f32.mrb[0].mxu0
      %v2244 = vadd.f32 0.0, %v2243
      %v2245 = vpop.f32.mrb[0].mxu0
      %v2246 = vpop.f32.mrb[0].mxu0
      %v2247 = vadd.f32 0.0, %v2246
      %v2248 = vpop.f32.mrb[0].mxu0
      %2249 = vmatprep.mubr.bf16.mxu0 %v1367
      %2250 = vmatmul.mubr.bf16.gmra.mrb[0].mxu0 %v1366
      %v2251 = vpop.f32.mrb[0].mxu0
      %v2252 = vadd.f32 0.0, %v2251
      %v2253 = vpop.f32.mrb[0].mxu0
      %v2254 = vpop.f32.mrb[0].mxu0
      %v2255 = vadd.f32 0.0, %v2254
      %v2256 = vpop.f32.mrb[0].mxu0
      %2257 = vmatprep.mubr.bf16.mxu0 %v1374
      %2258 = vmatmul.mubr.bf16.gmra.mrb[0].mxu0 %v1373
      %v2259 = vpop.f32.mrb[0].mxu0
      %v2260 = vadd.f32 0.0, %v2259
      %v2261 = vpop.f32.mrb[0].mxu0
      %v2262 = vpop.f32.mrb[0].mxu0
      %v2263 = vadd.f32 0.0, %v2262
      %v2264 = vpop.f32.mrb[0].mxu0
      %2265 = vmatprep.mubr.bf16.mxu0 %v1381
      %2266 = vmatmul.mubr.bf16.gmra.mrb[0].mxu0 %v1380
      %v2267 = vpop.f32.mrb[0].mxu0
      %v2268 = vadd.f32 0.0, %v2267
      %v2269 = vpop.f32.mrb[0].mxu0
      %v2270 = vpop.f32.mrb[0].mxu0
      %v2271 = vadd.f32 0.0, %v2270
      %v2272 = vpop.f32.mrb[0].mxu0
      %2273 = vmatprep.mubr.bf16.mxu0 %v1388
      %2274 = vmatmul.mubr.bf16.gmra.mrb[0].mxu0 %v1387
      %v2275 = vpop.f32.mrb[0].mxu0
      %v2276 = vadd.f32 0.0, %v2275
      %v2277 = vpop.f32.mrb[0].mxu0
      %v2278 = vpop.f32.mrb[0].mxu0
      %v2279 = vadd.f32 0.0, %v2278
      %v2280 = vpop.f32.mrb[0].mxu0
      %2281 = vmatprep.mubr.bf16.mxu0 %v1395
      %2282 = vmatmul.mubr.bf16.gmra.mrb[0].mxu0 %v1394
      %v2283 = vpop.f32.mrb[0].mxu0
      %v2284 = vadd.f32 0.0, %v2283
      %v2285 = vpop.f32.mrb[0].mxu0
      %v2286 = vpop.f32.mrb[0].mxu0
      %v2287 = vadd.f32 0.0, %v2286
      %v2288 = vpop.f32.mrb[0].mxu0
      %2289 = vmatprep.mubr.bf16.mxu0 %v1402
      %2290 = vmatmul.mubr.bf16.gmra.mrb[0].mxu0 %v1401
      %v2291 = vpop.f32.mrb[0].mxu0
      %v2292 = vadd.f32 0.0, %v2291
      %v2293 = vpop.f32.mrb[0].mxu0
      %v2294 = vpop.f32.mrb[0].mxu0
      %v2295 = vadd.f32 0.0, %v2294
      %v2296 = vpop.f32.mrb[0].mxu0
      %2297 = vmatprep.mubr.bf16.mxu0 %v1409
      %2298 = vmatmul.mubr.bf16.gmra.mrb[0].mxu0 %v1408
      %v2299 = vpop.f32.mrb[0].mxu0
      %v2300 = vadd.f32 0.0, %v2299
      %v2301 = vpop.f32.mrb[0].mxu0
      %v2302 = vpop.f32.mrb[0].mxu0
      %v2303 = vadd.f32 0.0, %v2302
      %v2304 = vpop.f32.mrb[0].mxu0
      %2305 = vmatprep.mubr.bf16.mxu0 %v1416
      %2306 = vmatmul.mubr.bf16.gmra.mrb[0].mxu0 %v1415
      %v2307 = vpop.f32.mrb[0].mxu0
      %v2308 = vadd.f32 0.0, %v2307
      %v2309 = vpop.f32.mrb[0].mxu0
      %v2310 = vpop.f32.mrb[0].mxu0
      %v2311 = vadd.f32 0.0, %v2310
      %v2312 = vpop.f32.mrb[0].mxu0
      %2313 = vmatprep.mubr.bf16.mxu0 %v1423
      %2314 = vmatmul.mubr.bf16.gmra.mrb[0].mxu0 %v1422
      %v2315 = vpop.f32.mrb[0].mxu0
      %v2316 = vadd.f32 0.0, %v2315
      %v2317 = vpop.f32.mrb[0].mxu0
      %v2318 = vpop.f32.mrb[0].mxu0
      %v2319 = vadd.f32 0.0, %v2318
      %v2320 = vpop.f32.mrb[0].mxu0
      %2321 = vmatprep.mubr.bf16.mxu0 %v1430
      %2322 = vmatmul.mubr.bf16.gmra.mrb[0].mxu0 %v1429
      %v2323 = vpop.f32.mrb[0].mxu0
      %v2324 = vadd.f32 0.0, %v2323
      %v2325 = vpop.f32.mrb[0].mxu0
      %v2326 = vpop.f32.mrb[0].mxu0
      %v2327 = vadd.f32 0.0, %v2326
      %v2328 = vpop.f32.mrb[0].mxu0
      %2329 = vmatprep.mubr.bf16.mxu0 %v1437
      %2330 = vmatmul.mubr.bf16.gmra.mrb[0].mxu0 %v1436
      %v2331 = vpop.f32.mrb[0].mxu0
      %v2332 = vadd.f32 0.0, %v2331
      %v2333 = vpop.f32.mrb[0].mxu0
      %v2334 = vpop.f32.mrb[0].mxu0
      %v2335 = vadd.f32 0.0, %v2334
      %v2336 = vpop.f32.mrb[0].mxu0
      %2337 = vmatprep.mubr.bf16.mxu0 %v1444
      %2338 = vmatmul.mubr.bf16.gmra.mrb[0].mxu0 %v1443
      %v2339 = vpop.f32.mrb[0].mxu0
      %v2340 = vadd.f32 0.0, %v2339
      %v2341 = vpop.f32.mrb[0].mxu0
      %v2342 = vpop.f32.mrb[0].mxu0
      %v2343 = vadd.f32 0.0, %v2342
      %v2344 = vpop.f32.mrb[0].mxu0
      %2345 = vmatprep.mubr.bf16.mxu0 %v1451
      %2346 = vmatmul.mubr.bf16.gmra.mrb[0].mxu0 %v1450
      %v2347 = vpop.f32.mrb[0].mxu0
      %v2348 = vadd.f32 0.0, %v2347
      %v2349 = vpop.f32.mrb[0].mxu0
      %v2350 = vpop.f32.mrb[0].mxu0
      %v2351 = vadd.f32 0.0, %v2350
      %v2352 = vpop.f32.mrb[0].mxu0
      %2353 = vmatprep.mubr.bf16.mxu0 %v1458
      %2354 = vmatmul.mubr.bf16.gmra.mrb[0].mxu0 %v1457
      %v2355 = vpop.f32.mrb[0].mxu0
      %v2356 = vadd.f32 0.0, %v2355
      %v2357 = vpop.f32.mrb[0].mxu0
      %v2358 = vpop.f32.mrb[0].mxu0
      %v2359 = vadd.f32 0.0, %v2358
      %v2360 = vpop.f32.mrb[0].mxu0
      %2361 = vmatprep.mubr.bf16.mxu0 %v1465
      %2362 = vmatmul.mubr.bf16.gmra.mrb[0].mxu0 %v1464
      %v2363 = vpop.f32.mrb[0].mxu0
      %v2364 = vadd.f32 0.0, %v2363
      %v2365 = vpop.f32.mrb[0].mxu0
      %v2366 = vpop.f32.mrb[0].mxu0
      %v2367 = vadd.f32 0.0, %v2366
      %v2368 = vpop.f32.mrb[0].mxu0
      %2369 = vmatprep.mubr.bf16.mxu0 %v1472
      %2370 = vmatmul.mubr.bf16.gmra.mrb[0].mxu0 %v1471
      %v2371 = vpop.f32.mrb[0].mxu0
      %v2372 = vadd.f32 0.0, %v2371
      %v2373 = vpop.f32.mrb[0].mxu0
      %v2374 = vpop.f32.mrb[0].mxu0
      %v2375 = vadd.f32 0.0, %v2374
      %v2376 = vpop.f32.mrb[0].mxu0
      %2377 = vmatprep.mubr.bf16.mxu0 %v1479
      %2378 = vmatmul.mubr.bf16.gmra.mrb[0].mxu0 %v1478
      %v2379 = vpop.f32.mrb[0].mxu0
      %v2380 = vadd.f32 0.0, %v2379
      %v2381 = vpop.f32.mrb[0].mxu0
      %v2382 = vpop.f32.mrb[0].mxu0
      %v2383 = vadd.f32 0.0, %v2382
      %v2384 = vpop.f32.mrb[0].mxu0
      %2385 = vmatprep.mubr.bf16.mxu0 %v1486
      %2386 = vmatmul.mubr.bf16.gmra.mrb[0].mxu0 %v1485
      %v2387 = vpop.f32.mrb[0].mxu0
      %v2388 = vadd.f32 0.0, %v2387
      %v2389 = vpop.f32.mrb[0].mxu0
      %v2390 = vpop.f32.mrb[0].mxu0
      %v2391 = vadd.f32 0.0, %v2390
      %v2392 = vpop.f32.mrb[0].mxu0
      %2393 = vdwg.mxu0
      %2394 = vmatprep.subr.bf16.mxu0 0
      %2395 = vmatpush1.bf16.msra.mxu0 %v1916
      %2396 = vmatprep.subr.bf16.mxu0 0
      %2397 = vmatpush1.bf16.msra.mxu0 %v1917
      %2398 = vmatprep.subr.bf16.mxu0 0
      %2399 = vmatpush1.bf16.msra.mxu0 %v1918
      %2400 = vmatprep.subr.bf16.mxu0 0
      %2401 = vmatpush1.bf16.msra.mxu0 %v1919
      %2402 = vmatprep.subr.bf16.mxu0 0
      %2403 = vmatpush1.bf16.msra.mxu0 %v1920
      %2404 = vmatprep.subr.bf16.mxu0 0
      %2405 = vmatpush1.bf16.msra.mxu0 %v1921
      %2406 = vmatprep.subr.bf16.mxu0 0
      %2407 = vmatpush1.bf16.msra.mxu0 %v1922
      %2408 = vmatprep.subr.bf16.mxu0 0
      %2409 = vmatpush1.bf16.msra.mxu0 %v1923
      %2410 = vmatprep.subr.bf16.mxu0 0
      %2411 = vmatpush1.bf16.msra.mxu0 %v1924
      %2412 = vmatprep.subr.bf16.mxu0 0
      %2413 = vmatpush1.bf16.msra.mxu0 %v1925
      %2414 = vmatprep.subr.bf16.mxu0 0
      %2415 = vmatpush1.bf16.msra.mxu0 %v1926
      %2416 = vmatprep.subr.bf16.mxu0 0
      %2417 = vmatpush1.bf16.msra.mxu0 %v1927
      %2418 = vmatprep.subr.bf16.mxu0 0
      %2419 = vmatpush1.bf16.msra.mxu0 %v1928
      %2420 = vmatprep.subr.bf16.mxu0 0
      %2421 = vmatpush1.bf16.msra.mxu0 %v1929
      %2422 = vmatprep.subr.bf16.mxu0 0
      %2423 = vmatpush1.bf16.msra.mxu0 %v1930
      %2424 = vmatprep.subr.bf16.mxu0 0
      %2425 = vmatpush1.bf16.msra.mxu0 %v1931
      %2426 = vmatprep.mubr.bf16.mxu0 %v1271
      %2427 = vmatmul.mubr.bf16.gmra.mrb[0].mxu0 %v1270
      %v2428 = vpop.f32.mrb[0].mxu0
      %v2429 = vadd.f32 %v2140, %v2428
      %v2430 = vpop.f32.mrb[0].mxu0
      %v2431 = vpop.f32.mrb[0].mxu0
      %v2432 = vadd.f32 %v2143, %v2431
      %v2433 = vpop.f32.mrb[0].mxu0
      %2434 = vmatprep.mubr.bf16.mxu0 %v1278
      %2435 = vmatmul.mubr.bf16.gmra.mrb[0].mxu0 %v1277
      %v2436 = vpop.f32.mrb[0].mxu0
      %v2437 = vadd.f32 %v2148, %v2436
      %v2438 = vpop.f32.mrb[0].mxu0
      %v2439 = vpop.f32.mrb[0].mxu0
      %v2440 = vadd.f32 %v2151, %v2439
      %v2441 = vpop.f32.mrb[0].mxu0
      %2442 = vmatprep.mubr.bf16.mxu0 %v1285
      %2443 = vmatmul.mubr.bf16.gmra.mrb[0].mxu0 %v1284
      %v2444 = vpop.f32.mrb[0].mxu0
      %v2445 = vadd.f32 %v2156, %v2444
      %v2446 = vpop.f32.mrb[0].mxu0
      %v2447 = vpop.f32.mrb[0].mxu0
      %v2448 = vadd.f32 %v2159, %v2447
      %v2449 = vpop.f32.mrb[0].mxu0
      %2450 = vmatprep.mubr.bf16.mxu0 %v1292
      %2451 = vmatmul.mubr.bf16.gmra.mrb[0].mxu0 %v1291
      %v2452 = vpop.f32.mrb[0].mxu0
      %v2453 = vadd.f32 %v2164, %v2452
      %v2454 = vpop.f32.mrb[0].mxu0
      %v2455 = vpop.f32.mrb[0].mxu0
      %v2456 = vadd.f32 %v2167, %v2455
      %v2457 = vpop.f32.mrb[0].mxu0
      %2458 = vmatprep.mubr.bf16.mxu0 %v1299
      %2459 = vmatmul.mubr.bf16.gmra.mrb[0].mxu0 %v1298
      %v2460 = vpop.f32.mrb[0].mxu0
      %v2461 = vadd.f32 %v2172, %v2460
      %v2462 = vpop.f32.mrb[0].mxu0
      %v2463 = vpop.f32.mrb[0].mxu0
      %v2464 = vadd.f32 %v2175, %v2463
      %v2465 = vpop.f32.mrb[0].mxu0
      %2466 = vmatprep.mubr.bf16.mxu0 %v1306
      %2467 = vmatmul.mubr.bf16.gmra.mrb[0].mxu0 %v1305
      %v2468 = vpop.f32.mrb[0].mxu0
      %v2469 = vadd.f32 %v2180, %v2468
      %v2470 = vpop.f32.mrb[0].mxu0
      %v2471 = vpop.f32.mrb[0].mxu0
      %v2472 = vadd.f32 %v2183, %v2471
      %v2473 = vpop.f32.mrb[0].mxu0
      %2474 = vmatprep.mubr.bf16.mxu0 %v1313
      %2475 = vmatmul.mubr.bf16.gmra.mrb[0].mxu0 %v1312
      %v2476 = vpop.f32.mrb[0].mxu0
      %v2477 = vadd.f32 %v2188, %v2476
      %v2478 = vpop.f32.mrb[0].mxu0
      %v2479 = vpop.f32.mrb[0].mxu0
      %v2480 = vadd.f32 %v2191, %v2479
      %v2481 = vpop.f32.mrb[0].mxu0
      %2482 = vmatprep.mubr.bf16.mxu0 %v1320
      %2483 = vmatmul.mubr.bf16.gmra.mrb[0].mxu0 %v1319
      %v2484 = vpop.f32.mrb[0].mxu0
      %v2485 = vadd.f32 %v2196, %v2484
      %v2486 = vpop.f32.mrb[0].mxu0
      %v2487 = vpop.f32.mrb[0].mxu0
      %v2488 = vadd.f32 %v2199, %v2487
      %v2489 = vpop.f32.mrb[0].mxu0
      %2490 = vmatprep.mubr.bf16.mxu0 %v1327
      %2491 = vmatmul.mubr.bf16.gmra.mrb[0].mxu0 %v1326
      %v2492 = vpop.f32.mrb[0].mxu0
      %v2493 = vadd.f32 %v2204, %v2492
      %v2494 = vpop.f32.mrb[0].mxu0
      %v2495 = vpop.f32.mrb[0].mxu0
      %v2496 = vadd.f32 %v2207, %v2495
      %v2497 = vpop.f32.mrb[0].mxu0
      %2498 = vmatprep.mubr.bf16.mxu0 %v1334
      %2499 = vmatmul.mubr.bf16.gmra.mrb[0].mxu0 %v1333
      %v2500 = vpop.f32.mrb[0].mxu0
      %v2501 = vadd.f32 %v2212, %v2500
      %v2502 = vpop.f32.mrb[0].mxu0
      %v2503 = vpop.f32.mrb[0].mxu0
      %v2504 = vadd.f32 %v2215, %v2503
      %v2505 = vpop.f32.mrb[0].mxu0
      %2506 = vmatprep.mubr.bf16.mxu0 %v1341
      %2507 = vmatmul.mubr.bf16.gmra.mrb[0].mxu0 %v1340
      %v2508 = vpop.f32.mrb[0].mxu0
      %v2509 = vadd.f32 %v2220, %v2508
      %v2510 = vpop.f32.mrb[0].mxu0
      %v2511 = vpop.f32.mrb[0].mxu0
      %v2512 = vadd.f32 %v2223, %v2511
      %v2513 = vpop.f32.mrb[0].mxu0
      %2514 = vmatprep.mubr.bf16.mxu0 %v1348
      %2515 = vmatmul.mubr.bf16.gmra.mrb[0].mxu0 %v1347
      %v2516 = vpop.f32.mrb[0].mxu0
      %v2517 = vadd.f32 %v2228, %v2516
      %v2518 = vpop.f32.mrb[0].mxu0
      %v2519 = vpop.f32.mrb[0].mxu0
      %v2520 = vadd.f32 %v2231, %v2519
      %v2521 = vpop.f32.mrb[0].mxu0
      %2522 = vmatprep.mubr.bf16.mxu0 %v1355
      %2523 = vmatmul.mubr.bf16.gmra.mrb[0].mxu0 %v1354
      %v2524 = vpop.f32.mrb[0].mxu0
      %v2525 = vadd.f32 %v2236, %v2524
      %v2526 = vpop.f32.mrb[0].mxu0
      %v2527 = vpop.f32.mrb[0].mxu0
      %v2528 = vadd.f32 %v2239, %v2527
      %v2529 = vpop.f32.mrb[0].mxu0
      %2530 = vmatprep.mubr.bf16.mxu0 %v1362
      %2531 = vmatmul.mubr.bf16.gmra.mrb[0].mxu0 %v1361
      %v2532 = vpop.f32.mrb[0].mxu0
      %v2533 = vadd.f32 %v2244, %v2532
      %v2534 = vpop.f32.mrb[0].mxu0
      %v2535 = vpop.f32.mrb[0].mxu0
      %v2536 = vadd.f32 %v2247, %v2535
      %v2537 = vpop.f32.mrb[0].mxu0
      %2538 = vmatprep.mubr.bf16.mxu0 %v1369
      %2539 = vmatmul.mubr.bf16.gmra.mrb[0].mxu0 %v1368
      %v2540 = vpop.f32.mrb[0].mxu0
      %v2541 = vadd.f32 %v2252, %v2540
      %v2542 = vpop.f32.mrb[0].mxu0
      %v2543 = vpop.f32.mrb[0].mxu0
      %v2544 = vadd.f32 %v2255, %v2543
      %v2545 = vpop.f32.mrb[0].mxu0
      %2546 = vmatprep.mubr.bf16.mxu0 %v1376
      %2547 = vmatmul.mubr.bf16.gmra.mrb[0].mxu0 %v1375
      %v2548 = vpop.f32.mrb[0].mxu0
      %v2549 = vadd.f32 %v2260, %v2548
      %v2550 = vpop.f32.mrb[0].mxu0
      %v2551 = vpop.f32.mrb[0].mxu0
      %v2552 = vadd.f32 %v2263, %v2551
      %v2553 = vpop.f32.mrb[0].mxu0
      %2554 = vmatprep.mubr.bf16.mxu0 %v1383
      %2555 = vmatmul.mubr.bf16.gmra.mrb[0].mxu0 %v1382
      %v2556 = vpop.f32.mrb[0].mxu0
      %v2557 = vadd.f32 %v2268, %v2556
      %v2558 = vpop.f32.mrb[0].mxu0
      %v2559 = vpop.f32.mrb[0].mxu0
      %v2560 = vadd.f32 %v2271, %v2559
      %v2561 = vpop.f32.mrb[0].mxu0
      %2562 = vmatprep.mubr.bf16.mxu0 %v1390
      %2563 = vmatmul.mubr.bf16.gmra.mrb[0].mxu0 %v1389
      %v2564 = vpop.f32.mrb[0].mxu0
      %v2565 = vadd.f32 %v2276, %v2564
      %v2566 = vpop.f32.mrb[0].mxu0
      %v2567 = vpop.f32.mrb[0].mxu0
      %v2568 = vadd.f32 %v2279, %v2567
      %v2569 = vpop.f32.mrb[0].mxu0
      %2570 = vmatprep.mubr.bf16.mxu0 %v1397
      %2571 = vmatmul.mubr.bf16.gmra.mrb[0].mxu0 %v1396
      %v2572 = vpop.f32.mrb[0].mxu0
      %v2573 = vadd.f32 %v2284, %v2572
      %v2574 = vpop.f32.mrb[0].mxu0
      %v2575 = vpop.f32.mrb[0].mxu0
      %v2576 = vadd.f32 %v2287, %v2575
      %v2577 = vpop.f32.mrb[0].mxu0
      %2578 = vmatprep.mubr.bf16.mxu0 %v1404
      %2579 = vmatmul.mubr.bf16.gmra.mrb[0].mxu0 %v1403
      %v2580 = vpop.f32.mrb[0].mxu0
      %v2581 = vadd.f32 %v2292, %v2580
      %v2582 = vpop.f32.mrb[0].mxu0
      %v2583 = vpop.f32.mrb[0].mxu0
      %v2584 = vadd.f32 %v2295, %v2583
      %v2585 = vpop.f32.mrb[0].mxu0
      %2586 = vmatprep.mubr.bf16.mxu0 %v1411
      %2587 = vmatmul.mubr.bf16.gmra.mrb[0].mxu0 %v1410
      %v2588 = vpop.f32.mrb[0].mxu0
      %v2589 = vadd.f32 %v2300, %v2588
      %v2590 = vpop.f32.mrb[0].mxu0
      %v2591 = vpop.f32.mrb[0].mxu0
      %v2592 = vadd.f32 %v2303, %v2591
      %v2593 = vpop.f32.mrb[0].mxu0
      %2594 = vmatprep.mubr.bf16.mxu0 %v1418
      %2595 = vmatmul.mubr.bf16.gmra.mrb[0].mxu0 %v1417
      %v2596 = vpop.f32.mrb[0].mxu0
      %v2597 = vadd.f32 %v2308, %v2596
      %v2598 = vpop.f32.mrb[0].mxu0
      %v2599 = vpop.f32.mrb[0].mxu0
      %v2600 = vadd.f32 %v2311, %v2599
      %v2601 = vpop.f32.mrb[0].mxu0
      %2602 = vmatprep.mubr.bf16.mxu0 %v1425
      %2603 = vmatmul.mubr.bf16.gmra.mrb[0].mxu0 %v1424
      %v2604 = vpop.f32.mrb[0].mxu0
      %v2605 = vadd.f32 %v2316, %v2604
      %v2606 = vpop.f32.mrb[0].mxu0
      %v2607 = vpop.f32.mrb[0].mxu0
      %v2608 = vadd.f32 %v2319, %v2607
      %v2609 = vpop.f32.mrb[0].mxu0
      %2610 = vmatprep.mubr.bf16.mxu0 %v1432
      %2611 = vmatmul.mubr.bf16.gmra.mrb[0].mxu0 %v1431
      %v2612 = vpop.f32.mrb[0].mxu0
      %v2613 = vadd.f32 %v2324, %v2612
      %v2614 = vpop.f32.mrb[0].mxu0
      %v2615 = vpop.f32.mrb[0].mxu0
      %v2616 = vadd.f32 %v2327, %v2615
      %v2617 = vpop.f32.mrb[0].mxu0
      %2618 = vmatprep.mubr.bf16.mxu0 %v1439
      %2619 = vmatmul.mubr.bf16.gmra.mrb[0].mxu0 %v1438
      %v2620 = vpop.f32.mrb[0].mxu0
      %v2621 = vadd.f32 %v2332, %v2620
      %v2622 = vpop.f32.mrb[0].mxu0
      %v2623 = vpop.f32.mrb[0].mxu0
      %v2624 = vadd.f32 %v2335, %v2623
      %v2625 = vpop.f32.mrb[0].mxu0
      %2626 = vmatprep.mubr.bf16.mxu0 %v1446
      %2627 = vmatmul.mubr.bf16.gmra.mrb[0].mxu0 %v1445
      %v2628 = vpop.f32.mrb[0].mxu0
      %v2629 = vadd.f32 %v2340, %v2628
      %v2630 = vpop.f32.mrb[0].mxu0
      %v2631 = vpop.f32.mrb[0].mxu0
      %v2632 = vadd.f32 %v2343, %v2631
      %v2633 = vpop.f32.mrb[0].mxu0
      %2634 = vmatprep.mubr.bf16.mxu0 %v1453
      %2635 = vmatmul.mubr.bf16.gmra.mrb[0].mxu0 %v1452
      %v2636 = vpop.f32.mrb[0].mxu0
      %v2637 = vadd.f32 %v2348, %v2636
      %v2638 = vpop.f32.mrb[0].mxu0
      %v2639 = vpop.f32.mrb[0].mxu0
      %v2640 = vadd.f32 %v2351, %v2639
      %v2641 = vpop.f32.mrb[0].mxu0
      %2642 = vmatprep.mubr.bf16.mxu0 %v1460
      %2643 = vmatmul.mubr.bf16.gmra.mrb[0].mxu0 %v1459
      %v2644 = vpop.f32.mrb[0].mxu0
      %v2645 = vadd.f32 %v2356, %v2644
      %v2646 = vpop.f32.mrb[0].mxu0
      %v2647 = vpop.f32.mrb[0].mxu0
      %v2648 = vadd.f32 %v2359, %v2647
      %v2649 = vpop.f32.mrb[0].mxu0
      %2650 = vmatprep.mubr.bf16.mxu0 %v1467
      %2651 = vmatmul.mubr.bf16.gmra.mrb[0].mxu0 %v1466
      %v2652 = vpop.f32.mrb[0].mxu0
      %v2653 = vadd.f32 %v2364, %v2652
      %v2654 = vpop.f32.mrb[0].mxu0
      %v2655 = vpop.f32.mrb[0].mxu0
      %v2656 = vadd.f32 %v2367, %v2655
      %v2657 = vpop.f32.mrb[0].mxu0
      %2658 = vmatprep.mubr.bf16.mxu0 %v1474
      %2659 = vmatmul.mubr.bf16.gmra.mrb[0].mxu0 %v1473
      %v2660 = vpop.f32.mrb[0].mxu0
      %v2661 = vadd.f32 %v2372, %v2660
      %v2662 = vpop.f32.mrb[0].mxu0
      %v2663 = vpop.f32.mrb[0].mxu0
      %v2664 = vadd.f32 %v2375, %v2663
      %v2665 = vpop.f32.mrb[0].mxu0
      %2666 = vmatprep.mubr.bf16.mxu0 %v1481
      %2667 = vmatmul.mubr.bf16.gmra.mrb[0].mxu0 %v1480
      %v2668 = vpop.f32.mrb[0].mxu0
      %v2669 = vadd.f32 %v2380, %v2668
      %v2670 = vpop.f32.mrb[0].mxu0
      %v2671 = vpop.f32.mrb[0].mxu0
      %v2672 = vadd.f32 %v2383, %v2671
      %v2673 = vpop.f32.mrb[0].mxu0
      %2674 = vmatprep.mubr.bf16.mxu0 %v1488
      %2675 = vmatmul.mubr.bf16.gmra.mrb[0].mxu0 %v1487
      %v2676 = vpop.f32.mrb[0].mxu0
      %v2677 = vadd.f32 %v2388, %v2676
      %v2678 = vpop.f32.mrb[0].mxu0
      %v2679 = vpop.f32.mrb[0].mxu0
      %v2680 = vadd.f32 %v2391, %v2679
      %v2681 = vpop.f32.mrb[0].mxu0
      %2682 = vdwg.mxu0
      %2683 = vmatprep.subr.bf16.mxu0 0
      %2684 = vmatpush1.bf16.msra.mxu0 %v1932
      %2685 = vmatprep.subr.bf16.mxu0 0
      %2686 = vmatpush1.bf16.msra.mxu0 %v1933
      %2687 = vmatprep.subr.bf16.mxu0 0
      %2688 = vmatpush1.bf16.msra.mxu0 %v1934
      %2689 = vmatprep.subr.bf16.mxu0 0
      %2690 = vmatpush1.bf16.msra.mxu0 %v1935
      %2691 = vmatprep.subr.bf16.mxu0 0
      %2692 = vmatpush1.bf16.msra.mxu0 %v1936
      %2693 = vmatprep.subr.bf16.mxu0 0
      %2694 = vmatpush1.bf16.msra.mxu0 %v1937
      %2695 = vmatprep.subr.bf16.mxu0 0
      %2696 = vmatpush1.bf16.msra.mxu0 %v1938
      %2697 = vmatprep.subr.bf16.mxu0 0
      %2698 = vmatpush1.bf16.msra.mxu0 %v1939
      %2699 = vmatprep.subr.bf16.mxu0 0
      %2700 = vmatpush1.bf16.msra.mxu0 %v1940
      %2701 = vmatprep.subr.bf16.mxu0 0
      %2702 = vmatpush1.bf16.msra.mxu0 %v1941
      %2703 = vmatprep.subr.bf16.mxu0 0
      %2704 = vmatpush1.bf16.msra.mxu0 %v1942
      %2705 = vmatprep.subr.bf16.mxu0 0
      %2706 = vmatpush1.bf16.msra.mxu0 %v1943
      %2707 = vmatprep.subr.bf16.mxu0 0
      %2708 = vmatpush1.bf16.msra.mxu0 %v1944
      %2709 = vmatprep.subr.bf16.mxu0 0
      %2710 = vmatpush1.bf16.msra.mxu0 %v1945
      %2711 = vmatprep.subr.bf16.mxu0 0
      %2712 = vmatpush1.bf16.msra.mxu0 %v1946
      %2713 = vmatprep.subr.bf16.mxu0 0
      %2714 = vmatpush1.bf16.msra.mxu0 %v1947
      %2715 = vmatprep.mubr.bf16.mxu0 %v1273
      %2716 = vmatmul.mubr.bf16.gmra.mrb[0].mxu0 %v1272
      %v2717 = vpop.f32.mrb[0].mxu0
      %v2718 = vadd.f32 %v2429, %v2717
      %v2719 = vpop.f32.mrb[0].mxu0
      %v2720 = vpop.f32.mrb[0].mxu0
      %v2721 = vadd.f32 %v2432, %v2720
      %v2722 = vpop.f32.mrb[0].mxu0
      %2723 = vmatprep.mubr.bf16.mxu0 %v1280
      %2724 = vmatmul.mubr.bf16.gmra.mrb[0].mxu0 %v1279
      %v2725 = vpop.f32.mrb[0].mxu0
      %v2726 = vadd.f32 %v2437, %v2725
      %v2727 = vpop.f32.mrb[0].mxu0
      %v2728 = vpop.f32.mrb[0].mxu0
      %v2729 = vadd.f32 %v2440, %v2728
      %v2730 = vpop.f32.mrb[0].mxu0
      %2731 = vmatprep.mubr.bf16.mxu0 %v1287
      %2732 = vmatmul.mubr.bf16.gmra.mrb[0].mxu0 %v1286
      %v2733 = vpop.f32.mrb[0].mxu0
      %v2734 = vadd.f32 %v2445, %v2733
      %v2735 = vpop.f32.mrb[0].mxu0
      %v2736 = vpop.f32.mrb[0].mxu0
      %v2737 = vadd.f32 %v2448, %v2736
      %v2738 = vpop.f32.mrb[0].mxu0
      %2739 = vmatprep.mubr.bf16.mxu0 %v1294
      %2740 = vmatmul.mubr.bf16.gmra.mrb[0].mxu0 %v1293
      %v2741 = vpop.f32.mrb[0].mxu0
      %v2742 = vadd.f32 %v2453, %v2741
      %v2743 = vpop.f32.mrb[0].mxu0
      %v2744 = vpop.f32.mrb[0].mxu0
      %v2745 = vadd.f32 %v2456, %v2744
      %v2746 = vpop.f32.mrb[0].mxu0
      %2747 = vmatprep.mubr.bf16.mxu0 %v1301
      %2748 = vmatmul.mubr.bf16.gmra.mrb[0].mxu0 %v1300
      %v2749 = vpop.f32.mrb[0].mxu0
      %v2750 = vadd.f32 %v2461, %v2749
      %v2751 = vpop.f32.mrb[0].mxu0
      %v2752 = vpop.f32.mrb[0].mxu0
      %v2753 = vadd.f32 %v2464, %v2752
      %v2754 = vpop.f32.mrb[0].mxu0
      %2755 = vmatprep.mubr.bf16.mxu0 %v1308
      %2756 = vmatmul.mubr.bf16.gmra.mrb[0].mxu0 %v1307
      %v2757 = vpop.f32.mrb[0].mxu0
      %v2758 = vadd.f32 %v2469, %v2757
      %v2759 = vpop.f32.mrb[0].mxu0
      %v2760 = vpop.f32.mrb[0].mxu0
      %v2761 = vadd.f32 %v2472, %v2760
      %v2762 = vpop.f32.mrb[0].mxu0
      %2763 = vmatprep.mubr.bf16.mxu0 %v1315
      %2764 = vmatmul.mubr.bf16.gmra.mrb[0].mxu0 %v1314
      %v2765 = vpop.f32.mrb[0].mxu0
      %v2766 = vadd.f32 %v2477, %v2765
      %v2767 = vpop.f32.mrb[0].mxu0
      %v2768 = vpop.f32.mrb[0].mxu0
      %v2769 = vadd.f32 %v2480, %v2768
      %v2770 = vpop.f32.mrb[0].mxu0
      %2771 = vmatprep.mubr.bf16.mxu0 %v1322
      %2772 = vmatmul.mubr.bf16.gmra.mrb[0].mxu0 %v1321
      %v2773 = vpop.f32.mrb[0].mxu0
      %v2774 = vadd.f32 %v2485, %v2773
      %v2775 = vpop.f32.mrb[0].mxu0
      %v2776 = vpop.f32.mrb[0].mxu0
      %v2777 = vadd.f32 %v2488, %v2776
      %v2778 = vpop.f32.mrb[0].mxu0
      %2779 = vmatprep.mubr.bf16.mxu0 %v1329
      %2780 = vmatmul.mubr.bf16.gmra.mrb[0].mxu0 %v1328
      %v2781 = vpop.f32.mrb[0].mxu0
      %v2782 = vadd.f32 %v2493, %v2781
      %v2783 = vpop.f32.mrb[0].mxu0
      %v2784 = vpop.f32.mrb[0].mxu0
      %v2785 = vadd.f32 %v2496, %v2784
      %v2786 = vpop.f32.mrb[0].mxu0
      %2787 = vmatprep.mubr.bf16.mxu0 %v1336
      %2788 = vmatmul.mubr.bf16.gmra.mrb[0].mxu0 %v1335
      %v2789 = vpop.f32.mrb[0].mxu0
      %v2790 = vadd.f32 %v2501, %v2789
      %v2791 = vpop.f32.mrb[0].mxu0
      %v2792 = vpop.f32.mrb[0].mxu0
      %v2793 = vadd.f32 %v2504, %v2792
      %v2794 = vpop.f32.mrb[0].mxu0
      %2795 = vmatprep.mubr.bf16.mxu0 %v1343
      %2796 = vmatmul.mubr.bf16.gmra.mrb[0].mxu0 %v1342
      %v2797 = vpop.f32.mrb[0].mxu0
      %v2798 = vadd.f32 %v2509, %v2797
      %v2799 = vpop.f32.mrb[0].mxu0
      %v2800 = vpop.f32.mrb[0].mxu0
      %v2801 = vadd.f32 %v2512, %v2800
      %v2802 = vpop.f32.mrb[0].mxu0
      %2803 = vmatprep.mubr.bf16.mxu0 %v1350
      %2804 = vmatmul.mubr.bf16.gmra.mrb[0].mxu0 %v1349
      %v2805 = vpop.f32.mrb[0].mxu0
      %v2806 = vadd.f32 %v2517, %v2805
      %v2807 = vpop.f32.mrb[0].mxu0
      %v2808 = vpop.f32.mrb[0].mxu0
      %v2809 = vadd.f32 %v2520, %v2808
      %v2810 = vpop.f32.mrb[0].mxu0
      %2811 = vmatprep.mubr.bf16.mxu0 %v1357
      %2812 = vmatmul.mubr.bf16.gmra.mrb[0].mxu0 %v1356
      %v2813 = vpop.f32.mrb[0].mxu0
      %v2814 = vadd.f32 %v2525, %v2813
      %v2815 = vpop.f32.mrb[0].mxu0
      %v2816 = vpop.f32.mrb[0].mxu0
      %v2817 = vadd.f32 %v2528, %v2816
      %v2818 = vpop.f32.mrb[0].mxu0
      %2819 = vmatprep.mubr.bf16.mxu0 %v1364
      %2820 = vmatmul.mubr.bf16.gmra.mrb[0].mxu0 %v1363
      %v2821 = vpop.f32.mrb[0].mxu0
      %v2822 = vadd.f32 %v2533, %v2821
      %v2823 = vpop.f32.mrb[0].mxu0
      %v2824 = vpop.f32.mrb[0].mxu0
      %v2825 = vadd.f32 %v2536, %v2824
      %v2826 = vpop.f32.mrb[0].mxu0
      %2827 = vmatprep.mubr.bf16.mxu0 %v1371
      %2828 = vmatmul.mubr.bf16.gmra.mrb[0].mxu0 %v1370
      %v2829 = vpop.f32.mrb[0].mxu0
      %v2830 = vadd.f32 %v2541, %v2829
      %v2831 = vpop.f32.mrb[0].mxu0
      %v2832 = vpop.f32.mrb[0].mxu0
      %v2833 = vadd.f32 %v2544, %v2832
      %v2834 = vpop.f32.mrb[0].mxu0
      %2835 = vmatprep.mubr.bf16.mxu0 %v1378
      %2836 = vmatmul.mubr.bf16.gmra.mrb[0].mxu0 %v1377
      %v2837 = vpop.f32.mrb[0].mxu0
      %v2838 = vadd.f32 %v2549, %v2837
      %v2839 = vpop.f32.mrb[0].mxu0
      %v2840 = vpop.f32.mrb[0].mxu0
      %v2841 = vadd.f32 %v2552, %v2840
      %v2842 = vpop.f32.mrb[0].mxu0
      %2843 = vmatprep.mubr.bf16.mxu0 %v1385
      %2844 = vmatmul.mubr.bf16.gmra.mrb[0].mxu0 %v1384
      %v2845 = vpop.f32.mrb[0].mxu0
      %v2846 = vadd.f32 %v2557, %v2845
      %v2847 = vpop.f32.mrb[0].mxu0
      %v2848 = vpop.f32.mrb[0].mxu0
      %v2849 = vadd.f32 %v2560, %v2848
      %v2850 = vpop.f32.mrb[0].mxu0
      %2851 = vmatprep.mubr.bf16.mxu0 %v1392
      %2852 = vmatmul.mubr.bf16.gmra.mrb[0].mxu0 %v1391
      %v2853 = vpop.f32.mrb[0].mxu0
      %v2854 = vadd.f32 %v2565, %v2853
      %v2855 = vpop.f32.mrb[0].mxu0
      %v2856 = vpop.f32.mrb[0].mxu0
      %v2857 = vadd.f32 %v2568, %v2856
      %v2858 = vpop.f32.mrb[0].mxu0
      %2859 = vmatprep.mubr.bf16.mxu0 %v1399
      %2860 = vmatmul.mubr.bf16.gmra.mrb[0].mxu0 %v1398
      %v2861 = vpop.f32.mrb[0].mxu0
      %v2862 = vadd.f32 %v2573, %v2861
      %v2863 = vpop.f32.mrb[0].mxu0
      %v2864 = vpop.f32.mrb[0].mxu0
      %v2865 = vadd.f32 %v2576, %v2864
      %v2866 = vpop.f32.mrb[0].mxu0
      %2867 = vmatprep.mubr.bf16.mxu0 %v1406
      %2868 = vmatmul.mubr.bf16.gmra.mrb[0].mxu0 %v1405
      %v2869 = vpop.f32.mrb[0].mxu0
      %v2870 = vadd.f32 %v2581, %v2869
      %v2871 = vpop.f32.mrb[0].mxu0
      %v2872 = vpop.f32.mrb[0].mxu0
      %v2873 = vadd.f32 %v2584, %v2872
      %v2874 = vpop.f32.mrb[0].mxu0
      %2875 = vmatprep.mubr.bf16.mxu0 %v1413
      %2876 = vmatmul.mubr.bf16.gmra.mrb[0].mxu0 %v1412
      %v2877 = vpop.f32.mrb[0].mxu0
      %v2878 = vadd.f32 %v2589, %v2877
      %v2879 = vpop.f32.mrb[0].mxu0
      %v2880 = vpop.f32.mrb[0].mxu0
      %v2881 = vadd.f32 %v2592, %v2880
      %v2882 = vpop.f32.mrb[0].mxu0
      %2883 = vmatprep.mubr.bf16.mxu0 %v1420
      %2884 = vmatmul.mubr.bf16.gmra.mrb[0].mxu0 %v1419
      %v2885 = vpop.f32.mrb[0].mxu0
      %v2886 = vadd.f32 %v2597, %v2885
      %v2887 = vpop.f32.mrb[0].mxu0
      %v2888 = vpop.f32.mrb[0].mxu0
      %v2889 = vadd.f32 %v2600, %v2888
      %v2890 = vpop.f32.mrb[0].mxu0
      %2891 = vmatprep.mubr.bf16.mxu0 %v1427
      %2892 = vmatmul.mubr.bf16.gmra.mrb[0].mxu0 %v1426
      %v2893 = vpop.f32.mrb[0].mxu0
      %v2894 = vadd.f32 %v2605, %v2893
      %v2895 = vpop.f32.mrb[0].mxu0
      %v2896 = vpop.f32.mrb[0].mxu0
      %v2897 = vadd.f32 %v2608, %v2896
      %v2898 = vpop.f32.mrb[0].mxu0
      %2899 = vmatprep.mubr.bf16.mxu0 %v1434
      %2900 = vmatmul.mubr.bf16.gmra.mrb[0].mxu0 %v1433
      %v2901 = vpop.f32.mrb[0].mxu0
      %v2902 = vadd.f32 %v2613, %v2901
      %v2903 = vpop.f32.mrb[0].mxu0
      %v2904 = vpop.f32.mrb[0].mxu0
      %v2905 = vadd.f32 %v2616, %v2904
      %v2906 = vpop.f32.mrb[0].mxu0
      %2907 = vmatprep.mubr.bf16.mxu0 %v1441
      %2908 = vmatmul.mubr.bf16.gmra.mrb[0].mxu0 %v1440
      %v2909 = vpop.f32.mrb[0].mxu0
      %v2910 = vadd.f32 %v2621, %v2909
      %v2911 = vpop.f32.mrb[0].mxu0
      %v2912 = vpop.f32.mrb[0].mxu0
      %v2913 = vadd.f32 %v2624, %v2912
      %v2914 = vpop.f32.mrb[0].mxu0
      %2915 = vmatprep.mubr.bf16.mxu0 %v1448
      %2916 = vmatmul.mubr.bf16.gmra.mrb[0].mxu0 %v1447
      %v2917 = vpop.f32.mrb[0].mxu0
      %v2918 = vadd.f32 %v2629, %v2917
      %v2919 = vpop.f32.mrb[0].mxu0
      %v2920 = vpop.f32.mrb[0].mxu0
      %v2921 = vadd.f32 %v2632, %v2920
      %v2922 = vpop.f32.mrb[0].mxu0
      %2923 = vmatprep.mubr.bf16.mxu0 %v1455
      %2924 = vmatmul.mubr.bf16.gmra.mrb[0].mxu0 %v1454
      %v2925 = vpop.f32.mrb[0].mxu0
      %v2926 = vadd.f32 %v2637, %v2925
      %v2927 = vpop.f32.mrb[0].mxu0
      %v2928 = vpop.f32.mrb[0].mxu0
      %v2929 = vadd.f32 %v2640, %v2928
      %v2930 = vpop.f32.mrb[0].mxu0
      %2931 = vmatprep.mubr.bf16.mxu0 %v1462
      %2932 = vmatmul.mubr.bf16.gmra.mrb[0].mxu0 %v1461
      %v2933 = vpop.f32.mrb[0].mxu0
      %v2934 = vadd.f32 %v2645, %v2933
      %v2935 = vpop.f32.mrb[0].mxu0
      %v2936 = vpop.f32.mrb[0].mxu0
      %v2937 = vadd.f32 %v2648, %v2936
      %v2938 = vpop.f32.mrb[0].mxu0
      %2939 = vmatprep.mubr.bf16.mxu0 %v1469
      %2940 = vmatmul.mubr.bf16.gmra.mrb[0].mxu0 %v1468
      %v2941 = vpop.f32.mrb[0].mxu0
      %v2942 = vadd.f32 %v2653, %v2941
      %v2943 = vpop.f32.mrb[0].mxu0
      %v2944 = vpop.f32.mrb[0].mxu0
      %v2945 = vadd.f32 %v2656, %v2944
      %v2946 = vpop.f32.mrb[0].mxu0
      %2947 = vmatprep.mubr.bf16.mxu0 %v1476
      %2948 = vmatmul.mubr.bf16.gmra.mrb[0].mxu0 %v1475
      %v2949 = vpop.f32.mrb[0].mxu0
      %v2950 = vadd.f32 %v2661, %v2949
      %v2951 = vpop.f32.mrb[0].mxu0
      %v2952 = vpop.f32.mrb[0].mxu0
      %v2953 = vadd.f32 %v2664, %v2952
      %v2954 = vpop.f32.mrb[0].mxu0
      %2955 = vmatprep.mubr.bf16.mxu0 %v1483
      %2956 = vmatmul.mubr.bf16.gmra.mrb[0].mxu0 %v1482
      %v2957 = vpop.f32.mrb[0].mxu0
      %v2958 = vadd.f32 %v2669, %v2957
      %v2959 = vpop.f32.mrb[0].mxu0
      %v2960 = vpop.f32.mrb[0].mxu0
      %v2961 = vadd.f32 %v2672, %v2960
      %v2962 = vpop.f32.mrb[0].mxu0
      %2963 = vmatprep.mubr.bf16.mxu0 %v1490
      %2964 = vmatmul.mubr.bf16.gmra.mrb[0].mxu0 %v1489
      %v2965 = vpop.f32.mrb[0].mxu0
      %v2966 = vadd.f32 %v2677, %v2965
      %v2967 = vpop.f32.mrb[0].mxu0
      %v2968 = vpop.f32.mrb[0].mxu0
      %v2969 = vadd.f32 %v2680, %v2968
      %v2970 = vpop.f32.mrb[0].mxu0
      %2971 = vdwg.mxu0
      %2972 = vmatprep.subr.bf16.mxu0 0
      %2973 = vmatpush1.bf16.msra.mxu0 %v1948
      %2974 = vmatprep.subr.bf16.mxu0 0
      %2975 = vmatpush1.bf16.msra.mxu0 %v1949
      %2976 = vmatprep.subr.bf16.mxu0 0
      %2977 = vmatpush1.bf16.msra.mxu0 %v1950
      %2978 = vmatprep.subr.bf16.mxu0 0
      %2979 = vmatpush1.bf16.msra.mxu0 %v1951
      %2980 = vmatprep.subr.bf16.mxu0 0
      %2981 = vmatpush1.bf16.msra.mxu0 %v1952
      %2982 = vmatprep.subr.bf16.mxu0 0
      %2983 = vmatpush1.bf16.msra.mxu0 %v1953
      %2984 = vmatprep.subr.bf16.mxu0 0
      %2985 = vmatpush1.bf16.msra.mxu0 0
      %2986 = vmatprep.subr.bf16.mxu0 0
      %2987 = vmatpush1.bf16.msra.mxu0 0
      %2988 = vmatprep.subr.bf16.mxu0 0
      %2989 = vmatpush1.bf16.msra.mxu0 0
      %2990 = vmatprep.subr.bf16.mxu0 0
      %2991 = vmatpush1.bf16.msra.mxu0 0
      %2992 = vmatprep.subr.bf16.mxu0 0
      %2993 = vmatpush1.bf16.msra.mxu0 0
      %2994 = vmatprep.subr.bf16.mxu0 0
      %2995 = vmatpush1.bf16.msra.mxu0 0
      %2996 = vmatprep.subr.bf16.mxu0 0
      %2997 = vmatpush1.bf16.msra.mxu0 0
      %2998 = vmatprep.subr.bf16.mxu0 0
      %2999 = vmatpush1.bf16.msra.mxu0 0
      %3000 = vmatprep.subr.bf16.mxu0 0
      %3001 = vmatpush1.bf16.msra.mxu0 0
      %3002 = vmatprep.subr.bf16.mxu0 0
      %3003 = vmatpush1.bf16.msra.mxu0 0
      %3004 = vmatprep.mubr.bf16.mxu0 0
      %3005 = vmatmul.mubr.bf16.gmra.mrb[0].mxu0 %v2010
      %v3006 = vpop.f32.mrb[0].mxu0
      %v3007 = vadd.f32 %v2718, %v3006
      %v3008 = vpop.f32.mrb[0].mxu0
      %v3009 = vpop.f32.mrb[0].mxu0
      %v3010 = vadd.f32 %v2721, %v3009
      %v3011 = vpop.f32.mrb[0].mxu0
      %3012 = vmatprep.mubr.bf16.mxu0 0
      %3013 = vmatmul.mubr.bf16.gmra.mrb[0].mxu0 %v2013
      %v3014 = vpop.f32.mrb[0].mxu0
      %v3015 = vadd.f32 %v2726, %v3014
      %v3016 = vpop.f32.mrb[0].mxu0
      %v3017 = vpop.f32.mrb[0].mxu0
      %v3018 = vadd.f32 %v2729, %v3017
      %v3019 = vpop.f32.mrb[0].mxu0
      %3020 = vmatprep.mubr.bf16.mxu0 0
      %3021 = vmatmul.mubr.bf16.gmra.mrb[0].mxu0 %v2016
      %v3022 = vpop.f32.mrb[0].mxu0
      %v3023 = vadd.f32 %v2734, %v3022
      %v3024 = vpop.f32.mrb[0].mxu0
      %v3025 = vpop.f32.mrb[0].mxu0
      %v3026 = vadd.f32 %v2737, %v3025
      %v3027 = vpop.f32.mrb[0].mxu0
      %3028 = vmatprep.mubr.bf16.mxu0 0
      %3029 = vmatmul.mubr.bf16.gmra.mrb[0].mxu0 %v2019
      %v3030 = vpop.f32.mrb[0].mxu0
      %v3031 = vadd.f32 %v2742, %v3030
      %v3032 = vpop.f32.mrb[0].mxu0
      %v3033 = vpop.f32.mrb[0].mxu0
      %v3034 = vadd.f32 %v2745, %v3033
      %v3035 = vpop.f32.mrb[0].mxu0
      %3036 = vmatprep.mubr.bf16.mxu0 0
      %3037 = vmatmul.mubr.bf16.gmra.mrb[0].mxu0 %v2022
      %v3038 = vpop.f32.mrb[0].mxu0
      %v3039 = vadd.f32 %v2750, %v3038
      %v3040 = vpop.f32.mrb[0].mxu0
      %v3041 = vpop.f32.mrb[0].mxu0
      %v3042 = vadd.f32 %v2753, %v3041
      %v3043 = vpop.f32.mrb[0].mxu0
      %3044 = vmatprep.mubr.bf16.mxu0 0
      %3045 = vmatmul.mubr.bf16.gmra.mrb[0].mxu0 %v2025
      %v3046 = vpop.f32.mrb[0].mxu0
      %v3047 = vadd.f32 %v2758, %v3046
      %v3048 = vpop.f32.mrb[0].mxu0
      %v3049 = vpop.f32.mrb[0].mxu0
      %v3050 = vadd.f32 %v2761, %v3049
      %v3051 = vpop.f32.mrb[0].mxu0
      %3052 = vmatprep.mubr.bf16.mxu0 0
      %3053 = vmatmul.mubr.bf16.gmra.mrb[0].mxu0 %v2028
      %v3054 = vpop.f32.mrb[0].mxu0
      %v3055 = vadd.f32 %v2766, %v3054
      %v3056 = vpop.f32.mrb[0].mxu0
      %v3057 = vpop.f32.mrb[0].mxu0
      %v3058 = vadd.f32 %v2769, %v3057
      %v3059 = vpop.f32.mrb[0].mxu0
      %3060 = vmatprep.mubr.bf16.mxu0 0
      %3061 = vmatmul.mubr.bf16.gmra.mrb[0].mxu0 %v2031
      %v3062 = vpop.f32.mrb[0].mxu0
      %v3063 = vadd.f32 %v2774, %v3062
      %v3064 = vpop.f32.mrb[0].mxu0
      %v3065 = vpop.f32.mrb[0].mxu0
      %v3066 = vadd.f32 %v2777, %v3065
      %v3067 = vpop.f32.mrb[0].mxu0
      %3068 = vmatprep.mubr.bf16.mxu0 0
      %3069 = vmatmul.mubr.bf16.gmra.mrb[0].mxu0 %v2034
      %v3070 = vpop.f32.mrb[0].mxu0
      %v3071 = vadd.f32 %v2782, %v3070
      %v3072 = vpop.f32.mrb[0].mxu0
      %v3073 = vpop.f32.mrb[0].mxu0
      %v3074 = vadd.f32 %v2785, %v3073
      %v3075 = vpop.f32.mrb[0].mxu0
      %3076 = vmatprep.mubr.bf16.mxu0 0
      %3077 = vmatmul.mubr.bf16.gmra.mrb[0].mxu0 %v2037
      %v3078 = vpop.f32.mrb[0].mxu0
      %v3079 = vadd.f32 %v2790, %v3078
      %v3080 = vpop.f32.mrb[0].mxu0
      %v3081 = vpop.f32.mrb[0].mxu0
      %v3082 = vadd.f32 %v2793, %v3081
      %v3083 = vpop.f32.mrb[0].mxu0
      %3084 = vmatprep.mubr.bf16.mxu0 0
      %3085 = vmatmul.mubr.bf16.gmra.mrb[0].mxu0 %v2040
      %v3086 = vpop.f32.mrb[0].mxu0
      %v3087 = vadd.f32 %v2798, %v3086
      %v3088 = vpop.f32.mrb[0].mxu0
      %v3089 = vpop.f32.mrb[0].mxu0
      %v3090 = vadd.f32 %v2801, %v3089
      %v3091 = vpop.f32.mrb[0].mxu0
      %3092 = vmatprep.mubr.bf16.mxu0 0
      %3093 = vmatmul.mubr.bf16.gmra.mrb[0].mxu0 %v2043
      %v3094 = vpop.f32.mrb[0].mxu0
      %v3095 = vadd.f32 %v2806, %v3094
      %v3096 = vpop.f32.mrb[0].mxu0
      %v3097 = vpop.f32.mrb[0].mxu0
      %v3098 = vadd.f32 %v2809, %v3097
      %v3099 = vpop.f32.mrb[0].mxu0
      %3100 = vmatprep.mubr.bf16.mxu0 0
      %3101 = vmatmul.mubr.bf16.gmra.mrb[0].mxu0 %v2046
      %v3102 = vpop.f32.mrb[0].mxu0
      %v3103 = vadd.f32 %v2814, %v3102
      %v3104 = vpop.f32.mrb[0].mxu0
      %v3105 = vpop.f32.mrb[0].mxu0
      %v3106 = vadd.f32 %v2817, %v3105
      %v3107 = vpop.f32.mrb[0].mxu0
      %3108 = vmatprep.mubr.bf16.mxu0 0
      %3109 = vmatmul.mubr.bf16.gmra.mrb[0].mxu0 %v2049
      %v3110 = vpop.f32.mrb[0].mxu0
      %v3111 = vadd.f32 %v2822, %v3110
      %v3112 = vpop.f32.mrb[0].mxu0
      %v3113 = vpop.f32.mrb[0].mxu0
      %v3114 = vadd.f32 %v2825, %v3113
      %v3115 = vpop.f32.mrb[0].mxu0
      %3116 = vmatprep.mubr.bf16.mxu0 0
      %3117 = vmatmul.mubr.bf16.gmra.mrb[0].mxu0 %v2052
      %v3118 = vpop.f32.mrb[0].mxu0
      %v3119 = vadd.f32 %v2830, %v3118
      %v3120 = vpop.f32.mrb[0].mxu0
      %v3121 = vpop.f32.mrb[0].mxu0
      %v3122 = vadd.f32 %v2833, %v3121
      %v3123 = vpop.f32.mrb[0].mxu0
      %3124 = vmatprep.mubr.bf16.mxu0 0
      %3125 = vmatmul.mubr.bf16.gmra.mrb[0].mxu0 %v2055
      %v3126 = vpop.f32.mrb[0].mxu0
      %v3127 = vadd.f32 %v2838, %v3126
      %v3128 = vpop.f32.mrb[0].mxu0
      %v3129 = vpop.f32.mrb[0].mxu0
      %v3130 = vadd.f32 %v2841, %v3129
      %v3131 = vpop.f32.mrb[0].mxu0
      %3132 = vmatprep.mubr.bf16.mxu0 0
      %3133 = vmatmul.mubr.bf16.gmra.mrb[0].mxu0 %v2058
      %v3134 = vpop.f32.mrb[0].mxu0
      %v3135 = vadd.f32 %v2846, %v3134
      %v3136 = vpop.f32.mrb[0].mxu0
      %v3137 = vpop.f32.mrb[0].mxu0
      %v3138 = vadd.f32 %v2849, %v3137
      %v3139 = vpop.f32.mrb[0].mxu0
      %3140 = vmatprep.mubr.bf16.mxu0 0
      %3141 = vmatmul.mubr.bf16.gmra.mrb[0].mxu0 %v2061
      %v3142 = vpop.f32.mrb[0].mxu0
      %v3143 = vadd.f32 %v2854, %v3142
      %v3144 = vpop.f32.mrb[0].mxu0
      %v3145 = vpop.f32.mrb[0].mxu0
      %v3146 = vadd.f32 %v2857, %v3145
      %v3147 = vpop.f32.mrb[0].mxu0
      %3148 = vmatprep.mubr.bf16.mxu0 0
      %3149 = vmatmul.mubr.bf16.gmra.mrb[0].mxu0 %v2064
      %v3150 = vpop.f32.mrb[0].mxu0
      %v3151 = vadd.f32 %v2862, %v3150
      %v3152 = vpop.f32.mrb[0].mxu0
      %v3153 = vpop.f32.mrb[0].mxu0
      %v3154 = vadd.f32 %v2865, %v3153
      %v3155 = vpop.f32.mrb[0].mxu0
      %3156 = vmatprep.mubr.bf16.mxu0 0
      %3157 = vmatmul.mubr.bf16.gmra.mrb[0].mxu0 %v2067
      %v3158 = vpop.f32.mrb[0].mxu0
      %v3159 = vadd.f32 %v2870, %v3158
      %v3160 = vpop.f32.mrb[0].mxu0
      %v3161 = vpop.f32.mrb[0].mxu0
      %v3162 = vadd.f32 %v2873, %v3161
      %v3163 = vpop.f32.mrb[0].mxu0
      %3164 = vmatprep.mubr.bf16.mxu0 0
      %3165 = vmatmul.mubr.bf16.gmra.mrb[0].mxu0 %v2070
      %v3166 = vpop.f32.mrb[0].mxu0
      %v3167 = vadd.f32 %v2878, %v3166
      %v3168 = vpop.f32.mrb[0].mxu0
      %v3169 = vpop.f32.mrb[0].mxu0
      %v3170 = vadd.f32 %v2881, %v3169
      %v3171 = vpop.f32.mrb[0].mxu0
      %3172 = vmatprep.mubr.bf16.mxu0 0
      %3173 = vmatmul.mubr.bf16.gmra.mrb[0].mxu0 %v2073
      %v3174 = vpop.f32.mrb[0].mxu0
      %v3175 = vadd.f32 %v2886, %v3174
      %v3176 = vpop.f32.mrb[0].mxu0
      %v3177 = vpop.f32.mrb[0].mxu0
      %v3178 = vadd.f32 %v2889, %v3177
      %v3179 = vpop.f32.mrb[0].mxu0
      %3180 = vmatprep.mubr.bf16.mxu0 0
      %3181 = vmatmul.mubr.bf16.gmra.mrb[0].mxu0 %v2076
      %v3182 = vpop.f32.mrb[0].mxu0
      %v3183 = vadd.f32 %v2894, %v3182
      %v3184 = vpop.f32.mrb[0].mxu0
      %v3185 = vpop.f32.mrb[0].mxu0
      %v3186 = vadd.f32 %v2897, %v3185
      %v3187 = vpop.f32.mrb[0].mxu0
      %3188 = vmatprep.mubr.bf16.mxu0 0
      %3189 = vmatmul.mubr.bf16.gmra.mrb[0].mxu0 %v2079
      %v3190 = vpop.f32.mrb[0].mxu0
      %v3191 = vadd.f32 %v2902, %v3190
      %v3192 = vpop.f32.mrb[0].mxu0
      %v3193 = vpop.f32.mrb[0].mxu0
      %v3194 = vadd.f32 %v2905, %v3193
      %v3195 = vpop.f32.mrb[0].mxu0
      %3196 = vmatprep.mubr.bf16.mxu0 0
      %3197 = vmatmul.mubr.bf16.gmra.mrb[0].mxu0 %v2082
      %v3198 = vpop.f32.mrb[0].mxu0
      %v3199 = vadd.f32 %v2910, %v3198
      %v3200 = vpop.f32.mrb[0].mxu0
      %v3201 = vpop.f32.mrb[0].mxu0
      %v3202 = vadd.f32 %v2913, %v3201
      %v3203 = vpop.f32.mrb[0].mxu0
      %3204 = vmatprep.mubr.bf16.mxu0 0
      %3205 = vmatmul.mubr.bf16.gmra.mrb[0].mxu0 %v2085
      %v3206 = vpop.f32.mrb[0].mxu0
      %v3207 = vadd.f32 %v2918, %v3206
      %v3208 = vpop.f32.mrb[0].mxu0
      %v3209 = vpop.f32.mrb[0].mxu0
      %v3210 = vadd.f32 %v2921, %v3209
      %v3211 = vpop.f32.mrb[0].mxu0
      %3212 = vmatprep.mubr.bf16.mxu0 0
      %3213 = vmatmul.mubr.bf16.gmra.mrb[0].mxu0 %v2088
      %v3214 = vpop.f32.mrb[0].mxu0
      %v3215 = vadd.f32 %v2926, %v3214
      %v3216 = vpop.f32.mrb[0].mxu0
      %v3217 = vpop.f32.mrb[0].mxu0
      %v3218 = vadd.f32 %v2929, %v3217
      %v3219 = vpop.f32.mrb[0].mxu0
      %3220 = vmatprep.mubr.bf16.mxu0 0
      %3221 = vmatmul.mubr.bf16.gmra.mrb[0].mxu0 %v2091
      %v3222 = vpop.f32.mrb[0].mxu0
      %v3223 = vadd.f32 %v2934, %v3222
      %v3224 = vpop.f32.mrb[0].mxu0
      %v3225 = vpop.f32.mrb[0].mxu0
      %v3226 = vadd.f32 %v2937, %v3225
      %v3227 = vpop.f32.mrb[0].mxu0
      %3228 = vmatprep.mubr.bf16.mxu0 0
      %3229 = vmatmul.mubr.bf16.gmra.mrb[0].mxu0 %v2094
      %v3230 = vpop.f32.mrb[0].mxu0
      %v3231 = vadd.f32 %v2942, %v3230
      %v3232 = vpop.f32.mrb[0].mxu0
      %v3233 = vpop.f32.mrb[0].mxu0
      %v3234 = vadd.f32 %v2945, %v3233
      %v3235 = vpop.f32.mrb[0].mxu0
      %3236 = vmatprep.mubr.bf16.mxu0 0
      %3237 = vmatmul.mubr.bf16.gmra.mrb[0].mxu0 %v2097
      %v3238 = vpop.f32.mrb[0].mxu0
      %v3239 = vadd.f32 %v2950, %v3238
      %v3240 = vpop.f32.mrb[0].mxu0
      %v3241 = vpop.f32.mrb[0].mxu0
      %v3242 = vadd.f32 %v2953, %v3241
      %v3243 = vpop.f32.mrb[0].mxu0
      %3244 = vmatprep.mubr.bf16.mxu0 0
      %3245 = vmatmul.mubr.bf16.gmra.mrb[0].mxu0 %v2100
      %v3246 = vpop.f32.mrb[0].mxu0
      %v3247 = vadd.f32 %v2958, %v3246
      %v3248 = vpop.f32.mrb[0].mxu0
      %v3249 = vpop.f32.mrb[0].mxu0
      %v3250 = vadd.f32 %v2961, %v3249
      %v3251 = vpop.f32.mrb[0].mxu0
      %3252 = vmatprep.mubr.bf16.mxu0 0
      %3253 = vmatmul.mubr.bf16.gmra.mrb[0].mxu0 %v2103
      %v3254 = vpop.f32.mrb[0].mxu0
      %v3255 = vadd.f32 %v2966, %v3254
      %v3256 = vpop.f32.mrb[0].mxu0
      %v3257 = vpop.f32.mrb[0].mxu0
      %v3258 = vadd.f32 %v2969, %v3257
      %v3259 = vpop.f32.mrb[0].mxu0
      %3260 = vdwg.mxu0
      %vm3261 = vcmask 261120
      %3262 = vst.msk [vmem:[%s197] sm:$0xff] %vm3261, %v3007
      %3263 = vst.msk [vmem:[%s197 + $0x8] sm:$0xff] %vm3261, %v3010
      %3264 = vst.msk [vmem:[%s197 + $0x10] sm:$0xff] %vm3261, %v3015
      %3265 = vst.msk [vmem:[%s197 + $0x18] sm:$0xff] %vm3261, %v3018
      %3266 = vst.msk [vmem:[%s197 + $0x20] sm:$0xff] %vm3261, %v3023
      %3267 = vst.msk [vmem:[%s197 + $0x28] sm:$0xff] %vm3261, %v3026
      %3268 = vst.msk [vmem:[%s197 + $0x30] sm:$0xff] %vm3261, %v3031
      %3269 = vst.msk [vmem:[%s197 + $0x38] sm:$0xff] %vm3261, %v3034
      %3270 = vst.msk [vmem:[%s197 + $0x40] sm:$0xff] %vm3261, %v3039
      %3271 = vst.msk [vmem:[%s197 + $0x48] sm:$0xff] %vm3261, %v3042
      %3272 = vst.msk [vmem:[%s197 + $0x50] sm:$0xff] %vm3261, %v3047
      %3273 = vst.msk [vmem:[%s197 + $0x58] sm:$0xff] %vm3261, %v3050
      %3274 = vst.msk [vmem:[%s197 + $0x60] sm:$0xff] %vm3261, %v3055
      %3275 = vst.msk [vmem:[%s197 + $0x68] sm:$0xff] %vm3261, %v3058
      %3276 = vst.msk [vmem:[%s197 + $0x70] sm:$0xff] %vm3261, %v3063
      %3277 = vst.msk [vmem:[%s197 + $0x78] sm:$0xff] %vm3261, %v3066
      %3278 = vst.msk [vmem:[%s197 + $0x80] sm:$0xff] %vm3261, %v3071
      %3279 = vst.msk [vmem:[%s197 + $0x88] sm:$0xff] %vm3261, %v3074
      %3280 = vst.msk [vmem:[%s197 + $0x90] sm:$0xff] %vm3261, %v3079
      %3281 = vst.msk [vmem:[%s197 + $0x98] sm:$0xff] %vm3261, %v3082
      %3282 = vst.msk [vmem:[%s197 + $0xa0] sm:$0xff] %vm3261, %v3087
      %3283 = vst.msk [vmem:[%s197 + $0xa8] sm:$0xff] %vm3261, %v3090
      %3284 = vst.msk [vmem:[%s197 + $0xb0] sm:$0xff] %vm3261, %v3095
      %3285 = vst.msk [vmem:[%s197 + $0xb8] sm:$0xff] %vm3261, %v3098
      %3286 = vst.msk [vmem:[%s197 + $0xc0] sm:$0xff] %vm3261, %v3103
      %3287 = vst.msk [vmem:[%s197 + $0xc8] sm:$0xff] %vm3261, %v3106
      %3288 = vst.msk [vmem:[%s197 + $0xd0] sm:$0xff] %vm3261, %v3111
      %3289 = vst.msk [vmem:[%s197 + $0xd8] sm:$0xff] %vm3261, %v3114
      %3290 = vst.msk [vmem:[%s197 + $0xe0] sm:$0xff] %vm3261, %v3119
      %3291 = vst.msk [vmem:[%s197 + $0xe8] sm:$0xff] %vm3261, %v3122
      %3292 = vst.msk [vmem:[%s197 + $0xf0] sm:$0xff] %vm3261, %v3127
      %3293 = vst.msk [vmem:[%s197 + $0xf8] sm:$0xff] %vm3261, %v3130
      %3294 = vst.msk [vmem:[%s197 + $0x100] sm:$0xff] %vm3261, %v3135
      %3295 = vst.msk [vmem:[%s197 + $0x108] sm:$0xff] %vm3261, %v3138
      %3296 = vst.msk [vmem:[%s197 + $0x110] sm:$0xff] %vm3261, %v3143
      %3297 = vst.msk [vmem:[%s197 + $0x118] sm:$0xff] %vm3261, %v3146
      %3298 = vst.msk [vmem:[%s197 + $0x120] sm:$0xff] %vm3261, %v3151
      %3299 = vst.msk [vmem:[%s197 + $0x128] sm:$0xff] %vm3261, %v3154
      %3300 = vst.msk [vmem:[%s197 + $0x130] sm:$0xff] %vm3261, %v3159
      %3301 = vst.msk [vmem:[%s197 + $0x138] sm:$0xff] %vm3261, %v3162
      %3302 = vst.msk [vmem:[%s197 + $0x140] sm:$0xff] %vm3261, %v3167
      %3303 = vst.msk [vmem:[%s197 + $0x148] sm:$0xff] %vm3261, %v3170
      %3304 = vst.msk [vmem:[%s197 + $0x150] sm:$0xff] %vm3261, %v3175
      %3305 = vst.msk [vmem:[%s197 + $0x158] sm:$0xff] %vm3261, %v3178
      %3306 = vst.msk [vmem:[%s197 + $0x160] sm:$0xff] %vm3261, %v3183
      %3307 = vst.msk [vmem:[%s197 + $0x168] sm:$0xff] %vm3261, %v3186
      %3308 = vst.msk [vmem:[%s197 + $0x170] sm:$0xff] %vm3261, %v3191
      %3309 = vst.msk [vmem:[%s197 + $0x178] sm:$0xff] %vm3261, %v3194
      %3310 = vst.msk [vmem:[%s197 + $0x180] sm:$0xff] %vm3261, %v3199
      %3311 = vst.msk [vmem:[%s197 + $0x188] sm:$0xff] %vm3261, %v3202
      %3312 = vst.msk [vmem:[%s197 + $0x190] sm:$0xff] %vm3261, %v3207
      %3313 = vst.msk [vmem:[%s197 + $0x198] sm:$0xff] %vm3261, %v3210
      %3314 = vst.msk [vmem:[%s197 + $0x1a0] sm:$0xff] %vm3261, %v3215
      %3315 = vst.msk [vmem:[%s197 + $0x1a8] sm:$0xff] %vm3261, %v3218
      %3316 = vst.msk [vmem:[%s197 + $0x1b0] sm:$0xff] %vm3261, %v3223
      %3317 = vst.msk [vmem:[%s197 + $0x1b8] sm:$0xff] %vm3261, %v3226
      %3318 = vst.msk [vmem:[%s197 + $0x1c0] sm:$0xff] %vm3261, %v3231
      %3319 = vst.msk [vmem:[%s197 + $0x1c8] sm:$0xff] %vm3261, %v3234
      %3320 = vst.msk [vmem:[%s197 + $0x1d0] sm:$0xff] %vm3261, %v3239
      %3321 = vst.msk [vmem:[%s197 + $0x1d8] sm:$0xff] %vm3261, %v3242
      %3322 = vst.msk [vmem:[%s197 + $0x1e0] sm:$0xff] %vm3261, %v3247
      %3323 = vst.msk [vmem:[%s197 + $0x1e8] sm:$0xff] %vm3261, %v3250
      %3324 = vst.msk [vmem:[%s197 + $0x1f0] sm:$0xff] %vm3261, %v3255
      %3325 = vst.msk [vmem:[%s197 + $0x1f8] sm:$0xff] %vm3261, %v3258
      %p3326 = scmp.eq.s32.totalorder %s16, 0
      // Predicated region
      $region29: #{unet_block_forward.6} parent=27 // pred_check
        %p3327 = pneg %p3326
      $region30: #{unet_block_forward.6} parent=27 // pred_check_branch
        %3329 = sbr.rel (%p3327) target = $region32
      $region31: #{unet_block_forward.6} parent=27 // pred_region
        %vm3330 = vcmask 253952
        %3331 = vst.msk [vmem:[%s3] sm:$0x1] %vm3330, 0.0
        %3332 = vst.msk [vmem:[%s4] sm:$0x1] %vm3330, 0.0
      $region32: #{unet_block_forward.6} parent=27 // pred_fallthru
        _
      %v3333 = vld [vmem:[%s3] sm:$0x1]
      %v3334 = vsel %vm3261, %v3007, 0.0
      %v3335 = vsel %vm3261, %v3010, 0.0
      %v3336 = vadd.f32 %v3334, %v3335
      %v3337 = vsel %vm3261, %v3015, 0.0
      %v3338 = vadd.f32 %v3336, %v3337
      %v3339 = vsel %vm3261, %v3018, 0.0
      %v3340 = vadd.f32 %v3338, %v3339
      %v3341 = vsel %vm3261, %v3023, 0.0
      %v3342 = vadd.f32 %v3340, %v3341
      %v3343 = vsel %vm3261, %v3026, 0.0
      %v3344 = vadd.f32 %v3342, %v3343
      %v3345 = vsel %vm3261, %v3031, 0.0
      %v3346 = vadd.f32 %v3344, %v3345
      %v3347 = vsel %vm3261, %v3034, 0.0
      %v3348 = vadd.f32 %v3346, %v3347
      %v3349 = vsel %vm3261, %v3039, 0.0
      %v3350 = vadd.f32 %v3348, %v3349
      %v3351 = vsel %vm3261, %v3042, 0.0
      %v3352 = vadd.f32 %v3350, %v3351
      %v3353 = vsel %vm3261, %v3047, 0.0
      %v3354 = vadd.f32 %v3352, %v3353
      %v3355 = vsel %vm3261, %v3050, 0.0
      %v3356 = vadd.f32 %v3354, %v3355
      %v3357 = vsel %vm3261, %v3055, 0.0
      %v3358 = vadd.f32 %v3356, %v3357
      %v3359 = vsel %vm3261, %v3058, 0.0
      %v3360 = vadd.f32 %v3358, %v3359
      %v3361 = vsel %vm3261, %v3063, 0.0
      %v3362 = vadd.f32 %v3360, %v3361
      %v3363 = vsel %vm3261, %v3066, 0.0
      %v3364 = vadd.f32 %v3362, %v3363
      %v3365 = vsel %vm3261, %v3071, 0.0
      %v3366 = vadd.f32 %v3364, %v3365
      %v3367 = vsel %vm3261, %v3074, 0.0
      %v3368 = vadd.f32 %v3366, %v3367
      %v3369 = vsel %vm3261, %v3079, 0.0
      %v3370 = vadd.f32 %v3368, %v3369
      %v3371 = vsel %vm3261, %v3082, 0.0
      %v3372 = vadd.f32 %v3370, %v3371
      %v3373 = vsel %vm3261, %v3087, 0.0
      %v3374 = vadd.f32 %v3372, %v3373
      %v3375 = vsel %vm3261, %v3090, 0.0
      %v3376 = vadd.f32 %v3374, %v3375
      %v3377 = vsel %vm3261, %v3095, 0.0
      %v3378 = vadd.f32 %v3376, %v3377
      %v3379 = vsel %vm3261, %v3098, 0.0
      %v3380 = vadd.f32 %v3378, %v3379
      %v3381 = vsel %vm3261, %v3103, 0.0
      %v3382 = vadd.f32 %v3380, %v3381
      %v3383 = vsel %vm3261, %v3106, 0.0
      %v3384 = vadd.f32 %v3382, %v3383
      %v3385 = vsel %vm3261, %v3111, 0.0
      %v3386 = vadd.f32 %v3384, %v3385
      %v3387 = vsel %vm3261, %v3114, 0.0
      %v3388 = vadd.f32 %v3386, %v3387
      %v3389 = vsel %vm3261, %v3119, 0.0
      %v3390 = vadd.f32 %v3388, %v3389
      %v3391 = vsel %vm3261, %v3122, 0.0
      %v3392 = vadd.f32 %v3390, %v3391
      %v3393 = vsel %vm3261, %v3127, 0.0
      %v3394 = vadd.f32 %v3392, %v3393
      %v3395 = vsel %vm3261, %v3130, 0.0
      %v3396 = vadd.f32 %v3394, %v3395
      %v3397 = vsel %vm3261, %v3135, 0.0
      %v3398 = vadd.f32 %v3396, %v3397
      %v3399 = vsel %vm3261, %v3138, 0.0
      %v3400 = vadd.f32 %v3398, %v3399
      %v3401 = vsel %vm3261, %v3143, 0.0
      %v3402 = vadd.f32 %v3400, %v3401
      %v3403 = vsel %vm3261, %v3146, 0.0
      %v3404 = vadd.f32 %v3402, %v3403
      %v3405 = vsel %vm3261, %v3151, 0.0
      %v3406 = vadd.f32 %v3404, %v3405
      %v3407 = vsel %vm3261, %v3154, 0.0
      %v3408 = vadd.f32 %v3406, %v3407
      %v3409 = vsel %vm3261, %v3159, 0.0
      %v3410 = vadd.f32 %v3408, %v3409
      %v3411 = vsel %vm3261, %v3162, 0.0
      %v3412 = vadd.f32 %v3410, %v3411
      %v3413 = vsel %vm3261, %v3167, 0.0
      %v3414 = vadd.f32 %v3412, %v3413
      %v3415 = vsel %vm3261, %v3170, 0.0
      %v3416 = vadd.f32 %v3414, %v3415
      %v3417 = vsel %vm3261, %v3175, 0.0
      %v3418 = vadd.f32 %v3416, %v3417
      %v3419 = vsel %vm3261, %v3178, 0.0
      %v3420 = vadd.f32 %v3418, %v3419
      %v3421 = vsel %vm3261, %v3183, 0.0
      %v3422 = vadd.f32 %v3420, %v3421
      %v3423 = vsel %vm3261, %v3186, 0.0
      %v3424 = vadd.f32 %v3422, %v3423
      %v3425 = vsel %vm3261, %v3191, 0.0
      %v3426 = vadd.f32 %v3424, %v3425
      %v3427 = vsel %vm3261, %v3194, 0.0
      %v3428 = vadd.f32 %v3426, %v3427
      %v3429 = vsel %vm3261, %v3199, 0.0
      %v3430 = vadd.f32 %v3428, %v3429
      %v3431 = vsel %vm3261, %v3202, 0.0
      %v3432 = vadd.f32 %v3430, %v3431
      %v3433 = vsel %vm3261, %v3207, 0.0
      %v3434 = vadd.f32 %v3432, %v3433
      %v3435 = vsel %vm3261, %v3210, 0.0
      %v3436 = vadd.f32 %v3434, %v3435
      %v3437 = vsel %vm3261, %v3215, 0.0
      %v3438 = vadd.f32 %v3436, %v3437
      %v3439 = vsel %vm3261, %v3218, 0.0
      %v3440 = vadd.f32 %v3438, %v3439
      %v3441 = vsel %vm3261, %v3223, 0.0
      %v3442 = vadd.f32 %v3440, %v3441
      %v3443 = vsel %vm3261, %v3226, 0.0
      %v3444 = vadd.f32 %v3442, %v3443
      %v3445 = vsel %vm3261, %v3231, 0.0
      %v3446 = vadd.f32 %v3444, %v3445
      %v3447 = vsel %vm3261, %v3234, 0.0
      %v3448 = vadd.f32 %v3446, %v3447
      %v3449 = vsel %vm3261, %v3239, 0.0
      %v3450 = vadd.f32 %v3448, %v3449
      %v3451 = vsel %vm3261, %v3242, 0.0
      %v3452 = vadd.f32 %v3450, %v3451
      %v3453 = vsel %vm3261, %v3247, 0.0
      %v3454 = vadd.f32 %v3452, %v3453
      %v3455 = vsel %vm3261, %v3250, 0.0
      %v3456 = vadd.f32 %v3454, %v3455
      %v3457 = vsel %vm3261, %v3255, 0.0
      %v3458 = vadd.f32 %v3456, %v3457
      %v3459 = vsel %vm3261, %v3258, 0.0
      %v3460 = vadd.f32 %v3458, %v3459
      %v3461 = vrot.slane %v3460, 4
      %v3462 = vadd.f32 %v3460, %v3461
      %v3463 = vrot.slane %v3462, 2
      %v3464 = vadd.f32 %v3462, %v3463
      %v3465 = vrot.slane %v3464, 1
      %v3466 = vadd.f32 %v3464, %v3465
      %v3467 = vadd.f32 %v3333, %v3466
      %vm3468 = vcmask 253952
      %3469 = vst.msk [vmem:[%s3] sm:$0x1] %vm3468, %v3467
      %v3470 = vld [vmem:[%s4] sm:$0x1]
      %v3471 = vmul.f32 %v3007, %v3007
      %v3472 = vmul.f32 %v3010, %v3010
      %v3473 = vmul.f32 %v3015, %v3015
      %v3474 = vmul.f32 %v3018, %v3018
      %v3475 = vmul.f32 %v3023, %v3023
      %v3476 = vmul.f32 %v3026, %v3026
      %v3477 = vmul.f32 %v3031, %v3031
      %v3478 = vmul.f32 %v3034, %v3034
      %v3479 = vmul.f32 %v3039, %v3039
      %v3480 = vmul.f32 %v3042, %v3042
      %v3481 = vmul.f32 %v3047, %v3047
      %v3482 = vmul.f32 %v3050, %v3050
      %v3483 = vmul.f32 %v3055, %v3055
      %v3484 = vmul.f32 %v3058, %v3058
      %v3485 = vmul.f32 %v3063, %v3063
      %v3486 = vmul.f32 %v3066, %v3066
      %v3487 = vmul.f32 %v3071, %v3071
      %v3488 = vmul.f32 %v3074, %v3074
      %v3489 = vmul.f32 %v3079, %v3079
      %v3490 = vmul.f32 %v3082, %v3082
      %v3491 = vmul.f32 %v3087, %v3087
      %v3492 = vmul.f32 %v3090, %v3090
      %v3493 = vmul.f32 %v3095, %v3095
      %v3494 = vmul.f32 %v3098, %v3098
      %v3495 = vmul.f32 %v3103, %v3103
      %v3496 = vmul.f32 %v3106, %v3106
      %v3497 = vmul.f32 %v3111, %v3111
      %v3498 = vmul.f32 %v3114, %v3114
      %v3499 = vmul.f32 %v3119, %v3119
      %v3500 = vmul.f32 %v3122, %v3122
      %v3501 = vmul.f32 %v3127, %v3127
      %v3502 = vmul.f32 %v3130, %v3130
      %v3503 = vmul.f32 %v3135, %v3135
      %v3504 = vmul.f32 %v3138, %v3138
      %v3505 = vmul.f32 %v3143, %v3143
      %v3506 = vmul.f32 %v3146, %v3146
      %v3507 = vmul.f32 %v3151, %v3151
      %v3508 = vmul.f32 %v3154, %v3154
      %v3509 = vmul.f32 %v3159, %v3159
      %v3510 = vmul.f32 %v3162, %v3162
      %v3511 = vmul.f32 %v3167, %v3167
      %v3512 = vmul.f32 %v3170, %v3170
      %v3513 = vmul.f32 %v3175, %v3175
      %v3514 = vmul.f32 %v3178, %v3178
      %v3515 = vmul.f32 %v3183, %v3183
      %v3516 = vmul.f32 %v3186, %v3186
      %v3517 = vmul.f32 %v3191, %v3191
      %v3518 = vmul.f32 %v3194, %v3194
      %v3519 = vmul.f32 %v3199, %v3199
      %v3520 = vmul.f32 %v3202, %v3202
      %v3521 = vmul.f32 %v3207, %v3207
      %v3522 = vmul.f32 %v3210, %v3210
      %v3523 = vmul.f32 %v3215, %v3215
      %v3524 = vmul.f32 %v3218, %v3218
      %v3525 = vmul.f32 %v3223, %v3223
      %v3526 = vmul.f32 %v3226, %v3226
      %v3527 = vmul.f32 %v3231, %v3231
      %v3528 = vmul.f32 %v3234, %v3234
      %v3529 = vmul.f32 %v3239, %v3239
      %v3530 = vmul.f32 %v3242, %v3242
      %v3531 = vmul.f32 %v3247, %v3247
      %v3532 = vmul.f32 %v3250, %v3250
      %v3533 = vmul.f32 %v3255, %v3255
      %v3534 = vmul.f32 %v3258, %v3258
      %v3535 = vsel %vm3261, %v3471, 0.0
      %v3536 = vsel %vm3261, %v3472, 0.0
      %v3537 = vadd.f32 %v3535, %v3536
      %v3538 = vsel %vm3261, %v3473, 0.0
      %v3539 = vadd.f32 %v3537, %v3538
      %v3540 = vsel %vm3261, %v3474, 0.0
      %v3541 = vadd.f32 %v3539, %v3540
      %v3542 = vsel %vm3261, %v3475, 0.0
      %v3543 = vadd.f32 %v3541, %v3542
      %v3544 = vsel %vm3261, %v3476, 0.0
      %v3545 = vadd.f32 %v3543, %v3544
      %v3546 = vsel %vm3261, %v3477, 0.0
      %v3547 = vadd.f32 %v3545, %v3546
      %v3548 = vsel %vm3261, %v3478, 0.0
      %v3549 = vadd.f32 %v3547, %v3548
      %v3550 = vsel %vm3261, %v3479, 0.0
      %v3551 = vadd.f32 %v3549, %v3550
      %v3552 = vsel %vm3261, %v3480, 0.0
      %v3553 = vadd.f32 %v3551, %v3552
      %v3554 = vsel %vm3261, %v3481, 0.0
      %v3555 = vadd.f32 %v3553, %v3554
      %v3556 = vsel %vm3261, %v3482, 0.0
      %v3557 = vadd.f32 %v3555, %v3556
      %v3558 = vsel %vm3261, %v3483, 0.0
      %v3559 = vadd.f32 %v3557, %v3558
      %v3560 = vsel %vm3261, %v3484, 0.0
      %v3561 = vadd.f32 %v3559, %v3560
      %v3562 = vsel %vm3261, %v3485, 0.0
      %v3563 = vadd.f32 %v3561, %v3562
      %v3564 = vsel %vm3261, %v3486, 0.0
      %v3565 = vadd.f32 %v3563, %v3564
      %v3566 = vsel %vm3261, %v3487, 0.0
      %v3567 = vadd.f32 %v3565, %v3566
      %v3568 = vsel %vm3261, %v3488, 0.0
      %v3569 = vadd.f32 %v3567, %v3568
      %v3570 = vsel %vm3261, %v3489, 0.0
      %v3571 = vadd.f32 %v3569, %v3570
      %v3572 = vsel %vm3261, %v3490, 0.0
      %v3573 = vadd.f32 %v3571, %v3572
      %v3574 = vsel %vm3261, %v3491, 0.0
      %v3575 = vadd.f32 %v3573, %v3574
      %v3576 = vsel %vm3261, %v3492, 0.0
      %v3577 = vadd.f32 %v3575, %v3576
      %v3578 = vsel %vm3261, %v3493, 0.0
      %v3579 = vadd.f32 %v3577, %v3578
      %v3580 = vsel %vm3261, %v3494, 0.0
      %v3581 = vadd.f32 %v3579, %v3580
      %v3582 = vsel %vm3261, %v3495, 0.0
      %v3583 = vadd.f32 %v3581, %v3582
      %v3584 = vsel %vm3261, %v3496, 0.0
      %v3585 = vadd.f32 %v3583, %v3584
      %v3586 = vsel %vm3261, %v3497, 0.0
      %v3587 = vadd.f32 %v3585, %v3586
      %v3588 = vsel %vm3261, %v3498, 0.0
      %v3589 = vadd.f32 %v3587, %v3588
      %v3590 = vsel %vm3261, %v3499, 0.0
      %v3591 = vadd.f32 %v3589, %v3590
      %v3592 = vsel %vm3261, %v3500, 0.0
      %v3593 = vadd.f32 %v3591, %v3592
      %v3594 = vsel %vm3261, %v3501, 0.0
      %v3595 = vadd.f32 %v3593, %v3594
      %v3596 = vsel %vm3261, %v3502, 0.0
      %v3597 = vadd.f32 %v3595, %v3596
      %v3598 = vsel %vm3261, %v3503, 0.0
      %v3599 = vadd.f32 %v3597, %v3598
      %v3600 = vsel %vm3261, %v3504, 0.0
      %v3601 = vadd.f32 %v3599, %v3600
      %v3602 = vsel %vm3261, %v3505, 0.0
      %v3603 = vadd.f32 %v3601, %v3602
      %v3604 = vsel %vm3261, %v3506, 0.0
      %v3605 = vadd.f32 %v3603, %v3604
      %v3606 = vsel %vm3261, %v3507, 0.0
      %v3607 = vadd.f32 %v3605, %v3606
      %v3608 = vsel %vm3261, %v3508, 0.0
      %v3609 = vadd.f32 %v3607, %v3608
      %v3610 = vsel %vm3261, %v3509, 0.0
      %v3611 = vadd.f32 %v3609, %v3610
      %v3612 = vsel %vm3261, %v3510, 0.0
      %v3613 = vadd.f32 %v3611, %v3612
      %v3614 = vsel %vm3261, %v3511, 0.0
      %v3615 = vadd.f32 %v3613, %v3614
      %v3616 = vsel %vm3261, %v3512, 0.0
      %v3617 = vadd.f32 %v3615, %v3616
      %v3618 = vsel %vm3261, %v3513, 0.0
      %v3619 = vadd.f32 %v3617, %v3618
      %v3620 = vsel %vm3261, %v3514, 0.0
      %v3621 = vadd.f32 %v3619, %v3620
      %v3622 = vsel %vm3261, %v3515, 0.0
      %v3623 = vadd.f32 %v3621, %v3622
      %v3624 = vsel %vm3261, %v3516, 0.0
      %v3625 = vadd.f32 %v3623, %v3624
      %v3626 = vsel %vm3261, %v3517, 0.0
      %v3627 = vadd.f32 %v3625, %v3626
      %v3628 = vsel %vm3261, %v3518, 0.0
      %v3629 = vadd.f32 %v3627, %v3628
      %v3630 = vsel %vm3261, %v3519, 0.0
      %v3631 = vadd.f32 %v3629, %v3630
      %v3632 = vsel %vm3261, %v3520, 0.0
      %v3633 = vadd.f32 %v3631, %v3632
      %v3634 = vsel %vm3261, %v3521, 0.0
      %v3635 = vadd.f32 %v3633, %v3634
      %v3636 = vsel %vm3261, %v3522, 0.0
      %v3637 = vadd.f32 %v3635, %v3636
      %v3638 = vsel %vm3261, %v3523, 0.0
      %v3639 = vadd.f32 %v3637, %v3638
      %v3640 = vsel %vm3261, %v3524, 0.0
      %v3641 = vadd.f32 %v3639, %v3640
      %v3642 = vsel %vm3261, %v3525, 0.0
      %v3643 = vadd.f32 %v3641, %v3642
      %v3644 = vsel %vm3261, %v3526, 0.0
      %v3645 = vadd.f32 %v3643, %v3644
      %v3646 = vsel %vm3261, %v3527, 0.0
      %v3647 = vadd.f32 %v3645, %v3646
      %v3648 = vsel %vm3261, %v3528, 0.0
      %v3649 = vadd.f32 %v3647, %v3648
      %v3650 = vsel %vm3261, %v3529, 0.0
      %v3651 = vadd.f32 %v3649, %v3650
      %v3652 = vsel %vm3261, %v3530, 0.0
      %v3653 = vadd.f32 %v3651, %v3652
      %v3654 = vsel %vm3261, %v3531, 0.0
      %v3655 = vadd.f32 %v3653, %v3654
      %v3656 = vsel %vm3261, %v3532, 0.0
      %v3657 = vadd.f32 %v3655, %v3656
      %v3658 = vsel %vm3261, %v3533, 0.0
      %v3659 = vadd.f32 %v3657, %v3658
      %v3660 = vsel %vm3261, %v3534, 0.0
      %v3661 = vadd.f32 %v3659, %v3660
      %v3662 = vrot.slane %v3661, 4
      %v3663 = vadd.f32 %v3661, %v3662
      %v3664 = vrot.slane %v3663, 2
      %v3665 = vadd.f32 %v3663, %v3664
      %v3666 = vrot.slane %v3665, 1
      %v3667 = vadd.f32 %v3665, %v3666
      %v3668 = vadd.f32 %v3470, %v3667
      %3669 = vst.msk [vmem:[%s4] sm:$0x1] %vm3468, %v3668
      %s3670 = smul.u32 64, %s16
      %p3671 = scmp.lt.s32.totalorder %s3670, 127
      %s3672 = scalar_select %p3671, %s3670, 127
      %s3673 = smul.addr %s3672, 8
      %s3674 = scalar_lea.vmem %s2, %s3673
      // Predicated region
      $region33: #{unet_block_forward.6} parent=27 // pred_check
        %p3675 = pneg %p81
      $region34: #{unet_block_forward.6} parent=27 // pred_check_branch
        %3677 = sbr.rel (%p3675) target = $region36
      $region35: #{unet_block_forward.6} parent=27 // pred_region
        %s3678 = smul.u32 64, %s16
      $region36: #{unet_block_forward.6} parent=27 // pred_fallthru
        _
      // Predicated region
      $region37: #{unet_block_forward.6} parent=27 // pred_check
        %p3679 = pneg %p102
      $region38: #{unet_block_forward.6} parent=27 // pred_check_branch
        %3681 = sbr.rel (%p3679) target = $region40
      $region39: #{unet_block_forward.6} parent=27 // pred_region
        _
      $region40: #{unet_block_forward.6} parent=27 // pred_fallthru
        _
      // Predicated region
      $region41: #{unet_block_forward.6} parent=27 // pred_check
        %p3682 = pneg %p123
      $region42: #{unet_block_forward.6} parent=27 // pred_check_branch
        %3684 = sbr.rel (%p3682) target = $region44
      $region43: #{unet_block_forward.6} parent=27 // pred_region
        _
      $region44: #{unet_block_forward.6} parent=27 // pred_fallthru
        _
      // Predicated region
      $region45: #{unet_block_forward.6} parent=27 // pred_check
        %p3685 = pneg %p102
      $region46: #{unet_block_forward.6} parent=27 // pred_check_branch
        %3687 = sbr.rel (%p3685) target = $region48
      $region47: #{unet_block_forward.6} parent=27 // pred_region
        _
      $region48: #{unet_block_forward.6} parent=27 // pred_fallthru
        _
      // Predicated region
      $region49: #{unet_block_forward.6} parent=27 // pred_check
        %p3688 = pneg %p123
      $region50: #{unet_block_forward.6} parent=27 // pred_check_branch
        %3690 = sbr.rel (%p3688) target = $region52
      $region51: #{unet_block_forward.6} parent=27 // pred_region
        _
      $region52: #{unet_block_forward.6} parent=27 // pred_fallthru
        _
    $region28: #{unet_block_forward.6} parent=5 // pred_fallthru
      _
    %p3691 = scmp.le.s32.totalorder 2, %s11
    // Predicated region
    $region53: #{unet_block_forward.6} parent=5 // pred_check
      %p3692 = pneg %p3691
    $region54: #{unet_block_forward.6} parent=5 // pred_check_branch
      %3694 = sbr.rel (%p3692) target = $region56
    $region55: #{unet_block_forward.6} parent=5 // pred_region
      %s3695 = ssub.s32 %s11, 2
      // Predicated region
      $region57: #{unet_block_forward.6} parent=55 // pred_check
        %p3696 = pneg %p87
      $region58: #{unet_block_forward.6} parent=55 // pred_check_branch
        %3698 = sbr.rel (%p3696) target = $region60
      $region59: #{unet_block_forward.6} parent=55 // pred_region
        %s3699 = smul.u32 64, %s17
        %p3700 = scmp.lt.s32.totalorder %s3699, 127
        %s3701 = scalar_select %p3700, %s3699, 127
        %s3702 = smul.addr %s3701, 8
        %s3703 = scalar_lea.vmem %s2, %s3702
      $region60: #{unet_block_forward.6} parent=55 // pred_fallthru
        _
    $region56: #{unet_block_forward.6} parent=5 // pred_fallthru
      _
  $region6: #{unet_block_forward.6} parent=0 // loop_footer
    %s15 = sadd.s32 1, %s11
  $region7: #{unet_block_forward.6} parent=0 // loop_footer_branch
    %10 = sbr.rel target = $region3
  $region8: #{unet_block_forward.6} parent=0 // loop_exit
    _

</llo_original>
